<compile_context>
chip_gen: v7x
topology: tpu7x:2x2x1
jax: 0.10.0
libtpu: 0.0.40
codegen_flags: <defaults>
</compile_context>

<pallas_src>
import functools

import jax
import jax.numpy as jnp
from jax.experimental import pallas as pl
from jax.experimental.pallas import tpu as pltpu

# ----------------------------- model sizes -----------------------------------
VOCAB = 50
EMBED = 16
HIDDEN = 32
CATEGORIES = 4
K = 40              # jump head has K + 1 = 41 outputs
R_TRAIN = 20
N_TRAIN = 5

B_PAD = 8           # fp32 sublane count: pad batch rows to 8
HEAD_PAD = 128      # lane-dense head outputs (jump / baseline / classifier)
NEG_BIG = -1e30     # effectively -inf logits for padded softmax columns


def _vmem():
    return pl.BlockSpec(memory_space=pltpu.MemorySpace.VMEM)


# ----------------------------- Pallas kernels --------------------------------
def _fused_outer_kernel(embs_ref, exec_ref, cap_ref, h_ref, c_ref, hcap_ref,
                        wg_ref, bg_ref, wj_ref, bj_ref, wb_ref, bb_ref,
                        h_out, c_out, hcap_out, jlp_out, base_out):
    """One outer LSTMJump iteration: R inner steps + extra step + both heads."""
    H = h_ref.shape[-1]
    n_steps = embs_ref.shape[0]               # R + 1 (static)

    wg = wg_ref[...]                          # (E+H, 4H)  stacked LSTM weight
    bg = bg_ref[...]                          # (1, 4H)

    h = h_ref[...]
    c = c_ref[...]
    hcap = hcap_ref[...]

    # Statically unrolled time loop: everything stays in registers / VMEM.
    for s in range(n_steps):
        x = embs_ref[s]                       # (B_PAD, E)   pre-gathered embedding
        e = exec_ref[s]                       # (B_PAD, 1)   1.0 -> this slot executes
        cp = cap_ref[s]                       # (B_PAD, 1)   1.0 -> capture hidden here
        # hidden capture happens BEFORE the cell update (PyTorch order)
        hcap = jnp.where(cp > 0.0, h, hcap)
        # fused cell: single MXU dot on [x, h] against the stacked weight
        xh = jnp.concatenate([x, h], axis=-1)                        # (B_PAD, E+H)
        g = jnp.dot(xh, wg, preferred_element_type=jnp.float32) + bg  # (B_PAD, 4H)
        i_g = jax.nn.sigmoid(g[:, 0:H])
        f_g = jax.nn.sigmoid(g[:, H:2 * H])
        g_g = jnp.tanh(g[:, 2 * H:3 * H])
        o_g = jax.nn.sigmoid(g[:, 3 * H:4 * H])
        c_new = f_g * c + i_g * g_g
        h_new = o_g * jnp.tanh(c_new)
        h = jnp.where(e > 0.0, h_new, h)
        c = jnp.where(e > 0.0, c_new, c)

    h_out[...] = h
    c_out[...] = c
    hcap_out[...] = hcap

    # ---- epilogue: jump head (log-softmax) + baseline head, lane-dense ----
    jl = (jnp.dot(h, wj_ref[...], preferred_element_type=jnp.float32)
          + bj_ref[...])                                             # (B_PAD, 128)
    m = jnp.max(jl, axis=-1, keepdims=True)
    sh = jl - m
    jlp_out[...] = sh - jnp.log(jnp.sum(jnp.exp(sh), axis=-1, keepdims=True))
    base_out[...] = (jnp.dot(h, wb_ref[...], preferred_element_type=jnp.float32)
                     + bb_ref[...])                                  # (B_PAD, 128)


def _linear_logsoftmax_kernel(x_ref, w_ref, b_ref, o_ref):
    logits = (jnp.dot(x_ref[...], w_ref[...],
                      preferred_element_type=jnp.float32) + b_ref[...])
    m = jnp.max(logits, axis=-1, keepdims=True)
    s = logits - m
    o_ref[...] = s - jnp.log(jnp.sum(jnp.exp(s), axis=-1, keepdims=True))


# ----------------------------- kernel wrappers --------------------------------
def _fused_outer(step_embs, exec_m, cap_m, h, c, hcap, wg, bg, wj, bj, wb, bb):
    bp, hd = h.shape
    wout = wj.shape[1]
    shp = jax.ShapeDtypeStruct
    return pl.pallas_call(
        _fused_outer_kernel,
        in_specs=[_vmem() for _ in range(12)],
        out_specs=tuple(_vmem() for _ in range(5)),
        out_shape=(shp((bp, hd), jnp.float32), shp((bp, hd), jnp.float32),
                   shp((bp, hd), jnp.float32), shp((bp, wout), jnp.float32),
                   shp((bp, wout), jnp.float32)),
    )(step_embs, exec_m, cap_m, h, c, hcap, wg, bg, wj, bj, wb, bb)


def _linear_logsoftmax(x, w, b):
    bp = x.shape[0]
    wout = w.shape[1]
    return pl.pallas_call(
        _linear_logsoftmax_kernel,
        in_specs=[_vmem() for _ in range(3)],
        out_specs=_vmem(),
        out_shape=jax.ShapeDtypeStruct((bp, wout), jnp.float32),
    )(x, w, b)


# ----------------------------- parameters -------------------------------------
def init_params(key):
    ks = jax.random.split(key, 11)
    s = 1.0 / (HIDDEN ** 0.5)

    def u(k, shape):
        return jax.random.uniform(k, shape, jnp.float32, -s, s)

    return {
        "embed": jax.random.normal(ks[0], (VOCAB, EMBED), jnp.float32),
        # nn.LSTM layer-0 weights, PyTorch layout (4H, in), gate order i,f,g,o
        "w_ih": u(ks[1], (4 * HIDDEN, EMBED)),
        "w_hh": u(ks[2], (4 * HIDDEN, HIDDEN)),
        "b_ih": u(ks[3], (4 * HIDDEN,)),
        "b_hh": u(ks[4], (4 * HIDDEN,)),
        # nn.Linear layouts (out, in)
        "w_out": u(ks[5], (CATEGORIES, HIDDEN)),
        "b_out": u(ks[6], (CATEGORIES,)),
        "w_jump": u(ks[7], (K + 1, HIDDEN)),
        "b_jump": u(ks[8], (K + 1,)),
        "w_base": u(ks[9], (1, HIDDEN)),
        "b_base": u(ks[10], (1,)),
    }


# ----------------------------- LSTMJump.forward --------------------------------
@functools.partial(jax.jit, static_argnames=("R", "N", "dropout_p"))
def _lstm_jump_forward_impl(params, xs, t, rng, R, N, dropout_p):
    L, B = xs.shape                      # (max_length, batch_size), time-major
    H = HIDDEN

    # ---- pre-pack weights: stacked LSTM weight + lane-padded heads ----
    w_gate = jnp.concatenate([params["w_ih"].T, params["w_hh"].T], axis=0)  # (E+H, 4H)
    b_gate = (params["b_ih"] + params["b_hh"])[None, :]                     # (1, 4H)

    w_jump = jnp.zeros((H, HEAD_PAD), jnp.float32).at[:, :K + 1].set(params["w_jump"].T)
    b_jump = jnp.full((1, HEAD_PAD), NEG_BIG, jnp.float32).at[0, :K + 1].set(params["b_jump"])
    w_base = jnp.zeros((H, HEAD_PAD), jnp.float32).at[:, :1].set(params["w_base"].T)
    b_base = jnp.zeros((1, HEAD_PAD), jnp.float32).at[0, :1].set(params["b_base"])
    w_out = jnp.zeros((H, HEAD_PAD), jnp.float32).at[:, :CATEGORIES].set(params["w_out"].T)
    b_out = jnp.full((1, HEAD_PAD), NEG_BIG, jnp.float32).at[0, :CATEGORIES].set(params["b_out"])

    # ---- embedding + dropout(p=0.1) (functional.dropout defaults to training) ----
    embs = params["embed"][xs]                                     # (T, B, E)
    rng, dkey = jax.random.split(rng)
    keep = jax.random.bernoulli(dkey, 1.0 - dropout_p, embs.shape)
    embs = jnp.where(keep, embs / (1.0 - dropout_p), 0.0)

    # ---- recurrent state (batch padded to B_PAD sublanes) ----
    h = jnp.zeros((B_PAD, H), jnp.float32)
    c = jnp.zeros((B_PAD, H), jnp.float32)
    hcap = jnp.zeros((B_PAD, H), jnp.float32)          # captured hiddens
    has_cap = jnp.zeros((B,), bool)

    rows = jnp.zeros((B,), jnp.int32)
    cols = jnp.arange(B, dtype=jnp.int32)
    outer_active = jnp.asarray(True)                   # "outer loop not broken yet"

    s_idx = jnp.arange(R + 1, dtype=jnp.int32)
    log_probs, baselines, masks, valids = [], [], [], []

    for _ in range(N):
        # Closed-form schedule of the R inner steps + the extra step.
        # Inside the inner loop rows evolve as r_s = min(r0 + s, L), so gather
        # rows / feed_previous / the break step are pure functions of r0.
        n_inner = jnp.minimum(R, jnp.maximum(1, L - jnp.min(rows))).astype(jnp.int32)
        slot_off = jnp.where(s_idx < R, s_idx, n_inner)            # (R+1,)
        rows_at = rows[None, :] + slot_off[:, None]                # (R+1, B)
        fp = rows_at >= L                                          # feed_previous per slot
        row_read = jnp.minimum(rows_at, L - 1)                     # gather rows per slot
        exec_s = jnp.where(s_idx < R, s_idx < n_inner, True) & outer_active   # (R+1,)
        cap_s = fp & exec_s[:, None]                               # (R+1, B)

        # one batched gather for all R+1 slots, then pad batch to B_PAD
        step_embs = embs[row_read, cols[None, :], :]               # (R+1, B, E)
        step_embs_p = jnp.zeros((R + 1, B_PAD, EMBED), jnp.float32
                                ).at[:, :B, :].set(step_embs)
        exec_p = jnp.broadcast_to(
            exec_s.astype(jnp.float32)[:, None, None], (R + 1, B_PAD, 1))
        cap_p = jnp.zeros((R + 1, B_PAD, 1), jnp.float32
                          ).at[:, :B, :].set(cap_s.astype(jnp.float32)[..., None])

        h, c, hcap, jlp_pad, base_pad = _fused_outer(
            step_embs_p, exec_p, cap_p, h, c, hcap,
            w_gate, b_gate, w_jump, b_jump, w_base, b_base)

        # jump sampling + REINFORCE bookkeeping (jitted JAX, no host syncs)
        jump_logp = jlp_pad[:B, :K + 1]                            # (B, K+1)
        rng, skey = jax.random.split(rng)
        jump = jax.random.categorical(skey, jump_logp, axis=-1).astype(jnp.int32)
        log_probs.append(jump_logp[cols, jump])                    # (B,)
        baselines.append(base_pad[:B, 0])                          # (B,)
        masks.append(fp[R])                        # feed_previous at the extra step
        valids.append(outer_active)                # did this outer iteration run?

        has_cap = has_cap | jnp.any(cap_s, axis=0)

        rows_extra = row_read[R]                   # rows after clamping at extra step
        rows_new = jnp.where(jump == 0, L, rows_extra + jump)
        rows = jnp.where(outer_active, rows_new, rows)
        outer_active = outer_active & jnp.logical_not(jnp.all(rows >= L))

    # ---- final classifier on captured (or final) hiddens ----
    h_cls = jnp.where(has_cap[:, None], hcap[:B], h[:B])           # (B, H)
    h_cls_p = jnp.zeros((B_PAD, H), jnp.float32).at[:B].set(h_cls)
    y = _linear_logsoftmax(h_cls_p, w_out, b_out)[:B, :CATEGORIES]  # (B, categories)

    log_prob = jnp.stack(log_probs, axis=1)                        # (B, N)
    baseline = jnp.stack(baselines, axis=1)                        # (B, N)
    mask = jnp.stack(masks, axis=1)                                # (B, N) bool
    valid = jnp.stack(valids)                                      # (N,)  bool

    # reward in {+1, -1}
    pred = jnp.argmax(y, axis=1)
    correct = (pred == t).astype(jnp.float32)
    reward = jnp.broadcast_to(jnp.where(correct == 0.0, -1.0, correct)[:, None],
                              baseline.shape)

    # masked_fill_(mask, 0); also zero out outer iterations that never executed
    kill = mask | ~valid[None, :]
    log_prob = jnp.where(kill, 0.0, log_prob)
    baseline = jnp.where(kill, 0.0, baseline)
    reward = jnp.where(kill, 0.0, reward)

    n_valid = jnp.sum(valid.astype(jnp.float32))   # == n_jumps appended in PyTorch
    nll = -jnp.mean(y[cols, t])                                    # NLLLoss (mean)
    reinforce = -jnp.sum((reward - baseline) * log_prob) / (B * n_valid)
    mse = jnp.sum((baseline - reward) ** 2)        # MSELoss(size_average=False)
    return nll + reinforce + mse


def lstm_jump_forward(params, xs, lengths, t, *, R=R_TRAIN, N=N_TRAIN,
                      dropout_p=0.1, rng=None):
    """Training-mode forward of LSTMJump; returns the scalar loss."""
    del lengths  # not used by LSTMJump.forward (same as the PyTorch reference)
    if rng is None:
        # TODO(synk): fixed key when rng is omitted -> identical dropout/sampling per call.
        rng = jax.random.PRNGKey(1)
    return _lstm_jump_forward_impl(params, xs, t, rng, R, N, dropout_p)


# ----------------------------- main --------------------------------------------
if __name__ == "__main__":
    key = jax.random.PRNGKey(0)
    pkey, xkey, tkey, fkey = jax.random.split(key, 4)

    params = init_params(pkey)

    T_LEN, B = 24, 2   # time-major (max_length, batch) like PyTorch xs.size()
    xs = jax.random.randint(xkey, (T_LEN, B), 0, VOCAB, dtype=jnp.int32)
    lengths = jnp.full((B,), T_LEN, dtype=jnp.int32)            # unused by forward
    t = jax.random.randint(tkey, (B,), 0, CATEGORIES, dtype=jnp.int32)

    loss = lstm_jump_forward(params, xs, lengths, t, rng=fkey)
    jax.block_until_ready(loss)
    print("KERNEL_OK")
</pallas_src>

<mosaic_0001>
module attributes {stable_mosaic.version = 11 : i64} {
  func.func @_fused_outer_kernel(%arg0: memref<21x8x16xf32, #tpu.memory_space<vmem>>, %arg1: memref<21x8x1xf32, #tpu.memory_space<vmem>>, %arg2: memref<21x8x1xf32, #tpu.memory_space<vmem>>, %arg3: memref<8x32xf32, #tpu.memory_space<vmem>>, %arg4: memref<8x32xf32, #tpu.memory_space<vmem>>, %arg5: memref<8x32xf32, #tpu.memory_space<vmem>>, %arg6: memref<48x128xf32, #tpu.memory_space<vmem>>, %arg7: memref<1x128xf32, #tpu.memory_space<vmem>>, %arg8: memref<32x128xf32, #tpu.memory_space<vmem>>, %arg9: memref<1x128xf32, #tpu.memory_space<vmem>>, %arg10: memref<32x128xf32, #tpu.memory_space<vmem>>, %arg11: memref<1x128xf32, #tpu.memory_space<vmem>>, %arg12: memref<8x32xf32, #tpu.memory_space<vmem>>, %arg13: memref<8x32xf32, #tpu.memory_space<vmem>>, %arg14: memref<8x32xf32, #tpu.memory_space<vmem>>, %arg15: memref<8x128xf32, #tpu.memory_space<vmem>>, %arg16: memref<8x128xf32, #tpu.memory_space<vmem>>) attributes {dimension_semantics = [], scalar_prefetch = 0 : i64, scratch_operands = 0 : i64, tpu.core_type = #tpu.core_type<tc>} {
    %c0 = arith.constant 0 : index
    %c0_0 = arith.constant 0 : index
    %0 = vector.load %arg6[%c0, %c0_0] : memref<48x128xf32, #tpu.memory_space<vmem>>, vector<48x128xf32>
    %c0_1 = arith.constant 0 : index
    %c0_2 = arith.constant 0 : index
    %1 = vector.load %arg7[%c0_1, %c0_2] : memref<1x128xf32, #tpu.memory_space<vmem>>, vector<1x128xf32>
    %c0_3 = arith.constant 0 : index
    %c0_4 = arith.constant 0 : index
    %2 = vector.load %arg3[%c0_3, %c0_4] : memref<8x32xf32, #tpu.memory_space<vmem>>, vector<8x32xf32>
    %c0_5 = arith.constant 0 : index
    %c0_6 = arith.constant 0 : index
    %3 = vector.load %arg4[%c0_5, %c0_6] : memref<8x32xf32, #tpu.memory_space<vmem>>, vector<8x32xf32>
    %c0_7 = arith.constant 0 : index
    %c0_8 = arith.constant 0 : index
    %4 = vector.load %arg5[%c0_7, %c0_8] : memref<8x32xf32, #tpu.memory_space<vmem>>, vector<8x32xf32>
    %c0_9 = arith.constant 0 : index
    %c0_10 = arith.constant 0 : index
    %c0_11 = arith.constant 0 : index
    %5 = vector.load %arg0[%c0_9, %c0_10, %c0_11] : memref<21x8x16xf32, #tpu.memory_space<vmem>>, vector<1x8x16xf32>
    %6 = vector.shape_cast %5 : vector<1x8x16xf32> to vector<8x16xf32>
    %c0_12 = arith.constant 0 : index
    %c0_13 = arith.constant 0 : index
    %c0_14 = arith.constant 0 : index
    %7 = vector.load %arg1[%c0_12, %c0_13, %c0_14] : memref<21x8x1xf32, #tpu.memory_space<vmem>>, vector<1x8x1xf32>
    %8 = vector.shape_cast %7 : vector<1x8x1xf32> to vector<8x1xf32>
    %c0_15 = arith.constant 0 : index
    %c0_16 = arith.constant 0 : index
    %c0_17 = arith.constant 0 : index
    %9 = vector.load %arg2[%c0_15, %c0_16, %c0_17] : memref<21x8x1xf32, #tpu.memory_space<vmem>>, vector<1x8x1xf32>
    %10 = vector.shape_cast %9 : vector<1x8x1xf32> to vector<8x1xf32>
    %cst = arith.constant 0.000000e+00 : f32
    %11 = vector.broadcast %cst : f32 to vector<8x1xf32>
    %12 = arith.cmpf ogt, %10, %11 : vector<8x1xf32>
    %13 = vector.shape_cast %12 : vector<8x1xi1> to vector<8x1xi1>
    %14 = vector.broadcast %13 : vector<8x1xi1> to vector<8x32xi1>
    %15 = arith.select %14, %2, %4 : vector<8x32xi1>, vector<8x32xf32>
    %16 = tpu.concatenate %6, %2 in 1 : vector<8x16xf32>, vector<8x32xf32> -> vector<8x48xf32>
    %cst_18 = arith.constant dense<0.000000e+00> : vector<8x128xf32>
    %17 = tpu.matmul %16, %0, %cst_18 {dimension_numbers = #tpu.dot_dimension_numbers<[1], [0], [0], [1], [0, 0, 1, 1], [], []>} : vector<8x48xf32>, vector<48x128xf32>, vector<8x128xf32> -> vector<8x128xf32>
    %18 = vector.broadcast %1 : vector<1x128xf32> to vector<8x128xf32>
    %19 = arith.addf %17, %18 : vector<8x128xf32>
    %20 = vector.extract_strided_slice %19 {offsets = [0, 0], sizes = [8, 32], strides = [1, 1]} : vector<8x128xf32> to vector<8x32xf32>
    %21 = arith.negf %20 : vector<8x32xf32>
    %22 = math.exp %21 : vector<8x32xf32>
    %cst_19 = arith.constant 1.000000e+00 : f32
    %23 = vector.broadcast %cst_19 : f32 to vector<8x32xf32>
    %24 = arith.addf %23, %22 : vector<8x32xf32>
    %25 = arith.divf %23, %24 : vector<8x32xf32>
    %26 = vector.extract_strided_slice %19 {offsets = [0, 32], sizes = [8, 32], strides = [1, 1]} : vector<8x128xf32> to vector<8x32xf32>
    %27 = arith.negf %26 : vector<8x32xf32>
    %28 = math.exp %27 : vector<8x32xf32>
    %cst_20 = arith.constant 1.000000e+00 : f32
    %29 = vector.broadcast %cst_20 : f32 to vector<8x32xf32>
    %30 = arith.addf %29, %28 : vector<8x32xf32>
    %31 = arith.divf %29, %30 : vector<8x32xf32>
    %32 = vector.extract_strided_slice %19 {offsets = [0, 64], sizes = [8, 32], strides = [1, 1]} : vector<8x128xf32> to vector<8x32xf32>
    %33 = math.tanh %32 : vector<8x32xf32>
    %34 = vector.extract_strided_slice %19 {offsets = [0, 96], sizes = [8, 32], strides = [1, 1]} : vector<8x128xf32> to vector<8x32xf32>
    %35 = arith.negf %34 : vector<8x32xf32>
    %36 = math.exp %35 : vector<8x32xf32>
    %cst_21 = arith.constant 1.000000e+00 : f32
    %37 = vector.broadcast %cst_21 : f32 to vector<8x32xf32>
    %38 = arith.addf %37, %36 : vector<8x32xf32>
    %39 = arith.divf %37, %38 : vector<8x32xf32>
    %40 = arith.mulf %31, %3 : vector<8x32xf32>
    %41 = arith.mulf %25, %33 : vector<8x32xf32>
    %42 = arith.addf %40, %41 : vector<8x32xf32>
    %43 = math.tanh %42 : vector<8x32xf32>
    %44 = arith.mulf %39, %43 : vector<8x32xf32>
    %cst_22 = arith.constant 0.000000e+00 : f32
    %45 = vector.broadcast %cst_22 : f32 to vector<8x1xf32>
    %46 = arith.cmpf ogt, %8, %45 : vector<8x1xf32>
    %47 = vector.shape_cast %46 : vector<8x1xi1> to vector<8x1xi1>
    %48 = vector.broadcast %47 : vector<8x1xi1> to vector<8x32xi1>
    %49 = arith.select %48, %44, %2 : vector<8x32xi1>, vector<8x32xf32>
    %cst_23 = arith.constant 0.000000e+00 : f32
    %50 = vector.broadcast %cst_23 : f32 to vector<8x1xf32>
    %51 = arith.cmpf ogt, %8, %50 : vector<8x1xf32>
    %52 = vector.shape_cast %51 : vector<8x1xi1> to vector<8x1xi1>
    %53 = vector.broadcast %52 : vector<8x1xi1> to vector<8x32xi1>
    %54 = arith.select %53, %42, %3 : vector<8x32xi1>, vector<8x32xf32>
    %c1 = arith.constant 1 : index
    %c0_24 = arith.constant 0 : index
    %c0_25 = arith.constant 0 : index
    %55 = vector.load %arg0[%c1, %c0_24, %c0_25] : memref<21x8x16xf32, #tpu.memory_space<vmem>>, vector<1x8x16xf32>
    %56 = vector.shape_cast %55 : vector<1x8x16xf32> to vector<8x16xf32>
    %c1_26 = arith.constant 1 : index
    %c0_27 = arith.constant 0 : index
    %c0_28 = arith.constant 0 : index
    %57 = vector.load %arg1[%c1_26, %c0_27, %c0_28] : memref<21x8x1xf32, #tpu.memory_space<vmem>>, vector<1x8x1xf32>
    %58 = vector.shape_cast %57 : vector<1x8x1xf32> to vector<8x1xf32>
    %c1_29 = arith.constant 1 : index
    %c0_30 = arith.constant 0 : index
    %c0_31 = arith.constant 0 : index
    %59 = vector.load %arg2[%c1_29, %c0_30, %c0_31] : memref<21x8x1xf32, #tpu.memory_space<vmem>>, vector<1x8x1xf32>
    %60 = vector.shape_cast %59 : vector<1x8x1xf32> to vector<8x1xf32>
    %cst_32 = arith.constant 0.000000e+00 : f32
    %61 = vector.broadcast %cst_32 : f32 to vector<8x1xf32>
    %62 = arith.cmpf ogt, %60, %61 : vector<8x1xf32>
    %63 = vector.shape_cast %62 : vector<8x1xi1> to vector<8x1xi1>
    %64 = vector.broadcast %63 : vector<8x1xi1> to vector<8x32xi1>
    %65 = arith.select %64, %49, %15 : vector<8x32xi1>, vector<8x32xf32>
    %66 = tpu.concatenate %56, %49 in 1 : vector<8x16xf32>, vector<8x32xf32> -> vector<8x48xf32>
    %cst_33 = arith.constant dense<0.000000e+00> : vector<8x128xf32>
    %67 = tpu.matmul %66, %0, %cst_33 {dimension_numbers = #tpu.dot_dimension_numbers<[1], [0], [0], [1], [0, 0, 1, 1], [], []>} : vector<8x48xf32>, vector<48x128xf32>, vector<8x128xf32> -> vector<8x128xf32>
    %68 = vector.broadcast %1 : vector<1x128xf32> to vector<8x128xf32>
    %69 = arith.addf %67, %68 : vector<8x128xf32>
    %70 = vector.extract_strided_slice %69 {offsets = [0, 0], sizes = [8, 32], strides = [1, 1]} : vector<8x128xf32> to vector<8x32xf32>
    %71 = arith.negf %70 : vector<8x32xf32>
    %72 = math.exp %71 : vector<8x32xf32>
    %cst_34 = arith.constant 1.000000e+00 : f32
    %73 = vector.broadcast %cst_34 : f32 to vector<8x32xf32>
    %74 = arith.addf %73, %72 : vector<8x32xf32>
    %75 = arith.divf %73, %74 : vector<8x32xf32>
    %76 = vector.extract_strided_slice %69 {offsets = [0, 32], sizes = [8, 32], strides = [1, 1]} : vector<8x128xf32> to vector<8x32xf32>
    %77 = arith.negf %76 : vector<8x32xf32>
    %78 = math.exp %77 : vector<8x32xf32>
    %cst_35 = arith.constant 1.000000e+00 : f32
    %79 = vector.broadcast %cst_35 : f32 to vector<8x32xf32>
    %80 = arith.addf %79, %78 : vector<8x32xf32>
    %81 = arith.divf %79, %80 : vector<8x32xf32>
    %82 = vector.extract_strided_slice %69 {offsets = [0, 64], sizes = [8, 32], strides = [1, 1]} : vector<8x128xf32> to vector<8x32xf32>
    %83 = math.tanh %82 : vector<8x32xf32>
    %84 = vector.extract_strided_slice %69 {offsets = [0, 96], sizes = [8, 32], strides = [1, 1]} : vector<8x128xf32> to vector<8x32xf32>
    %85 = arith.negf %84 : vector<8x32xf32>
    %86 = math.exp %85 : vector<8x32xf32>
    %cst_36 = arith.constant 1.000000e+00 : f32
    %87 = vector.broadcast %cst_36 : f32 to vector<8x32xf32>
    %88 = arith.addf %87, %86 : vector<8x32xf32>
    %89 = arith.divf %87, %88 : vector<8x32xf32>
    %90 = arith.mulf %81, %54 : vector<8x32xf32>
    %91 = arith.mulf %75, %83 : vector<8x32xf32>
    %92 = arith.addf %90, %91 : vector<8x32xf32>
    %93 = math.tanh %92 : vector<8x32xf32>
    %94 = arith.mulf %89, %93 : vector<8x32xf32>
    %cst_37 = arith.constant 0.000000e+00 : f32
    %95 = vector.broadcast %cst_37 : f32 to vector<8x1xf32>
    %96 = arith.cmpf ogt, %58, %95 : vector<8x1xf32>
    %97 = vector.shape_cast %96 : vector<8x1xi1> to vector<8x1xi1>
    %98 = vector.broadcast %97 : vector<8x1xi1> to vector<8x32xi1>
    %99 = arith.select %98, %94, %49 : vector<8x32xi1>, vector<8x32xf32>
    %cst_38 = arith.constant 0.000000e+00 : f32
    %100 = vector.broadcast %cst_38 : f32 to vector<8x1xf32>
    %101 = arith.cmpf ogt, %58, %100 : vector<8x1xf32>
    %102 = vector.shape_cast %101 : vector<8x1xi1> to vector<8x1xi1>
    %103 = vector.broadcast %102 : vector<8x1xi1> to vector<8x32xi1>
    %104 = arith.select %103, %92, %54 : vector<8x32xi1>, vector<8x32xf32>
    %c2 = arith.constant 2 : index
    %c0_39 = arith.constant 0 : index
    %c0_40 = arith.constant 0 : index
    %105 = vector.load %arg0[%c2, %c0_39, %c0_40] : memref<21x8x16xf32, #tpu.memory_space<vmem>>, vector<1x8x16xf32>
    %106 = vector.shape_cast %105 : vector<1x8x16xf32> to vector<8x16xf32>
    %c2_41 = arith.constant 2 : index
    %c0_42 = arith.constant 0 : index
    %c0_43 = arith.constant 0 : index
    %107 = vector.load %arg1[%c2_41, %c0_42, %c0_43] : memref<21x8x1xf32, #tpu.memory_space<vmem>>, vector<1x8x1xf32>
    %108 = vector.shape_cast %107 : vector<1x8x1xf32> to vector<8x1xf32>
    %c2_44 = arith.constant 2 : index
    %c0_45 = arith.constant 0 : index
    %c0_46 = arith.constant 0 : index
    %109 = vector.load %arg2[%c2_44, %c0_45, %c0_46] : memref<21x8x1xf32, #tpu.memory_space<vmem>>, vector<1x8x1xf32>
    %110 = vector.shape_cast %109 : vector<1x8x1xf32> to vector<8x1xf32>
    %cst_47 = arith.constant 0.000000e+00 : f32
    %111 = vector.broadcast %cst_47 : f32 to vector<8x1xf32>
    %112 = arith.cmpf ogt, %110, %111 : vector<8x1xf32>
    %113 = vector.shape_cast %112 : vector<8x1xi1> to vector<8x1xi1>
    %114 = vector.broadcast %113 : vector<8x1xi1> to vector<8x32xi1>
    %115 = arith.select %114, %99, %65 : vector<8x32xi1>, vector<8x32xf32>
    %116 = tpu.concatenate %106, %99 in 1 : vector<8x16xf32>, vector<8x32xf32> -> vector<8x48xf32>
    %cst_48 = arith.constant dense<0.000000e+00> : vector<8x128xf32>
    %117 = tpu.matmul %116, %0, %cst_48 {dimension_numbers = #tpu.dot_dimension_numbers<[1], [0], [0], [1], [0, 0, 1, 1], [], []>} : vector<8x48xf32>, vector<48x128xf32>, vector<8x128xf32> -> vector<8x128xf32>
    %118 = vector.broadcast %1 : vector<1x128xf32> to vector<8x128xf32>
    %119 = arith.addf %117, %118 : vector<8x128xf32>
    %120 = vector.extract_strided_slice %119 {offsets = [0, 0], sizes = [8, 32], strides = [1, 1]} : vector<8x128xf32> to vector<8x32xf32>
    %121 = arith.negf %120 : vector<8x32xf32>
    %122 = math.exp %121 : vector<8x32xf32>
    %cst_49 = arith.constant 1.000000e+00 : f32
    %123 = vector.broadcast %cst_49 : f32 to vector<8x32xf32>
    %124 = arith.addf %123, %122 : vector<8x32xf32>
    %125 = arith.divf %123, %124 : vector<8x32xf32>
    %126 = vector.extract_strided_slice %119 {offsets = [0, 32], sizes = [8, 32], strides = [1, 1]} : vector<8x128xf32> to vector<8x32xf32>
    %127 = arith.negf %126 : vector<8x32xf32>
    %128 = math.exp %127 : vector<8x32xf32>
    %cst_50 = arith.constant 1.000000e+00 : f32
    %129 = vector.broadcast %cst_50 : f32 to vector<8x32xf32>
    %130 = arith.addf %129, %128 : vector<8x32xf32>
    %131 = arith.divf %129, %130 : vector<8x32xf32>
    %132 = vector.extract_strided_slice %119 {offsets = [0, 64], sizes = [8, 32], strides = [1, 1]} : vector<8x128xf32> to vector<8x32xf32>
    %133 = math.tanh %132 : vector<8x32xf32>
    %134 = vector.extract_strided_slice %119 {offsets = [0, 96], sizes = [8, 32], strides = [1, 1]} : vector<8x128xf32> to vector<8x32xf32>
    %135 = arith.negf %134 : vector<8x32xf32>
    %136 = math.exp %135 : vector<8x32xf32>
    %cst_51 = arith.constant 1.000000e+00 : f32
    %137 = vector.broadcast %cst_51 : f32 to vector<8x32xf32>
    %138 = arith.addf %137, %136 : vector<8x32xf32>
    %139 = arith.divf %137, %138 : vector<8x32xf32>
    %140 = arith.mulf %131, %104 : vector<8x32xf32>
    %141 = arith.mulf %125, %133 : vector<8x32xf32>
    %142 = arith.addf %140, %141 : vector<8x32xf32>
    %143 = math.tanh %142 : vector<8x32xf32>
    %144 = arith.mulf %139, %143 : vector<8x32xf32>
    %cst_52 = arith.constant 0.000000e+00 : f32
    %145 = vector.broadcast %cst_52 : f32 to vector<8x1xf32>
    %146 = arith.cmpf ogt, %108, %145 : vector<8x1xf32>
    %147 = vector.shape_cast %146 : vector<8x1xi1> to vector<8x1xi1>
    %148 = vector.broadcast %147 : vector<8x1xi1> to vector<8x32xi1>
    %149 = arith.select %148, %144, %99 : vector<8x32xi1>, vector<8x32xf32>
    %cst_53 = arith.constant 0.000000e+00 : f32
    %150 = vector.broadcast %cst_53 : f32 to vector<8x1xf32>
    %151 = arith.cmpf ogt, %108, %150 : vector<8x1xf32>
    %152 = vector.shape_cast %151 : vector<8x1xi1> to vector<8x1xi1>
    %153 = vector.broadcast %152 : vector<8x1xi1> to vector<8x32xi1>
    %154 = arith.select %153, %142, %104 : vector<8x32xi1>, vector<8x32xf32>
    %c3 = arith.constant 3 : index
    %c0_54 = arith.constant 0 : index
    %c0_55 = arith.constant 0 : index
    %155 = vector.load %arg0[%c3, %c0_54, %c0_55] : memref<21x8x16xf32, #tpu.memory_space<vmem>>, vector<1x8x16xf32>
    %156 = vector.shape_cast %155 : vector<1x8x16xf32> to vector<8x16xf32>
    %c3_56 = arith.constant 3 : index
    %c0_57 = arith.constant 0 : index
    %c0_58 = arith.constant 0 : index
    %157 = vector.load %arg1[%c3_56, %c0_57, %c0_58] : memref<21x8x1xf32, #tpu.memory_space<vmem>>, vector<1x8x1xf32>
    %158 = vector.shape_cast %157 : vector<1x8x1xf32> to vector<8x1xf32>
    %c3_59 = arith.constant 3 : index
    %c0_60 = arith.constant 0 : index
    %c0_61 = arith.constant 0 : index
    %159 = vector.load %arg2[%c3_59, %c0_60, %c0_61] : memref<21x8x1xf32, #tpu.memory_space<vmem>>, vector<1x8x1xf32>
    %160 = vector.shape_cast %159 : vector<1x8x1xf32> to vector<8x1xf32>
    %cst_62 = arith.constant 0.000000e+00 : f32
    %161 = vector.broadcast %cst_62 : f32 to vector<8x1xf32>
    %162 = arith.cmpf ogt, %160, %161 : vector<8x1xf32>
    %163 = vector.shape_cast %162 : vector<8x1xi1> to vector<8x1xi1>
    %164 = vector.broadcast %163 : vector<8x1xi1> to vector<8x32xi1>
    %165 = arith.select %164, %149, %115 : vector<8x32xi1>, vector<8x32xf32>
    %166 = tpu.concatenate %156, %149 in 1 : vector<8x16xf32>, vector<8x32xf32> -> vector<8x48xf32>
    %cst_63 = arith.constant dense<0.000000e+00> : vector<8x128xf32>
    %167 = tpu.matmul %166, %0, %cst_63 {dimension_numbers = #tpu.dot_dimension_numbers<[1], [0], [0], [1], [0, 0, 1, 1], [], []>} : vector<8x48xf32>, vector<48x128xf32>, vector<8x128xf32> -> vector<8x128xf32>
    %168 = vector.broadcast %1 : vector<1x128xf32> to vector<8x128xf32>
    %169 = arith.addf %167, %168 : vector<8x128xf32>
    %170 = vector.extract_strided_slice %169 {offsets = [0, 0], sizes = [8, 32], strides = [1, 1]} : vector<8x128xf32> to vector<8x32xf32>
    %171 = arith.negf %170 : vector<8x32xf32>
    %172 = math.exp %171 : vector<8x32xf32>
    %cst_64 = arith.constant 1.000000e+00 : f32
    %173 = vector.broadcast %cst_64 : f32 to vector<8x32xf32>
    %174 = arith.addf %173, %172 : vector<8x32xf32>
    %175 = arith.divf %173, %174 : vector<8x32xf32>
    %176 = vector.extract_strided_slice %169 {offsets = [0, 32], sizes = [8, 32], strides = [1, 1]} : vector<8x128xf32> to vector<8x32xf32>
    %177 = arith.negf %176 : vector<8x32xf32>
    %178 = math.exp %177 : vector<8x32xf32>
    %cst_65 = arith.constant 1.000000e+00 : f32
    %179 = vector.broadcast %cst_65 : f32 to vector<8x32xf32>
    %180 = arith.addf %179, %178 : vector<8x32xf32>
    %181 = arith.divf %179, %180 : vector<8x32xf32>
    %182 = vector.extract_strided_slice %169 {offsets = [0, 64], sizes = [8, 32], strides = [1, 1]} : vector<8x128xf32> to vector<8x32xf32>
    %183 = math.tanh %182 : vector<8x32xf32>
    %184 = vector.extract_strided_slice %169 {offsets = [0, 96], sizes = [8, 32], strides = [1, 1]} : vector<8x128xf32> to vector<8x32xf32>
    %185 = arith.negf %184 : vector<8x32xf32>
    %186 = math.exp %185 : vector<8x32xf32>
    %cst_66 = arith.constant 1.000000e+00 : f32
    %187 = vector.broadcast %cst_66 : f32 to vector<8x32xf32>
    %188 = arith.addf %187, %186 : vector<8x32xf32>
    %189 = arith.divf %187, %188 : vector<8x32xf32>
    %190 = arith.mulf %181, %154 : vector<8x32xf32>
    %191 = arith.mulf %175, %183 : vector<8x32xf32>
    %192 = arith.addf %190, %191 : vector<8x32xf32>
    %193 = math.tanh %192 : vector<8x32xf32>
    %194 = arith.mulf %189, %193 : vector<8x32xf32>
    %cst_67 = arith.constant 0.000000e+00 : f32
    %195 = vector.broadcast %cst_67 : f32 to vector<8x1xf32>
    %196 = arith.cmpf ogt, %158, %195 : vector<8x1xf32>
    %197 = vector.shape_cast %196 : vector<8x1xi1> to vector<8x1xi1>
    %198 = vector.broadcast %197 : vector<8x1xi1> to vector<8x32xi1>
    %199 = arith.select %198, %194, %149 : vector<8x32xi1>, vector<8x32xf32>
    %cst_68 = arith.constant 0.000000e+00 : f32
    %200 = vector.broadcast %cst_68 : f32 to vector<8x1xf32>
    %201 = arith.cmpf ogt, %158, %200 : vector<8x1xf32>
    %202 = vector.shape_cast %201 : vector<8x1xi1> to vector<8x1xi1>
    %203 = vector.broadcast %202 : vector<8x1xi1> to vector<8x32xi1>
    %204 = arith.select %203, %192, %154 : vector<8x32xi1>, vector<8x32xf32>
    %c4 = arith.constant 4 : index
    %c0_69 = arith.constant 0 : index
    %c0_70 = arith.constant 0 : index
    %205 = vector.load %arg0[%c4, %c0_69, %c0_70] : memref<21x8x16xf32, #tpu.memory_space<vmem>>, vector<1x8x16xf32>
    %206 = vector.shape_cast %205 : vector<1x8x16xf32> to vector<8x16xf32>
    %c4_71 = arith.constant 4 : index
    %c0_72 = arith.constant 0 : index
    %c0_73 = arith.constant 0 : index
    %207 = vector.load %arg1[%c4_71, %c0_72, %c0_73] : memref<21x8x1xf32, #tpu.memory_space<vmem>>, vector<1x8x1xf32>
    %208 = vector.shape_cast %207 : vector<1x8x1xf32> to vector<8x1xf32>
    %c4_74 = arith.constant 4 : index
    %c0_75 = arith.constant 0 : index
    %c0_76 = arith.constant 0 : index
    %209 = vector.load %arg2[%c4_74, %c0_75, %c0_76] : memref<21x8x1xf32, #tpu.memory_space<vmem>>, vector<1x8x1xf32>
    %210 = vector.shape_cast %209 : vector<1x8x1xf32> to vector<8x1xf32>
    %cst_77 = arith.constant 0.000000e+00 : f32
    %211 = vector.broadcast %cst_77 : f32 to vector<8x1xf32>
    %212 = arith.cmpf ogt, %210, %211 : vector<8x1xf32>
    %213 = vector.shape_cast %212 : vector<8x1xi1> to vector<8x1xi1>
    %214 = vector.broadcast %213 : vector<8x1xi1> to vector<8x32xi1>
    %215 = arith.select %214, %199, %165 : vector<8x32xi1>, vector<8x32xf32>
    %216 = tpu.concatenate %206, %199 in 1 : vector<8x16xf32>, vector<8x32xf32> -> vector<8x48xf32>
    %cst_78 = arith.constant dense<0.000000e+00> : vector<8x128xf32>
    %217 = tpu.matmul %216, %0, %cst_78 {dimension_numbers = #tpu.dot_dimension_numbers<[1], [0], [0], [1], [0, 0, 1, 1], [], []>} : vector<8x48xf32>, vector<48x128xf32>, vector<8x128xf32> -> vector<8x128xf32>
    %218 = vector.broadcast %1 : vector<1x128xf32> to vector<8x128xf32>
    %219 = arith.addf %217, %218 : vector<8x128xf32>
    %220 = vector.extract_strided_slice %219 {offsets = [0, 0], sizes = [8, 32], strides = [1, 1]} : vector<8x128xf32> to vector<8x32xf32>
    %221 = arith.negf %220 : vector<8x32xf32>
    %222 = math.exp %221 : vector<8x32xf32>
    %cst_79 = arith.constant 1.000000e+00 : f32
    %223 = vector.broadcast %cst_79 : f32 to vector<8x32xf32>
    %224 = arith.addf %223, %222 : vector<8x32xf32>
    %225 = arith.divf %223, %224 : vector<8x32xf32>
    %226 = vector.extract_strided_slice %219 {offsets = [0, 32], sizes = [8, 32], strides = [1, 1]} : vector<8x128xf32> to vector<8x32xf32>
    %227 = arith.negf %226 : vector<8x32xf32>
    %228 = math.exp %227 : vector<8x32xf32>
    %cst_80 = arith.constant 1.000000e+00 : f32
    %229 = vector.broadcast %cst_80 : f32 to vector<8x32xf32>
    %230 = arith.addf %229, %228 : vector<8x32xf32>
    %231 = arith.divf %229, %230 : vector<8x32xf32>
    %232 = vector.extract_strided_slice %219 {offsets = [0, 64], sizes = [8, 32], strides = [1, 1]} : vector<8x128xf32> to vector<8x32xf32>
    %233 = math.tanh %232 : vector<8x32xf32>
    %234 = vector.extract_strided_slice %219 {offsets = [0, 96], sizes = [8, 32], strides = [1, 1]} : vector<8x128xf32> to vector<8x32xf32>
    %235 = arith.negf %234 : vector<8x32xf32>
    %236 = math.exp %235 : vector<8x32xf32>
    %cst_81 = arith.constant 1.000000e+00 : f32
    %237 = vector.broadcast %cst_81 : f32 to vector<8x32xf32>
    %238 = arith.addf %237, %236 : vector<8x32xf32>
    %239 = arith.divf %237, %238 : vector<8x32xf32>
    %240 = arith.mulf %231, %204 : vector<8x32xf32>
    %241 = arith.mulf %225, %233 : vector<8x32xf32>
    %242 = arith.addf %240, %241 : vector<8x32xf32>
    %243 = math.tanh %242 : vector<8x32xf32>
    %244 = arith.mulf %239, %243 : vector<8x32xf32>
    %cst_82 = arith.constant 0.000000e+00 : f32
    %245 = vector.broadcast %cst_82 : f32 to vector<8x1xf32>
    %246 = arith.cmpf ogt, %208, %245 : vector<8x1xf32>
    %247 = vector.shape_cast %246 : vector<8x1xi1> to vector<8x1xi1>
    %248 = vector.broadcast %247 : vector<8x1xi1> to vector<8x32xi1>
    %249 = arith.select %248, %244, %199 : vector<8x32xi1>, vector<8x32xf32>
    %cst_83 = arith.constant 0.000000e+00 : f32
    %250 = vector.broadcast %cst_83 : f32 to vector<8x1xf32>
    %251 = arith.cmpf ogt, %208, %250 : vector<8x1xf32>
    %252 = vector.shape_cast %251 : vector<8x1xi1> to vector<8x1xi1>
    %253 = vector.broadcast %252 : vector<8x1xi1> to vector<8x32xi1>
    %254 = arith.select %253, %242, %204 : vector<8x32xi1>, vector<8x32xf32>
    %c5 = arith.constant 5 : index
    %c0_84 = arith.constant 0 : index
    %c0_85 = arith.constant 0 : index
    %255 = vector.load %arg0[%c5, %c0_84, %c0_85] : memref<21x8x16xf32, #tpu.memory_space<vmem>>, vector<1x8x16xf32>
    %256 = vector.shape_cast %255 : vector<1x8x16xf32> to vector<8x16xf32>
    %c5_86 = arith.constant 5 : index
    %c0_87 = arith.constant 0 : index
    %c0_88 = arith.constant 0 : index
    %257 = vector.load %arg1[%c5_86, %c0_87, %c0_88] : memref<21x8x1xf32, #tpu.memory_space<vmem>>, vector<1x8x1xf32>
    %258 = vector.shape_cast %257 : vector<1x8x1xf32> to vector<8x1xf32>
    %c5_89 = arith.constant 5 : index
    %c0_90 = arith.constant 0 : index
    %c0_91 = arith.constant 0 : index
    %259 = vector.load %arg2[%c5_89, %c0_90, %c0_91] : memref<21x8x1xf32, #tpu.memory_space<vmem>>, vector<1x8x1xf32>
    %260 = vector.shape_cast %259 : vector<1x8x1xf32> to vector<8x1xf32>
    %cst_92 = arith.constant 0.000000e+00 : f32
    %261 = vector.broadcast %cst_92 : f32 to vector<8x1xf32>
    %262 = arith.cmpf ogt, %260, %261 : vector<8x1xf32>
    %263 = vector.shape_cast %262 : vector<8x1xi1> to vector<8x1xi1>
    %264 = vector.broadcast %263 : vector<8x1xi1> to vector<8x32xi1>
    %265 = arith.select %264, %249, %215 : vector<8x32xi1>, vector<8x32xf32>
    %266 = tpu.concatenate %256, %249 in 1 : vector<8x16xf32>, vector<8x32xf32> -> vector<8x48xf32>
    %cst_93 = arith.constant dense<0.000000e+00> : vector<8x128xf32>
    %267 = tpu.matmul %266, %0, %cst_93 {dimension_numbers = #tpu.dot_dimension_numbers<[1], [0], [0], [1], [0, 0, 1, 1], [], []>} : vector<8x48xf32>, vector<48x128xf32>, vector<8x128xf32> -> vector<8x128xf32>
    %268 = vector.broadcast %1 : vector<1x128xf32> to vector<8x128xf32>
    %269 = arith.addf %267, %268 : vector<8x128xf32>
    %270 = vector.extract_strided_slice %269 {offsets = [0, 0], sizes = [8, 32], strides = [1, 1]} : vector<8x128xf32> to vector<8x32xf32>
    %271 = arith.negf %270 : vector<8x32xf32>
    %272 = math.exp %271 : vector<8x32xf32>
    %cst_94 = arith.constant 1.000000e+00 : f32
    %273 = vector.broadcast %cst_94 : f32 to vector<8x32xf32>
    %274 = arith.addf %273, %272 : vector<8x32xf32>
    %275 = arith.divf %273, %274 : vector<8x32xf32>
    %276 = vector.extract_strided_slice %269 {offsets = [0, 32], sizes = [8, 32], strides = [1, 1]} : vector<8x128xf32> to vector<8x32xf32>
    %277 = arith.negf %276 : vector<8x32xf32>
    %278 = math.exp %277 : vector<8x32xf32>
    %cst_95 = arith.constant 1.000000e+00 : f32
    %279 = vector.broadcast %cst_95 : f32 to vector<8x32xf32>
    %280 = arith.addf %279, %278 : vector<8x32xf32>
    %281 = arith.divf %279, %280 : vector<8x32xf32>
    %282 = vector.extract_strided_slice %269 {offsets = [0, 64], sizes = [8, 32], strides = [1, 1]} : vector<8x128xf32> to vector<8x32xf32>
    %283 = math.tanh %282 : vector<8x32xf32>
    %284 = vector.extract_strided_slice %269 {offsets = [0, 96], sizes = [8, 32], strides = [1, 1]} : vector<8x128xf32> to vector<8x32xf32>
    %285 = arith.negf %284 : vector<8x32xf32>
    %286 = math.exp %285 : vector<8x32xf32>
    %cst_96 = arith.constant 1.000000e+00 : f32
    %287 = vector.broadcast %cst_96 : f32 to vector<8x32xf32>
    %288 = arith.addf %287, %286 : vector<8x32xf32>
    %289 = arith.divf %287, %288 : vector<8x32xf32>
    %290 = arith.mulf %281, %254 : vector<8x32xf32>
    %291 = arith.mulf %275, %283 : vector<8x32xf32>
    %292 = arith.addf %290, %291 : vector<8x32xf32>
    %293 = math.tanh %292 : vector<8x32xf32>
    %294 = arith.mulf %289, %293 : vector<8x32xf32>
    %cst_97 = arith.constant 0.000000e+00 : f32
    %295 = vector.broadcast %cst_97 : f32 to vector<8x1xf32>
    %296 = arith.cmpf ogt, %258, %295 : vector<8x1xf32>
    %297 = vector.shape_cast %296 : vector<8x1xi1> to vector<8x1xi1>
    %298 = vector.broadcast %297 : vector<8x1xi1> to vector<8x32xi1>
    %299 = arith.select %298, %294, %249 : vector<8x32xi1>, vector<8x32xf32>
    %cst_98 = arith.constant 0.000000e+00 : f32
    %300 = vector.broadcast %cst_98 : f32 to vector<8x1xf32>
    %301 = arith.cmpf ogt, %258, %300 : vector<8x1xf32>
    %302 = vector.shape_cast %301 : vector<8x1xi1> to vector<8x1xi1>
    %303 = vector.broadcast %302 : vector<8x1xi1> to vector<8x32xi1>
    %304 = arith.select %303, %292, %254 : vector<8x32xi1>, vector<8x32xf32>
    %c6 = arith.constant 6 : index
    %c0_99 = arith.constant 0 : index
    %c0_100 = arith.constant 0 : index
    %305 = vector.load %arg0[%c6, %c0_99, %c0_100] : memref<21x8x16xf32, #tpu.memory_space<vmem>>, vector<1x8x16xf32>
    %306 = vector.shape_cast %305 : vector<1x8x16xf32> to vector<8x16xf32>
    %c6_101 = arith.constant 6 : index
    %c0_102 = arith.constant 0 : index
    %c0_103 = arith.constant 0 : index
    %307 = vector.load %arg1[%c6_101, %c0_102, %c0_103] : memref<21x8x1xf32, #tpu.memory_space<vmem>>, vector<1x8x1xf32>
    %308 = vector.shape_cast %307 : vector<1x8x1xf32> to vector<8x1xf32>
    %c6_104 = arith.constant 6 : index
    %c0_105 = arith.constant 0 : index
    %c0_106 = arith.constant 0 : index
    %309 = vector.load %arg2[%c6_104, %c0_105, %c0_106] : memref<21x8x1xf32, #tpu.memory_space<vmem>>, vector<1x8x1xf32>
    %310 = vector.shape_cast %309 : vector<1x8x1xf32> to vector<8x1xf32>
    %cst_107 = arith.constant 0.000000e+00 : f32
    %311 = vector.broadcast %cst_107 : f32 to vector<8x1xf32>
    %312 = arith.cmpf ogt, %310, %311 : vector<8x1xf32>
    %313 = vector.shape_cast %312 : vector<8x1xi1> to vector<8x1xi1>
    %314 = vector.broadcast %313 : vector<8x1xi1> to vector<8x32xi1>
    %315 = arith.select %314, %299, %265 : vector<8x32xi1>, vector<8x32xf32>
    %316 = tpu.concatenate %306, %299 in 1 : vector<8x16xf32>, vector<8x32xf32> -> vector<8x48xf32>
    %cst_108 = arith.constant dense<0.000000e+00> : vector<8x128xf32>
    %317 = tpu.matmul %316, %0, %cst_108 {dimension_numbers = #tpu.dot_dimension_numbers<[1], [0], [0], [1], [0, 0, 1, 1], [], []>} : vector<8x48xf32>, vector<48x128xf32>, vector<8x128xf32> -> vector<8x128xf32>
    %318 = vector.broadcast %1 : vector<1x128xf32> to vector<8x128xf32>
    %319 = arith.addf %317, %318 : vector<8x128xf32>
    %320 = vector.extract_strided_slice %319 {offsets = [0, 0], sizes = [8, 32], strides = [1, 1]} : vector<8x128xf32> to vector<8x32xf32>
    %321 = arith.negf %320 : vector<8x32xf32>
    %322 = math.exp %321 : vector<8x32xf32>
    %cst_109 = arith.constant 1.000000e+00 : f32
    %323 = vector.broadcast %cst_109 : f32 to vector<8x32xf32>
    %324 = arith.addf %323, %322 : vector<8x32xf32>
    %325 = arith.divf %323, %324 : vector<8x32xf32>
    %326 = vector.extract_strided_slice %319 {offsets = [0, 32], sizes = [8, 32], strides = [1, 1]} : vector<8x128xf32> to vector<8x32xf32>
    %327 = arith.negf %326 : vector<8x32xf32>
    %328 = math.exp %327 : vector<8x32xf32>
    %cst_110 = arith.constant 1.000000e+00 : f32
    %329 = vector.broadcast %cst_110 : f32 to vector<8x32xf32>
    %330 = arith.addf %329, %328 : vector<8x32xf32>
    %331 = arith.divf %329, %330 : vector<8x32xf32>
    %332 = vector.extract_strided_slice %319 {offsets = [0, 64], sizes = [8, 32], strides = [1, 1]} : vector<8x128xf32> to vector<8x32xf32>
    %333 = math.tanh %332 : vector<8x32xf32>
    %334 = vector.extract_strided_slice %319 {offsets = [0, 96], sizes = [8, 32], strides = [1, 1]} : vector<8x128xf32> to vector<8x32xf32>
    %335 = arith.negf %334 : vector<8x32xf32>
    %336 = math.exp %335 : vector<8x32xf32>
    %cst_111 = arith.constant 1.000000e+00 : f32
    %337 = vector.broadcast %cst_111 : f32 to vector<8x32xf32>
    %338 = arith.addf %337, %336 : vector<8x32xf32>
    %339 = arith.divf %337, %338 : vector<8x32xf32>
    %340 = arith.mulf %331, %304 : vector<8x32xf32>
    %341 = arith.mulf %325, %333 : vector<8x32xf32>
    %342 = arith.addf %340, %341 : vector<8x32xf32>
    %343 = math.tanh %342 : vector<8x32xf32>
    %344 = arith.mulf %339, %343 : vector<8x32xf32>
    %cst_112 = arith.constant 0.000000e+00 : f32
    %345 = vector.broadcast %cst_112 : f32 to vector<8x1xf32>
    %346 = arith.cmpf ogt, %308, %345 : vector<8x1xf32>
    %347 = vector.shape_cast %346 : vector<8x1xi1> to vector<8x1xi1>
    %348 = vector.broadcast %347 : vector<8x1xi1> to vector<8x32xi1>
    %349 = arith.select %348, %344, %299 : vector<8x32xi1>, vector<8x32xf32>
    %cst_113 = arith.constant 0.000000e+00 : f32
    %350 = vector.broadcast %cst_113 : f32 to vector<8x1xf32>
    %351 = arith.cmpf ogt, %308, %350 : vector<8x1xf32>
    %352 = vector.shape_cast %351 : vector<8x1xi1> to vector<8x1xi1>
    %353 = vector.broadcast %352 : vector<8x1xi1> to vector<8x32xi1>
    %354 = arith.select %353, %342, %304 : vector<8x32xi1>, vector<8x32xf32>
    %c7 = arith.constant 7 : index
    %c0_114 = arith.constant 0 : index
    %c0_115 = arith.constant 0 : index
    %355 = vector.load %arg0[%c7, %c0_114, %c0_115] : memref<21x8x16xf32, #tpu.memory_space<vmem>>, vector<1x8x16xf32>
    %356 = vector.shape_cast %355 : vector<1x8x16xf32> to vector<8x16xf32>
    %c7_116 = arith.constant 7 : index
    %c0_117 = arith.constant 0 : index
    %c0_118 = arith.constant 0 : index
    %357 = vector.load %arg1[%c7_116, %c0_117, %c0_118] : memref<21x8x1xf32, #tpu.memory_space<vmem>>, vector<1x8x1xf32>
    %358 = vector.shape_cast %357 : vector<1x8x1xf32> to vector<8x1xf32>
    %c7_119 = arith.constant 7 : index
    %c0_120 = arith.constant 0 : index
    %c0_121 = arith.constant 0 : index
    %359 = vector.load %arg2[%c7_119, %c0_120, %c0_121] : memref<21x8x1xf32, #tpu.memory_space<vmem>>, vector<1x8x1xf32>
    %360 = vector.shape_cast %359 : vector<1x8x1xf32> to vector<8x1xf32>
    %cst_122 = arith.constant 0.000000e+00 : f32
    %361 = vector.broadcast %cst_122 : f32 to vector<8x1xf32>
    %362 = arith.cmpf ogt, %360, %361 : vector<8x1xf32>
    %363 = vector.shape_cast %362 : vector<8x1xi1> to vector<8x1xi1>
    %364 = vector.broadcast %363 : vector<8x1xi1> to vector<8x32xi1>
    %365 = arith.select %364, %349, %315 : vector<8x32xi1>, vector<8x32xf32>
    %366 = tpu.concatenate %356, %349 in 1 : vector<8x16xf32>, vector<8x32xf32> -> vector<8x48xf32>
    %cst_123 = arith.constant dense<0.000000e+00> : vector<8x128xf32>
    %367 = tpu.matmul %366, %0, %cst_123 {dimension_numbers = #tpu.dot_dimension_numbers<[1], [0], [0], [1], [0, 0, 1, 1], [], []>} : vector<8x48xf32>, vector<48x128xf32>, vector<8x128xf32> -> vector<8x128xf32>
    %368 = vector.broadcast %1 : vector<1x128xf32> to vector<8x128xf32>
    %369 = arith.addf %367, %368 : vector<8x128xf32>
    %370 = vector.extract_strided_slice %369 {offsets = [0, 0], sizes = [8, 32], strides = [1, 1]} : vector<8x128xf32> to vector<8x32xf32>
    %371 = arith.negf %370 : vector<8x32xf32>
    %372 = math.exp %371 : vector<8x32xf32>
    %cst_124 = arith.constant 1.000000e+00 : f32
    %373 = vector.broadcast %cst_124 : f32 to vector<8x32xf32>
    %374 = arith.addf %373, %372 : vector<8x32xf32>
    %375 = arith.divf %373, %374 : vector<8x32xf32>
    %376 = vector.extract_strided_slice %369 {offsets = [0, 32], sizes = [8, 32], strides = [1, 1]} : vector<8x128xf32> to vector<8x32xf32>
    %377 = arith.negf %376 : vector<8x32xf32>
    %378 = math.exp %377 : vector<8x32xf32>
    %cst_125 = arith.constant 1.000000e+00 : f32
    %379 = vector.broadcast %cst_125 : f32 to vector<8x32xf32>
    %380 = arith.addf %379, %378 : vector<8x32xf32>
    %381 = arith.divf %379, %380 : vector<8x32xf32>
    %382 = vector.extract_strided_slice %369 {offsets = [0, 64], sizes = [8, 32], strides = [1, 1]} : vector<8x128xf32> to vector<8x32xf32>
    %383 = math.tanh %382 : vector<8x32xf32>
    %384 = vector.extract_strided_slice %369 {offsets = [0, 96], sizes = [8, 32], strides = [1, 1]} : vector<8x128xf32> to vector<8x32xf32>
    %385 = arith.negf %384 : vector<8x32xf32>
    %386 = math.exp %385 : vector<8x32xf32>
    %cst_126 = arith.constant 1.000000e+00 : f32
    %387 = vector.broadcast %cst_126 : f32 to vector<8x32xf32>
    %388 = arith.addf %387, %386 : vector<8x32xf32>
    %389 = arith.divf %387, %388 : vector<8x32xf32>
    %390 = arith.mulf %381, %354 : vector<8x32xf32>
    %391 = arith.mulf %375, %383 : vector<8x32xf32>
    %392 = arith.addf %390, %391 : vector<8x32xf32>
    %393 = math.tanh %392 : vector<8x32xf32>
    %394 = arith.mulf %389, %393 : vector<8x32xf32>
    %cst_127 = arith.constant 0.000000e+00 : f32
    %395 = vector.broadcast %cst_127 : f32 to vector<8x1xf32>
    %396 = arith.cmpf ogt, %358, %395 : vector<8x1xf32>
    %397 = vector.shape_cast %396 : vector<8x1xi1> to vector<8x1xi1>
    %398 = vector.broadcast %397 : vector<8x1xi1> to vector<8x32xi1>
    %399 = arith.select %398, %394, %349 : vector<8x32xi1>, vector<8x32xf32>
    %cst_128 = arith.constant 0.000000e+00 : f32
    %400 = vector.broadcast %cst_128 : f32 to vector<8x1xf32>
    %401 = arith.cmpf ogt, %358, %400 : vector<8x1xf32>
    %402 = vector.shape_cast %401 : vector<8x1xi1> to vector<8x1xi1>
    %403 = vector.broadcast %402 : vector<8x1xi1> to vector<8x32xi1>
    %404 = arith.select %403, %392, %354 : vector<8x32xi1>, vector<8x32xf32>
    %c8 = arith.constant 8 : index
    %c0_129 = arith.constant 0 : index
    %c0_130 = arith.constant 0 : index
    %405 = vector.load %arg0[%c8, %c0_129, %c0_130] : memref<21x8x16xf32, #tpu.memory_space<vmem>>, vector<1x8x16xf32>
    %406 = vector.shape_cast %405 : vector<1x8x16xf32> to vector<8x16xf32>
    %c8_131 = arith.constant 8 : index
    %c0_132 = arith.constant 0 : index
    %c0_133 = arith.constant 0 : index
    %407 = vector.load %arg1[%c8_131, %c0_132, %c0_133] : memref<21x8x1xf32, #tpu.memory_space<vmem>>, vector<1x8x1xf32>
    %408 = vector.shape_cast %407 : vector<1x8x1xf32> to vector<8x1xf32>
    %c8_134 = arith.constant 8 : index
    %c0_135 = arith.constant 0 : index
    %c0_136 = arith.constant 0 : index
    %409 = vector.load %arg2[%c8_134, %c0_135, %c0_136] : memref<21x8x1xf32, #tpu.memory_space<vmem>>, vector<1x8x1xf32>
    %410 = vector.shape_cast %409 : vector<1x8x1xf32> to vector<8x1xf32>
    %cst_137 = arith.constant 0.000000e+00 : f32
    %411 = vector.broadcast %cst_137 : f32 to vector<8x1xf32>
    %412 = arith.cmpf ogt, %410, %411 : vector<8x1xf32>
    %413 = vector.shape_cast %412 : vector<8x1xi1> to vector<8x1xi1>
    %414 = vector.broadcast %413 : vector<8x1xi1> to vector<8x32xi1>
    %415 = arith.select %414, %399, %365 : vector<8x32xi1>, vector<8x32xf32>
    %416 = tpu.concatenate %406, %399 in 1 : vector<8x16xf32>, vector<8x32xf32> -> vector<8x48xf32>
    %cst_138 = arith.constant dense<0.000000e+00> : vector<8x128xf32>
    %417 = tpu.matmul %416, %0, %cst_138 {dimension_numbers = #tpu.dot_dimension_numbers<[1], [0], [0], [1], [0, 0, 1, 1], [], []>} : vector<8x48xf32>, vector<48x128xf32>, vector<8x128xf32> -> vector<8x128xf32>
    %418 = vector.broadcast %1 : vector<1x128xf32> to vector<8x128xf32>
    %419 = arith.addf %417, %418 : vector<8x128xf32>
    %420 = vector.extract_strided_slice %419 {offsets = [0, 0], sizes = [8, 32], strides = [1, 1]} : vector<8x128xf32> to vector<8x32xf32>
    %421 = arith.negf %420 : vector<8x32xf32>
    %422 = math.exp %421 : vector<8x32xf32>
    %cst_139 = arith.constant 1.000000e+00 : f32
    %423 = vector.broadcast %cst_139 : f32 to vector<8x32xf32>
    %424 = arith.addf %423, %422 : vector<8x32xf32>
    %425 = arith.divf %423, %424 : vector<8x32xf32>
    %426 = vector.extract_strided_slice %419 {offsets = [0, 32], sizes = [8, 32], strides = [1, 1]} : vector<8x128xf32> to vector<8x32xf32>
    %427 = arith.negf %426 : vector<8x32xf32>
    %428 = math.exp %427 : vector<8x32xf32>
    %cst_140 = arith.constant 1.000000e+00 : f32
    %429 = vector.broadcast %cst_140 : f32 to vector<8x32xf32>
    %430 = arith.addf %429, %428 : vector<8x32xf32>
    %431 = arith.divf %429, %430 : vector<8x32xf32>
    %432 = vector.extract_strided_slice %419 {offsets = [0, 64], sizes = [8, 32], strides = [1, 1]} : vector<8x128xf32> to vector<8x32xf32>
    %433 = math.tanh %432 : vector<8x32xf32>
    %434 = vector.extract_strided_slice %419 {offsets = [0, 96], sizes = [8, 32], strides = [1, 1]} : vector<8x128xf32> to vector<8x32xf32>
    %435 = arith.negf %434 : vector<8x32xf32>
    %436 = math.exp %435 : vector<8x32xf32>
    %cst_141 = arith.constant 1.000000e+00 : f32
    %437 = vector.broadcast %cst_141 : f32 to vector<8x32xf32>
    %438 = arith.addf %437, %436 : vector<8x32xf32>
    %439 = arith.divf %437, %438 : vector<8x32xf32>
    %440 = arith.mulf %431, %404 : vector<8x32xf32>
    %441 = arith.mulf %425, %433 : vector<8x32xf32>
    %442 = arith.addf %440, %441 : vector<8x32xf32>
    %443 = math.tanh %442 : vector<8x32xf32>
    %444 = arith.mulf %439, %443 : vector<8x32xf32>
    %cst_142 = arith.constant 0.000000e+00 : f32
    %445 = vector.broadcast %cst_142 : f32 to vector<8x1xf32>
    %446 = arith.cmpf ogt, %408, %445 : vector<8x1xf32>
    %447 = vector.shape_cast %446 : vector<8x1xi1> to vector<8x1xi1>
    %448 = vector.broadcast %447 : vector<8x1xi1> to vector<8x32xi1>
    %449 = arith.select %448, %444, %399 : vector<8x32xi1>, vector<8x32xf32>
    %cst_143 = arith.constant 0.000000e+00 : f32
    %450 = vector.broadcast %cst_143 : f32 to vector<8x1xf32>
    %451 = arith.cmpf ogt, %408, %450 : vector<8x1xf32>
    %452 = vector.shape_cast %451 : vector<8x1xi1> to vector<8x1xi1>
    %453 = vector.broadcast %452 : vector<8x1xi1> to vector<8x32xi1>
    %454 = arith.select %453, %442, %404 : vector<8x32xi1>, vector<8x32xf32>
    %c9 = arith.constant 9 : index
    %c0_144 = arith.constant 0 : index
    %c0_145 = arith.constant 0 : index
    %455 = vector.load %arg0[%c9, %c0_144, %c0_145] : memref<21x8x16xf32, #tpu.memory_space<vmem>>, vector<1x8x16xf32>
    %456 = vector.shape_cast %455 : vector<1x8x16xf32> to vector<8x16xf32>
    %c9_146 = arith.constant 9 : index
    %c0_147 = arith.constant 0 : index
    %c0_148 = arith.constant 0 : index
    %457 = vector.load %arg1[%c9_146, %c0_147, %c0_148] : memref<21x8x1xf32, #tpu.memory_space<vmem>>, vector<1x8x1xf32>
    %458 = vector.shape_cast %457 : vector<1x8x1xf32> to vector<8x1xf32>
    %c9_149 = arith.constant 9 : index
    %c0_150 = arith.constant 0 : index
    %c0_151 = arith.constant 0 : index
    %459 = vector.load %arg2[%c9_149, %c0_150, %c0_151] : memref<21x8x1xf32, #tpu.memory_space<vmem>>, vector<1x8x1xf32>
    %460 = vector.shape_cast %459 : vector<1x8x1xf32> to vector<8x1xf32>
    %cst_152 = arith.constant 0.000000e+00 : f32
    %461 = vector.broadcast %cst_152 : f32 to vector<8x1xf32>
    %462 = arith.cmpf ogt, %460, %461 : vector<8x1xf32>
    %463 = vector.shape_cast %462 : vector<8x1xi1> to vector<8x1xi1>
    %464 = vector.broadcast %463 : vector<8x1xi1> to vector<8x32xi1>
    %465 = arith.select %464, %449, %415 : vector<8x32xi1>, vector<8x32xf32>
    %466 = tpu.concatenate %456, %449 in 1 : vector<8x16xf32>, vector<8x32xf32> -> vector<8x48xf32>
    %cst_153 = arith.constant dense<0.000000e+00> : vector<8x128xf32>
    %467 = tpu.matmul %466, %0, %cst_153 {dimension_numbers = #tpu.dot_dimension_numbers<[1], [0], [0], [1], [0, 0, 1, 1], [], []>} : vector<8x48xf32>, vector<48x128xf32>, vector<8x128xf32> -> vector<8x128xf32>
    %468 = vector.broadcast %1 : vector<1x128xf32> to vector<8x128xf32>
    %469 = arith.addf %467, %468 : vector<8x128xf32>
    %470 = vector.extract_strided_slice %469 {offsets = [0, 0], sizes = [8, 32], strides = [1, 1]} : vector<8x128xf32> to vector<8x32xf32>
    %471 = arith.negf %470 : vector<8x32xf32>
    %472 = math.exp %471 : vector<8x32xf32>
    %cst_154 = arith.constant 1.000000e+00 : f32
    %473 = vector.broadcast %cst_154 : f32 to vector<8x32xf32>
    %474 = arith.addf %473, %472 : vector<8x32xf32>
    %475 = arith.divf %473, %474 : vector<8x32xf32>
    %476 = vector.extract_strided_slice %469 {offsets = [0, 32], sizes = [8, 32], strides = [1, 1]} : vector<8x128xf32> to vector<8x32xf32>
    %477 = arith.negf %476 : vector<8x32xf32>
    %478 = math.exp %477 : vector<8x32xf32>
    %cst_155 = arith.constant 1.000000e+00 : f32
    %479 = vector.broadcast %cst_155 : f32 to vector<8x32xf32>
    %480 = arith.addf %479, %478 : vector<8x32xf32>
    %481 = arith.divf %479, %480 : vector<8x32xf32>
    %482 = vector.extract_strided_slice %469 {offsets = [0, 64], sizes = [8, 32], strides = [1, 1]} : vector<8x128xf32> to vector<8x32xf32>
    %483 = math.tanh %482 : vector<8x32xf32>
    %484 = vector.extract_strided_slice %469 {offsets = [0, 96], sizes = [8, 32], strides = [1, 1]} : vector<8x128xf32> to vector<8x32xf32>
    %485 = arith.negf %484 : vector<8x32xf32>
    %486 = math.exp %485 : vector<8x32xf32>
    %cst_156 = arith.constant 1.000000e+00 : f32
    %487 = vector.broadcast %cst_156 : f32 to vector<8x32xf32>
    %488 = arith.addf %487, %486 : vector<8x32xf32>
    %489 = arith.divf %487, %488 : vector<8x32xf32>
    %490 = arith.mulf %481, %454 : vector<8x32xf32>
    %491 = arith.mulf %475, %483 : vector<8x32xf32>
    %492 = arith.addf %490, %491 : vector<8x32xf32>
    %493 = math.tanh %492 : vector<8x32xf32>
    %494 = arith.mulf %489, %493 : vector<8x32xf32>
    %cst_157 = arith.constant 0.000000e+00 : f32
    %495 = vector.broadcast %cst_157 : f32 to vector<8x1xf32>
    %496 = arith.cmpf ogt, %458, %495 : vector<8x1xf32>
    %497 = vector.shape_cast %496 : vector<8x1xi1> to vector<8x1xi1>
    %498 = vector.broadcast %497 : vector<8x1xi1> to vector<8x32xi1>
    %499 = arith.select %498, %494, %449 : vector<8x32xi1>, vector<8x32xf32>
    %cst_158 = arith.constant 0.000000e+00 : f32
    %500 = vector.broadcast %cst_158 : f32 to vector<8x1xf32>
    %501 = arith.cmpf ogt, %458, %500 : vector<8x1xf32>
    %502 = vector.shape_cast %501 : vector<8x1xi1> to vector<8x1xi1>
    %503 = vector.broadcast %502 : vector<8x1xi1> to vector<8x32xi1>
    %504 = arith.select %503, %492, %454 : vector<8x32xi1>, vector<8x32xf32>
    %c10 = arith.constant 10 : index
    %c0_159 = arith.constant 0 : index
    %c0_160 = arith.constant 0 : index
    %505 = vector.load %arg0[%c10, %c0_159, %c0_160] : memref<21x8x16xf32, #tpu.memory_space<vmem>>, vector<1x8x16xf32>
    %506 = vector.shape_cast %505 : vector<1x8x16xf32> to vector<8x16xf32>
    %c10_161 = arith.constant 10 : index
    %c0_162 = arith.constant 0 : index
    %c0_163 = arith.constant 0 : index
    %507 = vector.load %arg1[%c10_161, %c0_162, %c0_163] : memref<21x8x1xf32, #tpu.memory_space<vmem>>, vector<1x8x1xf32>
    %508 = vector.shape_cast %507 : vector<1x8x1xf32> to vector<8x1xf32>
    %c10_164 = arith.constant 10 : index
    %c0_165 = arith.constant 0 : index
    %c0_166 = arith.constant 0 : index
    %509 = vector.load %arg2[%c10_164, %c0_165, %c0_166] : memref<21x8x1xf32, #tpu.memory_space<vmem>>, vector<1x8x1xf32>
    %510 = vector.shape_cast %509 : vector<1x8x1xf32> to vector<8x1xf32>
    %cst_167 = arith.constant 0.000000e+00 : f32
    %511 = vector.broadcast %cst_167 : f32 to vector<8x1xf32>
    %512 = arith.cmpf ogt, %510, %511 : vector<8x1xf32>
    %513 = vector.shape_cast %512 : vector<8x1xi1> to vector<8x1xi1>
    %514 = vector.broadcast %513 : vector<8x1xi1> to vector<8x32xi1>
    %515 = arith.select %514, %499, %465 : vector<8x32xi1>, vector<8x32xf32>
    %516 = tpu.concatenate %506, %499 in 1 : vector<8x16xf32>, vector<8x32xf32> -> vector<8x48xf32>
    %cst_168 = arith.constant dense<0.000000e+00> : vector<8x128xf32>
    %517 = tpu.matmul %516, %0, %cst_168 {dimension_numbers = #tpu.dot_dimension_numbers<[1], [0], [0], [1], [0, 0, 1, 1], [], []>} : vector<8x48xf32>, vector<48x128xf32>, vector<8x128xf32> -> vector<8x128xf32>
    %518 = vector.broadcast %1 : vector<1x128xf32> to vector<8x128xf32>
    %519 = arith.addf %517, %518 : vector<8x128xf32>
    %520 = vector.extract_strided_slice %519 {offsets = [0, 0], sizes = [8, 32], strides = [1, 1]} : vector<8x128xf32> to vector<8x32xf32>
    %521 = arith.negf %520 : vector<8x32xf32>
    %522 = math.exp %521 : vector<8x32xf32>
    %cst_169 = arith.constant 1.000000e+00 : f32
    %523 = vector.broadcast %cst_169 : f32 to vector<8x32xf32>
    %524 = arith.addf %523, %522 : vector<8x32xf32>
    %525 = arith.divf %523, %524 : vector<8x32xf32>
    %526 = vector.extract_strided_slice %519 {offsets = [0, 32], sizes = [8, 32], strides = [1, 1]} : vector<8x128xf32> to vector<8x32xf32>
    %527 = arith.negf %526 : vector<8x32xf32>
    %528 = math.exp %527 : vector<8x32xf32>
    %cst_170 = arith.constant 1.000000e+00 : f32
    %529 = vector.broadcast %cst_170 : f32 to vector<8x32xf32>
    %530 = arith.addf %529, %528 : vector<8x32xf32>
    %531 = arith.divf %529, %530 : vector<8x32xf32>
    %532 = vector.extract_strided_slice %519 {offsets = [0, 64], sizes = [8, 32], strides = [1, 1]} : vector<8x128xf32> to vector<8x32xf32>
    %533 = math.tanh %532 : vector<8x32xf32>
    %534 = vector.extract_strided_slice %519 {offsets = [0, 96], sizes = [8, 32], strides = [1, 1]} : vector<8x128xf32> to vector<8x32xf32>
    %535 = arith.negf %534 : vector<8x32xf32>
    %536 = math.exp %535 : vector<8x32xf32>
    %cst_171 = arith.constant 1.000000e+00 : f32
    %537 = vector.broadcast %cst_171 : f32 to vector<8x32xf32>
    %538 = arith.addf %537, %536 : vector<8x32xf32>
    %539 = arith.divf %537, %538 : vector<8x32xf32>
    %540 = arith.mulf %531, %504 : vector<8x32xf32>
    %541 = arith.mulf %525, %533 : vector<8x32xf32>
    %542 = arith.addf %540, %541 : vector<8x32xf32>
    %543 = math.tanh %542 : vector<8x32xf32>
    %544 = arith.mulf %539, %543 : vector<8x32xf32>
    %cst_172 = arith.constant 0.000000e+00 : f32
    %545 = vector.broadcast %cst_172 : f32 to vector<8x1xf32>
    %546 = arith.cmpf ogt, %508, %545 : vector<8x1xf32>
    %547 = vector.shape_cast %546 : vector<8x1xi1> to vector<8x1xi1>
    %548 = vector.broadcast %547 : vector<8x1xi1> to vector<8x32xi1>
    %549 = arith.select %548, %544, %499 : vector<8x32xi1>, vector<8x32xf32>
    %cst_173 = arith.constant 0.000000e+00 : f32
    %550 = vector.broadcast %cst_173 : f32 to vector<8x1xf32>
    %551 = arith.cmpf ogt, %508, %550 : vector<8x1xf32>
    %552 = vector.shape_cast %551 : vector<8x1xi1> to vector<8x1xi1>
    %553 = vector.broadcast %552 : vector<8x1xi1> to vector<8x32xi1>
    %554 = arith.select %553, %542, %504 : vector<8x32xi1>, vector<8x32xf32>
    %c11 = arith.constant 11 : index
    %c0_174 = arith.constant 0 : index
    %c0_175 = arith.constant 0 : index
    %555 = vector.load %arg0[%c11, %c0_174, %c0_175] : memref<21x8x16xf32, #tpu.memory_space<vmem>>, vector<1x8x16xf32>
    %556 = vector.shape_cast %555 : vector<1x8x16xf32> to vector<8x16xf32>
    %c11_176 = arith.constant 11 : index
    %c0_177 = arith.constant 0 : index
    %c0_178 = arith.constant 0 : index
    %557 = vector.load %arg1[%c11_176, %c0_177, %c0_178] : memref<21x8x1xf32, #tpu.memory_space<vmem>>, vector<1x8x1xf32>
    %558 = vector.shape_cast %557 : vector<1x8x1xf32> to vector<8x1xf32>
    %c11_179 = arith.constant 11 : index
    %c0_180 = arith.constant 0 : index
    %c0_181 = arith.constant 0 : index
    %559 = vector.load %arg2[%c11_179, %c0_180, %c0_181] : memref<21x8x1xf32, #tpu.memory_space<vmem>>, vector<1x8x1xf32>
    %560 = vector.shape_cast %559 : vector<1x8x1xf32> to vector<8x1xf32>
    %cst_182 = arith.constant 0.000000e+00 : f32
    %561 = vector.broadcast %cst_182 : f32 to vector<8x1xf32>
    %562 = arith.cmpf ogt, %560, %561 : vector<8x1xf32>
    %563 = vector.shape_cast %562 : vector<8x1xi1> to vector<8x1xi1>
    %564 = vector.broadcast %563 : vector<8x1xi1> to vector<8x32xi1>
    %565 = arith.select %564, %549, %515 : vector<8x32xi1>, vector<8x32xf32>
    %566 = tpu.concatenate %556, %549 in 1 : vector<8x16xf32>, vector<8x32xf32> -> vector<8x48xf32>
    %cst_183 = arith.constant dense<0.000000e+00> : vector<8x128xf32>
    %567 = tpu.matmul %566, %0, %cst_183 {dimension_numbers = #tpu.dot_dimension_numbers<[1], [0], [0], [1], [0, 0, 1, 1], [], []>} : vector<8x48xf32>, vector<48x128xf32>, vector<8x128xf32> -> vector<8x128xf32>
    %568 = vector.broadcast %1 : vector<1x128xf32> to vector<8x128xf32>
    %569 = arith.addf %567, %568 : vector<8x128xf32>
    %570 = vector.extract_strided_slice %569 {offsets = [0, 0], sizes = [8, 32], strides = [1, 1]} : vector<8x128xf32> to vector<8x32xf32>
    %571 = arith.negf %570 : vector<8x32xf32>
    %572 = math.exp %571 : vector<8x32xf32>
    %cst_184 = arith.constant 1.000000e+00 : f32
    %573 = vector.broadcast %cst_184 : f32 to vector<8x32xf32>
    %574 = arith.addf %573, %572 : vector<8x32xf32>
    %575 = arith.divf %573, %574 : vector<8x32xf32>
    %576 = vector.extract_strided_slice %569 {offsets = [0, 32], sizes = [8, 32], strides = [1, 1]} : vector<8x128xf32> to vector<8x32xf32>
    %577 = arith.negf %576 : vector<8x32xf32>
    %578 = math.exp %577 : vector<8x32xf32>
    %cst_185 = arith.constant 1.000000e+00 : f32
    %579 = vector.broadcast %cst_185 : f32 to vector<8x32xf32>
    %580 = arith.addf %579, %578 : vector<8x32xf32>
    %581 = arith.divf %579, %580 : vector<8x32xf32>
    %582 = vector.extract_strided_slice %569 {offsets = [0, 64], sizes = [8, 32], strides = [1, 1]} : vector<8x128xf32> to vector<8x32xf32>
    %583 = math.tanh %582 : vector<8x32xf32>
    %584 = vector.extract_strided_slice %569 {offsets = [0, 96], sizes = [8, 32], strides = [1, 1]} : vector<8x128xf32> to vector<8x32xf32>
    %585 = arith.negf %584 : vector<8x32xf32>
    %586 = math.exp %585 : vector<8x32xf32>
    %cst_186 = arith.constant 1.000000e+00 : f32
    %587 = vector.broadcast %cst_186 : f32 to vector<8x32xf32>
    %588 = arith.addf %587, %586 : vector<8x32xf32>
    %589 = arith.divf %587, %588 : vector<8x32xf32>
    %590 = arith.mulf %581, %554 : vector<8x32xf32>
    %591 = arith.mulf %575, %583 : vector<8x32xf32>
    %592 = arith.addf %590, %591 : vector<8x32xf32>
    %593 = math.tanh %592 : vector<8x32xf32>
    %594 = arith.mulf %589, %593 : vector<8x32xf32>
    %cst_187 = arith.constant 0.000000e+00 : f32
    %595 = vector.broadcast %cst_187 : f32 to vector<8x1xf32>
    %596 = arith.cmpf ogt, %558, %595 : vector<8x1xf32>
    %597 = vector.shape_cast %596 : vector<8x1xi1> to vector<8x1xi1>
    %598 = vector.broadcast %597 : vector<8x1xi1> to vector<8x32xi1>
    %599 = arith.select %598, %594, %549 : vector<8x32xi1>, vector<8x32xf32>
    %cst_188 = arith.constant 0.000000e+00 : f32
    %600 = vector.broadcast %cst_188 : f32 to vector<8x1xf32>
    %601 = arith.cmpf ogt, %558, %600 : vector<8x1xf32>
    %602 = vector.shape_cast %601 : vector<8x1xi1> to vector<8x1xi1>
    %603 = vector.broadcast %602 : vector<8x1xi1> to vector<8x32xi1>
    %604 = arith.select %603, %592, %554 : vector<8x32xi1>, vector<8x32xf32>
    %c12 = arith.constant 12 : index
    %c0_189 = arith.constant 0 : index
    %c0_190 = arith.constant 0 : index
    %605 = vector.load %arg0[%c12, %c0_189, %c0_190] : memref<21x8x16xf32, #tpu.memory_space<vmem>>, vector<1x8x16xf32>
    %606 = vector.shape_cast %605 : vector<1x8x16xf32> to vector<8x16xf32>
    %c12_191 = arith.constant 12 : index
    %c0_192 = arith.constant 0 : index
    %c0_193 = arith.constant 0 : index
    %607 = vector.load %arg1[%c12_191, %c0_192, %c0_193] : memref<21x8x1xf32, #tpu.memory_space<vmem>>, vector<1x8x1xf32>
    %608 = vector.shape_cast %607 : vector<1x8x1xf32> to vector<8x1xf32>
    %c12_194 = arith.constant 12 : index
    %c0_195 = arith.constant 0 : index
    %c0_196 = arith.constant 0 : index
    %609 = vector.load %arg2[%c12_194, %c0_195, %c0_196] : memref<21x8x1xf32, #tpu.memory_space<vmem>>, vector<1x8x1xf32>
    %610 = vector.shape_cast %609 : vector<1x8x1xf32> to vector<8x1xf32>
    %cst_197 = arith.constant 0.000000e+00 : f32
    %611 = vector.broadcast %cst_197 : f32 to vector<8x1xf32>
    %612 = arith.cmpf ogt, %610, %611 : vector<8x1xf32>
    %613 = vector.shape_cast %612 : vector<8x1xi1> to vector<8x1xi1>
    %614 = vector.broadcast %613 : vector<8x1xi1> to vector<8x32xi1>
    %615 = arith.select %614, %599, %565 : vector<8x32xi1>, vector<8x32xf32>
    %616 = tpu.concatenate %606, %599 in 1 : vector<8x16xf32>, vector<8x32xf32> -> vector<8x48xf32>
    %cst_198 = arith.constant dense<0.000000e+00> : vector<8x128xf32>
    %617 = tpu.matmul %616, %0, %cst_198 {dimension_numbers = #tpu.dot_dimension_numbers<[1], [0], [0], [1], [0, 0, 1, 1], [], []>} : vector<8x48xf32>, vector<48x128xf32>, vector<8x128xf32> -> vector<8x128xf32>
    %618 = vector.broadcast %1 : vector<1x128xf32> to vector<8x128xf32>
    %619 = arith.addf %617, %618 : vector<8x128xf32>
    %620 = vector.extract_strided_slice %619 {offsets = [0, 0], sizes = [8, 32], strides = [1, 1]} : vector<8x128xf32> to vector<8x32xf32>
    %621 = arith.negf %620 : vector<8x32xf32>
    %622 = math.exp %621 : vector<8x32xf32>
    %cst_199 = arith.constant 1.000000e+00 : f32
    %623 = vector.broadcast %cst_199 : f32 to vector<8x32xf32>
    %624 = arith.addf %623, %622 : vector<8x32xf32>
    %625 = arith.divf %623, %624 : vector<8x32xf32>
    %626 = vector.extract_strided_slice %619 {offsets = [0, 32], sizes = [8, 32], strides = [1, 1]} : vector<8x128xf32> to vector<8x32xf32>
    %627 = arith.negf %626 : vector<8x32xf32>
    %628 = math.exp %627 : vector<8x32xf32>
    %cst_200 = arith.constant 1.000000e+00 : f32
    %629 = vector.broadcast %cst_200 : f32 to vector<8x32xf32>
    %630 = arith.addf %629, %628 : vector<8x32xf32>
    %631 = arith.divf %629, %630 : vector<8x32xf32>
    %632 = vector.extract_strided_slice %619 {offsets = [0, 64], sizes = [8, 32], strides = [1, 1]} : vector<8x128xf32> to vector<8x32xf32>
    %633 = math.tanh %632 : vector<8x32xf32>
    %634 = vector.extract_strided_slice %619 {offsets = [0, 96], sizes = [8, 32], strides = [1, 1]} : vector<8x128xf32> to vector<8x32xf32>
    %635 = arith.negf %634 : vector<8x32xf32>
    %636 = math.exp %635 : vector<8x32xf32>
    %cst_201 = arith.constant 1.000000e+00 : f32
    %637 = vector.broadcast %cst_201 : f32 to vector<8x32xf32>
    %638 = arith.addf %637, %636 : vector<8x32xf32>
    %639 = arith.divf %637, %638 : vector<8x32xf32>
    %640 = arith.mulf %631, %604 : vector<8x32xf32>
    %641 = arith.mulf %625, %633 : vector<8x32xf32>
    %642 = arith.addf %640, %641 : vector<8x32xf32>
    %643 = math.tanh %642 : vector<8x32xf32>
    %644 = arith.mulf %639, %643 : vector<8x32xf32>
    %cst_202 = arith.constant 0.000000e+00 : f32
    %645 = vector.broadcast %cst_202 : f32 to vector<8x1xf32>
    %646 = arith.cmpf ogt, %608, %645 : vector<8x1xf32>
    %647 = vector.shape_cast %646 : vector<8x1xi1> to vector<8x1xi1>
    %648 = vector.broadcast %647 : vector<8x1xi1> to vector<8x32xi1>
    %649 = arith.select %648, %644, %599 : vector<8x32xi1>, vector<8x32xf32>
    %cst_203 = arith.constant 0.000000e+00 : f32
    %650 = vector.broadcast %cst_203 : f32 to vector<8x1xf32>
    %651 = arith.cmpf ogt, %608, %650 : vector<8x1xf32>
    %652 = vector.shape_cast %651 : vector<8x1xi1> to vector<8x1xi1>
    %653 = vector.broadcast %652 : vector<8x1xi1> to vector<8x32xi1>
    %654 = arith.select %653, %642, %604 : vector<8x32xi1>, vector<8x32xf32>
    %c13 = arith.constant 13 : index
    %c0_204 = arith.constant 0 : index
    %c0_205 = arith.constant 0 : index
    %655 = vector.load %arg0[%c13, %c0_204, %c0_205] : memref<21x8x16xf32, #tpu.memory_space<vmem>>, vector<1x8x16xf32>
    %656 = vector.shape_cast %655 : vector<1x8x16xf32> to vector<8x16xf32>
    %c13_206 = arith.constant 13 : index
    %c0_207 = arith.constant 0 : index
    %c0_208 = arith.constant 0 : index
    %657 = vector.load %arg1[%c13_206, %c0_207, %c0_208] : memref<21x8x1xf32, #tpu.memory_space<vmem>>, vector<1x8x1xf32>
    %658 = vector.shape_cast %657 : vector<1x8x1xf32> to vector<8x1xf32>
    %c13_209 = arith.constant 13 : index
    %c0_210 = arith.constant 0 : index
    %c0_211 = arith.constant 0 : index
    %659 = vector.load %arg2[%c13_209, %c0_210, %c0_211] : memref<21x8x1xf32, #tpu.memory_space<vmem>>, vector<1x8x1xf32>
    %660 = vector.shape_cast %659 : vector<1x8x1xf32> to vector<8x1xf32>
    %cst_212 = arith.constant 0.000000e+00 : f32
    %661 = vector.broadcast %cst_212 : f32 to vector<8x1xf32>
    %662 = arith.cmpf ogt, %660, %661 : vector<8x1xf32>
    %663 = vector.shape_cast %662 : vector<8x1xi1> to vector<8x1xi1>
    %664 = vector.broadcast %663 : vector<8x1xi1> to vector<8x32xi1>
    %665 = arith.select %664, %649, %615 : vector<8x32xi1>, vector<8x32xf32>
    %666 = tpu.concatenate %656, %649 in 1 : vector<8x16xf32>, vector<8x32xf32> -> vector<8x48xf32>
    %cst_213 = arith.constant dense<0.000000e+00> : vector<8x128xf32>
    %667 = tpu.matmul %666, %0, %cst_213 {dimension_numbers = #tpu.dot_dimension_numbers<[1], [0], [0], [1], [0, 0, 1, 1], [], []>} : vector<8x48xf32>, vector<48x128xf32>, vector<8x128xf32> -> vector<8x128xf32>
    %668 = vector.broadcast %1 : vector<1x128xf32> to vector<8x128xf32>
    %669 = arith.addf %667, %668 : vector<8x128xf32>
    %670 = vector.extract_strided_slice %669 {offsets = [0, 0], sizes = [8, 32], strides = [1, 1]} : vector<8x128xf32> to vector<8x32xf32>
    %671 = arith.negf %670 : vector<8x32xf32>
    %672 = math.exp %671 : vector<8x32xf32>
    %cst_214 = arith.constant 1.000000e+00 : f32
    %673 = vector.broadcast %cst_214 : f32 to vector<8x32xf32>
    %674 = arith.addf %673, %672 : vector<8x32xf32>
    %675 = arith.divf %673, %674 : vector<8x32xf32>
    %676 = vector.extract_strided_slice %669 {offsets = [0, 32], sizes = [8, 32], strides = [1, 1]} : vector<8x128xf32> to vector<8x32xf32>
    %677 = arith.negf %676 : vector<8x32xf32>
    %678 = math.exp %677 : vector<8x32xf32>
    %cst_215 = arith.constant 1.000000e+00 : f32
    %679 = vector.broadcast %cst_215 : f32 to vector<8x32xf32>
    %680 = arith.addf %679, %678 : vector<8x32xf32>
    %681 = arith.divf %679, %680 : vector<8x32xf32>
    %682 = vector.extract_strided_slice %669 {offsets = [0, 64], sizes = [8, 32], strides = [1, 1]} : vector<8x128xf32> to vector<8x32xf32>
    %683 = math.tanh %682 : vector<8x32xf32>
    %684 = vector.extract_strided_slice %669 {offsets = [0, 96], sizes = [8, 32], strides = [1, 1]} : vector<8x128xf32> to vector<8x32xf32>
    %685 = arith.negf %684 : vector<8x32xf32>
    %686 = math.exp %685 : vector<8x32xf32>
    %cst_216 = arith.constant 1.000000e+00 : f32
    %687 = vector.broadcast %cst_216 : f32 to vector<8x32xf32>
    %688 = arith.addf %687, %686 : vector<8x32xf32>
    %689 = arith.divf %687, %688 : vector<8x32xf32>
    %690 = arith.mulf %681, %654 : vector<8x32xf32>
    %691 = arith.mulf %675, %683 : vector<8x32xf32>
    %692 = arith.addf %690, %691 : vector<8x32xf32>
    %693 = math.tanh %692 : vector<8x32xf32>
    %694 = arith.mulf %689, %693 : vector<8x32xf32>
    %cst_217 = arith.constant 0.000000e+00 : f32
    %695 = vector.broadcast %cst_217 : f32 to vector<8x1xf32>
    %696 = arith.cmpf ogt, %658, %695 : vector<8x1xf32>
    %697 = vector.shape_cast %696 : vector<8x1xi1> to vector<8x1xi1>
    %698 = vector.broadcast %697 : vector<8x1xi1> to vector<8x32xi1>
    %699 = arith.select %698, %694, %649 : vector<8x32xi1>, vector<8x32xf32>
    %cst_218 = arith.constant 0.000000e+00 : f32
    %700 = vector.broadcast %cst_218 : f32 to vector<8x1xf32>
    %701 = arith.cmpf ogt, %658, %700 : vector<8x1xf32>
    %702 = vector.shape_cast %701 : vector<8x1xi1> to vector<8x1xi1>
    %703 = vector.broadcast %702 : vector<8x1xi1> to vector<8x32xi1>
    %704 = arith.select %703, %692, %654 : vector<8x32xi1>, vector<8x32xf32>
    %c14 = arith.constant 14 : index
    %c0_219 = arith.constant 0 : index
    %c0_220 = arith.constant 0 : index
    %705 = vector.load %arg0[%c14, %c0_219, %c0_220] : memref<21x8x16xf32, #tpu.memory_space<vmem>>, vector<1x8x16xf32>
    %706 = vector.shape_cast %705 : vector<1x8x16xf32> to vector<8x16xf32>
    %c14_221 = arith.constant 14 : index
    %c0_222 = arith.constant 0 : index
    %c0_223 = arith.constant 0 : index
    %707 = vector.load %arg1[%c14_221, %c0_222, %c0_223] : memref<21x8x1xf32, #tpu.memory_space<vmem>>, vector<1x8x1xf32>
    %708 = vector.shape_cast %707 : vector<1x8x1xf32> to vector<8x1xf32>
    %c14_224 = arith.constant 14 : index
    %c0_225 = arith.constant 0 : index
    %c0_226 = arith.constant 0 : index
    %709 = vector.load %arg2[%c14_224, %c0_225, %c0_226] : memref<21x8x1xf32, #tpu.memory_space<vmem>>, vector<1x8x1xf32>
    %710 = vector.shape_cast %709 : vector<1x8x1xf32> to vector<8x1xf32>
    %cst_227 = arith.constant 0.000000e+00 : f32
    %711 = vector.broadcast %cst_227 : f32 to vector<8x1xf32>
    %712 = arith.cmpf ogt, %710, %711 : vector<8x1xf32>
    %713 = vector.shape_cast %712 : vector<8x1xi1> to vector<8x1xi1>
    %714 = vector.broadcast %713 : vector<8x1xi1> to vector<8x32xi1>
    %715 = arith.select %714, %699, %665 : vector<8x32xi1>, vector<8x32xf32>
    %716 = tpu.concatenate %706, %699 in 1 : vector<8x16xf32>, vector<8x32xf32> -> vector<8x48xf32>
    %cst_228 = arith.constant dense<0.000000e+00> : vector<8x128xf32>
    %717 = tpu.matmul %716, %0, %cst_228 {dimension_numbers = #tpu.dot_dimension_numbers<[1], [0], [0], [1], [0, 0, 1, 1], [], []>} : vector<8x48xf32>, vector<48x128xf32>, vector<8x128xf32> -> vector<8x128xf32>
    %718 = vector.broadcast %1 : vector<1x128xf32> to vector<8x128xf32>
    %719 = arith.addf %717, %718 : vector<8x128xf32>
    %720 = vector.extract_strided_slice %719 {offsets = [0, 0], sizes = [8, 32], strides = [1, 1]} : vector<8x128xf32> to vector<8x32xf32>
    %721 = arith.negf %720 : vector<8x32xf32>
    %722 = math.exp %721 : vector<8x32xf32>
    %cst_229 = arith.constant 1.000000e+00 : f32
    %723 = vector.broadcast %cst_229 : f32 to vector<8x32xf32>
    %724 = arith.addf %723, %722 : vector<8x32xf32>
    %725 = arith.divf %723, %724 : vector<8x32xf32>
    %726 = vector.extract_strided_slice %719 {offsets = [0, 32], sizes = [8, 32], strides = [1, 1]} : vector<8x128xf32> to vector<8x32xf32>
    %727 = arith.negf %726 : vector<8x32xf32>
    %728 = math.exp %727 : vector<8x32xf32>
    %cst_230 = arith.constant 1.000000e+00 : f32
    %729 = vector.broadcast %cst_230 : f32 to vector<8x32xf32>
    %730 = arith.addf %729, %728 : vector<8x32xf32>
    %731 = arith.divf %729, %730 : vector<8x32xf32>
    %732 = vector.extract_strided_slice %719 {offsets = [0, 64], sizes = [8, 32], strides = [1, 1]} : vector<8x128xf32> to vector<8x32xf32>
    %733 = math.tanh %732 : vector<8x32xf32>
    %734 = vector.extract_strided_slice %719 {offsets = [0, 96], sizes = [8, 32], strides = [1, 1]} : vector<8x128xf32> to vector<8x32xf32>
    %735 = arith.negf %734 : vector<8x32xf32>
    %736 = math.exp %735 : vector<8x32xf32>
    %cst_231 = arith.constant 1.000000e+00 : f32
    %737 = vector.broadcast %cst_231 : f32 to vector<8x32xf32>
    %738 = arith.addf %737, %736 : vector<8x32xf32>
    %739 = arith.divf %737, %738 : vector<8x32xf32>
    %740 = arith.mulf %731, %704 : vector<8x32xf32>
    %741 = arith.mulf %725, %733 : vector<8x32xf32>
    %742 = arith.addf %740, %741 : vector<8x32xf32>
    %743 = math.tanh %742 : vector<8x32xf32>
    %744 = arith.mulf %739, %743 : vector<8x32xf32>
    %cst_232 = arith.constant 0.000000e+00 : f32
    %745 = vector.broadcast %cst_232 : f32 to vector<8x1xf32>
    %746 = arith.cmpf ogt, %708, %745 : vector<8x1xf32>
    %747 = vector.shape_cast %746 : vector<8x1xi1> to vector<8x1xi1>
    %748 = vector.broadcast %747 : vector<8x1xi1> to vector<8x32xi1>
    %749 = arith.select %748, %744, %699 : vector<8x32xi1>, vector<8x32xf32>
    %cst_233 = arith.constant 0.000000e+00 : f32
    %750 = vector.broadcast %cst_233 : f32 to vector<8x1xf32>
    %751 = arith.cmpf ogt, %708, %750 : vector<8x1xf32>
    %752 = vector.shape_cast %751 : vector<8x1xi1> to vector<8x1xi1>
    %753 = vector.broadcast %752 : vector<8x1xi1> to vector<8x32xi1>
    %754 = arith.select %753, %742, %704 : vector<8x32xi1>, vector<8x32xf32>
    %c15 = arith.constant 15 : index
    %c0_234 = arith.constant 0 : index
    %c0_235 = arith.constant 0 : index
    %755 = vector.load %arg0[%c15, %c0_234, %c0_235] : memref<21x8x16xf32, #tpu.memory_space<vmem>>, vector<1x8x16xf32>
    %756 = vector.shape_cast %755 : vector<1x8x16xf32> to vector<8x16xf32>
    %c15_236 = arith.constant 15 : index
    %c0_237 = arith.constant 0 : index
    %c0_238 = arith.constant 0 : index
    %757 = vector.load %arg1[%c15_236, %c0_237, %c0_238] : memref<21x8x1xf32, #tpu.memory_space<vmem>>, vector<1x8x1xf32>
    %758 = vector.shape_cast %757 : vector<1x8x1xf32> to vector<8x1xf32>
    %c15_239 = arith.constant 15 : index
    %c0_240 = arith.constant 0 : index
    %c0_241 = arith.constant 0 : index
    %759 = vector.load %arg2[%c15_239, %c0_240, %c0_241] : memref<21x8x1xf32, #tpu.memory_space<vmem>>, vector<1x8x1xf32>
    %760 = vector.shape_cast %759 : vector<1x8x1xf32> to vector<8x1xf32>
    %cst_242 = arith.constant 0.000000e+00 : f32
    %761 = vector.broadcast %cst_242 : f32 to vector<8x1xf32>
    %762 = arith.cmpf ogt, %760, %761 : vector<8x1xf32>
    %763 = vector.shape_cast %762 : vector<8x1xi1> to vector<8x1xi1>
    %764 = vector.broadcast %763 : vector<8x1xi1> to vector<8x32xi1>
    %765 = arith.select %764, %749, %715 : vector<8x32xi1>, vector<8x32xf32>
    %766 = tpu.concatenate %756, %749 in 1 : vector<8x16xf32>, vector<8x32xf32> -> vector<8x48xf32>
    %cst_243 = arith.constant dense<0.000000e+00> : vector<8x128xf32>
    %767 = tpu.matmul %766, %0, %cst_243 {dimension_numbers = #tpu.dot_dimension_numbers<[1], [0], [0], [1], [0, 0, 1, 1], [], []>} : vector<8x48xf32>, vector<48x128xf32>, vector<8x128xf32> -> vector<8x128xf32>
    %768 = vector.broadcast %1 : vector<1x128xf32> to vector<8x128xf32>
    %769 = arith.addf %767, %768 : vector<8x128xf32>
    %770 = vector.extract_strided_slice %769 {offsets = [0, 0], sizes = [8, 32], strides = [1, 1]} : vector<8x128xf32> to vector<8x32xf32>
    %771 = arith.negf %770 : vector<8x32xf32>
    %772 = math.exp %771 : vector<8x32xf32>
    %cst_244 = arith.constant 1.000000e+00 : f32
    %773 = vector.broadcast %cst_244 : f32 to vector<8x32xf32>
    %774 = arith.addf %773, %772 : vector<8x32xf32>
    %775 = arith.divf %773, %774 : vector<8x32xf32>
    %776 = vector.extract_strided_slice %769 {offsets = [0, 32], sizes = [8, 32], strides = [1, 1]} : vector<8x128xf32> to vector<8x32xf32>
    %777 = arith.negf %776 : vector<8x32xf32>
    %778 = math.exp %777 : vector<8x32xf32>
    %cst_245 = arith.constant 1.000000e+00 : f32
    %779 = vector.broadcast %cst_245 : f32 to vector<8x32xf32>
    %780 = arith.addf %779, %778 : vector<8x32xf32>
    %781 = arith.divf %779, %780 : vector<8x32xf32>
    %782 = vector.extract_strided_slice %769 {offsets = [0, 64], sizes = [8, 32], strides = [1, 1]} : vector<8x128xf32> to vector<8x32xf32>
    %783 = math.tanh %782 : vector<8x32xf32>
    %784 = vector.extract_strided_slice %769 {offsets = [0, 96], sizes = [8, 32], strides = [1, 1]} : vector<8x128xf32> to vector<8x32xf32>
    %785 = arith.negf %784 : vector<8x32xf32>
    %786 = math.exp %785 : vector<8x32xf32>
    %cst_246 = arith.constant 1.000000e+00 : f32
    %787 = vector.broadcast %cst_246 : f32 to vector<8x32xf32>
    %788 = arith.addf %787, %786 : vector<8x32xf32>
    %789 = arith.divf %787, %788 : vector<8x32xf32>
    %790 = arith.mulf %781, %754 : vector<8x32xf32>
    %791 = arith.mulf %775, %783 : vector<8x32xf32>
    %792 = arith.addf %790, %791 : vector<8x32xf32>
    %793 = math.tanh %792 : vector<8x32xf32>
    %794 = arith.mulf %789, %793 : vector<8x32xf32>
    %cst_247 = arith.constant 0.000000e+00 : f32
    %795 = vector.broadcast %cst_247 : f32 to vector<8x1xf32>
    %796 = arith.cmpf ogt, %758, %795 : vector<8x1xf32>
    %797 = vector.shape_cast %796 : vector<8x1xi1> to vector<8x1xi1>
    %798 = vector.broadcast %797 : vector<8x1xi1> to vector<8x32xi1>
    %799 = arith.select %798, %794, %749 : vector<8x32xi1>, vector<8x32xf32>
    %cst_248 = arith.constant 0.000000e+00 : f32
    %800 = vector.broadcast %cst_248 : f32 to vector<8x1xf32>
    %801 = arith.cmpf ogt, %758, %800 : vector<8x1xf32>
    %802 = vector.shape_cast %801 : vector<8x1xi1> to vector<8x1xi1>
    %803 = vector.broadcast %802 : vector<8x1xi1> to vector<8x32xi1>
    %804 = arith.select %803, %792, %754 : vector<8x32xi1>, vector<8x32xf32>
    %c16 = arith.constant 16 : index
    %c0_249 = arith.constant 0 : index
    %c0_250 = arith.constant 0 : index
    %805 = vector.load %arg0[%c16, %c0_249, %c0_250] : memref<21x8x16xf32, #tpu.memory_space<vmem>>, vector<1x8x16xf32>
    %806 = vector.shape_cast %805 : vector<1x8x16xf32> to vector<8x16xf32>
    %c16_251 = arith.constant 16 : index
    %c0_252 = arith.constant 0 : index
    %c0_253 = arith.constant 0 : index
    %807 = vector.load %arg1[%c16_251, %c0_252, %c0_253] : memref<21x8x1xf32, #tpu.memory_space<vmem>>, vector<1x8x1xf32>
    %808 = vector.shape_cast %807 : vector<1x8x1xf32> to vector<8x1xf32>
    %c16_254 = arith.constant 16 : index
    %c0_255 = arith.constant 0 : index
    %c0_256 = arith.constant 0 : index
    %809 = vector.load %arg2[%c16_254, %c0_255, %c0_256] : memref<21x8x1xf32, #tpu.memory_space<vmem>>, vector<1x8x1xf32>
    %810 = vector.shape_cast %809 : vector<1x8x1xf32> to vector<8x1xf32>
    %cst_257 = arith.constant 0.000000e+00 : f32
    %811 = vector.broadcast %cst_257 : f32 to vector<8x1xf32>
    %812 = arith.cmpf ogt, %810, %811 : vector<8x1xf32>
    %813 = vector.shape_cast %812 : vector<8x1xi1> to vector<8x1xi1>
    %814 = vector.broadcast %813 : vector<8x1xi1> to vector<8x32xi1>
    %815 = arith.select %814, %799, %765 : vector<8x32xi1>, vector<8x32xf32>
    %816 = tpu.concatenate %806, %799 in 1 : vector<8x16xf32>, vector<8x32xf32> -> vector<8x48xf32>
    %cst_258 = arith.constant dense<0.000000e+00> : vector<8x128xf32>
    %817 = tpu.matmul %816, %0, %cst_258 {dimension_numbers = #tpu.dot_dimension_numbers<[1], [0], [0], [1], [0, 0, 1, 1], [], []>} : vector<8x48xf32>, vector<48x128xf32>, vector<8x128xf32> -> vector<8x128xf32>
    %818 = vector.broadcast %1 : vector<1x128xf32> to vector<8x128xf32>
    %819 = arith.addf %817, %818 : vector<8x128xf32>
    %820 = vector.extract_strided_slice %819 {offsets = [0, 0], sizes = [8, 32], strides = [1, 1]} : vector<8x128xf32> to vector<8x32xf32>
    %821 = arith.negf %820 : vector<8x32xf32>
    %822 = math.exp %821 : vector<8x32xf32>
    %cst_259 = arith.constant 1.000000e+00 : f32
    %823 = vector.broadcast %cst_259 : f32 to vector<8x32xf32>
    %824 = arith.addf %823, %822 : vector<8x32xf32>
    %825 = arith.divf %823, %824 : vector<8x32xf32>
    %826 = vector.extract_strided_slice %819 {offsets = [0, 32], sizes = [8, 32], strides = [1, 1]} : vector<8x128xf32> to vector<8x32xf32>
    %827 = arith.negf %826 : vector<8x32xf32>
    %828 = math.exp %827 : vector<8x32xf32>
    %cst_260 = arith.constant 1.000000e+00 : f32
    %829 = vector.broadcast %cst_260 : f32 to vector<8x32xf32>
    %830 = arith.addf %829, %828 : vector<8x32xf32>
    %831 = arith.divf %829, %830 : vector<8x32xf32>
    %832 = vector.extract_strided_slice %819 {offsets = [0, 64], sizes = [8, 32], strides = [1, 1]} : vector<8x128xf32> to vector<8x32xf32>
    %833 = math.tanh %832 : vector<8x32xf32>
    %834 = vector.extract_strided_slice %819 {offsets = [0, 96], sizes = [8, 32], strides = [1, 1]} : vector<8x128xf32> to vector<8x32xf32>
    %835 = arith.negf %834 : vector<8x32xf32>
    %836 = math.exp %835 : vector<8x32xf32>
    %cst_261 = arith.constant 1.000000e+00 : f32
    %837 = vector.broadcast %cst_261 : f32 to vector<8x32xf32>
    %838 = arith.addf %837, %836 : vector<8x32xf32>
    %839 = arith.divf %837, %838 : vector<8x32xf32>
    %840 = arith.mulf %831, %804 : vector<8x32xf32>
    %841 = arith.mulf %825, %833 : vector<8x32xf32>
    %842 = arith.addf %840, %841 : vector<8x32xf32>
    %843 = math.tanh %842 : vector<8x32xf32>
    %844 = arith.mulf %839, %843 : vector<8x32xf32>
    %cst_262 = arith.constant 0.000000e+00 : f32
    %845 = vector.broadcast %cst_262 : f32 to vector<8x1xf32>
    %846 = arith.cmpf ogt, %808, %845 : vector<8x1xf32>
    %847 = vector.shape_cast %846 : vector<8x1xi1> to vector<8x1xi1>
    %848 = vector.broadcast %847 : vector<8x1xi1> to vector<8x32xi1>
    %849 = arith.select %848, %844, %799 : vector<8x32xi1>, vector<8x32xf32>
    %cst_263 = arith.constant 0.000000e+00 : f32
    %850 = vector.broadcast %cst_263 : f32 to vector<8x1xf32>
    %851 = arith.cmpf ogt, %808, %850 : vector<8x1xf32>
    %852 = vector.shape_cast %851 : vector<8x1xi1> to vector<8x1xi1>
    %853 = vector.broadcast %852 : vector<8x1xi1> to vector<8x32xi1>
    %854 = arith.select %853, %842, %804 : vector<8x32xi1>, vector<8x32xf32>
    %c17 = arith.constant 17 : index
    %c0_264 = arith.constant 0 : index
    %c0_265 = arith.constant 0 : index
    %855 = vector.load %arg0[%c17, %c0_264, %c0_265] : memref<21x8x16xf32, #tpu.memory_space<vmem>>, vector<1x8x16xf32>
    %856 = vector.shape_cast %855 : vector<1x8x16xf32> to vector<8x16xf32>
    %c17_266 = arith.constant 17 : index
    %c0_267 = arith.constant 0 : index
    %c0_268 = arith.constant 0 : index
    %857 = vector.load %arg1[%c17_266, %c0_267, %c0_268] : memref<21x8x1xf32, #tpu.memory_space<vmem>>, vector<1x8x1xf32>
    %858 = vector.shape_cast %857 : vector<1x8x1xf32> to vector<8x1xf32>
    %c17_269 = arith.constant 17 : index
    %c0_270 = arith.constant 0 : index
    %c0_271 = arith.constant 0 : index
    %859 = vector.load %arg2[%c17_269, %c0_270, %c0_271] : memref<21x8x1xf32, #tpu.memory_space<vmem>>, vector<1x8x1xf32>
    %860 = vector.shape_cast %859 : vector<1x8x1xf32> to vector<8x1xf32>
    %cst_272 = arith.constant 0.000000e+00 : f32
    %861 = vector.broadcast %cst_272 : f32 to vector<8x1xf32>
    %862 = arith.cmpf ogt, %860, %861 : vector<8x1xf32>
    %863 = vector.shape_cast %862 : vector<8x1xi1> to vector<8x1xi1>
    %864 = vector.broadcast %863 : vector<8x1xi1> to vector<8x32xi1>
    %865 = arith.select %864, %849, %815 : vector<8x32xi1>, vector<8x32xf32>
    %866 = tpu.concatenate %856, %849 in 1 : vector<8x16xf32>, vector<8x32xf32> -> vector<8x48xf32>
    %cst_273 = arith.constant dense<0.000000e+00> : vector<8x128xf32>
    %867 = tpu.matmul %866, %0, %cst_273 {dimension_numbers = #tpu.dot_dimension_numbers<[1], [0], [0], [1], [0, 0, 1, 1], [], []>} : vector<8x48xf32>, vector<48x128xf32>, vector<8x128xf32> -> vector<8x128xf32>
    %868 = vector.broadcast %1 : vector<1x128xf32> to vector<8x128xf32>
    %869 = arith.addf %867, %868 : vector<8x128xf32>
    %870 = vector.extract_strided_slice %869 {offsets = [0, 0], sizes = [8, 32], strides = [1, 1]} : vector<8x128xf32> to vector<8x32xf32>
    %871 = arith.negf %870 : vector<8x32xf32>
    %872 = math.exp %871 : vector<8x32xf32>
    %cst_274 = arith.constant 1.000000e+00 : f32
    %873 = vector.broadcast %cst_274 : f32 to vector<8x32xf32>
    %874 = arith.addf %873, %872 : vector<8x32xf32>
    %875 = arith.divf %873, %874 : vector<8x32xf32>
    %876 = vector.extract_strided_slice %869 {offsets = [0, 32], sizes = [8, 32], strides = [1, 1]} : vector<8x128xf32> to vector<8x32xf32>
    %877 = arith.negf %876 : vector<8x32xf32>
    %878 = math.exp %877 : vector<8x32xf32>
    %cst_275 = arith.constant 1.000000e+00 : f32
    %879 = vector.broadcast %cst_275 : f32 to vector<8x32xf32>
    %880 = arith.addf %879, %878 : vector<8x32xf32>
    %881 = arith.divf %879, %880 : vector<8x32xf32>
    %882 = vector.extract_strided_slice %869 {offsets = [0, 64], sizes = [8, 32], strides = [1, 1]} : vector<8x128xf32> to vector<8x32xf32>
    %883 = math.tanh %882 : vector<8x32xf32>
    %884 = vector.extract_strided_slice %869 {offsets = [0, 96], sizes = [8, 32], strides = [1, 1]} : vector<8x128xf32> to vector<8x32xf32>
    %885 = arith.negf %884 : vector<8x32xf32>
    %886 = math.exp %885 : vector<8x32xf32>
    %cst_276 = arith.constant 1.000000e+00 : f32
    %887 = vector.broadcast %cst_276 : f32 to vector<8x32xf32>
    %888 = arith.addf %887, %886 : vector<8x32xf32>
    %889 = arith.divf %887, %888 : vector<8x32xf32>
    %890 = arith.mulf %881, %854 : vector<8x32xf32>
    %891 = arith.mulf %875, %883 : vector<8x32xf32>
    %892 = arith.addf %890, %891 : vector<8x32xf32>
    %893 = math.tanh %892 : vector<8x32xf32>
    %894 = arith.mulf %889, %893 : vector<8x32xf32>
    %cst_277 = arith.constant 0.000000e+00 : f32
    %895 = vector.broadcast %cst_277 : f32 to vector<8x1xf32>
    %896 = arith.cmpf ogt, %858, %895 : vector<8x1xf32>
    %897 = vector.shape_cast %896 : vector<8x1xi1> to vector<8x1xi1>
    %898 = vector.broadcast %897 : vector<8x1xi1> to vector<8x32xi1>
    %899 = arith.select %898, %894, %849 : vector<8x32xi1>, vector<8x32xf32>
    %cst_278 = arith.constant 0.000000e+00 : f32
    %900 = vector.broadcast %cst_278 : f32 to vector<8x1xf32>
    %901 = arith.cmpf ogt, %858, %900 : vector<8x1xf32>
    %902 = vector.shape_cast %901 : vector<8x1xi1> to vector<8x1xi1>
    %903 = vector.broadcast %902 : vector<8x1xi1> to vector<8x32xi1>
    %904 = arith.select %903, %892, %854 : vector<8x32xi1>, vector<8x32xf32>
    %c18 = arith.constant 18 : index
    %c0_279 = arith.constant 0 : index
    %c0_280 = arith.constant 0 : index
    %905 = vector.load %arg0[%c18, %c0_279, %c0_280] : memref<21x8x16xf32, #tpu.memory_space<vmem>>, vector<1x8x16xf32>
    %906 = vector.shape_cast %905 : vector<1x8x16xf32> to vector<8x16xf32>
    %c18_281 = arith.constant 18 : index
    %c0_282 = arith.constant 0 : index
    %c0_283 = arith.constant 0 : index
    %907 = vector.load %arg1[%c18_281, %c0_282, %c0_283] : memref<21x8x1xf32, #tpu.memory_space<vmem>>, vector<1x8x1xf32>
    %908 = vector.shape_cast %907 : vector<1x8x1xf32> to vector<8x1xf32>
    %c18_284 = arith.constant 18 : index
    %c0_285 = arith.constant 0 : index
    %c0_286 = arith.constant 0 : index
    %909 = vector.load %arg2[%c18_284, %c0_285, %c0_286] : memref<21x8x1xf32, #tpu.memory_space<vmem>>, vector<1x8x1xf32>
    %910 = vector.shape_cast %909 : vector<1x8x1xf32> to vector<8x1xf32>
    %cst_287 = arith.constant 0.000000e+00 : f32
    %911 = vector.broadcast %cst_287 : f32 to vector<8x1xf32>
    %912 = arith.cmpf ogt, %910, %911 : vector<8x1xf32>
    %913 = vector.shape_cast %912 : vector<8x1xi1> to vector<8x1xi1>
    %914 = vector.broadcast %913 : vector<8x1xi1> to vector<8x32xi1>
    %915 = arith.select %914, %899, %865 : vector<8x32xi1>, vector<8x32xf32>
    %916 = tpu.concatenate %906, %899 in 1 : vector<8x16xf32>, vector<8x32xf32> -> vector<8x48xf32>
    %cst_288 = arith.constant dense<0.000000e+00> : vector<8x128xf32>
    %917 = tpu.matmul %916, %0, %cst_288 {dimension_numbers = #tpu.dot_dimension_numbers<[1], [0], [0], [1], [0, 0, 1, 1], [], []>} : vector<8x48xf32>, vector<48x128xf32>, vector<8x128xf32> -> vector<8x128xf32>
    %918 = vector.broadcast %1 : vector<1x128xf32> to vector<8x128xf32>
    %919 = arith.addf %917, %918 : vector<8x128xf32>
    %920 = vector.extract_strided_slice %919 {offsets = [0, 0], sizes = [8, 32], strides = [1, 1]} : vector<8x128xf32> to vector<8x32xf32>
    %921 = arith.negf %920 : vector<8x32xf32>
    %922 = math.exp %921 : vector<8x32xf32>
    %cst_289 = arith.constant 1.000000e+00 : f32
    %923 = vector.broadcast %cst_289 : f32 to vector<8x32xf32>
    %924 = arith.addf %923, %922 : vector<8x32xf32>
    %925 = arith.divf %923, %924 : vector<8x32xf32>
    %926 = vector.extract_strided_slice %919 {offsets = [0, 32], sizes = [8, 32], strides = [1, 1]} : vector<8x128xf32> to vector<8x32xf32>
    %927 = arith.negf %926 : vector<8x32xf32>
    %928 = math.exp %927 : vector<8x32xf32>
    %cst_290 = arith.constant 1.000000e+00 : f32
    %929 = vector.broadcast %cst_290 : f32 to vector<8x32xf32>
    %930 = arith.addf %929, %928 : vector<8x32xf32>
    %931 = arith.divf %929, %930 : vector<8x32xf32>
    %932 = vector.extract_strided_slice %919 {offsets = [0, 64], sizes = [8, 32], strides = [1, 1]} : vector<8x128xf32> to vector<8x32xf32>
    %933 = math.tanh %932 : vector<8x32xf32>
    %934 = vector.extract_strided_slice %919 {offsets = [0, 96], sizes = [8, 32], strides = [1, 1]} : vector<8x128xf32> to vector<8x32xf32>
    %935 = arith.negf %934 : vector<8x32xf32>
    %936 = math.exp %935 : vector<8x32xf32>
    %cst_291 = arith.constant 1.000000e+00 : f32
    %937 = vector.broadcast %cst_291 : f32 to vector<8x32xf32>
    %938 = arith.addf %937, %936 : vector<8x32xf32>
    %939 = arith.divf %937, %938 : vector<8x32xf32>
    %940 = arith.mulf %931, %904 : vector<8x32xf32>
    %941 = arith.mulf %925, %933 : vector<8x32xf32>
    %942 = arith.addf %940, %941 : vector<8x32xf32>
    %943 = math.tanh %942 : vector<8x32xf32>
    %944 = arith.mulf %939, %943 : vector<8x32xf32>
    %cst_292 = arith.constant 0.000000e+00 : f32
    %945 = vector.broadcast %cst_292 : f32 to vector<8x1xf32>
    %946 = arith.cmpf ogt, %908, %945 : vector<8x1xf32>
    %947 = vector.shape_cast %946 : vector<8x1xi1> to vector<8x1xi1>
    %948 = vector.broadcast %947 : vector<8x1xi1> to vector<8x32xi1>
    %949 = arith.select %948, %944, %899 : vector<8x32xi1>, vector<8x32xf32>
    %cst_293 = arith.constant 0.000000e+00 : f32
    %950 = vector.broadcast %cst_293 : f32 to vector<8x1xf32>
    %951 = arith.cmpf ogt, %908, %950 : vector<8x1xf32>
    %952 = vector.shape_cast %951 : vector<8x1xi1> to vector<8x1xi1>
    %953 = vector.broadcast %952 : vector<8x1xi1> to vector<8x32xi1>
    %954 = arith.select %953, %942, %904 : vector<8x32xi1>, vector<8x32xf32>
    %c19 = arith.constant 19 : index
    %c0_294 = arith.constant 0 : index
    %c0_295 = arith.constant 0 : index
    %955 = vector.load %arg0[%c19, %c0_294, %c0_295] : memref<21x8x16xf32, #tpu.memory_space<vmem>>, vector<1x8x16xf32>
    %956 = vector.shape_cast %955 : vector<1x8x16xf32> to vector<8x16xf32>
    %c19_296 = arith.constant 19 : index
    %c0_297 = arith.constant 0 : index
    %c0_298 = arith.constant 0 : index
    %957 = vector.load %arg1[%c19_296, %c0_297, %c0_298] : memref<21x8x1xf32, #tpu.memory_space<vmem>>, vector<1x8x1xf32>
    %958 = vector.shape_cast %957 : vector<1x8x1xf32> to vector<8x1xf32>
    %c19_299 = arith.constant 19 : index
    %c0_300 = arith.constant 0 : index
    %c0_301 = arith.constant 0 : index
    %959 = vector.load %arg2[%c19_299, %c0_300, %c0_301] : memref<21x8x1xf32, #tpu.memory_space<vmem>>, vector<1x8x1xf32>
    %960 = vector.shape_cast %959 : vector<1x8x1xf32> to vector<8x1xf32>
    %cst_302 = arith.constant 0.000000e+00 : f32
    %961 = vector.broadcast %cst_302 : f32 to vector<8x1xf32>
    %962 = arith.cmpf ogt, %960, %961 : vector<8x1xf32>
    %963 = vector.shape_cast %962 : vector<8x1xi1> to vector<8x1xi1>
    %964 = vector.broadcast %963 : vector<8x1xi1> to vector<8x32xi1>
    %965 = arith.select %964, %949, %915 : vector<8x32xi1>, vector<8x32xf32>
    %966 = tpu.concatenate %956, %949 in 1 : vector<8x16xf32>, vector<8x32xf32> -> vector<8x48xf32>
    %cst_303 = arith.constant dense<0.000000e+00> : vector<8x128xf32>
    %967 = tpu.matmul %966, %0, %cst_303 {dimension_numbers = #tpu.dot_dimension_numbers<[1], [0], [0], [1], [0, 0, 1, 1], [], []>} : vector<8x48xf32>, vector<48x128xf32>, vector<8x128xf32> -> vector<8x128xf32>
    %968 = vector.broadcast %1 : vector<1x128xf32> to vector<8x128xf32>
    %969 = arith.addf %967, %968 : vector<8x128xf32>
    %970 = vector.extract_strided_slice %969 {offsets = [0, 0], sizes = [8, 32], strides = [1, 1]} : vector<8x128xf32> to vector<8x32xf32>
    %971 = arith.negf %970 : vector<8x32xf32>
    %972 = math.exp %971 : vector<8x32xf32>
    %cst_304 = arith.constant 1.000000e+00 : f32
    %973 = vector.broadcast %cst_304 : f32 to vector<8x32xf32>
    %974 = arith.addf %973, %972 : vector<8x32xf32>
    %975 = arith.divf %973, %974 : vector<8x32xf32>
    %976 = vector.extract_strided_slice %969 {offsets = [0, 32], sizes = [8, 32], strides = [1, 1]} : vector<8x128xf32> to vector<8x32xf32>
    %977 = arith.negf %976 : vector<8x32xf32>
    %978 = math.exp %977 : vector<8x32xf32>
    %cst_305 = arith.constant 1.000000e+00 : f32
    %979 = vector.broadcast %cst_305 : f32 to vector<8x32xf32>
    %980 = arith.addf %979, %978 : vector<8x32xf32>
    %981 = arith.divf %979, %980 : vector<8x32xf32>
    %982 = vector.extract_strided_slice %969 {offsets = [0, 64], sizes = [8, 32], strides = [1, 1]} : vector<8x128xf32> to vector<8x32xf32>
    %983 = math.tanh %982 : vector<8x32xf32>
    %984 = vector.extract_strided_slice %969 {offsets = [0, 96], sizes = [8, 32], strides = [1, 1]} : vector<8x128xf32> to vector<8x32xf32>
    %985 = arith.negf %984 : vector<8x32xf32>
    %986 = math.exp %985 : vector<8x32xf32>
    %cst_306 = arith.constant 1.000000e+00 : f32
    %987 = vector.broadcast %cst_306 : f32 to vector<8x32xf32>
    %988 = arith.addf %987, %986 : vector<8x32xf32>
    %989 = arith.divf %987, %988 : vector<8x32xf32>
    %990 = arith.mulf %981, %954 : vector<8x32xf32>
    %991 = arith.mulf %975, %983 : vector<8x32xf32>
    %992 = arith.addf %990, %991 : vector<8x32xf32>
    %993 = math.tanh %992 : vector<8x32xf32>
    %994 = arith.mulf %989, %993 : vector<8x32xf32>
    %cst_307 = arith.constant 0.000000e+00 : f32
    %995 = vector.broadcast %cst_307 : f32 to vector<8x1xf32>
    %996 = arith.cmpf ogt, %958, %995 : vector<8x1xf32>
    %997 = vector.shape_cast %996 : vector<8x1xi1> to vector<8x1xi1>
    %998 = vector.broadcast %997 : vector<8x1xi1> to vector<8x32xi1>
    %999 = arith.select %998, %994, %949 : vector<8x32xi1>, vector<8x32xf32>
    %cst_308 = arith.constant 0.000000e+00 : f32
    %1000 = vector.broadcast %cst_308 : f32 to vector<8x1xf32>
    %1001 = arith.cmpf ogt, %958, %1000 : vector<8x1xf32>
    %1002 = vector.shape_cast %1001 : vector<8x1xi1> to vector<8x1xi1>
    %1003 = vector.broadcast %1002 : vector<8x1xi1> to vector<8x32xi1>
    %1004 = arith.select %1003, %992, %954 : vector<8x32xi1>, vector<8x32xf32>
    %c20 = arith.constant 20 : index
    %c0_309 = arith.constant 0 : index
    %c0_310 = arith.constant 0 : index
    %1005 = vector.load %arg0[%c20, %c0_309, %c0_310] : memref<21x8x16xf32, #tpu.memory_space<vmem>>, vector<1x8x16xf32>
    %1006 = vector.shape_cast %1005 : vector<1x8x16xf32> to vector<8x16xf32>
    %c20_311 = arith.constant 20 : index
    %c0_312 = arith.constant 0 : index
    %c0_313 = arith.constant 0 : index
    %1007 = vector.load %arg1[%c20_311, %c0_312, %c0_313] : memref<21x8x1xf32, #tpu.memory_space<vmem>>, vector<1x8x1xf32>
    %1008 = vector.shape_cast %1007 : vector<1x8x1xf32> to vector<8x1xf32>
    %c20_314 = arith.constant 20 : index
    %c0_315 = arith.constant 0 : index
    %c0_316 = arith.constant 0 : index
    %1009 = vector.load %arg2[%c20_314, %c0_315, %c0_316] : memref<21x8x1xf32, #tpu.memory_space<vmem>>, vector<1x8x1xf32>
    %1010 = vector.shape_cast %1009 : vector<1x8x1xf32> to vector<8x1xf32>
    %cst_317 = arith.constant 0.000000e+00 : f32
    %1011 = vector.broadcast %cst_317 : f32 to vector<8x1xf32>
    %1012 = arith.cmpf ogt, %1010, %1011 : vector<8x1xf32>
    %1013 = vector.shape_cast %1012 : vector<8x1xi1> to vector<8x1xi1>
    %1014 = vector.broadcast %1013 : vector<8x1xi1> to vector<8x32xi1>
    %1015 = arith.select %1014, %999, %965 : vector<8x32xi1>, vector<8x32xf32>
    %1016 = tpu.concatenate %1006, %999 in 1 : vector<8x16xf32>, vector<8x32xf32> -> vector<8x48xf32>
    %cst_318 = arith.constant dense<0.000000e+00> : vector<8x128xf32>
    %1017 = tpu.matmul %1016, %0, %cst_318 {dimension_numbers = #tpu.dot_dimension_numbers<[1], [0], [0], [1], [0, 0, 1, 1], [], []>} : vector<8x48xf32>, vector<48x128xf32>, vector<8x128xf32> -> vector<8x128xf32>
    %1018 = vector.broadcast %1 : vector<1x128xf32> to vector<8x128xf32>
    %1019 = arith.addf %1017, %1018 : vector<8x128xf32>
    %1020 = vector.extract_strided_slice %1019 {offsets = [0, 0], sizes = [8, 32], strides = [1, 1]} : vector<8x128xf32> to vector<8x32xf32>
    %1021 = arith.negf %1020 : vector<8x32xf32>
    %1022 = math.exp %1021 : vector<8x32xf32>
    %cst_319 = arith.constant 1.000000e+00 : f32
    %1023 = vector.broadcast %cst_319 : f32 to vector<8x32xf32>
    %1024 = arith.addf %1023, %1022 : vector<8x32xf32>
    %1025 = arith.divf %1023, %1024 : vector<8x32xf32>
    %1026 = vector.extract_strided_slice %1019 {offsets = [0, 32], sizes = [8, 32], strides = [1, 1]} : vector<8x128xf32> to vector<8x32xf32>
    %1027 = arith.negf %1026 : vector<8x32xf32>
    %1028 = math.exp %1027 : vector<8x32xf32>
    %cst_320 = arith.constant 1.000000e+00 : f32
    %1029 = vector.broadcast %cst_320 : f32 to vector<8x32xf32>
    %1030 = arith.addf %1029, %1028 : vector<8x32xf32>
    %1031 = arith.divf %1029, %1030 : vector<8x32xf32>
    %1032 = vector.extract_strided_slice %1019 {offsets = [0, 64], sizes = [8, 32], strides = [1, 1]} : vector<8x128xf32> to vector<8x32xf32>
    %1033 = math.tanh %1032 : vector<8x32xf32>
    %1034 = vector.extract_strided_slice %1019 {offsets = [0, 96], sizes = [8, 32], strides = [1, 1]} : vector<8x128xf32> to vector<8x32xf32>
    %1035 = arith.negf %1034 : vector<8x32xf32>
    %1036 = math.exp %1035 : vector<8x32xf32>
    %cst_321 = arith.constant 1.000000e+00 : f32
    %1037 = vector.broadcast %cst_321 : f32 to vector<8x32xf32>
    %1038 = arith.addf %1037, %1036 : vector<8x32xf32>
    %1039 = arith.divf %1037, %1038 : vector<8x32xf32>
    %1040 = arith.mulf %1031, %1004 : vector<8x32xf32>
    %1041 = arith.mulf %1025, %1033 : vector<8x32xf32>
    %1042 = arith.addf %1040, %1041 : vector<8x32xf32>
    %1043 = math.tanh %1042 : vector<8x32xf32>
    %1044 = arith.mulf %1039, %1043 : vector<8x32xf32>
    %cst_322 = arith.constant 0.000000e+00 : f32
    %1045 = vector.broadcast %cst_322 : f32 to vector<8x1xf32>
    %1046 = arith.cmpf ogt, %1008, %1045 : vector<8x1xf32>
    %1047 = vector.shape_cast %1046 : vector<8x1xi1> to vector<8x1xi1>
    %1048 = vector.broadcast %1047 : vector<8x1xi1> to vector<8x32xi1>
    %1049 = arith.select %1048, %1044, %999 : vector<8x32xi1>, vector<8x32xf32>
    %cst_323 = arith.constant 0.000000e+00 : f32
    %1050 = vector.broadcast %cst_323 : f32 to vector<8x1xf32>
    %1051 = arith.cmpf ogt, %1008, %1050 : vector<8x1xf32>
    %1052 = vector.shape_cast %1051 : vector<8x1xi1> to vector<8x1xi1>
    %1053 = vector.broadcast %1052 : vector<8x1xi1> to vector<8x32xi1>
    %1054 = arith.select %1053, %1042, %1004 : vector<8x32xi1>, vector<8x32xf32>
    %c0_324 = arith.constant 0 : index
    %c0_325 = arith.constant 0 : index
    %1055 = vector.load %arg12[%c0_324, %c0_325] : memref<8x32xf32, #tpu.memory_space<vmem>>, vector<8x32xf32>
    tpu.vector_store %arg12[%c0_324, %c0_325], %1049 {strides = array<i32>} : memref<8x32xf32, #tpu.memory_space<vmem>>, vector<8x32xf32>,
    %c0_326 = arith.constant 0 : index
    %c0_327 = arith.constant 0 : index
    %1056 = vector.load %arg13[%c0_326, %c0_327] : memref<8x32xf32, #tpu.memory_space<vmem>>, vector<8x32xf32>
    tpu.vector_store %arg13[%c0_326, %c0_327], %1054 {strides = array<i32>} : memref<8x32xf32, #tpu.memory_space<vmem>>, vector<8x32xf32>,
    %c0_328 = arith.constant 0 : index
    %c0_329 = arith.constant 0 : index
    %1057 = vector.load %arg14[%c0_328, %c0_329] : memref<8x32xf32, #tpu.memory_space<vmem>>, vector<8x32xf32>
    tpu.vector_store %arg14[%c0_328, %c0_329], %1015 {strides = array<i32>} : memref<8x32xf32, #tpu.memory_space<vmem>>, vector<8x32xf32>,
    %c0_330 = arith.constant 0 : index
    %c0_331 = arith.constant 0 : index
    %1058 = vector.load %arg8[%c0_330, %c0_331] : memref<32x128xf32, #tpu.memory_space<vmem>>, vector<32x128xf32>
    %cst_332 = arith.constant dense<0.000000e+00> : vector<8x128xf32>
    %1059 = tpu.matmul %1049, %1058, %cst_332 {dimension_numbers = #tpu.dot_dimension_numbers<[1], [0], [0], [1], [0, 0, 1, 1], [], []>} : vector<8x32xf32>, vector<32x128xf32>, vector<8x128xf32> -> vector<8x128xf32>
    %c0_333 = arith.constant 0 : index
    %c0_334 = arith.constant 0 : index
    %1060 = vector.load %arg9[%c0_333, %c0_334] : memref<1x128xf32, #tpu.memory_space<vmem>>, vector<1x128xf32>
    %1061 = vector.broadcast %1060 : vector<1x128xf32> to vector<8x128xf32>
    %1062 = arith.addf %1059, %1061 : vector<8x128xf32>
    %cst_335 = arith.constant dense<0xFF800000> : vector<8xf32>
    %1063 = vector.multi_reduction <maximumf>, %1062, %cst_335 [1] : vector<8x128xf32> to vector<8xf32>
    %1064 = vector.shape_cast %1063 : vector<8xf32> to vector<8x1xf32>
    %1065 = vector.broadcast %1064 : vector<8x1xf32> to vector<8x128xf32>
    %1066 = arith.subf %1062, %1065 : vector<8x128xf32>
    %1067 = math.exp %1066 : vector<8x128xf32>
    %cst_336 = arith.constant dense<0.000000e+00> : vector<8xf32>
    %1068 = vector.multi_reduction <add>, %1067, %cst_336 [1] : vector<8x128xf32> to vector<8xf32>
    %1069 = vector.shape_cast %1068 : vector<8xf32> to vector<8x1xf32>
    %1070 = math.log %1069 : vector<8x1xf32>
    %1071 = vector.broadcast %1070 : vector<8x1xf32> to vector<8x128xf32>
    %1072 = arith.subf %1066, %1071 : vector<8x128xf32>
    %c0_337 = arith.constant 0 : index
    %c0_338 = arith.constant 0 : index
    %1073 = vector.load %arg15[%c0_337, %c0_338] : memref<8x128xf32, #tpu.memory_space<vmem>>, vector<8x128xf32>
    tpu.vector_store %arg15[%c0_337, %c0_338], %1072 {strides = array<i32>} : memref<8x128xf32, #tpu.memory_space<vmem>>, vector<8x128xf32>,
    %c0_339 = arith.constant 0 : index
    %c0_340 = arith.constant 0 : index
    %1074 = vector.load %arg10[%c0_339, %c0_340] : memref<32x128xf32, #tpu.memory_space<vmem>>, vector<32x128xf32>
    %cst_341 = arith.constant dense<0.000000e+00> : vector<8x128xf32>
    %1075 = tpu.matmul %1049, %1074, %cst_341 {dimension_numbers = #tpu.dot_dimension_numbers<[1], [0], [0], [1], [0, 0, 1, 1], [], []>} : vector<8x32xf32>, vector<32x128xf32>, vector<8x128xf32> -> vector<8x128xf32>
    %c0_342 = arith.constant 0 : index
    %c0_343 = arith.constant 0 : index
    %1076 = vector.load %arg11[%c0_342, %c0_343] : memref<1x128xf32, #tpu.memory_space<vmem>>, vector<1x128xf32>
    %1077 = vector.broadcast %1076 : vector<1x128xf32> to vector<8x128xf32>
    %1078 = arith.addf %1075, %1077 : vector<8x128xf32>
    %c0_344 = arith.constant 0 : index
    %c0_345 = arith.constant 0 : index
    %1079 = vector.load %arg16[%c0_344, %c0_345] : memref<8x128xf32, #tpu.memory_space<vmem>>, vector<8x128xf32>
    tpu.vector_store %arg16[%c0_344, %c0_345], %1078 {strides = array<i32>} : memref<8x128xf32, #tpu.memory_space<vmem>>, vector<8x128xf32>,
    return
  }
}

module attributes {stable_mosaic.version = 11 : i64} {
  func.func @_fused_outer_kernel(%arg0: memref<21x8x16xf32, #tpu.memory_space<vmem>>, %arg1: memref<21x8x1xf32, #tpu.memory_space<vmem>>, %arg2: memref<21x8x1xf32, #tpu.memory_space<vmem>>, %arg3: memref<8x32xf32, #tpu.memory_space<vmem>>, %arg4: memref<8x32xf32, #tpu.memory_space<vmem>>, %arg5: memref<8x32xf32, #tpu.memory_space<vmem>>, %arg6: memref<48x128xf32, #tpu.memory_space<vmem>>, %arg7: memref<1x128xf32, #tpu.memory_space<vmem>>, %arg8: memref<32x128xf32, #tpu.memory_space<vmem>>, %arg9: memref<1x128xf32, #tpu.memory_space<vmem>>, %arg10: memref<32x128xf32, #tpu.memory_space<vmem>>, %arg11: memref<1x128xf32, #tpu.memory_space<vmem>>, %arg12: memref<8x32xf32, #tpu.memory_space<vmem>>, %arg13: memref<8x32xf32, #tpu.memory_space<vmem>>, %arg14: memref<8x32xf32, #tpu.memory_space<vmem>>, %arg15: memref<8x128xf32, #tpu.memory_space<vmem>>, %arg16: memref<8x128xf32, #tpu.memory_space<vmem>>) attributes {dimension_semantics = [], scalar_prefetch = 0 : i64, scratch_operands = 0 : i64, tpu.core_type = #tpu.core_type<tc>} {
    %c0 = arith.constant 0 : index
    %c0_0 = arith.constant 0 : index
    %0 = vector.load %arg6[%c0, %c0_0] : memref<48x128xf32, #tpu.memory_space<vmem>>, vector<48x128xf32>
    %c0_1 = arith.constant 0 : index
    %c0_2 = arith.constant 0 : index
    %1 = vector.load %arg7[%c0_1, %c0_2] : memref<1x128xf32, #tpu.memory_space<vmem>>, vector<1x128xf32>
    %c0_3 = arith.constant 0 : index
    %c0_4 = arith.constant 0 : index
    %2 = vector.load %arg3[%c0_3, %c0_4] : memref<8x32xf32, #tpu.memory_space<vmem>>, vector<8x32xf32>
    %c0_5 = arith.constant 0 : index
    %c0_6 = arith.constant 0 : index
    %3 = vector.load %arg4[%c0_5, %c0_6] : memref<8x32xf32, #tpu.memory_space<vmem>>, vector<8x32xf32>
    %c0_7 = arith.constant 0 : index
    %c0_8 = arith.constant 0 : index
    %4 = vector.load %arg5[%c0_7, %c0_8] : memref<8x32xf32, #tpu.memory_space<vmem>>, vector<8x32xf32>
    %c0_9 = arith.constant 0 : index
    %c0_10 = arith.constant 0 : index
    %c0_11 = arith.constant 0 : index
    %5 = vector.load %arg0[%c0_9, %c0_10, %c0_11] : memref<21x8x16xf32, #tpu.memory_space<vmem>>, vector<1x8x16xf32>
    %6 = vector.shape_cast %5 : vector<1x8x16xf32> to vector<8x16xf32>
    %c0_12 = arith.constant 0 : index
    %c0_13 = arith.constant 0 : index
    %c0_14 = arith.constant 0 : index
    %7 = vector.load %arg1[%c0_12, %c0_13, %c0_14] : memref<21x8x1xf32, #tpu.memory_space<vmem>>, vector<1x8x1xf32>
    %8 = vector.shape_cast %7 : vector<1x8x1xf32> to vector<8x1xf32>
    %c0_15 = arith.constant 0 : index
    %c0_16 = arith.constant 0 : index
    %c0_17 = arith.constant 0 : index
    %9 = vector.load %arg2[%c0_15, %c0_16, %c0_17] : memref<21x8x1xf32, #tpu.memory_space<vmem>>, vector<1x8x1xf32>
    %10 = vector.shape_cast %9 : vector<1x8x1xf32> to vector<8x1xf32>
    %cst = arith.constant 0.000000e+00 : f32
    %11 = vector.broadcast %cst : f32 to vector<8x1xf32>
    %12 = arith.cmpf ogt, %10, %11 : vector<8x1xf32>
    %13 = vector.shape_cast %12 : vector<8x1xi1> to vector<8x1xi1>
    %14 = vector.broadcast %13 : vector<8x1xi1> to vector<8x32xi1>
    %15 = arith.select %14, %2, %4 : vector<8x32xi1>, vector<8x32xf32>
    %16 = tpu.concatenate %6, %2 in 1 : vector<8x16xf32>, vector<8x32xf32> -> vector<8x48xf32>
    %cst_18 = arith.constant dense<0.000000e+00> : vector<8x128xf32>
    %17 = tpu.matmul %16, %0, %cst_18 {dimension_numbers = #tpu.dot_dimension_numbers<[1], [0], [0], [1], [0, 0, 1, 1], [], []>} : vector<8x48xf32>, vector<48x128xf32>, vector<8x128xf32> -> vector<8x128xf32>
    %18 = vector.broadcast %1 : vector<1x128xf32> to vector<8x128xf32>
    %19 = arith.addf %17, %18 : vector<8x128xf32>
    %20 = vector.extract_strided_slice %19 {offsets = [0, 0], sizes = [8, 32], strides = [1, 1]} : vector<8x128xf32> to vector<8x32xf32>
    %21 = arith.negf %20 : vector<8x32xf32>
    %22 = math.exp %21 : vector<8x32xf32>
    %cst_19 = arith.constant 1.000000e+00 : f32
    %23 = vector.broadcast %cst_19 : f32 to vector<8x32xf32>
    %24 = arith.addf %23, %22 : vector<8x32xf32>
    %25 = arith.divf %23, %24 : vector<8x32xf32>
    %26 = vector.extract_strided_slice %19 {offsets = [0, 32], sizes = [8, 32], strides = [1, 1]} : vector<8x128xf32> to vector<8x32xf32>
    %27 = arith.negf %26 : vector<8x32xf32>
    %28 = math.exp %27 : vector<8x32xf32>
    %cst_20 = arith.constant 1.000000e+00 : f32
    %29 = vector.broadcast %cst_20 : f32 to vector<8x32xf32>
    %30 = arith.addf %29, %28 : vector<8x32xf32>
    %31 = arith.divf %29, %30 : vector<8x32xf32>
    %32 = vector.extract_strided_slice %19 {offsets = [0, 64], sizes = [8, 32], strides = [1, 1]} : vector<8x128xf32> to vector<8x32xf32>
    %33 = math.tanh %32 : vector<8x32xf32>
    %34 = vector.extract_strided_slice %19 {offsets = [0, 96], sizes = [8, 32], strides = [1, 1]} : vector<8x128xf32> to vector<8x32xf32>
    %35 = arith.negf %34 : vector<8x32xf32>
    %36 = math.exp %35 : vector<8x32xf32>
    %cst_21 = arith.constant 1.000000e+00 : f32
    %37 = vector.broadcast %cst_21 : f32 to vector<8x32xf32>
    %38 = arith.addf %37, %36 : vector<8x32xf32>
    %39 = arith.divf %37, %38 : vector<8x32xf32>
    %40 = arith.mulf %31, %3 : vector<8x32xf32>
    %41 = arith.mulf %25, %33 : vector<8x32xf32>
    %42 = arith.addf %40, %41 : vector<8x32xf32>
    %43 = math.tanh %42 : vector<8x32xf32>
    %44 = arith.mulf %39, %43 : vector<8x32xf32>
    %cst_22 = arith.constant 0.000000e+00 : f32
    %45 = vector.broadcast %cst_22 : f32 to vector<8x1xf32>
    %46 = arith.cmpf ogt, %8, %45 : vector<8x1xf32>
    %47 = vector.shape_cast %46 : vector<8x1xi1> to vector<8x1xi1>
    %48 = vector.broadcast %47 : vector<8x1xi1> to vector<8x32xi1>
    %49 = arith.select %48, %44, %2 : vector<8x32xi1>, vector<8x32xf32>
    %cst_23 = arith.constant 0.000000e+00 : f32
    %50 = vector.broadcast %cst_23 : f32 to vector<8x1xf32>
    %51 = arith.cmpf ogt, %8, %50 : vector<8x1xf32>
    %52 = vector.shape_cast %51 : vector<8x1xi1> to vector<8x1xi1>
    %53 = vector.broadcast %52 : vector<8x1xi1> to vector<8x32xi1>
    %54 = arith.select %53, %42, %3 : vector<8x32xi1>, vector<8x32xf32>
    %c1 = arith.constant 1 : index
    %c0_24 = arith.constant 0 : index
    %c0_25 = arith.constant 0 : index
    %55 = vector.load %arg0[%c1, %c0_24, %c0_25] : memref<21x8x16xf32, #tpu.memory_space<vmem>>, vector<1x8x16xf32>
    %56 = vector.shape_cast %55 : vector<1x8x16xf32> to vector<8x16xf32>
    %c1_26 = arith.constant 1 : index
    %c0_27 = arith.constant 0 : index
    %c0_28 = arith.constant 0 : index
    %57 = vector.load %arg1[%c1_26, %c0_27, %c0_28] : memref<21x8x1xf32, #tpu.memory_space<vmem>>, vector<1x8x1xf32>
    %58 = vector.shape_cast %57 : vector<1x8x1xf32> to vector<8x1xf32>
    %c1_29 = arith.constant 1 : index
    %c0_30 = arith.constant 0 : index
    %c0_31 = arith.constant 0 : index
    %59 = vector.load %arg2[%c1_29, %c0_30, %c0_31] : memref<21x8x1xf32, #tpu.memory_space<vmem>>, vector<1x8x1xf32>
    %60 = vector.shape_cast %59 : vector<1x8x1xf32> to vector<8x1xf32>
    %cst_32 = arith.constant 0.000000e+00 : f32
    %61 = vector.broadcast %cst_32 : f32 to vector<8x1xf32>
    %62 = arith.cmpf ogt, %60, %61 : vector<8x1xf32>
    %63 = vector.shape_cast %62 : vector<8x1xi1> to vector<8x1xi1>
    %64 = vector.broadcast %63 : vector<8x1xi1> to vector<8x32xi1>
    %65 = arith.select %64, %49, %15 : vector<8x32xi1>, vector<8x32xf32>
    %66 = tpu.concatenate %56, %49 in 1 : vector<8x16xf32>, vector<8x32xf32> -> vector<8x48xf32>
    %cst_33 = arith.constant dense<0.000000e+00> : vector<8x128xf32>
    %67 = tpu.matmul %66, %0, %cst_33 {dimension_numbers = #tpu.dot_dimension_numbers<[1], [0], [0], [1], [0, 0, 1, 1], [], []>} : vector<8x48xf32>, vector<48x128xf32>, vector<8x128xf32> -> vector<8x128xf32>
    %68 = vector.broadcast %1 : vector<1x128xf32> to vector<8x128xf32>
    %69 = arith.addf %67, %68 : vector<8x128xf32>
    %70 = vector.extract_strided_slice %69 {offsets = [0, 0], sizes = [8, 32], strides = [1, 1]} : vector<8x128xf32> to vector<8x32xf32>
    %71 = arith.negf %70 : vector<8x32xf32>
    %72 = math.exp %71 : vector<8x32xf32>
    %cst_34 = arith.constant 1.000000e+00 : f32
    %73 = vector.broadcast %cst_34 : f32 to vector<8x32xf32>
    %74 = arith.addf %73, %72 : vector<8x32xf32>
    %75 = arith.divf %73, %74 : vector<8x32xf32>
    %76 = vector.extract_strided_slice %69 {offsets = [0, 32], sizes = [8, 32], strides = [1, 1]} : vector<8x128xf32> to vector<8x32xf32>
    %77 = arith.negf %76 : vector<8x32xf32>
    %78 = math.exp %77 : vector<8x32xf32>
    %cst_35 = arith.constant 1.000000e+00 : f32
    %79 = vector.broadcast %cst_35 : f32 to vector<8x32xf32>
    %80 = arith.addf %79, %78 : vector<8x32xf32>
    %81 = arith.divf %79, %80 : vector<8x32xf32>
    %82 = vector.extract_strided_slice %69 {offsets = [0, 64], sizes = [8, 32], strides = [1, 1]} : vector<8x128xf32> to vector<8x32xf32>
    %83 = math.tanh %82 : vector<8x32xf32>
    %84 = vector.extract_strided_slice %69 {offsets = [0, 96], sizes = [8, 32], strides = [1, 1]} : vector<8x128xf32> to vector<8x32xf32>
    %85 = arith.negf %84 : vector<8x32xf32>
    %86 = math.exp %85 : vector<8x32xf32>
    %cst_36 = arith.constant 1.000000e+00 : f32
    %87 = vector.broadcast %cst_36 : f32 to vector<8x32xf32>
    %88 = arith.addf %87, %86 : vector<8x32xf32>
    %89 = arith.divf %87, %88 : vector<8x32xf32>
    %90 = arith.mulf %81, %54 : vector<8x32xf32>
    %91 = arith.mulf %75, %83 : vector<8x32xf32>
    %92 = arith.addf %90, %91 : vector<8x32xf32>
    %93 = math.tanh %92 : vector<8x32xf32>
    %94 = arith.mulf %89, %93 : vector<8x32xf32>
    %cst_37 = arith.constant 0.000000e+00 : f32
    %95 = vector.broadcast %cst_37 : f32 to vector<8x1xf32>
    %96 = arith.cmpf ogt, %58, %95 : vector<8x1xf32>
    %97 = vector.shape_cast %96 : vector<8x1xi1> to vector<8x1xi1>
    %98 = vector.broadcast %97 : vector<8x1xi1> to vector<8x32xi1>
    %99 = arith.select %98, %94, %49 : vector<8x32xi1>, vector<8x32xf32>
    %cst_38 = arith.constant 0.000000e+00 : f32
    %100 = vector.broadcast %cst_38 : f32 to vector<8x1xf32>
    %101 = arith.cmpf ogt, %58, %100 : vector<8x1xf32>
    %102 = vector.shape_cast %101 : vector<8x1xi1> to vector<8x1xi1>
    %103 = vector.broadcast %102 : vector<8x1xi1> to vector<8x32xi1>
    %104 = arith.select %103, %92, %54 : vector<8x32xi1>, vector<8x32xf32>
    %c2 = arith.constant 2 : index
    %c0_39 = arith.constant 0 : index
    %c0_40 = arith.constant 0 : index
    %105 = vector.load %arg0[%c2, %c0_39, %c0_40] : memref<21x8x16xf32, #tpu.memory_space<vmem>>, vector<1x8x16xf32>
    %106 = vector.shape_cast %105 : vector<1x8x16xf32> to vector<8x16xf32>
    %c2_41 = arith.constant 2 : index
    %c0_42 = arith.constant 0 : index
    %c0_43 = arith.constant 0 : index
    %107 = vector.load %arg1[%c2_41, %c0_42, %c0_43] : memref<21x8x1xf32, #tpu.memory_space<vmem>>, vector<1x8x1xf32>
    %108 = vector.shape_cast %107 : vector<1x8x1xf32> to vector<8x1xf32>
    %c2_44 = arith.constant 2 : index
    %c0_45 = arith.constant 0 : index
    %c0_46 = arith.constant 0 : index
    %109 = vector.load %arg2[%c2_44, %c0_45, %c0_46] : memref<21x8x1xf32, #tpu.memory_space<vmem>>, vector<1x8x1xf32>
    %110 = vector.shape_cast %109 : vector<1x8x1xf32> to vector<8x1xf32>
    %cst_47 = arith.constant 0.000000e+00 : f32
    %111 = vector.broadcast %cst_47 : f32 to vector<8x1xf32>
    %112 = arith.cmpf ogt, %110, %111 : vector<8x1xf32>
    %113 = vector.shape_cast %112 : vector<8x1xi1> to vector<8x1xi1>
    %114 = vector.broadcast %113 : vector<8x1xi1> to vector<8x32xi1>
    %115 = arith.select %114, %99, %65 : vector<8x32xi1>, vector<8x32xf32>
    %116 = tpu.concatenate %106, %99 in 1 : vector<8x16xf32>, vector<8x32xf32> -> vector<8x48xf32>
    %cst_48 = arith.constant dense<0.000000e+00> : vector<8x128xf32>
    %117 = tpu.matmul %116, %0, %cst_48 {dimension_numbers = #tpu.dot_dimension_numbers<[1], [0], [0], [1], [0, 0, 1, 1], [], []>} : vector<8x48xf32>, vector<48x128xf32>, vector<8x128xf32> -> vector<8x128xf32>
    %118 = vector.broadcast %1 : vector<1x128xf32> to vector<8x128xf32>
    %119 = arith.addf %117, %118 : vector<8x128xf32>
    %120 = vector.extract_strided_slice %119 {offsets = [0, 0], sizes = [8, 32], strides = [1, 1]} : vector<8x128xf32> to vector<8x32xf32>
    %121 = arith.negf %120 : vector<8x32xf32>
    %122 = math.exp %121 : vector<8x32xf32>
    %cst_49 = arith.constant 1.000000e+00 : f32
    %123 = vector.broadcast %cst_49 : f32 to vector<8x32xf32>
    %124 = arith.addf %123, %122 : vector<8x32xf32>
    %125 = arith.divf %123, %124 : vector<8x32xf32>
    %126 = vector.extract_strided_slice %119 {offsets = [0, 32], sizes = [8, 32], strides = [1, 1]} : vector<8x128xf32> to vector<8x32xf32>
    %127 = arith.negf %126 : vector<8x32xf32>
    %128 = math.exp %127 : vector<8x32xf32>
    %cst_50 = arith.constant 1.000000e+00 : f32
    %129 = vector.broadcast %cst_50 : f32 to vector<8x32xf32>
    %130 = arith.addf %129, %128 : vector<8x32xf32>
    %131 = arith.divf %129, %130 : vector<8x32xf32>
    %132 = vector.extract_strided_slice %119 {offsets = [0, 64], sizes = [8, 32], strides = [1, 1]} : vector<8x128xf32> to vector<8x32xf32>
    %133 = math.tanh %132 : vector<8x32xf32>
    %134 = vector.extract_strided_slice %119 {offsets = [0, 96], sizes = [8, 32], strides = [1, 1]} : vector<8x128xf32> to vector<8x32xf32>
    %135 = arith.negf %134 : vector<8x32xf32>
    %136 = math.exp %135 : vector<8x32xf32>
    %cst_51 = arith.constant 1.000000e+00 : f32
    %137 = vector.broadcast %cst_51 : f32 to vector<8x32xf32>
    %138 = arith.addf %137, %136 : vector<8x32xf32>
    %139 = arith.divf %137, %138 : vector<8x32xf32>
    %140 = arith.mulf %131, %104 : vector<8x32xf32>
    %141 = arith.mulf %125, %133 : vector<8x32xf32>
    %142 = arith.addf %140, %141 : vector<8x32xf32>
    %143 = math.tanh %142 : vector<8x32xf32>
    %144 = arith.mulf %139, %143 : vector<8x32xf32>
    %cst_52 = arith.constant 0.000000e+00 : f32
    %145 = vector.broadcast %cst_52 : f32 to vector<8x1xf32>
    %146 = arith.cmpf ogt, %108, %145 : vector<8x1xf32>
    %147 = vector.shape_cast %146 : vector<8x1xi1> to vector<8x1xi1>
    %148 = vector.broadcast %147 : vector<8x1xi1> to vector<8x32xi1>
    %149 = arith.select %148, %144, %99 : vector<8x32xi1>, vector<8x32xf32>
    %cst_53 = arith.constant 0.000000e+00 : f32
    %150 = vector.broadcast %cst_53 : f32 to vector<8x1xf32>
    %151 = arith.cmpf ogt, %108, %150 : vector<8x1xf32>
    %152 = vector.shape_cast %151 : vector<8x1xi1> to vector<8x1xi1>
    %153 = vector.broadcast %152 : vector<8x1xi1> to vector<8x32xi1>
    %154 = arith.select %153, %142, %104 : vector<8x32xi1>, vector<8x32xf32>
    %c3 = arith.constant 3 : index
    %c0_54 = arith.constant 0 : index
    %c0_55 = arith.constant 0 : index
    %155 = vector.load %arg0[%c3, %c0_54, %c0_55] : memref<21x8x16xf32, #tpu.memory_space<vmem>>, vector<1x8x16xf32>
    %156 = vector.shape_cast %155 : vector<1x8x16xf32> to vector<8x16xf32>
    %c3_56 = arith.constant 3 : index
    %c0_57 = arith.constant 0 : index
    %c0_58 = arith.constant 0 : index
    %157 = vector.load %arg1[%c3_56, %c0_57, %c0_58] : memref<21x8x1xf32, #tpu.memory_space<vmem>>, vector<1x8x1xf32>
    %158 = vector.shape_cast %157 : vector<1x8x1xf32> to vector<8x1xf32>
    %c3_59 = arith.constant 3 : index
    %c0_60 = arith.constant 0 : index
    %c0_61 = arith.constant 0 : index
    %159 = vector.load %arg2[%c3_59, %c0_60, %c0_61] : memref<21x8x1xf32, #tpu.memory_space<vmem>>, vector<1x8x1xf32>
    %160 = vector.shape_cast %159 : vector<1x8x1xf32> to vector<8x1xf32>
    %cst_62 = arith.constant 0.000000e+00 : f32
    %161 = vector.broadcast %cst_62 : f32 to vector<8x1xf32>
    %162 = arith.cmpf ogt, %160, %161 : vector<8x1xf32>
    %163 = vector.shape_cast %162 : vector<8x1xi1> to vector<8x1xi1>
    %164 = vector.broadcast %163 : vector<8x1xi1> to vector<8x32xi1>
    %165 = arith.select %164, %149, %115 : vector<8x32xi1>, vector<8x32xf32>
    %166 = tpu.concatenate %156, %149 in 1 : vector<8x16xf32>, vector<8x32xf32> -> vector<8x48xf32>
    %cst_63 = arith.constant dense<0.000000e+00> : vector<8x128xf32>
    %167 = tpu.matmul %166, %0, %cst_63 {dimension_numbers = #tpu.dot_dimension_numbers<[1], [0], [0], [1], [0, 0, 1, 1], [], []>} : vector<8x48xf32>, vector<48x128xf32>, vector<8x128xf32> -> vector<8x128xf32>
    %168 = vector.broadcast %1 : vector<1x128xf32> to vector<8x128xf32>
    %169 = arith.addf %167, %168 : vector<8x128xf32>
    %170 = vector.extract_strided_slice %169 {offsets = [0, 0], sizes = [8, 32], strides = [1, 1]} : vector<8x128xf32> to vector<8x32xf32>
    %171 = arith.negf %170 : vector<8x32xf32>
    %172 = math.exp %171 : vector<8x32xf32>
    %cst_64 = arith.constant 1.000000e+00 : f32
    %173 = vector.broadcast %cst_64 : f32 to vector<8x32xf32>
    %174 = arith.addf %173, %172 : vector<8x32xf32>
    %175 = arith.divf %173, %174 : vector<8x32xf32>
    %176 = vector.extract_strided_slice %169 {offsets = [0, 32], sizes = [8, 32], strides = [1, 1]} : vector<8x128xf32> to vector<8x32xf32>
    %177 = arith.negf %176 : vector<8x32xf32>
    %178 = math.exp %177 : vector<8x32xf32>
    %cst_65 = arith.constant 1.000000e+00 : f32
    %179 = vector.broadcast %cst_65 : f32 to vector<8x32xf32>
    %180 = arith.addf %179, %178 : vector<8x32xf32>
    %181 = arith.divf %179, %180 : vector<8x32xf32>
    %182 = vector.extract_strided_slice %169 {offsets = [0, 64], sizes = [8, 32], strides = [1, 1]} : vector<8x128xf32> to vector<8x32xf32>
    %183 = math.tanh %182 : vector<8x32xf32>
    %184 = vector.extract_strided_slice %169 {offsets = [0, 96], sizes = [8, 32], strides = [1, 1]} : vector<8x128xf32> to vector<8x32xf32>
    %185 = arith.negf %184 : vector<8x32xf32>
    %186 = math.exp %185 : vector<8x32xf32>
    %cst_66 = arith.constant 1.000000e+00 : f32
    %187 = vector.broadcast %cst_66 : f32 to vector<8x32xf32>
    %188 = arith.addf %187, %186 : vector<8x32xf32>
    %189 = arith.divf %187, %188 : vector<8x32xf32>
    %190 = arith.mulf %181, %154 : vector<8x32xf32>
    %191 = arith.mulf %175, %183 : vector<8x32xf32>
    %192 = arith.addf %190, %191 : vector<8x32xf32>
    %193 = math.tanh %192 : vector<8x32xf32>
    %194 = arith.mulf %189, %193 : vector<8x32xf32>
    %cst_67 = arith.constant 0.000000e+00 : f32
    %195 = vector.broadcast %cst_67 : f32 to vector<8x1xf32>
    %196 = arith.cmpf ogt, %158, %195 : vector<8x1xf32>
    %197 = vector.shape_cast %196 : vector<8x1xi1> to vector<8x1xi1>
    %198 = vector.broadcast %197 : vector<8x1xi1> to vector<8x32xi1>
    %199 = arith.select %198, %194, %149 : vector<8x32xi1>, vector<8x32xf32>
    %cst_68 = arith.constant 0.000000e+00 : f32
    %200 = vector.broadcast %cst_68 : f32 to vector<8x1xf32>
    %201 = arith.cmpf ogt, %158, %200 : vector<8x1xf32>
    %202 = vector.shape_cast %201 : vector<8x1xi1> to vector<8x1xi1>
    %203 = vector.broadcast %202 : vector<8x1xi1> to vector<8x32xi1>
    %204 = arith.select %203, %192, %154 : vector<8x32xi1>, vector<8x32xf32>
    %c4 = arith.constant 4 : index
    %c0_69 = arith.constant 0 : index
    %c0_70 = arith.constant 0 : index
    %205 = vector.load %arg0[%c4, %c0_69, %c0_70] : memref<21x8x16xf32, #tpu.memory_space<vmem>>, vector<1x8x16xf32>
    %206 = vector.shape_cast %205 : vector<1x8x16xf32> to vector<8x16xf32>
    %c4_71 = arith.constant 4 : index
    %c0_72 = arith.constant 0 : index
    %c0_73 = arith.constant 0 : index
    %207 = vector.load %arg1[%c4_71, %c0_72, %c0_73] : memref<21x8x1xf32, #tpu.memory_space<vmem>>, vector<1x8x1xf32>
    %208 = vector.shape_cast %207 : vector<1x8x1xf32> to vector<8x1xf32>
    %c4_74 = arith.constant 4 : index
    %c0_75 = arith.constant 0 : index
    %c0_76 = arith.constant 0 : index
    %209 = vector.load %arg2[%c4_74, %c0_75, %c0_76] : memref<21x8x1xf32, #tpu.memory_space<vmem>>, vector<1x8x1xf32>
    %210 = vector.shape_cast %209 : vector<1x8x1xf32> to vector<8x1xf32>
    %cst_77 = arith.constant 0.000000e+00 : f32
    %211 = vector.broadcast %cst_77 : f32 to vector<8x1xf32>
    %212 = arith.cmpf ogt, %210, %211 : vector<8x1xf32>
    %213 = vector.shape_cast %212 : vector<8x1xi1> to vector<8x1xi1>
    %214 = vector.broadcast %213 : vector<8x1xi1> to vector<8x32xi1>
    %215 = arith.select %214, %199, %165 : vector<8x32xi1>, vector<8x32xf32>
    %216 = tpu.concatenate %206, %199 in 1 : vector<8x16xf32>, vector<8x32xf32> -> vector<8x48xf32>
    %cst_78 = arith.constant dense<0.000000e+00> : vector<8x128xf32>
    %217 = tpu.matmul %216, %0, %cst_78 {dimension_numbers = #tpu.dot_dimension_numbers<[1], [0], [0], [1], [0, 0, 1, 1], [], []>} : vector<8x48xf32>, vector<48x128xf32>, vector<8x128xf32> -> vector<8x128xf32>
    %218 = vector.broadcast %1 : vector<1x128xf32> to vector<8x128xf32>
    %219 = arith.addf %217, %218 : vector<8x128xf32>
    %220 = vector.extract_strided_slice %219 {offsets = [0, 0], sizes = [8, 32], strides = [1, 1]} : vector<8x128xf32> to vector<8x32xf32>
    %221 = arith.negf %220 : vector<8x32xf32>
    %222 = math.exp %221 : vector<8x32xf32>
    %cst_79 = arith.constant 1.000000e+00 : f32
    %223 = vector.broadcast %cst_79 : f32 to vector<8x32xf32>
    %224 = arith.addf %223, %222 : vector<8x32xf32>
    %225 = arith.divf %223, %224 : vector<8x32xf32>
    %226 = vector.extract_strided_slice %219 {offsets = [0, 32], sizes = [8, 32], strides = [1, 1]} : vector<8x128xf32> to vector<8x32xf32>
    %227 = arith.negf %226 : vector<8x32xf32>
    %228 = math.exp %227 : vector<8x32xf32>
    %cst_80 = arith.constant 1.000000e+00 : f32
    %229 = vector.broadcast %cst_80 : f32 to vector<8x32xf32>
    %230 = arith.addf %229, %228 : vector<8x32xf32>
    %231 = arith.divf %229, %230 : vector<8x32xf32>
    %232 = vector.extract_strided_slice %219 {offsets = [0, 64], sizes = [8, 32], strides = [1, 1]} : vector<8x128xf32> to vector<8x32xf32>
    %233 = math.tanh %232 : vector<8x32xf32>
    %234 = vector.extract_strided_slice %219 {offsets = [0, 96], sizes = [8, 32], strides = [1, 1]} : vector<8x128xf32> to vector<8x32xf32>
    %235 = arith.negf %234 : vector<8x32xf32>
    %236 = math.exp %235 : vector<8x32xf32>
    %cst_81 = arith.constant 1.000000e+00 : f32
    %237 = vector.broadcast %cst_81 : f32 to vector<8x32xf32>
    %238 = arith.addf %237, %236 : vector<8x32xf32>
    %239 = arith.divf %237, %238 : vector<8x32xf32>
    %240 = arith.mulf %231, %204 : vector<8x32xf32>
    %241 = arith.mulf %225, %233 : vector<8x32xf32>
    %242 = arith.addf %240, %241 : vector<8x32xf32>
    %243 = math.tanh %242 : vector<8x32xf32>
    %244 = arith.mulf %239, %243 : vector<8x32xf32>
    %cst_82 = arith.constant 0.000000e+00 : f32
    %245 = vector.broadcast %cst_82 : f32 to vector<8x1xf32>
    %246 = arith.cmpf ogt, %208, %245 : vector<8x1xf32>
    %247 = vector.shape_cast %246 : vector<8x1xi1> to vector<8x1xi1>
    %248 = vector.broadcast %247 : vector<8x1xi1> to vector<8x32xi1>
    %249 = arith.select %248, %244, %199 : vector<8x32xi1>, vector<8x32xf32>
    %cst_83 = arith.constant 0.000000e+00 : f32
    %250 = vector.broadcast %cst_83 : f32 to vector<8x1xf32>
    %251 = arith.cmpf ogt, %208, %250 : vector<8x1xf32>
    %252 = vector.shape_cast %251 : vector<8x1xi1> to vector<8x1xi1>
    %253 = vector.broadcast %252 : vector<8x1xi1> to vector<8x32xi1>
    %254 = arith.select %253, %242, %204 : vector<8x32xi1>, vector<8x32xf32>
    %c5 = arith.constant 5 : index
    %c0_84 = arith.constant 0 : index
    %c0_85 = arith.constant 0 : index
    %255 = vector.load %arg0[%c5, %c0_84, %c0_85] : memref<21x8x16xf32, #tpu.memory_space<vmem>>, vector<1x8x16xf32>
    %256 = vector.shape_cast %255 : vector<1x8x16xf32> to vector<8x16xf32>
    %c5_86 = arith.constant 5 : index
    %c0_87 = arith.constant 0 : index
    %c0_88 = arith.constant 0 : index
    %257 = vector.load %arg1[%c5_86, %c0_87, %c0_88] : memref<21x8x1xf32, #tpu.memory_space<vmem>>, vector<1x8x1xf32>
    %258 = vector.shape_cast %257 : vector<1x8x1xf32> to vector<8x1xf32>
    %c5_89 = arith.constant 5 : index
    %c0_90 = arith.constant 0 : index
    %c0_91 = arith.constant 0 : index
    %259 = vector.load %arg2[%c5_89, %c0_90, %c0_91] : memref<21x8x1xf32, #tpu.memory_space<vmem>>, vector<1x8x1xf32>
    %260 = vector.shape_cast %259 : vector<1x8x1xf32> to vector<8x1xf32>
    %cst_92 = arith.constant 0.000000e+00 : f32
    %261 = vector.broadcast %cst_92 : f32 to vector<8x1xf32>
    %262 = arith.cmpf ogt, %260, %261 : vector<8x1xf32>
    %263 = vector.shape_cast %262 : vector<8x1xi1> to vector<8x1xi1>
    %264 = vector.broadcast %263 : vector<8x1xi1> to vector<8x32xi1>
    %265 = arith.select %264, %249, %215 : vector<8x32xi1>, vector<8x32xf32>
    %266 = tpu.concatenate %256, %249 in 1 : vector<8x16xf32>, vector<8x32xf32> -> vector<8x48xf32>
    %cst_93 = arith.constant dense<0.000000e+00> : vector<8x128xf32>
    %267 = tpu.matmul %266, %0, %cst_93 {dimension_numbers = #tpu.dot_dimension_numbers<[1], [0], [0], [1], [0, 0, 1, 1], [], []>} : vector<8x48xf32>, vector<48x128xf32>, vector<8x128xf32> -> vector<8x128xf32>
    %268 = vector.broadcast %1 : vector<1x128xf32> to vector<8x128xf32>
    %269 = arith.addf %267, %268 : vector<8x128xf32>
    %270 = vector.extract_strided_slice %269 {offsets = [0, 0], sizes = [8, 32], strides = [1, 1]} : vector<8x128xf32> to vector<8x32xf32>
    %271 = arith.negf %270 : vector<8x32xf32>
    %272 = math.exp %271 : vector<8x32xf32>
    %cst_94 = arith.constant 1.000000e+00 : f32
    %273 = vector.broadcast %cst_94 : f32 to vector<8x32xf32>
    %274 = arith.addf %273, %272 : vector<8x32xf32>
    %275 = arith.divf %273, %274 : vector<8x32xf32>
    %276 = vector.extract_strided_slice %269 {offsets = [0, 32], sizes = [8, 32], strides = [1, 1]} : vector<8x128xf32> to vector<8x32xf32>
    %277 = arith.negf %276 : vector<8x32xf32>
    %278 = math.exp %277 : vector<8x32xf32>
    %cst_95 = arith.constant 1.000000e+00 : f32
    %279 = vector.broadcast %cst_95 : f32 to vector<8x32xf32>
    %280 = arith.addf %279, %278 : vector<8x32xf32>
    %281 = arith.divf %279, %280 : vector<8x32xf32>
    %282 = vector.extract_strided_slice %269 {offsets = [0, 64], sizes = [8, 32], strides = [1, 1]} : vector<8x128xf32> to vector<8x32xf32>
    %283 = math.tanh %282 : vector<8x32xf32>
    %284 = vector.extract_strided_slice %269 {offsets = [0, 96], sizes = [8, 32], strides = [1, 1]} : vector<8x128xf32> to vector<8x32xf32>
    %285 = arith.negf %284 : vector<8x32xf32>
    %286 = math.exp %285 : vector<8x32xf32>
    %cst_96 = arith.constant 1.000000e+00 : f32
    %287 = vector.broadcast %cst_96 : f32 to vector<8x32xf32>
    %288 = arith.addf %287, %286 : vector<8x32xf32>
    %289 = arith.divf %287, %288 : vector<8x32xf32>
    %290 = arith.mulf %281, %254 : vector<8x32xf32>
    %291 = arith.mulf %275, %283 : vector<8x32xf32>
    %292 = arith.addf %290, %291 : vector<8x32xf32>
    %293 = math.tanh %292 : vector<8x32xf32>
    %294 = arith.mulf %289, %293 : vector<8x32xf32>
    %cst_97 = arith.constant 0.000000e+00 : f32
    %295 = vector.broadcast %cst_97 : f32 to vector<8x1xf32>
    %296 = arith.cmpf ogt, %258, %295 : vector<8x1xf32>
    %297 = vector.shape_cast %296 : vector<8x1xi1> to vector<8x1xi1>
    %298 = vector.broadcast %297 : vector<8x1xi1> to vector<8x32xi1>
    %299 = arith.select %298, %294, %249 : vector<8x32xi1>, vector<8x32xf32>
    %cst_98 = arith.constant 0.000000e+00 : f32
    %300 = vector.broadcast %cst_98 : f32 to vector<8x1xf32>
    %301 = arith.cmpf ogt, %258, %300 : vector<8x1xf32>
    %302 = vector.shape_cast %301 : vector<8x1xi1> to vector<8x1xi1>
    %303 = vector.broadcast %302 : vector<8x1xi1> to vector<8x32xi1>
    %304 = arith.select %303, %292, %254 : vector<8x32xi1>, vector<8x32xf32>
    %c6 = arith.constant 6 : index
    %c0_99 = arith.constant 0 : index
    %c0_100 = arith.constant 0 : index
    %305 = vector.load %arg0[%c6, %c0_99, %c0_100] : memref<21x8x16xf32, #tpu.memory_space<vmem>>, vector<1x8x16xf32>
    %306 = vector.shape_cast %305 : vector<1x8x16xf32> to vector<8x16xf32>
    %c6_101 = arith.constant 6 : index
    %c0_102 = arith.constant 0 : index
    %c0_103 = arith.constant 0 : index
    %307 = vector.load %arg1[%c6_101, %c0_102, %c0_103] : memref<21x8x1xf32, #tpu.memory_space<vmem>>, vector<1x8x1xf32>
    %308 = vector.shape_cast %307 : vector<1x8x1xf32> to vector<8x1xf32>
    %c6_104 = arith.constant 6 : index
    %c0_105 = arith.constant 0 : index
    %c0_106 = arith.constant 0 : index
    %309 = vector.load %arg2[%c6_104, %c0_105, %c0_106] : memref<21x8x1xf32, #tpu.memory_space<vmem>>, vector<1x8x1xf32>
    %310 = vector.shape_cast %309 : vector<1x8x1xf32> to vector<8x1xf32>
    %cst_107 = arith.constant 0.000000e+00 : f32
    %311 = vector.broadcast %cst_107 : f32 to vector<8x1xf32>
    %312 = arith.cmpf ogt, %310, %311 : vector<8x1xf32>
    %313 = vector.shape_cast %312 : vector<8x1xi1> to vector<8x1xi1>
    %314 = vector.broadcast %313 : vector<8x1xi1> to vector<8x32xi1>
    %315 = arith.select %314, %299, %265 : vector<8x32xi1>, vector<8x32xf32>
    %316 = tpu.concatenate %306, %299 in 1 : vector<8x16xf32>, vector<8x32xf32> -> vector<8x48xf32>
    %cst_108 = arith.constant dense<0.000000e+00> : vector<8x128xf32>
    %317 = tpu.matmul %316, %0, %cst_108 {dimension_numbers = #tpu.dot_dimension_numbers<[1], [0], [0], [1], [0, 0, 1, 1], [], []>} : vector<8x48xf32>, vector<48x128xf32>, vector<8x128xf32> -> vector<8x128xf32>
    %318 = vector.broadcast %1 : vector<1x128xf32> to vector<8x128xf32>
    %319 = arith.addf %317, %318 : vector<8x128xf32>
    %320 = vector.extract_strided_slice %319 {offsets = [0, 0], sizes = [8, 32], strides = [1, 1]} : vector<8x128xf32> to vector<8x32xf32>
    %321 = arith.negf %320 : vector<8x32xf32>
    %322 = math.exp %321 : vector<8x32xf32>
    %cst_109 = arith.constant 1.000000e+00 : f32
    %323 = vector.broadcast %cst_109 : f32 to vector<8x32xf32>
    %324 = arith.addf %323, %322 : vector<8x32xf32>
    %325 = arith.divf %323, %324 : vector<8x32xf32>
    %326 = vector.extract_strided_slice %319 {offsets = [0, 32], sizes = [8, 32], strides = [1, 1]} : vector<8x128xf32> to vector<8x32xf32>
    %327 = arith.negf %326 : vector<8x32xf32>
    %328 = math.exp %327 : vector<8x32xf32>
    %cst_110 = arith.constant 1.000000e+00 : f32
    %329 = vector.broadcast %cst_110 : f32 to vector<8x32xf32>
    %330 = arith.addf %329, %328 : vector<8x32xf32>
    %331 = arith.divf %329, %330 : vector<8x32xf32>
    %332 = vector.extract_strided_slice %319 {offsets = [0, 64], sizes = [8, 32], strides = [1, 1]} : vector<8x128xf32> to vector<8x32xf32>
    %333 = math.tanh %332 : vector<8x32xf32>
    %334 = vector.extract_strided_slice %319 {offsets = [0, 96], sizes = [8, 32], strides = [1, 1]} : vector<8x128xf32> to vector<8x32xf32>
    %335 = arith.negf %334 : vector<8x32xf32>
    %336 = math.exp %335 : vector<8x32xf32>
    %cst_111 = arith.constant 1.000000e+00 : f32
    %337 = vector.broadcast %cst_111 : f32 to vector<8x32xf32>
    %338 = arith.addf %337, %336 : vector<8x32xf32>
    %339 = arith.divf %337, %338 : vector<8x32xf32>
    %340 = arith.mulf %331, %304 : vector<8x32xf32>
    %341 = arith.mulf %325, %333 : vector<8x32xf32>
    %342 = arith.addf %340, %341 : vector<8x32xf32>
    %343 = math.tanh %342 : vector<8x32xf32>
    %344 = arith.mulf %339, %343 : vector<8x32xf32>
    %cst_112 = arith.constant 0.000000e+00 : f32
    %345 = vector.broadcast %cst_112 : f32 to vector<8x1xf32>
    %346 = arith.cmpf ogt, %308, %345 : vector<8x1xf32>
    %347 = vector.shape_cast %346 : vector<8x1xi1> to vector<8x1xi1>
    %348 = vector.broadcast %347 : vector<8x1xi1> to vector<8x32xi1>
    %349 = arith.select %348, %344, %299 : vector<8x32xi1>, vector<8x32xf32>
    %cst_113 = arith.constant 0.000000e+00 : f32
    %350 = vector.broadcast %cst_113 : f32 to vector<8x1xf32>
    %351 = arith.cmpf ogt, %308, %350 : vector<8x1xf32>
    %352 = vector.shape_cast %351 : vector<8x1xi1> to vector<8x1xi1>
    %353 = vector.broadcast %352 : vector<8x1xi1> to vector<8x32xi1>
    %354 = arith.select %353, %342, %304 : vector<8x32xi1>, vector<8x32xf32>
    %c7 = arith.constant 7 : index
    %c0_114 = arith.constant 0 : index
    %c0_115 = arith.constant 0 : index
    %355 = vector.load %arg0[%c7, %c0_114, %c0_115] : memref<21x8x16xf32, #tpu.memory_space<vmem>>, vector<1x8x16xf32>
    %356 = vector.shape_cast %355 : vector<1x8x16xf32> to vector<8x16xf32>
    %c7_116 = arith.constant 7 : index
    %c0_117 = arith.constant 0 : index
    %c0_118 = arith.constant 0 : index
    %357 = vector.load %arg1[%c7_116, %c0_117, %c0_118] : memref<21x8x1xf32, #tpu.memory_space<vmem>>, vector<1x8x1xf32>
    %358 = vector.shape_cast %357 : vector<1x8x1xf32> to vector<8x1xf32>
    %c7_119 = arith.constant 7 : index
    %c0_120 = arith.constant 0 : index
    %c0_121 = arith.constant 0 : index
    %359 = vector.load %arg2[%c7_119, %c0_120, %c0_121] : memref<21x8x1xf32, #tpu.memory_space<vmem>>, vector<1x8x1xf32>
    %360 = vector.shape_cast %359 : vector<1x8x1xf32> to vector<8x1xf32>
    %cst_122 = arith.constant 0.000000e+00 : f32
    %361 = vector.broadcast %cst_122 : f32 to vector<8x1xf32>
    %362 = arith.cmpf ogt, %360, %361 : vector<8x1xf32>
    %363 = vector.shape_cast %362 : vector<8x1xi1> to vector<8x1xi1>
    %364 = vector.broadcast %363 : vector<8x1xi1> to vector<8x32xi1>
    %365 = arith.select %364, %349, %315 : vector<8x32xi1>, vector<8x32xf32>
    %366 = tpu.concatenate %356, %349 in 1 : vector<8x16xf32>, vector<8x32xf32> -> vector<8x48xf32>
    %cst_123 = arith.constant dense<0.000000e+00> : vector<8x128xf32>
    %367 = tpu.matmul %366, %0, %cst_123 {dimension_numbers = #tpu.dot_dimension_numbers<[1], [0], [0], [1], [0, 0, 1, 1], [], []>} : vector<8x48xf32>, vector<48x128xf32>, vector<8x128xf32> -> vector<8x128xf32>
    %368 = vector.broadcast %1 : vector<1x128xf32> to vector<8x128xf32>
    %369 = arith.addf %367, %368 : vector<8x128xf32>
    %370 = vector.extract_strided_slice %369 {offsets = [0, 0], sizes = [8, 32], strides = [1, 1]} : vector<8x128xf32> to vector<8x32xf32>
    %371 = arith.negf %370 : vector<8x32xf32>
    %372 = math.exp %371 : vector<8x32xf32>
    %cst_124 = arith.constant 1.000000e+00 : f32
    %373 = vector.broadcast %cst_124 : f32 to vector<8x32xf32>
    %374 = arith.addf %373, %372 : vector<8x32xf32>
    %375 = arith.divf %373, %374 : vector<8x32xf32>
    %376 = vector.extract_strided_slice %369 {offsets = [0, 32], sizes = [8, 32], strides = [1, 1]} : vector<8x128xf32> to vector<8x32xf32>
    %377 = arith.negf %376 : vector<8x32xf32>
    %378 = math.exp %377 : vector<8x32xf32>
    %cst_125 = arith.constant 1.000000e+00 : f32
    %379 = vector.broadcast %cst_125 : f32 to vector<8x32xf32>
    %380 = arith.addf %379, %378 : vector<8x32xf32>
    %381 = arith.divf %379, %380 : vector<8x32xf32>
    %382 = vector.extract_strided_slice %369 {offsets = [0, 64], sizes = [8, 32], strides = [1, 1]} : vector<8x128xf32> to vector<8x32xf32>
    %383 = math.tanh %382 : vector<8x32xf32>
    %384 = vector.extract_strided_slice %369 {offsets = [0, 96], sizes = [8, 32], strides = [1, 1]} : vector<8x128xf32> to vector<8x32xf32>
    %385 = arith.negf %384 : vector<8x32xf32>
    %386 = math.exp %385 : vector<8x32xf32>
    %cst_126 = arith.constant 1.000000e+00 : f32
    %387 = vector.broadcast %cst_126 : f32 to vector<8x32xf32>
    %388 = arith.addf %387, %386 : vector<8x32xf32>
    %389 = arith.divf %387, %388 : vector<8x32xf32>
    %390 = arith.mulf %381, %354 : vector<8x32xf32>
    %391 = arith.mulf %375, %383 : vector<8x32xf32>
    %392 = arith.addf %390, %391 : vector<8x32xf32>
    %393 = math.tanh %392 : vector<8x32xf32>
    %394 = arith.mulf %389, %393 : vector<8x32xf32>
    %cst_127 = arith.constant 0.000000e+00 : f32
    %395 = vector.broadcast %cst_127 : f32 to vector<8x1xf32>
    %396 = arith.cmpf ogt, %358, %395 : vector<8x1xf32>
    %397 = vector.shape_cast %396 : vector<8x1xi1> to vector<8x1xi1>
    %398 = vector.broadcast %397 : vector<8x1xi1> to vector<8x32xi1>
    %399 = arith.select %398, %394, %349 : vector<8x32xi1>, vector<8x32xf32>
    %cst_128 = arith.constant 0.000000e+00 : f32
    %400 = vector.broadcast %cst_128 : f32 to vector<8x1xf32>
    %401 = arith.cmpf ogt, %358, %400 : vector<8x1xf32>
    %402 = vector.shape_cast %401 : vector<8x1xi1> to vector<8x1xi1>
    %403 = vector.broadcast %402 : vector<8x1xi1> to vector<8x32xi1>
    %404 = arith.select %403, %392, %354 : vector<8x32xi1>, vector<8x32xf32>
    %c8 = arith.constant 8 : index
    %c0_129 = arith.constant 0 : index
    %c0_130 = arith.constant 0 : index
    %405 = vector.load %arg0[%c8, %c0_129, %c0_130] : memref<21x8x16xf32, #tpu.memory_space<vmem>>, vector<1x8x16xf32>
    %406 = vector.shape_cast %405 : vector<1x8x16xf32> to vector<8x16xf32>
    %c8_131 = arith.constant 8 : index
    %c0_132 = arith.constant 0 : index
    %c0_133 = arith.constant 0 : index
    %407 = vector.load %arg1[%c8_131, %c0_132, %c0_133] : memref<21x8x1xf32, #tpu.memory_space<vmem>>, vector<1x8x1xf32>
    %408 = vector.shape_cast %407 : vector<1x8x1xf32> to vector<8x1xf32>
    %c8_134 = arith.constant 8 : index
    %c0_135 = arith.constant 0 : index
    %c0_136 = arith.constant 0 : index
    %409 = vector.load %arg2[%c8_134, %c0_135, %c0_136] : memref<21x8x1xf32, #tpu.memory_space<vmem>>, vector<1x8x1xf32>
    %410 = vector.shape_cast %409 : vector<1x8x1xf32> to vector<8x1xf32>
    %cst_137 = arith.constant 0.000000e+00 : f32
    %411 = vector.broadcast %cst_137 : f32 to vector<8x1xf32>
    %412 = arith.cmpf ogt, %410, %411 : vector<8x1xf32>
    %413 = vector.shape_cast %412 : vector<8x1xi1> to vector<8x1xi1>
    %414 = vector.broadcast %413 : vector<8x1xi1> to vector<8x32xi1>
    %415 = arith.select %414, %399, %365 : vector<8x32xi1>, vector<8x32xf32>
    %416 = tpu.concatenate %406, %399 in 1 : vector<8x16xf32>, vector<8x32xf32> -> vector<8x48xf32>
    %cst_138 = arith.constant dense<0.000000e+00> : vector<8x128xf32>
    %417 = tpu.matmul %416, %0, %cst_138 {dimension_numbers = #tpu.dot_dimension_numbers<[1], [0], [0], [1], [0, 0, 1, 1], [], []>} : vector<8x48xf32>, vector<48x128xf32>, vector<8x128xf32> -> vector<8x128xf32>
    %418 = vector.broadcast %1 : vector<1x128xf32> to vector<8x128xf32>
    %419 = arith.addf %417, %418 : vector<8x128xf32>
    %420 = vector.extract_strided_slice %419 {offsets = [0, 0], sizes = [8, 32], strides = [1, 1]} : vector<8x128xf32> to vector<8x32xf32>
    %421 = arith.negf %420 : vector<8x32xf32>
    %422 = math.exp %421 : vector<8x32xf32>
    %cst_139 = arith.constant 1.000000e+00 : f32
    %423 = vector.broadcast %cst_139 : f32 to vector<8x32xf32>
    %424 = arith.addf %423, %422 : vector<8x32xf32>
    %425 = arith.divf %423, %424 : vector<8x32xf32>
    %426 = vector.extract_strided_slice %419 {offsets = [0, 32], sizes = [8, 32], strides = [1, 1]} : vector<8x128xf32> to vector<8x32xf32>
    %427 = arith.negf %426 : vector<8x32xf32>
    %428 = math.exp %427 : vector<8x32xf32>
    %cst_140 = arith.constant 1.000000e+00 : f32
    %429 = vector.broadcast %cst_140 : f32 to vector<8x32xf32>
    %430 = arith.addf %429, %428 : vector<8x32xf32>
    %431 = arith.divf %429, %430 : vector<8x32xf32>
    %432 = vector.extract_strided_slice %419 {offsets = [0, 64], sizes = [8, 32], strides = [1, 1]} : vector<8x128xf32> to vector<8x32xf32>
    %433 = math.tanh %432 : vector<8x32xf32>
    %434 = vector.extract_strided_slice %419 {offsets = [0, 96], sizes = [8, 32], strides = [1, 1]} : vector<8x128xf32> to vector<8x32xf32>
    %435 = arith.negf %434 : vector<8x32xf32>
    %436 = math.exp %435 : vector<8x32xf32>
    %cst_141 = arith.constant 1.000000e+00 : f32
    %437 = vector.broadcast %cst_141 : f32 to vector<8x32xf32>
    %438 = arith.addf %437, %436 : vector<8x32xf32>
    %439 = arith.divf %437, %438 : vector<8x32xf32>
    %440 = arith.mulf %431, %404 : vector<8x32xf32>
    %441 = arith.mulf %425, %433 : vector<8x32xf32>
    %442 = arith.addf %440, %441 : vector<8x32xf32>
    %443 = math.tanh %442 : vector<8x32xf32>
    %444 = arith.mulf %439, %443 : vector<8x32xf32>
    %cst_142 = arith.constant 0.000000e+00 : f32
    %445 = vector.broadcast %cst_142 : f32 to vector<8x1xf32>
    %446 = arith.cmpf ogt, %408, %445 : vector<8x1xf32>
    %447 = vector.shape_cast %446 : vector<8x1xi1> to vector<8x1xi1>
    %448 = vector.broadcast %447 : vector<8x1xi1> to vector<8x32xi1>
    %449 = arith.select %448, %444, %399 : vector<8x32xi1>, vector<8x32xf32>
    %cst_143 = arith.constant 0.000000e+00 : f32
    %450 = vector.broadcast %cst_143 : f32 to vector<8x1xf32>
    %451 = arith.cmpf ogt, %408, %450 : vector<8x1xf32>
    %452 = vector.shape_cast %451 : vector<8x1xi1> to vector<8x1xi1>
    %453 = vector.broadcast %452 : vector<8x1xi1> to vector<8x32xi1>
    %454 = arith.select %453, %442, %404 : vector<8x32xi1>, vector<8x32xf32>
    %c9 = arith.constant 9 : index
    %c0_144 = arith.constant 0 : index
    %c0_145 = arith.constant 0 : index
    %455 = vector.load %arg0[%c9, %c0_144, %c0_145] : memref<21x8x16xf32, #tpu.memory_space<vmem>>, vector<1x8x16xf32>
    %456 = vector.shape_cast %455 : vector<1x8x16xf32> to vector<8x16xf32>
    %c9_146 = arith.constant 9 : index
    %c0_147 = arith.constant 0 : index
    %c0_148 = arith.constant 0 : index
    %457 = vector.load %arg1[%c9_146, %c0_147, %c0_148] : memref<21x8x1xf32, #tpu.memory_space<vmem>>, vector<1x8x1xf32>
    %458 = vector.shape_cast %457 : vector<1x8x1xf32> to vector<8x1xf32>
    %c9_149 = arith.constant 9 : index
    %c0_150 = arith.constant 0 : index
    %c0_151 = arith.constant 0 : index
    %459 = vector.load %arg2[%c9_149, %c0_150, %c0_151] : memref<21x8x1xf32, #tpu.memory_space<vmem>>, vector<1x8x1xf32>
    %460 = vector.shape_cast %459 : vector<1x8x1xf32> to vector<8x1xf32>
    %cst_152 = arith.constant 0.000000e+00 : f32
    %461 = vector.broadcast %cst_152 : f32 to vector<8x1xf32>
    %462 = arith.cmpf ogt, %460, %461 : vector<8x1xf32>
    %463 = vector.shape_cast %462 : vector<8x1xi1> to vector<8x1xi1>
    %464 = vector.broadcast %463 : vector<8x1xi1> to vector<8x32xi1>
    %465 = arith.select %464, %449, %415 : vector<8x32xi1>, vector<8x32xf32>
    %466 = tpu.concatenate %456, %449 in 1 : vector<8x16xf32>, vector<8x32xf32> -> vector<8x48xf32>
    %cst_153 = arith.constant dense<0.000000e+00> : vector<8x128xf32>
    %467 = tpu.matmul %466, %0, %cst_153 {dimension_numbers = #tpu.dot_dimension_numbers<[1], [0], [0], [1], [0, 0, 1, 1], [], []>} : vector<8x48xf32>, vector<48x128xf32>, vector<8x128xf32> -> vector<8x128xf32>
    %468 = vector.broadcast %1 : vector<1x128xf32> to vector<8x128xf32>
    %469 = arith.addf %467, %468 : vector<8x128xf32>
    %470 = vector.extract_strided_slice %469 {offsets = [0, 0], sizes = [8, 32], strides = [1, 1]} : vector<8x128xf32> to vector<8x32xf32>
    %471 = arith.negf %470 : vector<8x32xf32>
    %472 = math.exp %471 : vector<8x32xf32>
    %cst_154 = arith.constant 1.000000e+00 : f32
    %473 = vector.broadcast %cst_154 : f32 to vector<8x32xf32>
    %474 = arith.addf %473, %472 : vector<8x32xf32>
    %475 = arith.divf %473, %474 : vector<8x32xf32>
    %476 = vector.extract_strided_slice %469 {offsets = [0, 32], sizes = [8, 32], strides = [1, 1]} : vector<8x128xf32> to vector<8x32xf32>
    %477 = arith.negf %476 : vector<8x32xf32>
    %478 = math.exp %477 : vector<8x32xf32>
    %cst_155 = arith.constant 1.000000e+00 : f32
    %479 = vector.broadcast %cst_155 : f32 to vector<8x32xf32>
    %480 = arith.addf %479, %478 : vector<8x32xf32>
    %481 = arith.divf %479, %480 : vector<8x32xf32>
    %482 = vector.extract_strided_slice %469 {offsets = [0, 64], sizes = [8, 32], strides = [1, 1]} : vector<8x128xf32> to vector<8x32xf32>
    %483 = math.tanh %482 : vector<8x32xf32>
    %484 = vector.extract_strided_slice %469 {offsets = [0, 96], sizes = [8, 32], strides = [1, 1]} : vector<8x128xf32> to vector<8x32xf32>
    %485 = arith.negf %484 : vector<8x32xf32>
    %486 = math.exp %485 : vector<8x32xf32>
    %cst_156 = arith.constant 1.000000e+00 : f32
    %487 = vector.broadcast %cst_156 : f32 to vector<8x32xf32>
    %488 = arith.addf %487, %486 : vector<8x32xf32>
    %489 = arith.divf %487, %488 : vector<8x32xf32>
    %490 = arith.mulf %481, %454 : vector<8x32xf32>
    %491 = arith.mulf %475, %483 : vector<8x32xf32>
    %492 = arith.addf %490, %491 : vector<8x32xf32>
    %493 = math.tanh %492 : vector<8x32xf32>
    %494 = arith.mulf %489, %493 : vector<8x32xf32>
    %cst_157 = arith.constant 0.000000e+00 : f32
    %495 = vector.broadcast %cst_157 : f32 to vector<8x1xf32>
    %496 = arith.cmpf ogt, %458, %495 : vector<8x1xf32>
    %497 = vector.shape_cast %496 : vector<8x1xi1> to vector<8x1xi1>
    %498 = vector.broadcast %497 : vector<8x1xi1> to vector<8x32xi1>
    %499 = arith.select %498, %494, %449 : vector<8x32xi1>, vector<8x32xf32>
    %cst_158 = arith.constant 0.000000e+00 : f32
    %500 = vector.broadcast %cst_158 : f32 to vector<8x1xf32>
    %501 = arith.cmpf ogt, %458, %500 : vector<8x1xf32>
    %502 = vector.shape_cast %501 : vector<8x1xi1> to vector<8x1xi1>
    %503 = vector.broadcast %502 : vector<8x1xi1> to vector<8x32xi1>
    %504 = arith.select %503, %492, %454 : vector<8x32xi1>, vector<8x32xf32>
    %c10 = arith.constant 10 : index
    %c0_159 = arith.constant 0 : index
    %c0_160 = arith.constant 0 : index
    %505 = vector.load %arg0[%c10, %c0_159, %c0_160] : memref<21x8x16xf32, #tpu.memory_space<vmem>>, vector<1x8x16xf32>
    %506 = vector.shape_cast %505 : vector<1x8x16xf32> to vector<8x16xf32>
    %c10_161 = arith.constant 10 : index
    %c0_162 = arith.constant 0 : index
    %c0_163 = arith.constant 0 : index
    %507 = vector.load %arg1[%c10_161, %c0_162, %c0_163] : memref<21x8x1xf32, #tpu.memory_space<vmem>>, vector<1x8x1xf32>
    %508 = vector.shape_cast %507 : vector<1x8x1xf32> to vector<8x1xf32>
    %c10_164 = arith.constant 10 : index
    %c0_165 = arith.constant 0 : index
    %c0_166 = arith.constant 0 : index
    %509 = vector.load %arg2[%c10_164, %c0_165, %c0_166] : memref<21x8x1xf32, #tpu.memory_space<vmem>>, vector<1x8x1xf32>
    %510 = vector.shape_cast %509 : vector<1x8x1xf32> to vector<8x1xf32>
    %cst_167 = arith.constant 0.000000e+00 : f32
    %511 = vector.broadcast %cst_167 : f32 to vector<8x1xf32>
    %512 = arith.cmpf ogt, %510, %511 : vector<8x1xf32>
    %513 = vector.shape_cast %512 : vector<8x1xi1> to vector<8x1xi1>
    %514 = vector.broadcast %513 : vector<8x1xi1> to vector<8x32xi1>
    %515 = arith.select %514, %499, %465 : vector<8x32xi1>, vector<8x32xf32>
    %516 = tpu.concatenate %506, %499 in 1 : vector<8x16xf32>, vector<8x32xf32> -> vector<8x48xf32>
    %cst_168 = arith.constant dense<0.000000e+00> : vector<8x128xf32>
    %517 = tpu.matmul %516, %0, %cst_168 {dimension_numbers = #tpu.dot_dimension_numbers<[1], [0], [0], [1], [0, 0, 1, 1], [], []>} : vector<8x48xf32>, vector<48x128xf32>, vector<8x128xf32> -> vector<8x128xf32>
    %518 = vector.broadcast %1 : vector<1x128xf32> to vector<8x128xf32>
    %519 = arith.addf %517, %518 : vector<8x128xf32>
    %520 = vector.extract_strided_slice %519 {offsets = [0, 0], sizes = [8, 32], strides = [1, 1]} : vector<8x128xf32> to vector<8x32xf32>
    %521 = arith.negf %520 : vector<8x32xf32>
    %522 = math.exp %521 : vector<8x32xf32>
    %cst_169 = arith.constant 1.000000e+00 : f32
    %523 = vector.broadcast %cst_169 : f32 to vector<8x32xf32>
    %524 = arith.addf %523, %522 : vector<8x32xf32>
    %525 = arith.divf %523, %524 : vector<8x32xf32>
    %526 = vector.extract_strided_slice %519 {offsets = [0, 32], sizes = [8, 32], strides = [1, 1]} : vector<8x128xf32> to vector<8x32xf32>
    %527 = arith.negf %526 : vector<8x32xf32>
    %528 = math.exp %527 : vector<8x32xf32>
    %cst_170 = arith.constant 1.000000e+00 : f32
    %529 = vector.broadcast %cst_170 : f32 to vector<8x32xf32>
    %530 = arith.addf %529, %528 : vector<8x32xf32>
    %531 = arith.divf %529, %530 : vector<8x32xf32>
    %532 = vector.extract_strided_slice %519 {offsets = [0, 64], sizes = [8, 32], strides = [1, 1]} : vector<8x128xf32> to vector<8x32xf32>
    %533 = math.tanh %532 : vector<8x32xf32>
    %534 = vector.extract_strided_slice %519 {offsets = [0, 96], sizes = [8, 32], strides = [1, 1]} : vector<8x128xf32> to vector<8x32xf32>
    %535 = arith.negf %534 : vector<8x32xf32>
    %536 = math.exp %535 : vector<8x32xf32>
    %cst_171 = arith.constant 1.000000e+00 : f32
    %537 = vector.broadcast %cst_171 : f32 to vector<8x32xf32>
    %538 = arith.addf %537, %536 : vector<8x32xf32>
    %539 = arith.divf %537, %538 : vector<8x32xf32>
    %540 = arith.mulf %531, %504 : vector<8x32xf32>
    %541 = arith.mulf %525, %533 : vector<8x32xf32>
    %542 = arith.addf %540, %541 : vector<8x32xf32>
    %543 = math.tanh %542 : vector<8x32xf32>
    %544 = arith.mulf %539, %543 : vector<8x32xf32>
    %cst_172 = arith.constant 0.000000e+00 : f32
    %545 = vector.broadcast %cst_172 : f32 to vector<8x1xf32>
    %546 = arith.cmpf ogt, %508, %545 : vector<8x1xf32>
    %547 = vector.shape_cast %546 : vector<8x1xi1> to vector<8x1xi1>
    %548 = vector.broadcast %547 : vector<8x1xi1> to vector<8x32xi1>
    %549 = arith.select %548, %544, %499 : vector<8x32xi1>, vector<8x32xf32>
    %cst_173 = arith.constant 0.000000e+00 : f32
    %550 = vector.broadcast %cst_173 : f32 to vector<8x1xf32>
    %551 = arith.cmpf ogt, %508, %550 : vector<8x1xf32>
    %552 = vector.shape_cast %551 : vector<8x1xi1> to vector<8x1xi1>
    %553 = vector.broadcast %552 : vector<8x1xi1> to vector<8x32xi1>
    %554 = arith.select %553, %542, %504 : vector<8x32xi1>, vector<8x32xf32>
    %c11 = arith.constant 11 : index
    %c0_174 = arith.constant 0 : index
    %c0_175 = arith.constant 0 : index
    %555 = vector.load %arg0[%c11, %c0_174, %c0_175] : memref<21x8x16xf32, #tpu.memory_space<vmem>>, vector<1x8x16xf32>
    %556 = vector.shape_cast %555 : vector<1x8x16xf32> to vector<8x16xf32>
    %c11_176 = arith.constant 11 : index
    %c0_177 = arith.constant 0 : index
    %c0_178 = arith.constant 0 : index
    %557 = vector.load %arg1[%c11_176, %c0_177, %c0_178] : memref<21x8x1xf32, #tpu.memory_space<vmem>>, vector<1x8x1xf32>
    %558 = vector.shape_cast %557 : vector<1x8x1xf32> to vector<8x1xf32>
    %c11_179 = arith.constant 11 : index
    %c0_180 = arith.constant 0 : index
    %c0_181 = arith.constant 0 : index
    %559 = vector.load %arg2[%c11_179, %c0_180, %c0_181] : memref<21x8x1xf32, #tpu.memory_space<vmem>>, vector<1x8x1xf32>
    %560 = vector.shape_cast %559 : vector<1x8x1xf32> to vector<8x1xf32>
    %cst_182 = arith.constant 0.000000e+00 : f32
    %561 = vector.broadcast %cst_182 : f32 to vector<8x1xf32>
    %562 = arith.cmpf ogt, %560, %561 : vector<8x1xf32>
    %563 = vector.shape_cast %562 : vector<8x1xi1> to vector<8x1xi1>
    %564 = vector.broadcast %563 : vector<8x1xi1> to vector<8x32xi1>
    %565 = arith.select %564, %549, %515 : vector<8x32xi1>, vector<8x32xf32>
    %566 = tpu.concatenate %556, %549 in 1 : vector<8x16xf32>, vector<8x32xf32> -> vector<8x48xf32>
    %cst_183 = arith.constant dense<0.000000e+00> : vector<8x128xf32>
    %567 = tpu.matmul %566, %0, %cst_183 {dimension_numbers = #tpu.dot_dimension_numbers<[1], [0], [0], [1], [0, 0, 1, 1], [], []>} : vector<8x48xf32>, vector<48x128xf32>, vector<8x128xf32> -> vector<8x128xf32>
    %568 = vector.broadcast %1 : vector<1x128xf32> to vector<8x128xf32>
    %569 = arith.addf %567, %568 : vector<8x128xf32>
    %570 = vector.extract_strided_slice %569 {offsets = [0, 0], sizes = [8, 32], strides = [1, 1]} : vector<8x128xf32> to vector<8x32xf32>
    %571 = arith.negf %570 : vector<8x32xf32>
    %572 = math.exp %571 : vector<8x32xf32>
    %cst_184 = arith.constant 1.000000e+00 : f32
    %573 = vector.broadcast %cst_184 : f32 to vector<8x32xf32>
    %574 = arith.addf %573, %572 : vector<8x32xf32>
    %575 = arith.divf %573, %574 : vector<8x32xf32>
    %576 = vector.extract_strided_slice %569 {offsets = [0, 32], sizes = [8, 32], strides = [1, 1]} : vector<8x128xf32> to vector<8x32xf32>
    %577 = arith.negf %576 : vector<8x32xf32>
    %578 = math.exp %577 : vector<8x32xf32>
    %cst_185 = arith.constant 1.000000e+00 : f32
    %579 = vector.broadcast %cst_185 : f32 to vector<8x32xf32>
    %580 = arith.addf %579, %578 : vector<8x32xf32>
    %581 = arith.divf %579, %580 : vector<8x32xf32>
    %582 = vector.extract_strided_slice %569 {offsets = [0, 64], sizes = [8, 32], strides = [1, 1]} : vector<8x128xf32> to vector<8x32xf32>
    %583 = math.tanh %582 : vector<8x32xf32>
    %584 = vector.extract_strided_slice %569 {offsets = [0, 96], sizes = [8, 32], strides = [1, 1]} : vector<8x128xf32> to vector<8x32xf32>
    %585 = arith.negf %584 : vector<8x32xf32>
    %586 = math.exp %585 : vector<8x32xf32>
    %cst_186 = arith.constant 1.000000e+00 : f32
    %587 = vector.broadcast %cst_186 : f32 to vector<8x32xf32>
    %588 = arith.addf %587, %586 : vector<8x32xf32>
    %589 = arith.divf %587, %588 : vector<8x32xf32>
    %590 = arith.mulf %581, %554 : vector<8x32xf32>
    %591 = arith.mulf %575, %583 : vector<8x32xf32>
    %592 = arith.addf %590, %591 : vector<8x32xf32>
    %593 = math.tanh %592 : vector<8x32xf32>
    %594 = arith.mulf %589, %593 : vector<8x32xf32>
    %cst_187 = arith.constant 0.000000e+00 : f32
    %595 = vector.broadcast %cst_187 : f32 to vector<8x1xf32>
    %596 = arith.cmpf ogt, %558, %595 : vector<8x1xf32>
    %597 = vector.shape_cast %596 : vector<8x1xi1> to vector<8x1xi1>
    %598 = vector.broadcast %597 : vector<8x1xi1> to vector<8x32xi1>
    %599 = arith.select %598, %594, %549 : vector<8x32xi1>, vector<8x32xf32>
    %cst_188 = arith.constant 0.000000e+00 : f32
    %600 = vector.broadcast %cst_188 : f32 to vector<8x1xf32>
    %601 = arith.cmpf ogt, %558, %600 : vector<8x1xf32>
    %602 = vector.shape_cast %601 : vector<8x1xi1> to vector<8x1xi1>
    %603 = vector.broadcast %602 : vector<8x1xi1> to vector<8x32xi1>
    %604 = arith.select %603, %592, %554 : vector<8x32xi1>, vector<8x32xf32>
    %c12 = arith.constant 12 : index
    %c0_189 = arith.constant 0 : index
    %c0_190 = arith.constant 0 : index
    %605 = vector.load %arg0[%c12, %c0_189, %c0_190] : memref<21x8x16xf32, #tpu.memory_space<vmem>>, vector<1x8x16xf32>
    %606 = vector.shape_cast %605 : vector<1x8x16xf32> to vector<8x16xf32>
    %c12_191 = arith.constant 12 : index
    %c0_192 = arith.constant 0 : index
    %c0_193 = arith.constant 0 : index
    %607 = vector.load %arg1[%c12_191, %c0_192, %c0_193] : memref<21x8x1xf32, #tpu.memory_space<vmem>>, vector<1x8x1xf32>
    %608 = vector.shape_cast %607 : vector<1x8x1xf32> to vector<8x1xf32>
    %c12_194 = arith.constant 12 : index
    %c0_195 = arith.constant 0 : index
    %c0_196 = arith.constant 0 : index
    %609 = vector.load %arg2[%c12_194, %c0_195, %c0_196] : memref<21x8x1xf32, #tpu.memory_space<vmem>>, vector<1x8x1xf32>
    %610 = vector.shape_cast %609 : vector<1x8x1xf32> to vector<8x1xf32>
    %cst_197 = arith.constant 0.000000e+00 : f32
    %611 = vector.broadcast %cst_197 : f32 to vector<8x1xf32>
    %612 = arith.cmpf ogt, %610, %611 : vector<8x1xf32>
    %613 = vector.shape_cast %612 : vector<8x1xi1> to vector<8x1xi1>
    %614 = vector.broadcast %613 : vector<8x1xi1> to vector<8x32xi1>
    %615 = arith.select %614, %599, %565 : vector<8x32xi1>, vector<8x32xf32>
    %616 = tpu.concatenate %606, %599 in 1 : vector<8x16xf32>, vector<8x32xf32> -> vector<8x48xf32>
    %cst_198 = arith.constant dense<0.000000e+00> : vector<8x128xf32>
    %617 = tpu.matmul %616, %0, %cst_198 {dimension_numbers = #tpu.dot_dimension_numbers<[1], [0], [0], [1], [0, 0, 1, 1], [], []>} : vector<8x48xf32>, vector<48x128xf32>, vector<8x128xf32> -> vector<8x128xf32>
    %618 = vector.broadcast %1 : vector<1x128xf32> to vector<8x128xf32>
    %619 = arith.addf %617, %618 : vector<8x128xf32>
    %620 = vector.extract_strided_slice %619 {offsets = [0, 0], sizes = [8, 32], strides = [1, 1]} : vector<8x128xf32> to vector<8x32xf32>
    %621 = arith.negf %620 : vector<8x32xf32>
    %622 = math.exp %621 : vector<8x32xf32>
    %cst_199 = arith.constant 1.000000e+00 : f32
    %623 = vector.broadcast %cst_199 : f32 to vector<8x32xf32>
    %624 = arith.addf %623, %622 : vector<8x32xf32>
    %625 = arith.divf %623, %624 : vector<8x32xf32>
    %626 = vector.extract_strided_slice %619 {offsets = [0, 32], sizes = [8, 32], strides = [1, 1]} : vector<8x128xf32> to vector<8x32xf32>
    %627 = arith.negf %626 : vector<8x32xf32>
    %628 = math.exp %627 : vector<8x32xf32>
    %cst_200 = arith.constant 1.000000e+00 : f32
    %629 = vector.broadcast %cst_200 : f32 to vector<8x32xf32>
    %630 = arith.addf %629, %628 : vector<8x32xf32>
    %631 = arith.divf %629, %630 : vector<8x32xf32>
    %632 = vector.extract_strided_slice %619 {offsets = [0, 64], sizes = [8, 32], strides = [1, 1]} : vector<8x128xf32> to vector<8x32xf32>
    %633 = math.tanh %632 : vector<8x32xf32>
    %634 = vector.extract_strided_slice %619 {offsets = [0, 96], sizes = [8, 32], strides = [1, 1]} : vector<8x128xf32> to vector<8x32xf32>
    %635 = arith.negf %634 : vector<8x32xf32>
    %636 = math.exp %635 : vector<8x32xf32>
    %cst_201 = arith.constant 1.000000e+00 : f32
    %637 = vector.broadcast %cst_201 : f32 to vector<8x32xf32>
    %638 = arith.addf %637, %636 : vector<8x32xf32>
    %639 = arith.divf %637, %638 : vector<8x32xf32>
    %640 = arith.mulf %631, %604 : vector<8x32xf32>
    %641 = arith.mulf %625, %633 : vector<8x32xf32>
    %642 = arith.addf %640, %641 : vector<8x32xf32>
    %643 = math.tanh %642 : vector<8x32xf32>
    %644 = arith.mulf %639, %643 : vector<8x32xf32>
    %cst_202 = arith.constant 0.000000e+00 : f32
    %645 = vector.broadcast %cst_202 : f32 to vector<8x1xf32>
    %646 = arith.cmpf ogt, %608, %645 : vector<8x1xf32>
    %647 = vector.shape_cast %646 : vector<8x1xi1> to vector<8x1xi1>
    %648 = vector.broadcast %647 : vector<8x1xi1> to vector<8x32xi1>
    %649 = arith.select %648, %644, %599 : vector<8x32xi1>, vector<8x32xf32>
    %cst_203 = arith.constant 0.000000e+00 : f32
    %650 = vector.broadcast %cst_203 : f32 to vector<8x1xf32>
    %651 = arith.cmpf ogt, %608, %650 : vector<8x1xf32>
    %652 = vector.shape_cast %651 : vector<8x1xi1> to vector<8x1xi1>
    %653 = vector.broadcast %652 : vector<8x1xi1> to vector<8x32xi1>
    %654 = arith.select %653, %642, %604 : vector<8x32xi1>, vector<8x32xf32>
    %c13 = arith.constant 13 : index
    %c0_204 = arith.constant 0 : index
    %c0_205 = arith.constant 0 : index
    %655 = vector.load %arg0[%c13, %c0_204, %c0_205] : memref<21x8x16xf32, #tpu.memory_space<vmem>>, vector<1x8x16xf32>
    %656 = vector.shape_cast %655 : vector<1x8x16xf32> to vector<8x16xf32>
    %c13_206 = arith.constant 13 : index
    %c0_207 = arith.constant 0 : index
    %c0_208 = arith.constant 0 : index
    %657 = vector.load %arg1[%c13_206, %c0_207, %c0_208] : memref<21x8x1xf32, #tpu.memory_space<vmem>>, vector<1x8x1xf32>
    %658 = vector.shape_cast %657 : vector<1x8x1xf32> to vector<8x1xf32>
    %c13_209 = arith.constant 13 : index
    %c0_210 = arith.constant 0 : index
    %c0_211 = arith.constant 0 : index
    %659 = vector.load %arg2[%c13_209, %c0_210, %c0_211] : memref<21x8x1xf32, #tpu.memory_space<vmem>>, vector<1x8x1xf32>
    %660 = vector.shape_cast %659 : vector<1x8x1xf32> to vector<8x1xf32>
    %cst_212 = arith.constant 0.000000e+00 : f32
    %661 = vector.broadcast %cst_212 : f32 to vector<8x1xf32>
    %662 = arith.cmpf ogt, %660, %661 : vector<8x1xf32>
    %663 = vector.shape_cast %662 : vector<8x1xi1> to vector<8x1xi1>
    %664 = vector.broadcast %663 : vector<8x1xi1> to vector<8x32xi1>
    %665 = arith.select %664, %649, %615 : vector<8x32xi1>, vector<8x32xf32>
    %666 = tpu.concatenate %656, %649 in 1 : vector<8x16xf32>, vector<8x32xf32> -> vector<8x48xf32>
    %cst_213 = arith.constant dense<0.000000e+00> : vector<8x128xf32>
    %667 = tpu.matmul %666, %0, %cst_213 {dimension_numbers = #tpu.dot_dimension_numbers<[1], [0], [0], [1], [0, 0, 1, 1], [], []>} : vector<8x48xf32>, vector<48x128xf32>, vector<8x128xf32> -> vector<8x128xf32>
    %668 = vector.broadcast %1 : vector<1x128xf32> to vector<8x128xf32>
    %669 = arith.addf %667, %668 : vector<8x128xf32>
    %670 = vector.extract_strided_slice %669 {offsets = [0, 0], sizes = [8, 32], strides = [1, 1]} : vector<8x128xf32> to vector<8x32xf32>
    %671 = arith.negf %670 : vector<8x32xf32>
    %672 = math.exp %671 : vector<8x32xf32>
    %cst_214 = arith.constant 1.000000e+00 : f32
    %673 = vector.broadcast %cst_214 : f32 to vector<8x32xf32>
    %674 = arith.addf %673, %672 : vector<8x32xf32>
    %675 = arith.divf %673, %674 : vector<8x32xf32>
    %676 = vector.extract_strided_slice %669 {offsets = [0, 32], sizes = [8, 32], strides = [1, 1]} : vector<8x128xf32> to vector<8x32xf32>
    %677 = arith.negf %676 : vector<8x32xf32>
    %678 = math.exp %677 : vector<8x32xf32>
    %cst_215 = arith.constant 1.000000e+00 : f32
    %679 = vector.broadcast %cst_215 : f32 to vector<8x32xf32>
    %680 = arith.addf %679, %678 : vector<8x32xf32>
    %681 = arith.divf %679, %680 : vector<8x32xf32>
    %682 = vector.extract_strided_slice %669 {offsets = [0, 64], sizes = [8, 32], strides = [1, 1]} : vector<8x128xf32> to vector<8x32xf32>
    %683 = math.tanh %682 : vector<8x32xf32>
    %684 = vector.extract_strided_slice %669 {offsets = [0, 96], sizes = [8, 32], strides = [1, 1]} : vector<8x128xf32> to vector<8x32xf32>
    %685 = arith.negf %684 : vector<8x32xf32>
    %686 = math.exp %685 : vector<8x32xf32>
    %cst_216 = arith.constant 1.000000e+00 : f32
    %687 = vector.broadcast %cst_216 : f32 to vector<8x32xf32>
    %688 = arith.addf %687, %686 : vector<8x32xf32>
    %689 = arith.divf %687, %688 : vector<8x32xf32>
    %690 = arith.mulf %681, %654 : vector<8x32xf32>
    %691 = arith.mulf %675, %683 : vector<8x32xf32>
    %692 = arith.addf %690, %691 : vector<8x32xf32>
    %693 = math.tanh %692 : vector<8x32xf32>
    %694 = arith.mulf %689, %693 : vector<8x32xf32>
    %cst_217 = arith.constant 0.000000e+00 : f32
    %695 = vector.broadcast %cst_217 : f32 to vector<8x1xf32>
    %696 = arith.cmpf ogt, %658, %695 : vector<8x1xf32>
    %697 = vector.shape_cast %696 : vector<8x1xi1> to vector<8x1xi1>
    %698 = vector.broadcast %697 : vector<8x1xi1> to vector<8x32xi1>
    %699 = arith.select %698, %694, %649 : vector<8x32xi1>, vector<8x32xf32>
    %cst_218 = arith.constant 0.000000e+00 : f32
    %700 = vector.broadcast %cst_218 : f32 to vector<8x1xf32>
    %701 = arith.cmpf ogt, %658, %700 : vector<8x1xf32>
    %702 = vector.shape_cast %701 : vector<8x1xi1> to vector<8x1xi1>
    %703 = vector.broadcast %702 : vector<8x1xi1> to vector<8x32xi1>
    %704 = arith.select %703, %692, %654 : vector<8x32xi1>, vector<8x32xf32>
    %c14 = arith.constant 14 : index
    %c0_219 = arith.constant 0 : index
    %c0_220 = arith.constant 0 : index
    %705 = vector.load %arg0[%c14, %c0_219, %c0_220] : memref<21x8x16xf32, #tpu.memory_space<vmem>>, vector<1x8x16xf32>
    %706 = vector.shape_cast %705 : vector<1x8x16xf32> to vector<8x16xf32>
    %c14_221 = arith.constant 14 : index
    %c0_222 = arith.constant 0 : index
    %c0_223 = arith.constant 0 : index
    %707 = vector.load %arg1[%c14_221, %c0_222, %c0_223] : memref<21x8x1xf32, #tpu.memory_space<vmem>>, vector<1x8x1xf32>
    %708 = vector.shape_cast %707 : vector<1x8x1xf32> to vector<8x1xf32>
    %c14_224 = arith.constant 14 : index
    %c0_225 = arith.constant 0 : index
    %c0_226 = arith.constant 0 : index
    %709 = vector.load %arg2[%c14_224, %c0_225, %c0_226] : memref<21x8x1xf32, #tpu.memory_space<vmem>>, vector<1x8x1xf32>
    %710 = vector.shape_cast %709 : vector<1x8x1xf32> to vector<8x1xf32>
    %cst_227 = arith.constant 0.000000e+00 : f32
    %711 = vector.broadcast %cst_227 : f32 to vector<8x1xf32>
    %712 = arith.cmpf ogt, %710, %711 : vector<8x1xf32>
    %713 = vector.shape_cast %712 : vector<8x1xi1> to vector<8x1xi1>
    %714 = vector.broadcast %713 : vector<8x1xi1> to vector<8x32xi1>
    %715 = arith.select %714, %699, %665 : vector<8x32xi1>, vector<8x32xf32>
    %716 = tpu.concatenate %706, %699 in 1 : vector<8x16xf32>, vector<8x32xf32> -> vector<8x48xf32>
    %cst_228 = arith.constant dense<0.000000e+00> : vector<8x128xf32>
    %717 = tpu.matmul %716, %0, %cst_228 {dimension_numbers = #tpu.dot_dimension_numbers<[1], [0], [0], [1], [0, 0, 1, 1], [], []>} : vector<8x48xf32>, vector<48x128xf32>, vector<8x128xf32> -> vector<8x128xf32>
    %718 = vector.broadcast %1 : vector<1x128xf32> to vector<8x128xf32>
    %719 = arith.addf %717, %718 : vector<8x128xf32>
    %720 = vector.extract_strided_slice %719 {offsets = [0, 0], sizes = [8, 32], strides = [1, 1]} : vector<8x128xf32> to vector<8x32xf32>
    %721 = arith.negf %720 : vector<8x32xf32>
    %722 = math.exp %721 : vector<8x32xf32>
    %cst_229 = arith.constant 1.000000e+00 : f32
    %723 = vector.broadcast %cst_229 : f32 to vector<8x32xf32>
    %724 = arith.addf %723, %722 : vector<8x32xf32>
    %725 = arith.divf %723, %724 : vector<8x32xf32>
    %726 = vector.extract_strided_slice %719 {offsets = [0, 32], sizes = [8, 32], strides = [1, 1]} : vector<8x128xf32> to vector<8x32xf32>
    %727 = arith.negf %726 : vector<8x32xf32>
    %728 = math.exp %727 : vector<8x32xf32>
    %cst_230 = arith.constant 1.000000e+00 : f32
    %729 = vector.broadcast %cst_230 : f32 to vector<8x32xf32>
    %730 = arith.addf %729, %728 : vector<8x32xf32>
    %731 = arith.divf %729, %730 : vector<8x32xf32>
    %732 = vector.extract_strided_slice %719 {offsets = [0, 64], sizes = [8, 32], strides = [1, 1]} : vector<8x128xf32> to vector<8x32xf32>
    %733 = math.tanh %732 : vector<8x32xf32>
    %734 = vector.extract_strided_slice %719 {offsets = [0, 96], sizes = [8, 32], strides = [1, 1]} : vector<8x128xf32> to vector<8x32xf32>
    %735 = arith.negf %734 : vector<8x32xf32>
    %736 = math.exp %735 : vector<8x32xf32>
    %cst_231 = arith.constant 1.000000e+00 : f32
    %737 = vector.broadcast %cst_231 : f32 to vector<8x32xf32>
    %738 = arith.addf %737, %736 : vector<8x32xf32>
    %739 = arith.divf %737, %738 : vector<8x32xf32>
    %740 = arith.mulf %731, %704 : vector<8x32xf32>
    %741 = arith.mulf %725, %733 : vector<8x32xf32>
    %742 = arith.addf %740, %741 : vector<8x32xf32>
    %743 = math.tanh %742 : vector<8x32xf32>
    %744 = arith.mulf %739, %743 : vector<8x32xf32>
    %cst_232 = arith.constant 0.000000e+00 : f32
    %745 = vector.broadcast %cst_232 : f32 to vector<8x1xf32>
    %746 = arith.cmpf ogt, %708, %745 : vector<8x1xf32>
    %747 = vector.shape_cast %746 : vector<8x1xi1> to vector<8x1xi1>
    %748 = vector.broadcast %747 : vector<8x1xi1> to vector<8x32xi1>
    %749 = arith.select %748, %744, %699 : vector<8x32xi1>, vector<8x32xf32>
    %cst_233 = arith.constant 0.000000e+00 : f32
    %750 = vector.broadcast %cst_233 : f32 to vector<8x1xf32>
    %751 = arith.cmpf ogt, %708, %750 : vector<8x1xf32>
    %752 = vector.shape_cast %751 : vector<8x1xi1> to vector<8x1xi1>
    %753 = vector.broadcast %752 : vector<8x1xi1> to vector<8x32xi1>
    %754 = arith.select %753, %742, %704 : vector<8x32xi1>, vector<8x32xf32>
    %c15 = arith.constant 15 : index
    %c0_234 = arith.constant 0 : index
    %c0_235 = arith.constant 0 : index
    %755 = vector.load %arg0[%c15, %c0_234, %c0_235] : memref<21x8x16xf32, #tpu.memory_space<vmem>>, vector<1x8x16xf32>
    %756 = vector.shape_cast %755 : vector<1x8x16xf32> to vector<8x16xf32>
    %c15_236 = arith.constant 15 : index
    %c0_237 = arith.constant 0 : index
    %c0_238 = arith.constant 0 : index
    %757 = vector.load %arg1[%c15_236, %c0_237, %c0_238] : memref<21x8x1xf32, #tpu.memory_space<vmem>>, vector<1x8x1xf32>
    %758 = vector.shape_cast %757 : vector<1x8x1xf32> to vector<8x1xf32>
    %c15_239 = arith.constant 15 : index
    %c0_240 = arith.constant 0 : index
    %c0_241 = arith.constant 0 : index
    %759 = vector.load %arg2[%c15_239, %c0_240, %c0_241] : memref<21x8x1xf32, #tpu.memory_space<vmem>>, vector<1x8x1xf32>
    %760 = vector.shape_cast %759 : vector<1x8x1xf32> to vector<8x1xf32>
    %cst_242 = arith.constant 0.000000e+00 : f32
    %761 = vector.broadcast %cst_242 : f32 to vector<8x1xf32>
    %762 = arith.cmpf ogt, %760, %761 : vector<8x1xf32>
    %763 = vector.shape_cast %762 : vector<8x1xi1> to vector<8x1xi1>
    %764 = vector.broadcast %763 : vector<8x1xi1> to vector<8x32xi1>
    %765 = arith.select %764, %749, %715 : vector<8x32xi1>, vector<8x32xf32>
    %766 = tpu.concatenate %756, %749 in 1 : vector<8x16xf32>, vector<8x32xf32> -> vector<8x48xf32>
    %cst_243 = arith.constant dense<0.000000e+00> : vector<8x128xf32>
    %767 = tpu.matmul %766, %0, %cst_243 {dimension_numbers = #tpu.dot_dimension_numbers<[1], [0], [0], [1], [0, 0, 1, 1], [], []>} : vector<8x48xf32>, vector<48x128xf32>, vector<8x128xf32> -> vector<8x128xf32>
    %768 = vector.broadcast %1 : vector<1x128xf32> to vector<8x128xf32>
    %769 = arith.addf %767, %768 : vector<8x128xf32>
    %770 = vector.extract_strided_slice %769 {offsets = [0, 0], sizes = [8, 32], strides = [1, 1]} : vector<8x128xf32> to vector<8x32xf32>
    %771 = arith.negf %770 : vector<8x32xf32>
    %772 = math.exp %771 : vector<8x32xf32>
    %cst_244 = arith.constant 1.000000e+00 : f32
    %773 = vector.broadcast %cst_244 : f32 to vector<8x32xf32>
    %774 = arith.addf %773, %772 : vector<8x32xf32>
    %775 = arith.divf %773, %774 : vector<8x32xf32>
    %776 = vector.extract_strided_slice %769 {offsets = [0, 32], sizes = [8, 32], strides = [1, 1]} : vector<8x128xf32> to vector<8x32xf32>
    %777 = arith.negf %776 : vector<8x32xf32>
    %778 = math.exp %777 : vector<8x32xf32>
    %cst_245 = arith.constant 1.000000e+00 : f32
    %779 = vector.broadcast %cst_245 : f32 to vector<8x32xf32>
    %780 = arith.addf %779, %778 : vector<8x32xf32>
    %781 = arith.divf %779, %780 : vector<8x32xf32>
    %782 = vector.extract_strided_slice %769 {offsets = [0, 64], sizes = [8, 32], strides = [1, 1]} : vector<8x128xf32> to vector<8x32xf32>
    %783 = math.tanh %782 : vector<8x32xf32>
    %784 = vector.extract_strided_slice %769 {offsets = [0, 96], sizes = [8, 32], strides = [1, 1]} : vector<8x128xf32> to vector<8x32xf32>
    %785 = arith.negf %784 : vector<8x32xf32>
    %786 = math.exp %785 : vector<8x32xf32>
    %cst_246 = arith.constant 1.000000e+00 : f32
    %787 = vector.broadcast %cst_246 : f32 to vector<8x32xf32>
    %788 = arith.addf %787, %786 : vector<8x32xf32>
    %789 = arith.divf %787, %788 : vector<8x32xf32>
    %790 = arith.mulf %781, %754 : vector<8x32xf32>
    %791 = arith.mulf %775, %783 : vector<8x32xf32>
    %792 = arith.addf %790, %791 : vector<8x32xf32>
    %793 = math.tanh %792 : vector<8x32xf32>
    %794 = arith.mulf %789, %793 : vector<8x32xf32>
    %cst_247 = arith.constant 0.000000e+00 : f32
    %795 = vector.broadcast %cst_247 : f32 to vector<8x1xf32>
    %796 = arith.cmpf ogt, %758, %795 : vector<8x1xf32>
    %797 = vector.shape_cast %796 : vector<8x1xi1> to vector<8x1xi1>
    %798 = vector.broadcast %797 : vector<8x1xi1> to vector<8x32xi1>
    %799 = arith.select %798, %794, %749 : vector<8x32xi1>, vector<8x32xf32>
    %cst_248 = arith.constant 0.000000e+00 : f32
    %800 = vector.broadcast %cst_248 : f32 to vector<8x1xf32>
    %801 = arith.cmpf ogt, %758, %800 : vector<8x1xf32>
    %802 = vector.shape_cast %801 : vector<8x1xi1> to vector<8x1xi1>
    %803 = vector.broadcast %802 : vector<8x1xi1> to vector<8x32xi1>
    %804 = arith.select %803, %792, %754 : vector<8x32xi1>, vector<8x32xf32>
    %c16 = arith.constant 16 : index
    %c0_249 = arith.constant 0 : index
    %c0_250 = arith.constant 0 : index
    %805 = vector.load %arg0[%c16, %c0_249, %c0_250] : memref<21x8x16xf32, #tpu.memory_space<vmem>>, vector<1x8x16xf32>
    %806 = vector.shape_cast %805 : vector<1x8x16xf32> to vector<8x16xf32>
    %c16_251 = arith.constant 16 : index
    %c0_252 = arith.constant 0 : index
    %c0_253 = arith.constant 0 : index
    %807 = vector.load %arg1[%c16_251, %c0_252, %c0_253] : memref<21x8x1xf32, #tpu.memory_space<vmem>>, vector<1x8x1xf32>
    %808 = vector.shape_cast %807 : vector<1x8x1xf32> to vector<8x1xf32>
    %c16_254 = arith.constant 16 : index
    %c0_255 = arith.constant 0 : index
    %c0_256 = arith.constant 0 : index
    %809 = vector.load %arg2[%c16_254, %c0_255, %c0_256] : memref<21x8x1xf32, #tpu.memory_space<vmem>>, vector<1x8x1xf32>
    %810 = vector.shape_cast %809 : vector<1x8x1xf32> to vector<8x1xf32>
    %cst_257 = arith.constant 0.000000e+00 : f32
    %811 = vector.broadcast %cst_257 : f32 to vector<8x1xf32>
    %812 = arith.cmpf ogt, %810, %811 : vector<8x1xf32>
    %813 = vector.shape_cast %812 : vector<8x1xi1> to vector<8x1xi1>
    %814 = vector.broadcast %813 : vector<8x1xi1> to vector<8x32xi1>
    %815 = arith.select %814, %799, %765 : vector<8x32xi1>, vector<8x32xf32>
    %816 = tpu.concatenate %806, %799 in 1 : vector<8x16xf32>, vector<8x32xf32> -> vector<8x48xf32>
    %cst_258 = arith.constant dense<0.000000e+00> : vector<8x128xf32>
    %817 = tpu.matmul %816, %0, %cst_258 {dimension_numbers = #tpu.dot_dimension_numbers<[1], [0], [0], [1], [0, 0, 1, 1], [], []>} : vector<8x48xf32>, vector<48x128xf32>, vector<8x128xf32> -> vector<8x128xf32>
    %818 = vector.broadcast %1 : vector<1x128xf32> to vector<8x128xf32>
    %819 = arith.addf %817, %818 : vector<8x128xf32>
    %820 = vector.extract_strided_slice %819 {offsets = [0, 0], sizes = [8, 32], strides = [1, 1]} : vector<8x128xf32> to vector<8x32xf32>
    %821 = arith.negf %820 : vector<8x32xf32>
    %822 = math.exp %821 : vector<8x32xf32>
    %cst_259 = arith.constant 1.000000e+00 : f32
    %823 = vector.broadcast %cst_259 : f32 to vector<8x32xf32>
    %824 = arith.addf %823, %822 : vector<8x32xf32>
    %825 = arith.divf %823, %824 : vector<8x32xf32>
    %826 = vector.extract_strided_slice %819 {offsets = [0, 32], sizes = [8, 32], strides = [1, 1]} : vector<8x128xf32> to vector<8x32xf32>
    %827 = arith.negf %826 : vector<8x32xf32>
    %828 = math.exp %827 : vector<8x32xf32>
    %cst_260 = arith.constant 1.000000e+00 : f32
    %829 = vector.broadcast %cst_260 : f32 to vector<8x32xf32>
    %830 = arith.addf %829, %828 : vector<8x32xf32>
    %831 = arith.divf %829, %830 : vector<8x32xf32>
    %832 = vector.extract_strided_slice %819 {offsets = [0, 64], sizes = [8, 32], strides = [1, 1]} : vector<8x128xf32> to vector<8x32xf32>
    %833 = math.tanh %832 : vector<8x32xf32>
    %834 = vector.extract_strided_slice %819 {offsets = [0, 96], sizes = [8, 32], strides = [1, 1]} : vector<8x128xf32> to vector<8x32xf32>
    %835 = arith.negf %834 : vector<8x32xf32>
    %836 = math.exp %835 : vector<8x32xf32>
    %cst_261 = arith.constant 1.000000e+00 : f32
    %837 = vector.broadcast %cst_261 : f32 to vector<8x32xf32>
    %838 = arith.addf %837, %836 : vector<8x32xf32>
    %839 = arith.divf %837, %838 : vector<8x32xf32>
    %840 = arith.mulf %831, %804 : vector<8x32xf32>
    %841 = arith.mulf %825, %833 : vector<8x32xf32>
    %842 = arith.addf %840, %841 : vector<8x32xf32>
    %843 = math.tanh %842 : vector<8x32xf32>
    %844 = arith.mulf %839, %843 : vector<8x32xf32>
    %cst_262 = arith.constant 0.000000e+00 : f32
    %845 = vector.broadcast %cst_262 : f32 to vector<8x1xf32>
    %846 = arith.cmpf ogt, %808, %845 : vector<8x1xf32>
    %847 = vector.shape_cast %846 : vector<8x1xi1> to vector<8x1xi1>
    %848 = vector.broadcast %847 : vector<8x1xi1> to vector<8x32xi1>
    %849 = arith.select %848, %844, %799 : vector<8x32xi1>, vector<8x32xf32>
    %cst_263 = arith.constant 0.000000e+00 : f32
    %850 = vector.broadcast %cst_263 : f32 to vector<8x1xf32>
    %851 = arith.cmpf ogt, %808, %850 : vector<8x1xf32>
    %852 = vector.shape_cast %851 : vector<8x1xi1> to vector<8x1xi1>
    %853 = vector.broadcast %852 : vector<8x1xi1> to vector<8x32xi1>
    %854 = arith.select %853, %842, %804 : vector<8x32xi1>, vector<8x32xf32>
    %c17 = arith.constant 17 : index
    %c0_264 = arith.constant 0 : index
    %c0_265 = arith.constant 0 : index
    %855 = vector.load %arg0[%c17, %c0_264, %c0_265] : memref<21x8x16xf32, #tpu.memory_space<vmem>>, vector<1x8x16xf32>
    %856 = vector.shape_cast %855 : vector<1x8x16xf32> to vector<8x16xf32>
    %c17_266 = arith.constant 17 : index
    %c0_267 = arith.constant 0 : index
    %c0_268 = arith.constant 0 : index
    %857 = vector.load %arg1[%c17_266, %c0_267, %c0_268] : memref<21x8x1xf32, #tpu.memory_space<vmem>>, vector<1x8x1xf32>
    %858 = vector.shape_cast %857 : vector<1x8x1xf32> to vector<8x1xf32>
    %c17_269 = arith.constant 17 : index
    %c0_270 = arith.constant 0 : index
    %c0_271 = arith.constant 0 : index
    %859 = vector.load %arg2[%c17_269, %c0_270, %c0_271] : memref<21x8x1xf32, #tpu.memory_space<vmem>>, vector<1x8x1xf32>
    %860 = vector.shape_cast %859 : vector<1x8x1xf32> to vector<8x1xf32>
    %cst_272 = arith.constant 0.000000e+00 : f32
    %861 = vector.broadcast %cst_272 : f32 to vector<8x1xf32>
    %862 = arith.cmpf ogt, %860, %861 : vector<8x1xf32>
    %863 = vector.shape_cast %862 : vector<8x1xi1> to vector<8x1xi1>
    %864 = vector.broadcast %863 : vector<8x1xi1> to vector<8x32xi1>
    %865 = arith.select %864, %849, %815 : vector<8x32xi1>, vector<8x32xf32>
    %866 = tpu.concatenate %856, %849 in 1 : vector<8x16xf32>, vector<8x32xf32> -> vector<8x48xf32>
    %cst_273 = arith.constant dense<0.000000e+00> : vector<8x128xf32>
    %867 = tpu.matmul %866, %0, %cst_273 {dimension_numbers = #tpu.dot_dimension_numbers<[1], [0], [0], [1], [0, 0, 1, 1], [], []>} : vector<8x48xf32>, vector<48x128xf32>, vector<8x128xf32> -> vector<8x128xf32>
    %868 = vector.broadcast %1 : vector<1x128xf32> to vector<8x128xf32>
    %869 = arith.addf %867, %868 : vector<8x128xf32>
    %870 = vector.extract_strided_slice %869 {offsets = [0, 0], sizes = [8, 32], strides = [1, 1]} : vector<8x128xf32> to vector<8x32xf32>
    %871 = arith.negf %870 : vector<8x32xf32>
    %872 = math.exp %871 : vector<8x32xf32>
    %cst_274 = arith.constant 1.000000e+00 : f32
    %873 = vector.broadcast %cst_274 : f32 to vector<8x32xf32>
    %874 = arith.addf %873, %872 : vector<8x32xf32>
    %875 = arith.divf %873, %874 : vector<8x32xf32>
    %876 = vector.extract_strided_slice %869 {offsets = [0, 32], sizes = [8, 32], strides = [1, 1]} : vector<8x128xf32> to vector<8x32xf32>
    %877 = arith.negf %876 : vector<8x32xf32>
    %878 = math.exp %877 : vector<8x32xf32>
    %cst_275 = arith.constant 1.000000e+00 : f32
    %879 = vector.broadcast %cst_275 : f32 to vector<8x32xf32>
    %880 = arith.addf %879, %878 : vector<8x32xf32>
    %881 = arith.divf %879, %880 : vector<8x32xf32>
    %882 = vector.extract_strided_slice %869 {offsets = [0, 64], sizes = [8, 32], strides = [1, 1]} : vector<8x128xf32> to vector<8x32xf32>
    %883 = math.tanh %882 : vector<8x32xf32>
    %884 = vector.extract_strided_slice %869 {offsets = [0, 96], sizes = [8, 32], strides = [1, 1]} : vector<8x128xf32> to vector<8x32xf32>
    %885 = arith.negf %884 : vector<8x32xf32>
    %886 = math.exp %885 : vector<8x32xf32>
    %cst_276 = arith.constant 1.000000e+00 : f32
    %887 = vector.broadcast %cst_276 : f32 to vector<8x32xf32>
    %888 = arith.addf %887, %886 : vector<8x32xf32>
    %889 = arith.divf %887, %888 : vector<8x32xf32>
    %890 = arith.mulf %881, %854 : vector<8x32xf32>
    %891 = arith.mulf %875, %883 : vector<8x32xf32>
    %892 = arith.addf %890, %891 : vector<8x32xf32>
    %893 = math.tanh %892 : vector<8x32xf32>
    %894 = arith.mulf %889, %893 : vector<8x32xf32>
    %cst_277 = arith.constant 0.000000e+00 : f32
    %895 = vector.broadcast %cst_277 : f32 to vector<8x1xf32>
    %896 = arith.cmpf ogt, %858, %895 : vector<8x1xf32>
    %897 = vector.shape_cast %896 : vector<8x1xi1> to vector<8x1xi1>
    %898 = vector.broadcast %897 : vector<8x1xi1> to vector<8x32xi1>
    %899 = arith.select %898, %894, %849 : vector<8x32xi1>, vector<8x32xf32>
    %cst_278 = arith.constant 0.000000e+00 : f32
    %900 = vector.broadcast %cst_278 : f32 to vector<8x1xf32>
    %901 = arith.cmpf ogt, %858, %900 : vector<8x1xf32>
    %902 = vector.shape_cast %901 : vector<8x1xi1> to vector<8x1xi1>
    %903 = vector.broadcast %902 : vector<8x1xi1> to vector<8x32xi1>
    %904 = arith.select %903, %892, %854 : vector<8x32xi1>, vector<8x32xf32>
    %c18 = arith.constant 18 : index
    %c0_279 = arith.constant 0 : index
    %c0_280 = arith.constant 0 : index
    %905 = vector.load %arg0[%c18, %c0_279, %c0_280] : memref<21x8x16xf32, #tpu.memory_space<vmem>>, vector<1x8x16xf32>
    %906 = vector.shape_cast %905 : vector<1x8x16xf32> to vector<8x16xf32>
    %c18_281 = arith.constant 18 : index
    %c0_282 = arith.constant 0 : index
    %c0_283 = arith.constant 0 : index
    %907 = vector.load %arg1[%c18_281, %c0_282, %c0_283] : memref<21x8x1xf32, #tpu.memory_space<vmem>>, vector<1x8x1xf32>
    %908 = vector.shape_cast %907 : vector<1x8x1xf32> to vector<8x1xf32>
    %c18_284 = arith.constant 18 : index
    %c0_285 = arith.constant 0 : index
    %c0_286 = arith.constant 0 : index
    %909 = vector.load %arg2[%c18_284, %c0_285, %c0_286] : memref<21x8x1xf32, #tpu.memory_space<vmem>>, vector<1x8x1xf32>
    %910 = vector.shape_cast %909 : vector<1x8x1xf32> to vector<8x1xf32>
    %cst_287 = arith.constant 0.000000e+00 : f32
    %911 = vector.broadcast %cst_287 : f32 to vector<8x1xf32>
    %912 = arith.cmpf ogt, %910, %911 : vector<8x1xf32>
    %913 = vector.shape_cast %912 : vector<8x1xi1> to vector<8x1xi1>
    %914 = vector.broadcast %913 : vector<8x1xi1> to vector<8x32xi1>
    %915 = arith.select %914, %899, %865 : vector<8x32xi1>, vector<8x32xf32>
    %916 = tpu.concatenate %906, %899 in 1 : vector<8x16xf32>, vector<8x32xf32> -> vector<8x48xf32>
    %cst_288 = arith.constant dense<0.000000e+00> : vector<8x128xf32>
    %917 = tpu.matmul %916, %0, %cst_288 {dimension_numbers = #tpu.dot_dimension_numbers<[1], [0], [0], [1], [0, 0, 1, 1], [], []>} : vector<8x48xf32>, vector<48x128xf32>, vector<8x128xf32> -> vector<8x128xf32>
    %918 = vector.broadcast %1 : vector<1x128xf32> to vector<8x128xf32>
    %919 = arith.addf %917, %918 : vector<8x128xf32>
    %920 = vector.extract_strided_slice %919 {offsets = [0, 0], sizes = [8, 32], strides = [1, 1]} : vector<8x128xf32> to vector<8x32xf32>
    %921 = arith.negf %920 : vector<8x32xf32>
    %922 = math.exp %921 : vector<8x32xf32>
    %cst_289 = arith.constant 1.000000e+00 : f32
    %923 = vector.broadcast %cst_289 : f32 to vector<8x32xf32>
    %924 = arith.addf %923, %922 : vector<8x32xf32>
    %925 = arith.divf %923, %924 : vector<8x32xf32>
    %926 = vector.extract_strided_slice %919 {offsets = [0, 32], sizes = [8, 32], strides = [1, 1]} : vector<8x128xf32> to vector<8x32xf32>
    %927 = arith.negf %926 : vector<8x32xf32>
    %928 = math.exp %927 : vector<8x32xf32>
    %cst_290 = arith.constant 1.000000e+00 : f32
    %929 = vector.broadcast %cst_290 : f32 to vector<8x32xf32>
    %930 = arith.addf %929, %928 : vector<8x32xf32>
    %931 = arith.divf %929, %930 : vector<8x32xf32>
    %932 = vector.extract_strided_slice %919 {offsets = [0, 64], sizes = [8, 32], strides = [1, 1]} : vector<8x128xf32> to vector<8x32xf32>
    %933 = math.tanh %932 : vector<8x32xf32>
    %934 = vector.extract_strided_slice %919 {offsets = [0, 96], sizes = [8, 32], strides = [1, 1]} : vector<8x128xf32> to vector<8x32xf32>
    %935 = arith.negf %934 : vector<8x32xf32>
    %936 = math.exp %935 : vector<8x32xf32>
    %cst_291 = arith.constant 1.000000e+00 : f32
    %937 = vector.broadcast %cst_291 : f32 to vector<8x32xf32>
    %938 = arith.addf %937, %936 : vector<8x32xf32>
    %939 = arith.divf %937, %938 : vector<8x32xf32>
    %940 = arith.mulf %931, %904 : vector<8x32xf32>
    %941 = arith.mulf %925, %933 : vector<8x32xf32>
    %942 = arith.addf %940, %941 : vector<8x32xf32>
    %943 = math.tanh %942 : vector<8x32xf32>
    %944 = arith.mulf %939, %943 : vector<8x32xf32>
    %cst_292 = arith.constant 0.000000e+00 : f32
    %945 = vector.broadcast %cst_292 : f32 to vector<8x1xf32>
    %946 = arith.cmpf ogt, %908, %945 : vector<8x1xf32>
    %947 = vector.shape_cast %946 : vector<8x1xi1> to vector<8x1xi1>
    %948 = vector.broadcast %947 : vector<8x1xi1> to vector<8x32xi1>
    %949 = arith.select %948, %944, %899 : vector<8x32xi1>, vector<8x32xf32>
    %cst_293 = arith.constant 0.000000e+00 : f32
    %950 = vector.broadcast %cst_293 : f32 to vector<8x1xf32>
    %951 = arith.cmpf ogt, %908, %950 : vector<8x1xf32>
    %952 = vector.shape_cast %951 : vector<8x1xi1> to vector<8x1xi1>
    %953 = vector.broadcast %952 : vector<8x1xi1> to vector<8x32xi1>
    %954 = arith.select %953, %942, %904 : vector<8x32xi1>, vector<8x32xf32>
    %c19 = arith.constant 19 : index
    %c0_294 = arith.constant 0 : index
    %c0_295 = arith.constant 0 : index
    %955 = vector.load %arg0[%c19, %c0_294, %c0_295] : memref<21x8x16xf32, #tpu.memory_space<vmem>>, vector<1x8x16xf32>
    %956 = vector.shape_cast %955 : vector<1x8x16xf32> to vector<8x16xf32>
    %c19_296 = arith.constant 19 : index
    %c0_297 = arith.constant 0 : index
    %c0_298 = arith.constant 0 : index
    %957 = vector.load %arg1[%c19_296, %c0_297, %c0_298] : memref<21x8x1xf32, #tpu.memory_space<vmem>>, vector<1x8x1xf32>
    %958 = vector.shape_cast %957 : vector<1x8x1xf32> to vector<8x1xf32>
    %c19_299 = arith.constant 19 : index
    %c0_300 = arith.constant 0 : index
    %c0_301 = arith.constant 0 : index
    %959 = vector.load %arg2[%c19_299, %c0_300, %c0_301] : memref<21x8x1xf32, #tpu.memory_space<vmem>>, vector<1x8x1xf32>
    %960 = vector.shape_cast %959 : vector<1x8x1xf32> to vector<8x1xf32>
    %cst_302 = arith.constant 0.000000e+00 : f32
    %961 = vector.broadcast %cst_302 : f32 to vector<8x1xf32>
    %962 = arith.cmpf ogt, %960, %961 : vector<8x1xf32>
    %963 = vector.shape_cast %962 : vector<8x1xi1> to vector<8x1xi1>
    %964 = vector.broadcast %963 : vector<8x1xi1> to vector<8x32xi1>
    %965 = arith.select %964, %949, %915 : vector<8x32xi1>, vector<8x32xf32>
    %966 = tpu.concatenate %956, %949 in 1 : vector<8x16xf32>, vector<8x32xf32> -> vector<8x48xf32>
    %cst_303 = arith.constant dense<0.000000e+00> : vector<8x128xf32>
    %967 = tpu.matmul %966, %0, %cst_303 {dimension_numbers = #tpu.dot_dimension_numbers<[1], [0], [0], [1], [0, 0, 1, 1], [], []>} : vector<8x48xf32>, vector<48x128xf32>, vector<8x128xf32> -> vector<8x128xf32>
    %968 = vector.broadcast %1 : vector<1x128xf32> to vector<8x128xf32>
    %969 = arith.addf %967, %968 : vector<8x128xf32>
    %970 = vector.extract_strided_slice %969 {offsets = [0, 0], sizes = [8, 32], strides = [1, 1]} : vector<8x128xf32> to vector<8x32xf32>
    %971 = arith.negf %970 : vector<8x32xf32>
    %972 = math.exp %971 : vector<8x32xf32>
    %cst_304 = arith.constant 1.000000e+00 : f32
    %973 = vector.broadcast %cst_304 : f32 to vector<8x32xf32>
    %974 = arith.addf %973, %972 : vector<8x32xf32>
    %975 = arith.divf %973, %974 : vector<8x32xf32>
    %976 = vector.extract_strided_slice %969 {offsets = [0, 32], sizes = [8, 32], strides = [1, 1]} : vector<8x128xf32> to vector<8x32xf32>
    %977 = arith.negf %976 : vector<8x32xf32>
    %978 = math.exp %977 : vector<8x32xf32>
    %cst_305 = arith.constant 1.000000e+00 : f32
    %979 = vector.broadcast %cst_305 : f32 to vector<8x32xf32>
    %980 = arith.addf %979, %978 : vector<8x32xf32>
    %981 = arith.divf %979, %980 : vector<8x32xf32>
    %982 = vector.extract_strided_slice %969 {offsets = [0, 64], sizes = [8, 32], strides = [1, 1]} : vector<8x128xf32> to vector<8x32xf32>
    %983 = math.tanh %982 : vector<8x32xf32>
    %984 = vector.extract_strided_slice %969 {offsets = [0, 96], sizes = [8, 32], strides = [1, 1]} : vector<8x128xf32> to vector<8x32xf32>
    %985 = arith.negf %984 : vector<8x32xf32>
    %986 = math.exp %985 : vector<8x32xf32>
    %cst_306 = arith.constant 1.000000e+00 : f32
    %987 = vector.broadcast %cst_306 : f32 to vector<8x32xf32>
    %988 = arith.addf %987, %986 : vector<8x32xf32>
    %989 = arith.divf %987, %988 : vector<8x32xf32>
    %990 = arith.mulf %981, %954 : vector<8x32xf32>
    %991 = arith.mulf %975, %983 : vector<8x32xf32>
    %992 = arith.addf %990, %991 : vector<8x32xf32>
    %993 = math.tanh %992 : vector<8x32xf32>
    %994 = arith.mulf %989, %993 : vector<8x32xf32>
    %cst_307 = arith.constant 0.000000e+00 : f32
    %995 = vector.broadcast %cst_307 : f32 to vector<8x1xf32>
    %996 = arith.cmpf ogt, %958, %995 : vector<8x1xf32>
    %997 = vector.shape_cast %996 : vector<8x1xi1> to vector<8x1xi1>
    %998 = vector.broadcast %997 : vector<8x1xi1> to vector<8x32xi1>
    %999 = arith.select %998, %994, %949 : vector<8x32xi1>, vector<8x32xf32>
    %cst_308 = arith.constant 0.000000e+00 : f32
    %1000 = vector.broadcast %cst_308 : f32 to vector<8x1xf32>
    %1001 = arith.cmpf ogt, %958, %1000 : vector<8x1xf32>
    %1002 = vector.shape_cast %1001 : vector<8x1xi1> to vector<8x1xi1>
    %1003 = vector.broadcast %1002 : vector<8x1xi1> to vector<8x32xi1>
    %1004 = arith.select %1003, %992, %954 : vector<8x32xi1>, vector<8x32xf32>
    %c20 = arith.constant 20 : index
    %c0_309 = arith.constant 0 : index
    %c0_310 = arith.constant 0 : index
    %1005 = vector.load %arg0[%c20, %c0_309, %c0_310] : memref<21x8x16xf32, #tpu.memory_space<vmem>>, vector<1x8x16xf32>
    %1006 = vector.shape_cast %1005 : vector<1x8x16xf32> to vector<8x16xf32>
    %c20_311 = arith.constant 20 : index
    %c0_312 = arith.constant 0 : index
    %c0_313 = arith.constant 0 : index
    %1007 = vector.load %arg1[%c20_311, %c0_312, %c0_313] : memref<21x8x1xf32, #tpu.memory_space<vmem>>, vector<1x8x1xf32>
    %1008 = vector.shape_cast %1007 : vector<1x8x1xf32> to vector<8x1xf32>
    %c20_314 = arith.constant 20 : index
    %c0_315 = arith.constant 0 : index
    %c0_316 = arith.constant 0 : index
    %1009 = vector.load %arg2[%c20_314, %c0_315, %c0_316] : memref<21x8x1xf32, #tpu.memory_space<vmem>>, vector<1x8x1xf32>
    %1010 = vector.shape_cast %1009 : vector<1x8x1xf32> to vector<8x1xf32>
    %cst_317 = arith.constant 0.000000e+00 : f32
    %1011 = vector.broadcast %cst_317 : f32 to vector<8x1xf32>
    %1012 = arith.cmpf ogt, %1010, %1011 : vector<8x1xf32>
    %1013 = vector.shape_cast %1012 : vector<8x1xi1> to vector<8x1xi1>
    %1014 = vector.broadcast %1013 : vector<8x1xi1> to vector<8x32xi1>
    %1015 = arith.select %1014, %999, %965 : vector<8x32xi1>, vector<8x32xf32>
    %1016 = tpu.concatenate %1006, %999 in 1 : vector<8x16xf32>, vector<8x32xf32> -> vector<8x48xf32>
    %cst_318 = arith.constant dense<0.000000e+00> : vector<8x128xf32>
    %1017 = tpu.matmul %1016, %0, %cst_318 {dimension_numbers = #tpu.dot_dimension_numbers<[1], [0], [0], [1], [0, 0, 1, 1], [], []>} : vector<8x48xf32>, vector<48x128xf32>, vector<8x128xf32> -> vector<8x128xf32>
    %1018 = vector.broadcast %1 : vector<1x128xf32> to vector<8x128xf32>
    %1019 = arith.addf %1017, %1018 : vector<8x128xf32>
    %1020 = vector.extract_strided_slice %1019 {offsets = [0, 0], sizes = [8, 32], strides = [1, 1]} : vector<8x128xf32> to vector<8x32xf32>
    %1021 = arith.negf %1020 : vector<8x32xf32>
    %1022 = math.exp %1021 : vector<8x32xf32>
    %cst_319 = arith.constant 1.000000e+00 : f32
    %1023 = vector.broadcast %cst_319 : f32 to vector<8x32xf32>
    %1024 = arith.addf %1023, %1022 : vector<8x32xf32>
    %1025 = arith.divf %1023, %1024 : vector<8x32xf32>
    %1026 = vector.extract_strided_slice %1019 {offsets = [0, 32], sizes = [8, 32], strides = [1, 1]} : vector<8x128xf32> to vector<8x32xf32>
    %1027 = arith.negf %1026 : vector<8x32xf32>
    %1028 = math.exp %1027 : vector<8x32xf32>
    %cst_320 = arith.constant 1.000000e+00 : f32
    %1029 = vector.broadcast %cst_320 : f32 to vector<8x32xf32>
    %1030 = arith.addf %1029, %1028 : vector<8x32xf32>
    %1031 = arith.divf %1029, %1030 : vector<8x32xf32>
    %1032 = vector.extract_strided_slice %1019 {offsets = [0, 64], sizes = [8, 32], strides = [1, 1]} : vector<8x128xf32> to vector<8x32xf32>
    %1033 = math.tanh %1032 : vector<8x32xf32>
    %1034 = vector.extract_strided_slice %1019 {offsets = [0, 96], sizes = [8, 32], strides = [1, 1]} : vector<8x128xf32> to vector<8x32xf32>
    %1035 = arith.negf %1034 : vector<8x32xf32>
    %1036 = math.exp %1035 : vector<8x32xf32>
    %cst_321 = arith.constant 1.000000e+00 : f32
    %1037 = vector.broadcast %cst_321 : f32 to vector<8x32xf32>
    %1038 = arith.addf %1037, %1036 : vector<8x32xf32>
    %1039 = arith.divf %1037, %1038 : vector<8x32xf32>
    %1040 = arith.mulf %1031, %1004 : vector<8x32xf32>
    %1041 = arith.mulf %1025, %1033 : vector<8x32xf32>
    %1042 = arith.addf %1040, %1041 : vector<8x32xf32>
    %1043 = math.tanh %1042 : vector<8x32xf32>
    %1044 = arith.mulf %1039, %1043 : vector<8x32xf32>
    %cst_322 = arith.constant 0.000000e+00 : f32
    %1045 = vector.broadcast %cst_322 : f32 to vector<8x1xf32>
    %1046 = arith.cmpf ogt, %1008, %1045 : vector<8x1xf32>
    %1047 = vector.shape_cast %1046 : vector<8x1xi1> to vector<8x1xi1>
    %1048 = vector.broadcast %1047 : vector<8x1xi1> to vector<8x32xi1>
    %1049 = arith.select %1048, %1044, %999 : vector<8x32xi1>, vector<8x32xf32>
    %cst_323 = arith.constant 0.000000e+00 : f32
    %1050 = vector.broadcast %cst_323 : f32 to vector<8x1xf32>
    %1051 = arith.cmpf ogt, %1008, %1050 : vector<8x1xf32>
    %1052 = vector.shape_cast %1051 : vector<8x1xi1> to vector<8x1xi1>
    %1053 = vector.broadcast %1052 : vector<8x1xi1> to vector<8x32xi1>
    %1054 = arith.select %1053, %1042, %1004 : vector<8x32xi1>, vector<8x32xf32>
    %c0_324 = arith.constant 0 : index
    %c0_325 = arith.constant 0 : index
    %1055 = vector.load %arg12[%c0_324, %c0_325] : memref<8x32xf32, #tpu.memory_space<vmem>>, vector<8x32xf32>
    tpu.vector_store %arg12[%c0_324, %c0_325], %1049 {strides = array<i32>} : memref<8x32xf32, #tpu.memory_space<vmem>>, vector<8x32xf32>,
    %c0_326 = arith.constant 0 : index
    %c0_327 = arith.constant 0 : index
    %1056 = vector.load %arg13[%c0_326, %c0_327] : memref<8x32xf32, #tpu.memory_space<vmem>>, vector<8x32xf32>
    tpu.vector_store %arg13[%c0_326, %c0_327], %1054 {strides = array<i32>} : memref<8x32xf32, #tpu.memory_space<vmem>>, vector<8x32xf32>,
    %c0_328 = arith.constant 0 : index
    %c0_329 = arith.constant 0 : index
    %1057 = vector.load %arg14[%c0_328, %c0_329] : memref<8x32xf32, #tpu.memory_space<vmem>>, vector<8x32xf32>
    tpu.vector_store %arg14[%c0_328, %c0_329], %1015 {strides = array<i32>} : memref<8x32xf32, #tpu.memory_space<vmem>>, vector<8x32xf32>,
    %c0_330 = arith.constant 0 : index
    %c0_331 = arith.constant 0 : index
    %1058 = vector.load %arg8[%c0_330, %c0_331] : memref<32x128xf32, #tpu.memory_space<vmem>>, vector<32x128xf32>
    %cst_332 = arith.constant dense<0.000000e+00> : vector<8x128xf32>
    %1059 = tpu.matmul %1049, %1058, %cst_332 {dimension_numbers = #tpu.dot_dimension_numbers<[1], [0], [0], [1], [0, 0, 1, 1], [], []>} : vector<8x32xf32>, vector<32x128xf32>, vector<8x128xf32> -> vector<8x128xf32>
    %c0_333 = arith.constant 0 : index
    %c0_334 = arith.constant 0 : index
    %1060 = vector.load %arg9[%c0_333, %c0_334] : memref<1x128xf32, #tpu.memory_space<vmem>>, vector<1x128xf32>
    %1061 = vector.broadcast %1060 : vector<1x128xf32> to vector<8x128xf32>
    %1062 = arith.addf %1059, %1061 : vector<8x128xf32>
    %cst_335 = arith.constant dense<0xFF800000> : vector<8xf32>
    %1063 = vector.multi_reduction <maximumf>, %1062, %cst_335 [1] : vector<8x128xf32> to vector<8xf32>
    %1064 = vector.shape_cast %1063 : vector<8xf32> to vector<8x1xf32>
    %1065 = vector.broadcast %1064 : vector<8x1xf32> to vector<8x128xf32>
    %1066 = arith.subf %1062, %1065 : vector<8x128xf32>
    %1067 = math.exp %1066 : vector<8x128xf32>
    %cst_336 = arith.constant dense<0.000000e+00> : vector<8xf32>
    %1068 = vector.multi_reduction <add>, %1067, %cst_336 [1] : vector<8x128xf32> to vector<8xf32>
    %1069 = vector.shape_cast %1068 : vector<8xf32> to vector<8x1xf32>
    %1070 = math.log %1069 : vector<8x1xf32>
    %1071 = vector.broadcast %1070 : vector<8x1xf32> to vector<8x128xf32>
    %1072 = arith.subf %1066, %1071 : vector<8x128xf32>
    %c0_337 = arith.constant 0 : index
    %c0_338 = arith.constant 0 : index
    %1073 = vector.load %arg15[%c0_337, %c0_338] : memref<8x128xf32, #tpu.memory_space<vmem>>, vector<8x128xf32>
    tpu.vector_store %arg15[%c0_337, %c0_338], %1072 {strides = array<i32>} : memref<8x128xf32, #tpu.memory_space<vmem>>, vector<8x128xf32>,
    %c0_339 = arith.constant 0 : index
    %c0_340 = arith.constant 0 : index
    %1074 = vector.load %arg10[%c0_339, %c0_340] : memref<32x128xf32, #tpu.memory_space<vmem>>, vector<32x128xf32>
    %cst_341 = arith.constant dense<0.000000e+00> : vector<8x128xf32>
    %1075 = tpu.matmul %1049, %1074, %cst_341 {dimension_numbers = #tpu.dot_dimension_numbers<[1], [0], [0], [1], [0, 0, 1, 1], [], []>} : vector<8x32xf32>, vector<32x128xf32>, vector<8x128xf32> -> vector<8x128xf32>
    %c0_342 = arith.constant 0 : index
    %c0_343 = arith.constant 0 : index
    %1076 = vector.load %arg11[%c0_342, %c0_343] : memref<1x128xf32, #tpu.memory_space<vmem>>, vector<1x128xf32>
    %1077 = vector.broadcast %1076 : vector<1x128xf32> to vector<8x128xf32>
    %1078 = arith.addf %1075, %1077 : vector<8x128xf32>
    %c0_344 = arith.constant 0 : index
    %c0_345 = arith.constant 0 : index
    %1079 = vector.load %arg16[%c0_344, %c0_345] : memref<8x128xf32, #tpu.memory_space<vmem>>, vector<8x128xf32>
    tpu.vector_store %arg16[%c0_344, %c0_345], %1078 {strides = array<i32>} : memref<8x128xf32, #tpu.memory_space<vmem>>, vector<8x128xf32>,
    return
  }
}

module attributes {stable_mosaic.version = 11 : i64} {
  func.func @_linear_logsoftmax_kernel(%arg0: memref<8x32xf32, #tpu.memory_space<vmem>>, %arg1: memref<32x128xf32, #tpu.memory_space<vmem>>, %arg2: memref<1x128xf32, #tpu.memory_space<vmem>>, %arg3: memref<8x128xf32, #tpu.memory_space<vmem>>) attributes {dimension_semantics = [], scalar_prefetch = 0 : i64, scratch_operands = 0 : i64, tpu.core_type = #tpu.core_type<tc>} {
    %c0 = arith.constant 0 : index
    %c0_0 = arith.constant 0 : index
    %0 = vector.load %arg0[%c0, %c0_0] : memref<8x32xf32, #tpu.memory_space<vmem>>, vector<8x32xf32>
    %c0_1 = arith.constant 0 : index
    %c0_2 = arith.constant 0 : index
    %1 = vector.load %arg1[%c0_1, %c0_2] : memref<32x128xf32, #tpu.memory_space<vmem>>, vector<32x128xf32>
    %cst = arith.constant dense<0.000000e+00> : vector<8x128xf32>
    %2 = tpu.matmul %0, %1, %cst {dimension_numbers = #tpu.dot_dimension_numbers<[1], [0], [0], [1], [0, 0, 1, 1], [], []>} : vector<8x32xf32>, vector<32x128xf32>, vector<8x128xf32> -> vector<8x128xf32>
    %c0_3 = arith.constant 0 : index
    %c0_4 = arith.constant 0 : index
    %3 = vector.load %arg2[%c0_3, %c0_4] : memref<1x128xf32, #tpu.memory_space<vmem>>, vector<1x128xf32>
    %4 = vector.broadcast %3 : vector<1x128xf32> to vector<8x128xf32>
    %5 = arith.addf %2, %4 : vector<8x128xf32>
    %cst_5 = arith.constant dense<0xFF800000> : vector<8xf32>
    %6 = vector.multi_reduction <maximumf>, %5, %cst_5 [1] : vector<8x128xf32> to vector<8xf32>
    %7 = vector.shape_cast %6 : vector<8xf32> to vector<8x1xf32>
    %8 = vector.broadcast %7 : vector<8x1xf32> to vector<8x128xf32>
    %9 = arith.subf %5, %8 : vector<8x128xf32>
    %10 = math.exp %9 : vector<8x128xf32>
    %cst_6 = arith.constant dense<0.000000e+00> : vector<8xf32>
    %11 = vector.multi_reduction <add>, %10, %cst_6 [1] : vector<8x128xf32> to vector<8xf32>
    %12 = vector.shape_cast %11 : vector<8xf32> to vector<8x1xf32>
    %13 = math.log %12 : vector<8x1xf32>
    %14 = vector.broadcast %13 : vector<8x1xf32> to vector<8x128xf32>
    %15 = arith.subf %9, %14 : vector<8x128xf32>
    %c0_7 = arith.constant 0 : index
    %c0_8 = arith.constant 0 : index
    %16 = vector.load %arg3[%c0_7, %c0_8] : memref<8x128xf32, #tpu.memory_space<vmem>>, vector<8x128xf32>
    tpu.vector_store %arg3[%c0_7, %c0_8], %15 {strides = array<i32>} : memref<8x128xf32, #tpu.memory_space<vmem>>, vector<8x128xf32>,
    return
  }
}

</mosaic_0001>

<llo_original>
// kernel: _lstm_jump_forward_impl.11
$region0: #{_lstm_jump_forward_impl.11}
  #allocation0 [shape = 'u32[]', space=smem, size = 0x4, offset = 0x4, fixed_abs, tag = 'smem constant byte address 0x4 - core index']
  #allocation1 [shape = 'u32[144,128]{1,0:T(1,128)}', space=vmem, size = 0x12000, scoped, tag = 'internal scratch']
  %s0 = inlined_call_operand.vmem [shape: f32[8,32], index: 0, kind: input, shape index: {}]
  %s1 = inlined_call_operand.vmem [shape: f32[32,128], index: 1, kind: input, shape index: {}]
  %s2 = inlined_call_operand.vmem [shape: f32[1,128], index: 2, kind: input, shape index: {}]
  %s3 = inlined_call_operand.vmem [shape: f32[8,128], index: 3, kind: output, shape index: {}]
  %s4 = sld [smem:[#allocation0]]
  $region22: #{_lstm_jump_forward_impl.11} parent=0
    _
  %s6 = ssub.s32 1, %s4
  %s7 = scalar_select 0, %s6, %s4
  // Predicated region
  $region2: #{_lstm_jump_forward_impl.11} parent=0 // pred_check
    _
  $region3: #{_lstm_jump_forward_impl.11} parent=0 // pred_check_branch
    %9 = sbr.rel (0) target = $region5
  $region4: #{_lstm_jump_forward_impl.11} parent=0 // pred_region
    _
  $region5: #{_lstm_jump_forward_impl.11} parent=0 // pred_fallthru
    _
  // Predicated region
  $region6: #{_lstm_jump_forward_impl.11} parent=0 // pred_check
    _
  $region7: #{_lstm_jump_forward_impl.11} parent=0 // pred_check_branch
    %11 = sbr.rel (0) target = $region9
  $region8: #{_lstm_jump_forward_impl.11} parent=0 // pred_region
    _
  $region9: #{_lstm_jump_forward_impl.11} parent=0 // pred_fallthru
    _
  // Predicated region
  $region10: #{_lstm_jump_forward_impl.11} parent=0 // pred_check
    _
  $region11: #{_lstm_jump_forward_impl.11} parent=0 // pred_check_branch
    %13 = sbr.rel (0) target = $region13
  $region12: #{_lstm_jump_forward_impl.11} parent=0 // pred_region
    _
  $region13: #{_lstm_jump_forward_impl.11} parent=0 // pred_fallthru
    _
  %v14 = vld [vmem:[%s0] sm:$0xff]
  %v15 = vld [vmem:[%s1] sm:$0xff]
  %v16 = vld [vmem:[%s1 + $0x8] sm:$0xff]
  %v17 = vld [vmem:[%s1 + $0x10] sm:$0xff]
  %v18 = vld [vmem:[%s1 + $0x18] sm:$0xff]
  %v19 = vld [vmem:[%s2] sm:$0x1]
  %v21 = vlaneseq
  %v22 = vshrl.u32 %v21, 7
  %v23 = vsub.s32 0, %v22
  %v24 = vrot.slane %v19, %v23
  %vm26 = vcmask 261120
  %v28 = vsel %vm26, %v14, 0
  %30 = vmatprep.subr.mxu0 0.0
  %31 = vmatpush1.msra.mxu0 %v15
  %32 = vmatprep.subr.mxu0 0.0
  %33 = vmatpush1.msra.mxu0 %v16
  %34 = vmatprep.subr.mxu0 0.0
  %35 = vmatpush1.msra.mxu0 %v17
  %36 = vmatprep.subr.mxu0 0.0
  %37 = vmatpush1.msra.mxu0 %v18
  %38 = vmatprep.subr.mxu0 0.0
  %39 = vmatpush1.msra.mxu0 0.0
  %40 = vmatprep.subr.mxu0 0.0
  %41 = vmatpush1.msra.mxu0 0.0
  %42 = vmatprep.subr.mxu0 0.0
  %43 = vmatpush1.msra.mxu0 0.0
  %44 = vmatprep.subr.mxu0 0.0
  %45 = vmatpush1.msra.mxu0 0.0
  %46 = vmatprep.subr.mxu0 0.0
  %47 = vmatpush1.msra.mxu0 0.0
  %48 = vmatprep.subr.mxu0 0.0
  %49 = vmatpush1.msra.mxu0 0.0
  %50 = vmatprep.subr.mxu0 0.0
  %51 = vmatpush1.msra.mxu0 0.0
  %52 = vmatprep.subr.mxu0 0.0
  %53 = vmatpush1.msra.mxu0 0.0
  %54 = vmatprep.subr.mxu0 0.0
  %55 = vmatpush1.msra.mxu0 0.0
  %56 = vmatprep.subr.mxu0 0.0
  %57 = vmatpush1.msra.mxu0 0.0
  %58 = vmatprep.subr.mxu0 0.0
  %59 = vmatpush1.msra.mxu0 0.0
  %60 = vmatprep.subr.mxu0 0.0
  %61 = vmatpush1.msra.mxu0 0.0
  %62 = vmatprep.subr.mxu0 0.0
  %63 = vmatpush1.msra.mxu0 0.0
  %64 = vmatprep.subr.mxu0 0.0
  %65 = vmatpush1.msra.mxu0 0.0
  %66 = vmatprep.subr.mxu0 0.0
  %67 = vmatpush1.msra.mxu0 0.0
  %68 = vmatprep.subr.mxu0 0.0
  %69 = vmatpush1.msra.mxu0 0.0
  %70 = vmatprep.subr.mxu0 0.0
  %71 = vmatpush1.msra.mxu0 0.0
  %72 = vmatprep.subr.mxu0 0.0
  %73 = vmatpush1.msra.mxu0 0.0
  %74 = vmatprep.subr.mxu0 0.0
  %75 = vmatpush1.msra.mxu0 0.0
  %76 = vmatprep.subr.mxu0 0.0
  %77 = vmatpush1.msra.mxu0 0.0
  %78 = vmatprep.subr.mxu0 0.0
  %79 = vmatpush1.msra.mxu0 0.0
  %80 = vmatprep.subr.mxu0 0.0
  %81 = vmatpush1.msra.mxu0 0.0
  %82 = vmatprep.subr.mxu0 0.0
  %83 = vmatpush1.msra.mxu0 0.0
  %84 = vmatprep.subr.mxu0 0.0
  %85 = vmatpush1.msra.mxu0 0.0
  %86 = vmatprep.subr.mxu0 0.0
  %87 = vmatpush1.msra.mxu0 0.0
  %88 = vmatprep.subr.mxu0 0.0
  %89 = vmatpush1.msra.mxu0 0.0
  %90 = vmatprep.subr.mxu0 0.0
  %91 = vmatpush1.msra.mxu0 0.0
  %92 = vmatprep.subr.mxu0 0.0
  %93 = vmatpush1.msra.mxu0 0.0
  %94 = vmatprep.mubr.f32.mxu0 0.0
  %95 = vmatmul.mubr.f32.gmra.mrb[0].mxu0 %v28
  %v96 = vpop.f32.mrb[0].mxu0
  %v97 = vadd.f32 %v24, %v96
  %v98 = vpop.f32.mrb[0].mxu0
  %99 = vdwg.mxu0
  %100 = vmax.xlane.f32.xlu0 %v97
  %v101 = vpop.xlane.xlu0 %100
  %v102 = vsub.f32 %v97, %v101
  %v103 = vmul.f32 %v102, 1.442695
  %v104 = vpow.pop %v103
  %105 = vadd.xlane.f32.xlu0 %v104
  %v106 = vpop.xlane.xlu0 %105
  %v107 = vlog2.pop %v106
  %v108 = vmul.f32 %v107, 0.6931472
  %v109 = vsub.f32 %v102, %v108
  %110 = vst [vmem:[%s3] sm:$0xff] %v109
  // Predicated region
  $region14: #{_lstm_jump_forward_impl.11} parent=0 // pred_check
    _
  $region15: #{_lstm_jump_forward_impl.11} parent=0 // pred_check_branch
    %112 = sbr.rel (0) target = $region17
  $region16: #{_lstm_jump_forward_impl.11} parent=0 // pred_region
    _
  $region17: #{_lstm_jump_forward_impl.11} parent=0 // pred_fallthru
    _
  // Predicated region
  $region18: #{_lstm_jump_forward_impl.11} parent=0 // pred_check
    _
  $region19: #{_lstm_jump_forward_impl.11} parent=0 // pred_check_branch
    %114 = sbr.rel (0) target = $region21
  $region20: #{_lstm_jump_forward_impl.11} parent=0 // pred_region
    _
  $region21: #{_lstm_jump_forward_impl.11} parent=0 // pred_fallthru
    _

// kernel: _lstm_jump_forward_impl.6
$region0: #{_lstm_jump_forward_impl.6}
  #allocation0 [shape = 'u32[]', space=smem, size = 0x4, offset = 0x4, fixed_abs, tag = 'smem constant byte address 0x4 - core index']
  #allocation1 [shape = 'u32[144,128]{1,0:T(1,128)}', space=vmem, size = 0x12000, scoped, tag = 'internal scratch']
  %s0 = inlined_call_operand.vmem [shape: f32[21,8,16], index: 0, kind: input, shape index: {}]
  %s1 = inlined_call_operand.vmem [shape: f32[21,8,1], index: 1, kind: input, shape index: {}]
  %s2 = inlined_call_operand.vmem [shape: f32[21,8,1], index: 2, kind: input, shape index: {}]
  %s3 = inlined_call_operand.vmem [shape: f32[8,32], index: 3, kind: input, shape index: {}, may-alias: {3,4,5}]
  %s4 = inlined_call_operand.vmem [shape: f32[8,32], index: 4, kind: input, shape index: {}, may-alias: {3,4,5}]
  %s5 = inlined_call_operand.vmem [shape: f32[8,32], index: 5, kind: input, shape index: {}, may-alias: {3,4,5}]
  %s6 = inlined_call_operand.vmem [shape: f32[48,128], index: 6, kind: input, shape index: {}]
  %s7 = inlined_call_operand.vmem [shape: f32[1,128], index: 7, kind: input, shape index: {}]
  %s8 = inlined_call_operand.vmem [shape: f32[32,128], index: 8, kind: input, shape index: {}]
  %s9 = inlined_call_operand.vmem [shape: f32[1,128], index: 9, kind: input, shape index: {}]
  %s10 = inlined_call_operand.vmem [shape: f32[32,128], index: 10, kind: input, shape index: {}]
  %s11 = inlined_call_operand.vmem [shape: f32[1,128], index: 11, kind: input, shape index: {}]
  %s12 = inlined_call_operand.vmem [shape: f32[8,32], index: 12, kind: output, shape index: {0}]
  %s13 = inlined_call_operand.vmem [shape: f32[8,32], index: 13, kind: output, shape index: {1}]
  %s14 = inlined_call_operand.vmem [shape: f32[8,32], index: 14, kind: output, shape index: {2}]
  %s15 = inlined_call_operand.vmem [shape: f32[8,128], index: 15, kind: output, shape index: {3}]
  %s16 = inlined_call_operand.vmem [shape: f32[8,128], index: 16, kind: output, shape index: {4}]
  %17 = xla_tuple %s12, %s13, %s14, %s15, %s16
  %s18 = sld [smem:[#allocation0]]
  $region90: #{_lstm_jump_forward_impl.6} parent=0
    _
  %s20 = ssub.s32 1, %s18
  %s21 = scalar_select 0, %s20, %s18
  // Predicated region
  $region2: #{_lstm_jump_forward_impl.6} parent=0 // pred_check
    _
  $region3: #{_lstm_jump_forward_impl.6} parent=0 // pred_check_branch
    %23 = sbr.rel (0) target = $region5
  $region4: #{_lstm_jump_forward_impl.6} parent=0 // pred_region
    _
  $region5: #{_lstm_jump_forward_impl.6} parent=0 // pred_fallthru
    _
  // Predicated region
  $region6: #{_lstm_jump_forward_impl.6} parent=0 // pred_check
    _
  $region7: #{_lstm_jump_forward_impl.6} parent=0 // pred_check_branch
    %25 = sbr.rel (0) target = $region9
  $region8: #{_lstm_jump_forward_impl.6} parent=0 // pred_region
    _
  $region9: #{_lstm_jump_forward_impl.6} parent=0 // pred_fallthru
    _
  // Predicated region
  $region10: #{_lstm_jump_forward_impl.6} parent=0 // pred_check
    _
  $region11: #{_lstm_jump_forward_impl.6} parent=0 // pred_check_branch
    %27 = sbr.rel (0) target = $region13
  $region12: #{_lstm_jump_forward_impl.6} parent=0 // pred_region
    _
  $region13: #{_lstm_jump_forward_impl.6} parent=0 // pred_fallthru
    _
  // Predicated region
  $region14: #{_lstm_jump_forward_impl.6} parent=0 // pred_check
    _
  $region15: #{_lstm_jump_forward_impl.6} parent=0 // pred_check_branch
    %29 = sbr.rel (0) target = $region17
  $region16: #{_lstm_jump_forward_impl.6} parent=0 // pred_region
    _
  $region17: #{_lstm_jump_forward_impl.6} parent=0 // pred_fallthru
    _
  // Predicated region
  $region18: #{_lstm_jump_forward_impl.6} parent=0 // pred_check
    _
  $region19: #{_lstm_jump_forward_impl.6} parent=0 // pred_check_branch
    %31 = sbr.rel (0) target = $region21
  $region20: #{_lstm_jump_forward_impl.6} parent=0 // pred_region
    _
  $region21: #{_lstm_jump_forward_impl.6} parent=0 // pred_fallthru
    _
  // Predicated region
  $region22: #{_lstm_jump_forward_impl.6} parent=0 // pred_check
    _
  $region23: #{_lstm_jump_forward_impl.6} parent=0 // pred_check_branch
    %33 = sbr.rel (0) target = $region25
  $region24: #{_lstm_jump_forward_impl.6} parent=0 // pred_region
    _
  $region25: #{_lstm_jump_forward_impl.6} parent=0 // pred_fallthru
    _
  // Predicated region
  $region26: #{_lstm_jump_forward_impl.6} parent=0 // pred_check
    _
  $region27: #{_lstm_jump_forward_impl.6} parent=0 // pred_check_branch
    %35 = sbr.rel (0) target = $region29
  $region28: #{_lstm_jump_forward_impl.6} parent=0 // pred_region
    _
  $region29: #{_lstm_jump_forward_impl.6} parent=0 // pred_fallthru
    _
  // Predicated region
  $region30: #{_lstm_jump_forward_impl.6} parent=0 // pred_check
    _
  $region31: #{_lstm_jump_forward_impl.6} parent=0 // pred_check_branch
    %37 = sbr.rel (0) target = $region33
  $region32: #{_lstm_jump_forward_impl.6} parent=0 // pred_region
    _
  $region33: #{_lstm_jump_forward_impl.6} parent=0 // pred_fallthru
    _
  // Predicated region
  $region34: #{_lstm_jump_forward_impl.6} parent=0 // pred_check
    _
  $region35: #{_lstm_jump_forward_impl.6} parent=0 // pred_check_branch
    %39 = sbr.rel (0) target = $region37
  $region36: #{_lstm_jump_forward_impl.6} parent=0 // pred_region
    _
  $region37: #{_lstm_jump_forward_impl.6} parent=0 // pred_fallthru
    _
  // Predicated region
  $region38: #{_lstm_jump_forward_impl.6} parent=0 // pred_check
    _
  $region39: #{_lstm_jump_forward_impl.6} parent=0 // pred_check_branch
    %41 = sbr.rel (0) target = $region41
  $region40: #{_lstm_jump_forward_impl.6} parent=0 // pred_region
    _
  $region41: #{_lstm_jump_forward_impl.6} parent=0 // pred_fallthru
    _
  // Predicated region
  $region42: #{_lstm_jump_forward_impl.6} parent=0 // pred_check
    _
  $region43: #{_lstm_jump_forward_impl.6} parent=0 // pred_check_branch
    %43 = sbr.rel (0) target = $region45
  $region44: #{_lstm_jump_forward_impl.6} parent=0 // pred_region
    _
  $region45: #{_lstm_jump_forward_impl.6} parent=0 // pred_fallthru
    _
  // Predicated region
  $region46: #{_lstm_jump_forward_impl.6} parent=0 // pred_check
    _
  $region47: #{_lstm_jump_forward_impl.6} parent=0 // pred_check_branch
    %45 = sbr.rel (0) target = $region49
  $region48: #{_lstm_jump_forward_impl.6} parent=0 // pred_region
    _
  $region49: #{_lstm_jump_forward_impl.6} parent=0 // pred_fallthru
    _
  %v46 = vld [vmem:[%s6] sm:$0xff]
  %v47 = vld [vmem:[%s6 + $0x8] sm:$0xff]
  %v48 = vld [vmem:[%s6 + $0x10] sm:$0xff]
  %v49 = vld [vmem:[%s6 + $0x18] sm:$0xff]
  %v50 = vld [vmem:[%s6 + $0x20] sm:$0xff]
  %v51 = vld [vmem:[%s6 + $0x28] sm:$0xff]
  %v52 = vld [vmem:[%s7] sm:$0x1]
  %v53 = vld [vmem:[%s3] sm:$0xff]
  %v54 = vld [vmem:[%s4] sm:$0xff]
  %v55 = vld [vmem:[%s5] sm:$0xff]
  %v56 = vld [vmem:[%s0] sm:$0xff]
  %v57 = vld [vmem:[%s1] sm:$0xff]
  %v58 = vld [vmem:[%s2] sm:$0xff]
  %vm59 = vcmp.gt.f32.partialorder %v58, 0.0
  %v60 = vsel %vm59, 1, 0
  %61 = vset.pattern.permute.xlu0 0
  %62 = vperm.xlu0 %61, %v60
  %v63 = vpop.permute.xlu0 %62
  %vm64 = vcmp.eq.s32.totalorder %v63, 1
  %v65 = vsel %vm64, %v53, %v55
  %67 = vrot.lane.b32.xlu0 %v53, 16
  %v68 = vpop.permute.xlu0 %67
  %vm70 = vcmask 130048
  %v71 = vsel %vm70, %v56, %v68
  %v73 = vlaneseq
  %v74 = vshrl.u32 %v73, 7
  %v75 = vsub.s32 0, %v74
  %v76 = vrot.slane %v52, %v75
  %vm78 = vcmask 392192
  %v80 = vsel %vm78, %v71, 0
  %82 = vmatprep.subr.mxu0 0.0
  %83 = vmatpush1.msra.mxu0 %v46
  %84 = vmatprep.subr.mxu0 0.0
  %85 = vmatpush1.msra.mxu0 %v47
  %86 = vmatprep.subr.mxu0 0.0
  %87 = vmatpush1.msra.mxu0 %v48
  %88 = vmatprep.subr.mxu0 0.0
  %89 = vmatpush1.msra.mxu0 %v49
  %90 = vmatprep.subr.mxu0 0.0
  %91 = vmatpush1.msra.mxu0 %v50
  %92 = vmatprep.subr.mxu0 0.0
  %93 = vmatpush1.msra.mxu0 %v51
  %94 = vmatprep.subr.mxu0 0.0
  %95 = vmatpush1.msra.mxu0 0.0
  %96 = vmatprep.subr.mxu0 0.0
  %97 = vmatpush1.msra.mxu0 0.0
  %98 = vmatprep.subr.mxu0 0.0
  %99 = vmatpush1.msra.mxu0 0.0
  %100 = vmatprep.subr.mxu0 0.0
  %101 = vmatpush1.msra.mxu0 0.0
  %102 = vmatprep.subr.mxu0 0.0
  %103 = vmatpush1.msra.mxu0 0.0
  %104 = vmatprep.subr.mxu0 0.0
  %105 = vmatpush1.msra.mxu0 0.0
  %106 = vmatprep.subr.mxu0 0.0
  %107 = vmatpush1.msra.mxu0 0.0
  %108 = vmatprep.subr.mxu0 0.0
  %109 = vmatpush1.msra.mxu0 0.0
  %110 = vmatprep.subr.mxu0 0.0
  %111 = vmatpush1.msra.mxu0 0.0
  %112 = vmatprep.subr.mxu0 0.0
  %113 = vmatpush1.msra.mxu0 0.0
  %114 = vmatprep.subr.mxu0 0.0
  %115 = vmatpush1.msra.mxu0 0.0
  %116 = vmatprep.subr.mxu0 0.0
  %117 = vmatpush1.msra.mxu0 0.0
  %118 = vmatprep.subr.mxu0 0.0
  %119 = vmatpush1.msra.mxu0 0.0
  %120 = vmatprep.subr.mxu0 0.0
  %121 = vmatpush1.msra.mxu0 0.0
  %122 = vmatprep.subr.mxu0 0.0
  %123 = vmatpush1.msra.mxu0 0.0
  %124 = vmatprep.subr.mxu0 0.0
  %125 = vmatpush1.msra.mxu0 0.0
  %126 = vmatprep.subr.mxu0 0.0
  %127 = vmatpush1.msra.mxu0 0.0
  %128 = vmatprep.subr.mxu0 0.0
  %129 = vmatpush1.msra.mxu0 0.0
  %130 = vmatprep.subr.mxu0 0.0
  %131 = vmatpush1.msra.mxu0 0.0
  %132 = vmatprep.subr.mxu0 0.0
  %133 = vmatpush1.msra.mxu0 0.0
  %134 = vmatprep.subr.mxu0 0.0
  %135 = vmatpush1.msra.mxu0 0.0
  %136 = vmatprep.subr.mxu0 0.0
  %137 = vmatpush1.msra.mxu0 0.0
  %138 = vmatprep.subr.mxu0 0.0
  %139 = vmatpush1.msra.mxu0 0.0
  %140 = vmatprep.subr.mxu0 0.0
  %141 = vmatpush1.msra.mxu0 0.0
  %142 = vmatprep.subr.mxu0 0.0
  %143 = vmatpush1.msra.mxu0 0.0
  %144 = vmatprep.subr.mxu0 0.0
  %145 = vmatpush1.msra.mxu0 0.0
  %146 = vmatprep.mubr.f32.mxu0 0.0
  %147 = vmatmul.mubr.f32.gmra.mrb[0].mxu0 %v80
  %v148 = vpop.f32.mrb[0].mxu0
  %v149 = vadd.f32 %v76, %v148
  %v150 = vpop.f32.mrb[0].mxu0
  %151 = vdwg.mxu0
  %v152 = vxor.u32 %v149, 2147483648
  %v153 = vmul.f32 %v152, 1.442695
  %v154 = vpow.pop %v153
  %v155 = vadd.f32 %v154, 1.0
  %v156 = vrcp.pop %v155
  %v157 = vmul.f32 1.0, %v156
  %v158 = vtanh.pop %v149
  %160 = vrot.lane.b32.xlu0 %v54, 32
  %v161 = vpop.permute.xlu0 %160
  %v163 = vmul.f32 %v157, %v161
  %165 = vrot.lane.b32.xlu0 %v158, 64
  %v166 = vpop.permute.xlu0 %165
  %v168 = vmul.f32 %v157, %v166
  %170 = vrot.lane.b32.xlu0 %v168, 32
  %v171 = vpop.permute.xlu0 %170
  %v173 = vadd.f32 %v163, %v171
  %v174 = vtanh.pop %v173
  %176 = vrot.lane.b32.xlu0 %v174, 64
  %v177 = vpop.permute.xlu0 %176
  %v179 = vmul.f32 %v157, %v177
  %vm180 = vcmp.gt.f32.partialorder %v57, 0.0
  %v181 = vsel %vm180, 1, 0
  %182 = vset.pattern.permute.xlu0 0
  %183 = vperm.xlu0 %182, %v181
  %v184 = vpop.permute.xlu0 %183
  %vm185 = vcmp.eq.s32.totalorder %v184, 1
  %186 = vrot.lane.b32.xlu0 %v53, 96
  %v187 = vpop.permute.xlu0 %186
  %v189 = vsel %vm185, %v179, %v187
  %v190 = vsel %vm185, %v173, %v161
  %s191 = scalar_lea.vmem %s0, 8
  %v192 = vld [vmem:[%s191] sm:$0xff]
  %s193 = scalar_lea.vmem %s1, 8
  %v194 = vld [vmem:[%s193] sm:$0xff]
  %s195 = scalar_lea.vmem %s2, 8
  %v196 = vld [vmem:[%s195] sm:$0xff]
  %vm197 = vcmp.gt.f32.partialorder %v196, 0.0
  %v198 = vsel %vm197, 1, 0
  %199 = vset.pattern.permute.xlu0 0
  %200 = vperm.xlu0 %199, %v198
  %v201 = vpop.permute.xlu0 %200
  %vm202 = vcmp.eq.s32.totalorder %v201, 1
  %204 = vrot.lane.b32.xlu0 %v65, 96
  %v205 = vpop.permute.xlu0 %204
  %v207 = vsel %vm202, %v189, %v205
  %209 = vrot.lane.b32.xlu0 %v189, 48
  %v210 = vpop.permute.xlu0 %209
  %v212 = vsel %vm70, %v192, %v210
  %v214 = vsel %vm78, %v212, 0
  %216 = vmatprep.subr.mxu0 0.0
  %217 = vmatpush1.msra.mxu0 %v46
  %218 = vmatprep.subr.mxu0 0.0
  %219 = vmatpush1.msra.mxu0 %v47
  %220 = vmatprep.subr.mxu0 0.0
  %221 = vmatpush1.msra.mxu0 %v48
  %222 = vmatprep.subr.mxu0 0.0
  %223 = vmatpush1.msra.mxu0 %v49
  %224 = vmatprep.subr.mxu0 0.0
  %225 = vmatpush1.msra.mxu0 %v50
  %226 = vmatprep.subr.mxu0 0.0
  %227 = vmatpush1.msra.mxu0 %v51
  %228 = vmatprep.subr.mxu0 0.0
  %229 = vmatpush1.msra.mxu0 0.0
  %230 = vmatprep.subr.mxu0 0.0
  %231 = vmatpush1.msra.mxu0 0.0
  %232 = vmatprep.subr.mxu0 0.0
  %233 = vmatpush1.msra.mxu0 0.0
  %234 = vmatprep.subr.mxu0 0.0
  %235 = vmatpush1.msra.mxu0 0.0
  %236 = vmatprep.subr.mxu0 0.0
  %237 = vmatpush1.msra.mxu0 0.0
  %238 = vmatprep.subr.mxu0 0.0
  %239 = vmatpush1.msra.mxu0 0.0
  %240 = vmatprep.subr.mxu0 0.0
  %241 = vmatpush1.msra.mxu0 0.0
  %242 = vmatprep.subr.mxu0 0.0
  %243 = vmatpush1.msra.mxu0 0.0
  %244 = vmatprep.subr.mxu0 0.0
  %245 = vmatpush1.msra.mxu0 0.0
  %246 = vmatprep.subr.mxu0 0.0
  %247 = vmatpush1.msra.mxu0 0.0
  %248 = vmatprep.subr.mxu0 0.0
  %249 = vmatpush1.msra.mxu0 0.0
  %250 = vmatprep.subr.mxu0 0.0
  %251 = vmatpush1.msra.mxu0 0.0
  %252 = vmatprep.subr.mxu0 0.0
  %253 = vmatpush1.msra.mxu0 0.0
  %254 = vmatprep.subr.mxu0 0.0
  %255 = vmatpush1.msra.mxu0 0.0
  %256 = vmatprep.subr.mxu0 0.0
  %257 = vmatpush1.msra.mxu0 0.0
  %258 = vmatprep.subr.mxu0 0.0
  %259 = vmatpush1.msra.mxu0 0.0
  %260 = vmatprep.subr.mxu0 0.0
  %261 = vmatpush1.msra.mxu0 0.0
  %262 = vmatprep.subr.mxu0 0.0
  %263 = vmatpush1.msra.mxu0 0.0
  %264 = vmatprep.subr.mxu0 0.0
  %265 = vmatpush1.msra.mxu0 0.0
  %266 = vmatprep.subr.mxu0 0.0
  %267 = vmatpush1.msra.mxu0 0.0
  %268 = vmatprep.subr.mxu0 0.0
  %269 = vmatpush1.msra.mxu0 0.0
  %270 = vmatprep.subr.mxu0 0.0
  %271 = vmatpush1.msra.mxu0 0.0
  %272 = vmatprep.subr.mxu0 0.0
  %273 = vmatpush1.msra.mxu0 0.0
  %274 = vmatprep.subr.mxu0 0.0
  %275 = vmatpush1.msra.mxu0 0.0
  %276 = vmatprep.subr.mxu0 0.0
  %277 = vmatpush1.msra.mxu0 0.0
  %278 = vmatprep.subr.mxu0 0.0
  %279 = vmatpush1.msra.mxu0 0.0
  %280 = vmatprep.mubr.f32.mxu0 0.0
  %281 = vmatmul.mubr.f32.gmra.mrb[0].mxu0 %v214
  %v282 = vpop.f32.mrb[0].mxu0
  %v283 = vadd.f32 %v76, %v282
  %v284 = vpop.f32.mrb[0].mxu0
  %285 = vdwg.mxu0
  %v286 = vxor.u32 %v283, 2147483648
  %v287 = vmul.f32 %v286, 1.442695
  %v288 = vpow.pop %v287
  %v289 = vadd.f32 %v288, 1.0
  %v290 = vrcp.pop %v289
  %v291 = vmul.f32 1.0, %v290
  %v292 = vtanh.pop %v283
  %v293 = vmul.f32 %v291, %v190
  %295 = vrot.lane.b32.xlu0 %v292, 64
  %v296 = vpop.permute.xlu0 %295
  %v298 = vmul.f32 %v291, %v296
  %300 = vrot.lane.b32.xlu0 %v298, 32
  %v301 = vpop.permute.xlu0 %300
  %v303 = vadd.f32 %v293, %v301
  %v304 = vtanh.pop %v303
  %306 = vrot.lane.b32.xlu0 %v304, 64
  %v307 = vpop.permute.xlu0 %306
  %v309 = vmul.f32 %v291, %v307
  %vm310 = vcmp.gt.f32.partialorder %v194, 0.0
  %v311 = vsel %vm310, 1, 0
  %312 = vset.pattern.permute.xlu0 0
  %313 = vperm.xlu0 %312, %v311
  %v314 = vpop.permute.xlu0 %313
  %vm315 = vcmp.eq.s32.totalorder %v314, 1
  %v316 = vsel %vm315, %v309, %v189
  %v317 = vsel %vm315, %v303, %v190
  %s318 = scalar_lea.vmem %s0, 16
  %v319 = vld [vmem:[%s318] sm:$0xff]
  %s320 = scalar_lea.vmem %s1, 16
  %v321 = vld [vmem:[%s320] sm:$0xff]
  %s322 = scalar_lea.vmem %s2, 16
  %v323 = vld [vmem:[%s322] sm:$0xff]
  %vm324 = vcmp.gt.f32.partialorder %v323, 0.0
  %v325 = vsel %vm324, 1, 0
  %326 = vset.pattern.permute.xlu0 0
  %327 = vperm.xlu0 %326, %v325
  %v328 = vpop.permute.xlu0 %327
  %vm329 = vcmp.eq.s32.totalorder %v328, 1
  %v330 = vsel %vm329, %v316, %v207
  %332 = vrot.lane.b32.xlu0 %v316, 48
  %v333 = vpop.permute.xlu0 %332
  %v335 = vsel %vm70, %v319, %v333
  %v337 = vsel %vm78, %v335, 0
  %339 = vmatprep.subr.mxu0 0.0
  %340 = vmatpush1.msra.mxu0 %v46
  %341 = vmatprep.subr.mxu0 0.0
  %342 = vmatpush1.msra.mxu0 %v47
  %343 = vmatprep.subr.mxu0 0.0
  %344 = vmatpush1.msra.mxu0 %v48
  %345 = vmatprep.subr.mxu0 0.0
  %346 = vmatpush1.msra.mxu0 %v49
  %347 = vmatprep.subr.mxu0 0.0
  %348 = vmatpush1.msra.mxu0 %v50
  %349 = vmatprep.subr.mxu0 0.0
  %350 = vmatpush1.msra.mxu0 %v51
  %351 = vmatprep.subr.mxu0 0.0
  %352 = vmatpush1.msra.mxu0 0.0
  %353 = vmatprep.subr.mxu0 0.0
  %354 = vmatpush1.msra.mxu0 0.0
  %355 = vmatprep.subr.mxu0 0.0
  %356 = vmatpush1.msra.mxu0 0.0
  %357 = vmatprep.subr.mxu0 0.0
  %358 = vmatpush1.msra.mxu0 0.0
  %359 = vmatprep.subr.mxu0 0.0
  %360 = vmatpush1.msra.mxu0 0.0
  %361 = vmatprep.subr.mxu0 0.0
  %362 = vmatpush1.msra.mxu0 0.0
  %363 = vmatprep.subr.mxu0 0.0
  %364 = vmatpush1.msra.mxu0 0.0
  %365 = vmatprep.subr.mxu0 0.0
  %366 = vmatpush1.msra.mxu0 0.0
  %367 = vmatprep.subr.mxu0 0.0
  %368 = vmatpush1.msra.mxu0 0.0
  %369 = vmatprep.subr.mxu0 0.0
  %370 = vmatpush1.msra.mxu0 0.0
  %371 = vmatprep.subr.mxu0 0.0
  %372 = vmatpush1.msra.mxu0 0.0
  %373 = vmatprep.subr.mxu0 0.0
  %374 = vmatpush1.msra.mxu0 0.0
  %375 = vmatprep.subr.mxu0 0.0
  %376 = vmatpush1.msra.mxu0 0.0
  %377 = vmatprep.subr.mxu0 0.0
  %378 = vmatpush1.msra.mxu0 0.0
  %379 = vmatprep.subr.mxu0 0.0
  %380 = vmatpush1.msra.mxu0 0.0
  %381 = vmatprep.subr.mxu0 0.0
  %382 = vmatpush1.msra.mxu0 0.0
  %383 = vmatprep.subr.mxu0 0.0
  %384 = vmatpush1.msra.mxu0 0.0
  %385 = vmatprep.subr.mxu0 0.0
  %386 = vmatpush1.msra.mxu0 0.0
  %387 = vmatprep.subr.mxu0 0.0
  %388 = vmatpush1.msra.mxu0 0.0
  %389 = vmatprep.subr.mxu0 0.0
  %390 = vmatpush1.msra.mxu0 0.0
  %391 = vmatprep.subr.mxu0 0.0
  %392 = vmatpush1.msra.mxu0 0.0
  %393 = vmatprep.subr.mxu0 0.0
  %394 = vmatpush1.msra.mxu0 0.0
  %395 = vmatprep.subr.mxu0 0.0
  %396 = vmatpush1.msra.mxu0 0.0
  %397 = vmatprep.subr.mxu0 0.0
  %398 = vmatpush1.msra.mxu0 0.0
  %399 = vmatprep.subr.mxu0 0.0
  %400 = vmatpush1.msra.mxu0 0.0
  %401 = vmatprep.subr.mxu0 0.0
  %402 = vmatpush1.msra.mxu0 0.0
  %403 = vmatprep.mubr.f32.mxu0 0.0
  %404 = vmatmul.mubr.f32.gmra.mrb[0].mxu0 %v337
  %v405 = vpop.f32.mrb[0].mxu0
  %v406 = vadd.f32 %v76, %v405
  %v407 = vpop.f32.mrb[0].mxu0
  %408 = vdwg.mxu0
  %v409 = vxor.u32 %v406, 2147483648
  %v410 = vmul.f32 %v409, 1.442695
  %v411 = vpow.pop %v410
  %v412 = vadd.f32 %v411, 1.0
  %v413 = vrcp.pop %v412
  %v414 = vmul.f32 1.0, %v413
  %v415 = vtanh.pop %v406
  %v416 = vmul.f32 %v414, %v317
  %418 = vrot.lane.b32.xlu0 %v415, 64
  %v419 = vpop.permute.xlu0 %418
  %v421 = vmul.f32 %v414, %v419
  %423 = vrot.lane.b32.xlu0 %v421, 32
  %v424 = vpop.permute.xlu0 %423
  %v426 = vadd.f32 %v416, %v424
  %v427 = vtanh.pop %v426
  %429 = vrot.lane.b32.xlu0 %v427, 64
  %v430 = vpop.permute.xlu0 %429
  %v432 = vmul.f32 %v414, %v430
  %vm433 = vcmp.gt.f32.partialorder %v321, 0.0
  %v434 = vsel %vm433, 1, 0
  %435 = vset.pattern.permute.xlu0 0
  %436 = vperm.xlu0 %435, %v434
  %v437 = vpop.permute.xlu0 %436
  %vm438 = vcmp.eq.s32.totalorder %v437, 1
  %v439 = vsel %vm438, %v432, %v316
  %v440 = vsel %vm438, %v426, %v317
  %s441 = scalar_lea.vmem %s0, 24
  %v442 = vld [vmem:[%s441] sm:$0xff]
  %s443 = scalar_lea.vmem %s1, 24
  %v444 = vld [vmem:[%s443] sm:$0xff]
  %s445 = scalar_lea.vmem %s2, 24
  %v446 = vld [vmem:[%s445] sm:$0xff]
  %vm447 = vcmp.gt.f32.partialorder %v446, 0.0
  %v448 = vsel %vm447, 1, 0
  %449 = vset.pattern.permute.xlu0 0
  %450 = vperm.xlu0 %449, %v448
  %v451 = vpop.permute.xlu0 %450
  %vm452 = vcmp.eq.s32.totalorder %v451, 1
  %v453 = vsel %vm452, %v439, %v330
  %455 = vrot.lane.b32.xlu0 %v439, 48
  %v456 = vpop.permute.xlu0 %455
  %v458 = vsel %vm70, %v442, %v456
  %v460 = vsel %vm78, %v458, 0
  %462 = vmatprep.subr.mxu0 0.0
  %463 = vmatpush1.msra.mxu0 %v46
  %464 = vmatprep.subr.mxu0 0.0
  %465 = vmatpush1.msra.mxu0 %v47
  %466 = vmatprep.subr.mxu0 0.0
  %467 = vmatpush1.msra.mxu0 %v48
  %468 = vmatprep.subr.mxu0 0.0
  %469 = vmatpush1.msra.mxu0 %v49
  %470 = vmatprep.subr.mxu0 0.0
  %471 = vmatpush1.msra.mxu0 %v50
  %472 = vmatprep.subr.mxu0 0.0
  %473 = vmatpush1.msra.mxu0 %v51
  %474 = vmatprep.subr.mxu0 0.0
  %475 = vmatpush1.msra.mxu0 0.0
  %476 = vmatprep.subr.mxu0 0.0
  %477 = vmatpush1.msra.mxu0 0.0
  %478 = vmatprep.subr.mxu0 0.0
  %479 = vmatpush1.msra.mxu0 0.0
  %480 = vmatprep.subr.mxu0 0.0
  %481 = vmatpush1.msra.mxu0 0.0
  %482 = vmatprep.subr.mxu0 0.0
  %483 = vmatpush1.msra.mxu0 0.0
  %484 = vmatprep.subr.mxu0 0.0
  %485 = vmatpush1.msra.mxu0 0.0
  %486 = vmatprep.subr.mxu0 0.0
  %487 = vmatpush1.msra.mxu0 0.0
  %488 = vmatprep.subr.mxu0 0.0
  %489 = vmatpush1.msra.mxu0 0.0
  %490 = vmatprep.subr.mxu0 0.0
  %491 = vmatpush1.msra.mxu0 0.0
  %492 = vmatprep.subr.mxu0 0.0
  %493 = vmatpush1.msra.mxu0 0.0
  %494 = vmatprep.subr.mxu0 0.0
  %495 = vmatpush1.msra.mxu0 0.0
  %496 = vmatprep.subr.mxu0 0.0
  %497 = vmatpush1.msra.mxu0 0.0
  %498 = vmatprep.subr.mxu0 0.0
  %499 = vmatpush1.msra.mxu0 0.0
  %500 = vmatprep.subr.mxu0 0.0
  %501 = vmatpush1.msra.mxu0 0.0
  %502 = vmatprep.subr.mxu0 0.0
  %503 = vmatpush1.msra.mxu0 0.0
  %504 = vmatprep.subr.mxu0 0.0
  %505 = vmatpush1.msra.mxu0 0.0
  %506 = vmatprep.subr.mxu0 0.0
  %507 = vmatpush1.msra.mxu0 0.0
  %508 = vmatprep.subr.mxu0 0.0
  %509 = vmatpush1.msra.mxu0 0.0
  %510 = vmatprep.subr.mxu0 0.0
  %511 = vmatpush1.msra.mxu0 0.0
  %512 = vmatprep.subr.mxu0 0.0
  %513 = vmatpush1.msra.mxu0 0.0
  %514 = vmatprep.subr.mxu0 0.0
  %515 = vmatpush1.msra.mxu0 0.0
  %516 = vmatprep.subr.mxu0 0.0
  %517 = vmatpush1.msra.mxu0 0.0
  %518 = vmatprep.subr.mxu0 0.0
  %519 = vmatpush1.msra.mxu0 0.0
  %520 = vmatprep.subr.mxu0 0.0
  %521 = vmatpush1.msra.mxu0 0.0
  %522 = vmatprep.subr.mxu0 0.0
  %523 = vmatpush1.msra.mxu0 0.0
  %524 = vmatprep.subr.mxu0 0.0
  %525 = vmatpush1.msra.mxu0 0.0
  %526 = vmatprep.mubr.f32.mxu0 0.0
  %527 = vmatmul.mubr.f32.gmra.mrb[0].mxu0 %v460
  %v528 = vpop.f32.mrb[0].mxu0
  %v529 = vadd.f32 %v76, %v528
  %v530 = vpop.f32.mrb[0].mxu0
  %531 = vdwg.mxu0
  %v532 = vxor.u32 %v529, 2147483648
  %v533 = vmul.f32 %v532, 1.442695
  %v534 = vpow.pop %v533
  %v535 = vadd.f32 %v534, 1.0
  %v536 = vrcp.pop %v535
  %v537 = vmul.f32 1.0, %v536
  %v538 = vtanh.pop %v529
  %v539 = vmul.f32 %v537, %v440
  %541 = vrot.lane.b32.xlu0 %v538, 64
  %v542 = vpop.permute.xlu0 %541
  %v544 = vmul.f32 %v537, %v542
  %546 = vrot.lane.b32.xlu0 %v544, 32
  %v547 = vpop.permute.xlu0 %546
  %v549 = vadd.f32 %v539, %v547
  %v550 = vtanh.pop %v549
  %552 = vrot.lane.b32.xlu0 %v550, 64
  %v553 = vpop.permute.xlu0 %552
  %v555 = vmul.f32 %v537, %v553
  %vm556 = vcmp.gt.f32.partialorder %v444, 0.0
  %v557 = vsel %vm556, 1, 0
  %558 = vset.pattern.permute.xlu0 0
  %559 = vperm.xlu0 %558, %v557
  %v560 = vpop.permute.xlu0 %559
  %vm561 = vcmp.eq.s32.totalorder %v560, 1
  %v562 = vsel %vm561, %v555, %v439
  %v563 = vsel %vm561, %v549, %v440
  %s564 = scalar_lea.vmem %s0, 32
  %v565 = vld [vmem:[%s564] sm:$0xff]
  %s566 = scalar_lea.vmem %s1, 32
  %v567 = vld [vmem:[%s566] sm:$0xff]
  %s568 = scalar_lea.vmem %s2, 32
  %v569 = vld [vmem:[%s568] sm:$0xff]
  %vm570 = vcmp.gt.f32.partialorder %v569, 0.0
  %v571 = vsel %vm570, 1, 0
  %572 = vset.pattern.permute.xlu0 0
  %573 = vperm.xlu0 %572, %v571
  %v574 = vpop.permute.xlu0 %573
  %vm575 = vcmp.eq.s32.totalorder %v574, 1
  %v576 = vsel %vm575, %v562, %v453
  %578 = vrot.lane.b32.xlu0 %v562, 48
  %v579 = vpop.permute.xlu0 %578
  %v581 = vsel %vm70, %v565, %v579
  %v583 = vsel %vm78, %v581, 0
  %585 = vmatprep.subr.mxu0 0.0
  %586 = vmatpush1.msra.mxu0 %v46
  %587 = vmatprep.subr.mxu0 0.0
  %588 = vmatpush1.msra.mxu0 %v47
  %589 = vmatprep.subr.mxu0 0.0
  %590 = vmatpush1.msra.mxu0 %v48
  %591 = vmatprep.subr.mxu0 0.0
  %592 = vmatpush1.msra.mxu0 %v49
  %593 = vmatprep.subr.mxu0 0.0
  %594 = vmatpush1.msra.mxu0 %v50
  %595 = vmatprep.subr.mxu0 0.0
  %596 = vmatpush1.msra.mxu0 %v51
  %597 = vmatprep.subr.mxu0 0.0
  %598 = vmatpush1.msra.mxu0 0.0
  %599 = vmatprep.subr.mxu0 0.0
  %600 = vmatpush1.msra.mxu0 0.0
  %601 = vmatprep.subr.mxu0 0.0
  %602 = vmatpush1.msra.mxu0 0.0
  %603 = vmatprep.subr.mxu0 0.0
  %604 = vmatpush1.msra.mxu0 0.0
  %605 = vmatprep.subr.mxu0 0.0
  %606 = vmatpush1.msra.mxu0 0.0
  %607 = vmatprep.subr.mxu0 0.0
  %608 = vmatpush1.msra.mxu0 0.0
  %609 = vmatprep.subr.mxu0 0.0
  %610 = vmatpush1.msra.mxu0 0.0
  %611 = vmatprep.subr.mxu0 0.0
  %612 = vmatpush1.msra.mxu0 0.0
  %613 = vmatprep.subr.mxu0 0.0
  %614 = vmatpush1.msra.mxu0 0.0
  %615 = vmatprep.subr.mxu0 0.0
  %616 = vmatpush1.msra.mxu0 0.0
  %617 = vmatprep.subr.mxu0 0.0
  %618 = vmatpush1.msra.mxu0 0.0
  %619 = vmatprep.subr.mxu0 0.0
  %620 = vmatpush1.msra.mxu0 0.0
  %621 = vmatprep.subr.mxu0 0.0
  %622 = vmatpush1.msra.mxu0 0.0
  %623 = vmatprep.subr.mxu0 0.0
  %624 = vmatpush1.msra.mxu0 0.0
  %625 = vmatprep.subr.mxu0 0.0
  %626 = vmatpush1.msra.mxu0 0.0
  %627 = vmatprep.subr.mxu0 0.0
  %628 = vmatpush1.msra.mxu0 0.0
  %629 = vmatprep.subr.mxu0 0.0
  %630 = vmatpush1.msra.mxu0 0.0
  %631 = vmatprep.subr.mxu0 0.0
  %632 = vmatpush1.msra.mxu0 0.0
  %633 = vmatprep.subr.mxu0 0.0
  %634 = vmatpush1.msra.mxu0 0.0
  %635 = vmatprep.subr.mxu0 0.0
  %636 = vmatpush1.msra.mxu0 0.0
  %637 = vmatprep.subr.mxu0 0.0
  %638 = vmatpush1.msra.mxu0 0.0
  %639 = vmatprep.subr.mxu0 0.0
  %640 = vmatpush1.msra.mxu0 0.0
  %641 = vmatprep.subr.mxu0 0.0
  %642 = vmatpush1.msra.mxu0 0.0
  %643 = vmatprep.subr.mxu0 0.0
  %644 = vmatpush1.msra.mxu0 0.0
  %645 = vmatprep.subr.mxu0 0.0
  %646 = vmatpush1.msra.mxu0 0.0
  %647 = vmatprep.subr.mxu0 0.0
  %648 = vmatpush1.msra.mxu0 0.0
  %649 = vmatprep.mubr.f32.mxu0 0.0
  %650 = vmatmul.mubr.f32.gmra.mrb[0].mxu0 %v583
  %v651 = vpop.f32.mrb[0].mxu0
  %v652 = vadd.f32 %v76, %v651
  %v653 = vpop.f32.mrb[0].mxu0
  %654 = vdwg.mxu0
  %v655 = vxor.u32 %v652, 2147483648
  %v656 = vmul.f32 %v655, 1.442695
  %v657 = vpow.pop %v656
  %v658 = vadd.f32 %v657, 1.0
  %v659 = vrcp.pop %v658
  %v660 = vmul.f32 1.0, %v659
  %v661 = vtanh.pop %v652
  %v662 = vmul.f32 %v660, %v563
  %664 = vrot.lane.b32.xlu0 %v661, 64
  %v665 = vpop.permute.xlu0 %664
  %v667 = vmul.f32 %v660, %v665
  %669 = vrot.lane.b32.xlu0 %v667, 32
  %v670 = vpop.permute.xlu0 %669
  %v672 = vadd.f32 %v662, %v670
  %v673 = vtanh.pop %v672
  %675 = vrot.lane.b32.xlu0 %v673, 64
  %v676 = vpop.permute.xlu0 %675
  %v678 = vmul.f32 %v660, %v676
  %vm679 = vcmp.gt.f32.partialorder %v567, 0.0
  %v680 = vsel %vm679, 1, 0
  %681 = vset.pattern.permute.xlu0 0
  %682 = vperm.xlu0 %681, %v680
  %v683 = vpop.permute.xlu0 %682
  %vm684 = vcmp.eq.s32.totalorder %v683, 1
  %v685 = vsel %vm684, %v678, %v562
  %v686 = vsel %vm684, %v672, %v563
  %s687 = scalar_lea.vmem %s0, 40
  %v688 = vld [vmem:[%s687] sm:$0xff]
  %s689 = scalar_lea.vmem %s1, 40
  %v690 = vld [vmem:[%s689] sm:$0xff]
  %s691 = scalar_lea.vmem %s2, 40
  %v692 = vld [vmem:[%s691] sm:$0xff]
  %vm693 = vcmp.gt.f32.partialorder %v692, 0.0
  %v694 = vsel %vm693, 1, 0
  %695 = vset.pattern.permute.xlu0 0
  %696 = vperm.xlu0 %695, %v694
  %v697 = vpop.permute.xlu0 %696
  %vm698 = vcmp.eq.s32.totalorder %v697, 1
  %v699 = vsel %vm698, %v685, %v576
  %701 = vrot.lane.b32.xlu0 %v685, 48
  %v702 = vpop.permute.xlu0 %701
  %v704 = vsel %vm70, %v688, %v702
  %v706 = vsel %vm78, %v704, 0
  %708 = vmatprep.subr.mxu0 0.0
  %709 = vmatpush1.msra.mxu0 %v46
  %710 = vmatprep.subr.mxu0 0.0
  %711 = vmatpush1.msra.mxu0 %v47
  %712 = vmatprep.subr.mxu0 0.0
  %713 = vmatpush1.msra.mxu0 %v48
  %714 = vmatprep.subr.mxu0 0.0
  %715 = vmatpush1.msra.mxu0 %v49
  %716 = vmatprep.subr.mxu0 0.0
  %717 = vmatpush1.msra.mxu0 %v50
  %718 = vmatprep.subr.mxu0 0.0
  %719 = vmatpush1.msra.mxu0 %v51
  %720 = vmatprep.subr.mxu0 0.0
  %721 = vmatpush1.msra.mxu0 0.0
  %722 = vmatprep.subr.mxu0 0.0
  %723 = vmatpush1.msra.mxu0 0.0
  %724 = vmatprep.subr.mxu0 0.0
  %725 = vmatpush1.msra.mxu0 0.0
  %726 = vmatprep.subr.mxu0 0.0
  %727 = vmatpush1.msra.mxu0 0.0
  %728 = vmatprep.subr.mxu0 0.0
  %729 = vmatpush1.msra.mxu0 0.0
  %730 = vmatprep.subr.mxu0 0.0
  %731 = vmatpush1.msra.mxu0 0.0
  %732 = vmatprep.subr.mxu0 0.0
  %733 = vmatpush1.msra.mxu0 0.0
  %734 = vmatprep.subr.mxu0 0.0
  %735 = vmatpush1.msra.mxu0 0.0
  %736 = vmatprep.subr.mxu0 0.0
  %737 = vmatpush1.msra.mxu0 0.0
  %738 = vmatprep.subr.mxu0 0.0
  %739 = vmatpush1.msra.mxu0 0.0
  %740 = vmatprep.subr.mxu0 0.0
  %741 = vmatpush1.msra.mxu0 0.0
  %742 = vmatprep.subr.mxu0 0.0
  %743 = vmatpush1.msra.mxu0 0.0
  %744 = vmatprep.subr.mxu0 0.0
  %745 = vmatpush1.msra.mxu0 0.0
  %746 = vmatprep.subr.mxu0 0.0
  %747 = vmatpush1.msra.mxu0 0.0
  %748 = vmatprep.subr.mxu0 0.0
  %749 = vmatpush1.msra.mxu0 0.0
  %750 = vmatprep.subr.mxu0 0.0
  %751 = vmatpush1.msra.mxu0 0.0
  %752 = vmatprep.subr.mxu0 0.0
  %753 = vmatpush1.msra.mxu0 0.0
  %754 = vmatprep.subr.mxu0 0.0
  %755 = vmatpush1.msra.mxu0 0.0
  %756 = vmatprep.subr.mxu0 0.0
  %757 = vmatpush1.msra.mxu0 0.0
  %758 = vmatprep.subr.mxu0 0.0
  %759 = vmatpush1.msra.mxu0 0.0
  %760 = vmatprep.subr.mxu0 0.0
  %761 = vmatpush1.msra.mxu0 0.0
  %762 = vmatprep.subr.mxu0 0.0
  %763 = vmatpush1.msra.mxu0 0.0
  %764 = vmatprep.subr.mxu0 0.0
  %765 = vmatpush1.msra.mxu0 0.0
  %766 = vmatprep.subr.mxu0 0.0
  %767 = vmatpush1.msra.mxu0 0.0
  %768 = vmatprep.subr.mxu0 0.0
  %769 = vmatpush1.msra.mxu0 0.0
  %770 = vmatprep.subr.mxu0 0.0
  %771 = vmatpush1.msra.mxu0 0.0
  %772 = vmatprep.mubr.f32.mxu0 0.0
  %773 = vmatmul.mubr.f32.gmra.mrb[0].mxu0 %v706
  %v774 = vpop.f32.mrb[0].mxu0
  %v775 = vadd.f32 %v76, %v774
  %v776 = vpop.f32.mrb[0].mxu0
  %777 = vdwg.mxu0
  %v778 = vxor.u32 %v775, 2147483648
  %v779 = vmul.f32 %v778, 1.442695
  %v780 = vpow.pop %v779
  %v781 = vadd.f32 %v780, 1.0
  %v782 = vrcp.pop %v781
  %v783 = vmul.f32 1.0, %v782
  %v784 = vtanh.pop %v775
  %v785 = vmul.f32 %v783, %v686
  %787 = vrot.lane.b32.xlu0 %v784, 64
  %v788 = vpop.permute.xlu0 %787
  %v790 = vmul.f32 %v783, %v788
  %792 = vrot.lane.b32.xlu0 %v790, 32
  %v793 = vpop.permute.xlu0 %792
  %v795 = vadd.f32 %v785, %v793
  %v796 = vtanh.pop %v795
  %798 = vrot.lane.b32.xlu0 %v796, 64
  %v799 = vpop.permute.xlu0 %798
  %v801 = vmul.f32 %v783, %v799
  %vm802 = vcmp.gt.f32.partialorder %v690, 0.0
  %v803 = vsel %vm802, 1, 0
  %804 = vset.pattern.permute.xlu0 0
  %805 = vperm.xlu0 %804, %v803
  %v806 = vpop.permute.xlu0 %805
  %vm807 = vcmp.eq.s32.totalorder %v806, 1
  %v808 = vsel %vm807, %v801, %v685
  %v809 = vsel %vm807, %v795, %v686
  %s810 = scalar_lea.vmem %s0, 48
  %v811 = vld [vmem:[%s810] sm:$0xff]
  %s812 = scalar_lea.vmem %s1, 48
  %v813 = vld [vmem:[%s812] sm:$0xff]
  %s814 = scalar_lea.vmem %s2, 48
  %v815 = vld [vmem:[%s814] sm:$0xff]
  %vm816 = vcmp.gt.f32.partialorder %v815, 0.0
  %v817 = vsel %vm816, 1, 0
  %818 = vset.pattern.permute.xlu0 0
  %819 = vperm.xlu0 %818, %v817
  %v820 = vpop.permute.xlu0 %819
  %vm821 = vcmp.eq.s32.totalorder %v820, 1
  %v822 = vsel %vm821, %v808, %v699
  %824 = vrot.lane.b32.xlu0 %v808, 48
  %v825 = vpop.permute.xlu0 %824
  %v827 = vsel %vm70, %v811, %v825
  %v829 = vsel %vm78, %v827, 0
  %831 = vmatprep.subr.mxu0 0.0
  %832 = vmatpush1.msra.mxu0 %v46
  %833 = vmatprep.subr.mxu0 0.0
  %834 = vmatpush1.msra.mxu0 %v47
  %835 = vmatprep.subr.mxu0 0.0
  %836 = vmatpush1.msra.mxu0 %v48
  %837 = vmatprep.subr.mxu0 0.0
  %838 = vmatpush1.msra.mxu0 %v49
  %839 = vmatprep.subr.mxu0 0.0
  %840 = vmatpush1.msra.mxu0 %v50
  %841 = vmatprep.subr.mxu0 0.0
  %842 = vmatpush1.msra.mxu0 %v51
  %843 = vmatprep.subr.mxu0 0.0
  %844 = vmatpush1.msra.mxu0 0.0
  %845 = vmatprep.subr.mxu0 0.0
  %846 = vmatpush1.msra.mxu0 0.0
  %847 = vmatprep.subr.mxu0 0.0
  %848 = vmatpush1.msra.mxu0 0.0
  %849 = vmatprep.subr.mxu0 0.0
  %850 = vmatpush1.msra.mxu0 0.0
  %851 = vmatprep.subr.mxu0 0.0
  %852 = vmatpush1.msra.mxu0 0.0
  %853 = vmatprep.subr.mxu0 0.0
  %854 = vmatpush1.msra.mxu0 0.0
  %855 = vmatprep.subr.mxu0 0.0
  %856 = vmatpush1.msra.mxu0 0.0
  %857 = vmatprep.subr.mxu0 0.0
  %858 = vmatpush1.msra.mxu0 0.0
  %859 = vmatprep.subr.mxu0 0.0
  %860 = vmatpush1.msra.mxu0 0.0
  %861 = vmatprep.subr.mxu0 0.0
  %862 = vmatpush1.msra.mxu0 0.0
  %863 = vmatprep.subr.mxu0 0.0
  %864 = vmatpush1.msra.mxu0 0.0
  %865 = vmatprep.subr.mxu0 0.0
  %866 = vmatpush1.msra.mxu0 0.0
  %867 = vmatprep.subr.mxu0 0.0
  %868 = vmatpush1.msra.mxu0 0.0
  %869 = vmatprep.subr.mxu0 0.0
  %870 = vmatpush1.msra.mxu0 0.0
  %871 = vmatprep.subr.mxu0 0.0
  %872 = vmatpush1.msra.mxu0 0.0
  %873 = vmatprep.subr.mxu0 0.0
  %874 = vmatpush1.msra.mxu0 0.0
  %875 = vmatprep.subr.mxu0 0.0
  %876 = vmatpush1.msra.mxu0 0.0
  %877 = vmatprep.subr.mxu0 0.0
  %878 = vmatpush1.msra.mxu0 0.0
  %879 = vmatprep.subr.mxu0 0.0
  %880 = vmatpush1.msra.mxu0 0.0
  %881 = vmatprep.subr.mxu0 0.0
  %882 = vmatpush1.msra.mxu0 0.0
  %883 = vmatprep.subr.mxu0 0.0
  %884 = vmatpush1.msra.mxu0 0.0
  %885 = vmatprep.subr.mxu0 0.0
  %886 = vmatpush1.msra.mxu0 0.0
  %887 = vmatprep.subr.mxu0 0.0
  %888 = vmatpush1.msra.mxu0 0.0
  %889 = vmatprep.subr.mxu0 0.0
  %890 = vmatpush1.msra.mxu0 0.0
  %891 = vmatprep.subr.mxu0 0.0
  %892 = vmatpush1.msra.mxu0 0.0
  %893 = vmatprep.subr.mxu0 0.0
  %894 = vmatpush1.msra.mxu0 0.0
  %895 = vmatprep.mubr.f32.mxu0 0.0
  %896 = vmatmul.mubr.f32.gmra.mrb[0].mxu0 %v829
  %v897 = vpop.f32.mrb[0].mxu0
  %v898 = vadd.f32 %v76, %v897
  %v899 = vpop.f32.mrb[0].mxu0
  %900 = vdwg.mxu0
  %v901 = vxor.u32 %v898, 2147483648
  %v902 = vmul.f32 %v901, 1.442695
  %v903 = vpow.pop %v902
  %v904 = vadd.f32 %v903, 1.0
  %v905 = vrcp.pop %v904
  %v906 = vmul.f32 1.0, %v905
  %v907 = vtanh.pop %v898
  %v908 = vmul.f32 %v906, %v809
  %910 = vrot.lane.b32.xlu0 %v907, 64
  %v911 = vpop.permute.xlu0 %910
  %v913 = vmul.f32 %v906, %v911
  %915 = vrot.lane.b32.xlu0 %v913, 32
  %v916 = vpop.permute.xlu0 %915
  %v918 = vadd.f32 %v908, %v916
  %v919 = vtanh.pop %v918
  %921 = vrot.lane.b32.xlu0 %v919, 64
  %v922 = vpop.permute.xlu0 %921
  %v924 = vmul.f32 %v906, %v922
  %vm925 = vcmp.gt.f32.partialorder %v813, 0.0
  %v926 = vsel %vm925, 1, 0
  %927 = vset.pattern.permute.xlu0 0
  %928 = vperm.xlu0 %927, %v926
  %v929 = vpop.permute.xlu0 %928
  %vm930 = vcmp.eq.s32.totalorder %v929, 1
  %v931 = vsel %vm930, %v924, %v808
  %v932 = vsel %vm930, %v918, %v809
  %s933 = scalar_lea.vmem %s0, 56
  %v934 = vld [vmem:[%s933] sm:$0xff]
  %s935 = scalar_lea.vmem %s1, 56
  %v936 = vld [vmem:[%s935] sm:$0xff]
  %s937 = scalar_lea.vmem %s2, 56
  %v938 = vld [vmem:[%s937] sm:$0xff]
  %vm939 = vcmp.gt.f32.partialorder %v938, 0.0
  %v940 = vsel %vm939, 1, 0
  %941 = vset.pattern.permute.xlu0 0
  %942 = vperm.xlu0 %941, %v940
  %v943 = vpop.permute.xlu0 %942
  %vm944 = vcmp.eq.s32.totalorder %v943, 1
  %v945 = vsel %vm944, %v931, %v822
  %947 = vrot.lane.b32.xlu0 %v931, 48
  %v948 = vpop.permute.xlu0 %947
  %v950 = vsel %vm70, %v934, %v948
  %v952 = vsel %vm78, %v950, 0
  %954 = vmatprep.subr.mxu0 0.0
  %955 = vmatpush1.msra.mxu0 %v46
  %956 = vmatprep.subr.mxu0 0.0
  %957 = vmatpush1.msra.mxu0 %v47
  %958 = vmatprep.subr.mxu0 0.0
  %959 = vmatpush1.msra.mxu0 %v48
  %960 = vmatprep.subr.mxu0 0.0
  %961 = vmatpush1.msra.mxu0 %v49
  %962 = vmatprep.subr.mxu0 0.0
  %963 = vmatpush1.msra.mxu0 %v50
  %964 = vmatprep.subr.mxu0 0.0
  %965 = vmatpush1.msra.mxu0 %v51
  %966 = vmatprep.subr.mxu0 0.0
  %967 = vmatpush1.msra.mxu0 0.0
  %968 = vmatprep.subr.mxu0 0.0
  %969 = vmatpush1.msra.mxu0 0.0
  %970 = vmatprep.subr.mxu0 0.0
  %971 = vmatpush1.msra.mxu0 0.0
  %972 = vmatprep.subr.mxu0 0.0
  %973 = vmatpush1.msra.mxu0 0.0
  %974 = vmatprep.subr.mxu0 0.0
  %975 = vmatpush1.msra.mxu0 0.0
  %976 = vmatprep.subr.mxu0 0.0
  %977 = vmatpush1.msra.mxu0 0.0
  %978 = vmatprep.subr.mxu0 0.0
  %979 = vmatpush1.msra.mxu0 0.0
  %980 = vmatprep.subr.mxu0 0.0
  %981 = vmatpush1.msra.mxu0 0.0
  %982 = vmatprep.subr.mxu0 0.0
  %983 = vmatpush1.msra.mxu0 0.0
  %984 = vmatprep.subr.mxu0 0.0
  %985 = vmatpush1.msra.mxu0 0.0
  %986 = vmatprep.subr.mxu0 0.0
  %987 = vmatpush1.msra.mxu0 0.0
  %988 = vmatprep.subr.mxu0 0.0
  %989 = vmatpush1.msra.mxu0 0.0
  %990 = vmatprep.subr.mxu0 0.0
  %991 = vmatpush1.msra.mxu0 0.0
  %992 = vmatprep.subr.mxu0 0.0
  %993 = vmatpush1.msra.mxu0 0.0
  %994 = vmatprep.subr.mxu0 0.0
  %995 = vmatpush1.msra.mxu0 0.0
  %996 = vmatprep.subr.mxu0 0.0
  %997 = vmatpush1.msra.mxu0 0.0
  %998 = vmatprep.subr.mxu0 0.0
  %999 = vmatpush1.msra.mxu0 0.0
  %1000 = vmatprep.subr.mxu0 0.0
  %1001 = vmatpush1.msra.mxu0 0.0
  %1002 = vmatprep.subr.mxu0 0.0
  %1003 = vmatpush1.msra.mxu0 0.0
  %1004 = vmatprep.subr.mxu0 0.0
  %1005 = vmatpush1.msra.mxu0 0.0
  %1006 = vmatprep.subr.mxu0 0.0
  %1007 = vmatpush1.msra.mxu0 0.0
  %1008 = vmatprep.subr.mxu0 0.0
  %1009 = vmatpush1.msra.mxu0 0.0
  %1010 = vmatprep.subr.mxu0 0.0
  %1011 = vmatpush1.msra.mxu0 0.0
  %1012 = vmatprep.subr.mxu0 0.0
  %1013 = vmatpush1.msra.mxu0 0.0
  %1014 = vmatprep.subr.mxu0 0.0
  %1015 = vmatpush1.msra.mxu0 0.0
  %1016 = vmatprep.subr.mxu0 0.0
  %1017 = vmatpush1.msra.mxu0 0.0
  %1018 = vmatprep.mubr.f32.mxu0 0.0
  %1019 = vmatmul.mubr.f32.gmra.mrb[0].mxu0 %v952
  %v1020 = vpop.f32.mrb[0].mxu0
  %v1021 = vadd.f32 %v76, %v1020
  %v1022 = vpop.f32.mrb[0].mxu0
  %1023 = vdwg.mxu0
  %v1024 = vxor.u32 %v1021, 2147483648
  %v1025 = vmul.f32 %v1024, 1.442695
  %v1026 = vpow.pop %v1025
  %v1027 = vadd.f32 %v1026, 1.0
  %v1028 = vrcp.pop %v1027
  %v1029 = vmul.f32 1.0, %v1028
  %v1030 = vtanh.pop %v1021
  %v1031 = vmul.f32 %v1029, %v932
  %1033 = vrot.lane.b32.xlu0 %v1030, 64
  %v1034 = vpop.permute.xlu0 %1033
  %v1036 = vmul.f32 %v1029, %v1034
  %1038 = vrot.lane.b32.xlu0 %v1036, 32
  %v1039 = vpop.permute.xlu0 %1038
  %v1041 = vadd.f32 %v1031, %v1039
  %v1042 = vtanh.pop %v1041
  %1044 = vrot.lane.b32.xlu0 %v1042, 64
  %v1045 = vpop.permute.xlu0 %1044
  %v1047 = vmul.f32 %v1029, %v1045
  %vm1048 = vcmp.gt.f32.partialorder %v936, 0.0
  %v1049 = vsel %vm1048, 1, 0
  %1050 = vset.pattern.permute.xlu0 0
  %1051 = vperm.xlu0 %1050, %v1049
  %v1052 = vpop.permute.xlu0 %1051
  %vm1053 = vcmp.eq.s32.totalorder %v1052, 1
  %v1054 = vsel %vm1053, %v1047, %v931
  %v1055 = vsel %vm1053, %v1041, %v932
  %s1056 = scalar_lea.vmem %s0, 64
  %v1057 = vld [vmem:[%s1056] sm:$0xff]
  %s1058 = scalar_lea.vmem %s1, 64
  %v1059 = vld [vmem:[%s1058] sm:$0xff]
  %s1060 = scalar_lea.vmem %s2, 64
  %v1061 = vld [vmem:[%s1060] sm:$0xff]
  %vm1062 = vcmp.gt.f32.partialorder %v1061, 0.0
  %v1063 = vsel %vm1062, 1, 0
  %1064 = vset.pattern.permute.xlu0 0
  %1065 = vperm.xlu0 %1064, %v1063
  %v1066 = vpop.permute.xlu0 %1065
  %vm1067 = vcmp.eq.s32.totalorder %v1066, 1
  %v1068 = vsel %vm1067, %v1054, %v945
  %1070 = vrot.lane.b32.xlu0 %v1054, 48
  %v1071 = vpop.permute.xlu0 %1070
  %v1073 = vsel %vm70, %v1057, %v1071
  %v1075 = vsel %vm78, %v1073, 0
  %1077 = vmatprep.subr.mxu0 0.0
  %1078 = vmatpush1.msra.mxu0 %v46
  %1079 = vmatprep.subr.mxu0 0.0
  %1080 = vmatpush1.msra.mxu0 %v47
  %1081 = vmatprep.subr.mxu0 0.0
  %1082 = vmatpush1.msra.mxu0 %v48
  %1083 = vmatprep.subr.mxu0 0.0
  %1084 = vmatpush1.msra.mxu0 %v49
  %1085 = vmatprep.subr.mxu0 0.0
  %1086 = vmatpush1.msra.mxu0 %v50
  %1087 = vmatprep.subr.mxu0 0.0
  %1088 = vmatpush1.msra.mxu0 %v51
  %1089 = vmatprep.subr.mxu0 0.0
  %1090 = vmatpush1.msra.mxu0 0.0
  %1091 = vmatprep.subr.mxu0 0.0
  %1092 = vmatpush1.msra.mxu0 0.0
  %1093 = vmatprep.subr.mxu0 0.0
  %1094 = vmatpush1.msra.mxu0 0.0
  %1095 = vmatprep.subr.mxu0 0.0
  %1096 = vmatpush1.msra.mxu0 0.0
  %1097 = vmatprep.subr.mxu0 0.0
  %1098 = vmatpush1.msra.mxu0 0.0
  %1099 = vmatprep.subr.mxu0 0.0
  %1100 = vmatpush1.msra.mxu0 0.0
  %1101 = vmatprep.subr.mxu0 0.0
  %1102 = vmatpush1.msra.mxu0 0.0
  %1103 = vmatprep.subr.mxu0 0.0
  %1104 = vmatpush1.msra.mxu0 0.0
  %1105 = vmatprep.subr.mxu0 0.0
  %1106 = vmatpush1.msra.mxu0 0.0
  %1107 = vmatprep.subr.mxu0 0.0
  %1108 = vmatpush1.msra.mxu0 0.0
  %1109 = vmatprep.subr.mxu0 0.0
  %1110 = vmatpush1.msra.mxu0 0.0
  %1111 = vmatprep.subr.mxu0 0.0
  %1112 = vmatpush1.msra.mxu0 0.0
  %1113 = vmatprep.subr.mxu0 0.0
  %1114 = vmatpush1.msra.mxu0 0.0
  %1115 = vmatprep.subr.mxu0 0.0
  %1116 = vmatpush1.msra.mxu0 0.0
  %1117 = vmatprep.subr.mxu0 0.0
  %1118 = vmatpush1.msra.mxu0 0.0
  %1119 = vmatprep.subr.mxu0 0.0
  %1120 = vmatpush1.msra.mxu0 0.0
  %1121 = vmatprep.subr.mxu0 0.0
  %1122 = vmatpush1.msra.mxu0 0.0
  %1123 = vmatprep.subr.mxu0 0.0
  %1124 = vmatpush1.msra.mxu0 0.0
  %1125 = vmatprep.subr.mxu0 0.0
  %1126 = vmatpush1.msra.mxu0 0.0
  %1127 = vmatprep.subr.mxu0 0.0
  %1128 = vmatpush1.msra.mxu0 0.0
  %1129 = vmatprep.subr.mxu0 0.0
  %1130 = vmatpush1.msra.mxu0 0.0
  %1131 = vmatprep.subr.mxu0 0.0
  %1132 = vmatpush1.msra.mxu0 0.0
  %1133 = vmatprep.subr.mxu0 0.0
  %1134 = vmatpush1.msra.mxu0 0.0
  %1135 = vmatprep.subr.mxu0 0.0
  %1136 = vmatpush1.msra.mxu0 0.0
  %1137 = vmatprep.subr.mxu0 0.0
  %1138 = vmatpush1.msra.mxu0 0.0
  %1139 = vmatprep.subr.mxu0 0.0
  %1140 = vmatpush1.msra.mxu0 0.0
  %1141 = vmatprep.mubr.f32.mxu0 0.0
  %1142 = vmatmul.mubr.f32.gmra.mrb[0].mxu0 %v1075
  %v1143 = vpop.f32.mrb[0].mxu0
  %v1144 = vadd.f32 %v76, %v1143
  %v1145 = vpop.f32.mrb[0].mxu0
  %1146 = vdwg.mxu0
  %v1147 = vxor.u32 %v1144, 2147483648
  %v1148 = vmul.f32 %v1147, 1.442695
  %v1149 = vpow.pop %v1148
  %v1150 = vadd.f32 %v1149, 1.0
  %v1151 = vrcp.pop %v1150
  %v1152 = vmul.f32 1.0, %v1151
  %v1153 = vtanh.pop %v1144
  %v1154 = vmul.f32 %v1152, %v1055
  %1156 = vrot.lane.b32.xlu0 %v1153, 64
  %v1157 = vpop.permute.xlu0 %1156
  %v1159 = vmul.f32 %v1152, %v1157
  %1161 = vrot.lane.b32.xlu0 %v1159, 32
  %v1162 = vpop.permute.xlu0 %1161
  %v1164 = vadd.f32 %v1154, %v1162
  %v1165 = vtanh.pop %v1164
  %1167 = vrot.lane.b32.xlu0 %v1165, 64
  %v1168 = vpop.permute.xlu0 %1167
  %v1170 = vmul.f32 %v1152, %v1168
  %vm1171 = vcmp.gt.f32.partialorder %v1059, 0.0
  %v1172 = vsel %vm1171, 1, 0
  %1173 = vset.pattern.permute.xlu0 0
  %1174 = vperm.xlu0 %1173, %v1172
  %v1175 = vpop.permute.xlu0 %1174
  %vm1176 = vcmp.eq.s32.totalorder %v1175, 1
  %v1177 = vsel %vm1176, %v1170, %v1054
  %v1178 = vsel %vm1176, %v1164, %v1055
  %s1179 = scalar_lea.vmem %s0, 72
  %v1180 = vld [vmem:[%s1179] sm:$0xff]
  %s1181 = scalar_lea.vmem %s1, 72
  %v1182 = vld [vmem:[%s1181] sm:$0xff]
  %s1183 = scalar_lea.vmem %s2, 72
  %v1184 = vld [vmem:[%s1183] sm:$0xff]
  %vm1185 = vcmp.gt.f32.partialorder %v1184, 0.0
  %v1186 = vsel %vm1185, 1, 0
  %1187 = vset.pattern.permute.xlu0 0
  %1188 = vperm.xlu0 %1187, %v1186
  %v1189 = vpop.permute.xlu0 %1188
  %vm1190 = vcmp.eq.s32.totalorder %v1189, 1
  %v1191 = vsel %vm1190, %v1177, %v1068
  %1193 = vrot.lane.b32.xlu0 %v1177, 48
  %v1194 = vpop.permute.xlu0 %1193
  %v1196 = vsel %vm70, %v1180, %v1194
  %v1198 = vsel %vm78, %v1196, 0
  %1200 = vmatprep.subr.mxu0 0.0
  %1201 = vmatpush1.msra.mxu0 %v46
  %1202 = vmatprep.subr.mxu0 0.0
  %1203 = vmatpush1.msra.mxu0 %v47
  %1204 = vmatprep.subr.mxu0 0.0
  %1205 = vmatpush1.msra.mxu0 %v48
  %1206 = vmatprep.subr.mxu0 0.0
  %1207 = vmatpush1.msra.mxu0 %v49
  %1208 = vmatprep.subr.mxu0 0.0
  %1209 = vmatpush1.msra.mxu0 %v50
  %1210 = vmatprep.subr.mxu0 0.0
  %1211 = vmatpush1.msra.mxu0 %v51
  %1212 = vmatprep.subr.mxu0 0.0
  %1213 = vmatpush1.msra.mxu0 0.0
  %1214 = vmatprep.subr.mxu0 0.0
  %1215 = vmatpush1.msra.mxu0 0.0
  %1216 = vmatprep.subr.mxu0 0.0
  %1217 = vmatpush1.msra.mxu0 0.0
  %1218 = vmatprep.subr.mxu0 0.0
  %1219 = vmatpush1.msra.mxu0 0.0
  %1220 = vmatprep.subr.mxu0 0.0
  %1221 = vmatpush1.msra.mxu0 0.0
  %1222 = vmatprep.subr.mxu0 0.0
  %1223 = vmatpush1.msra.mxu0 0.0
  %1224 = vmatprep.subr.mxu0 0.0
  %1225 = vmatpush1.msra.mxu0 0.0
  %1226 = vmatprep.subr.mxu0 0.0
  %1227 = vmatpush1.msra.mxu0 0.0
  %1228 = vmatprep.subr.mxu0 0.0
  %1229 = vmatpush1.msra.mxu0 0.0
  %1230 = vmatprep.subr.mxu0 0.0
  %1231 = vmatpush1.msra.mxu0 0.0
  %1232 = vmatprep.subr.mxu0 0.0
  %1233 = vmatpush1.msra.mxu0 0.0
  %1234 = vmatprep.subr.mxu0 0.0
  %1235 = vmatpush1.msra.mxu0 0.0
  %1236 = vmatprep.subr.mxu0 0.0
  %1237 = vmatpush1.msra.mxu0 0.0
  %1238 = vmatprep.subr.mxu0 0.0
  %1239 = vmatpush1.msra.mxu0 0.0
  %1240 = vmatprep.subr.mxu0 0.0
  %1241 = vmatpush1.msra.mxu0 0.0
  %1242 = vmatprep.subr.mxu0 0.0
  %1243 = vmatpush1.msra.mxu0 0.0
  %1244 = vmatprep.subr.mxu0 0.0
  %1245 = vmatpush1.msra.mxu0 0.0
  %1246 = vmatprep.subr.mxu0 0.0
  %1247 = vmatpush1.msra.mxu0 0.0
  %1248 = vmatprep.subr.mxu0 0.0
  %1249 = vmatpush1.msra.mxu0 0.0
  %1250 = vmatprep.subr.mxu0 0.0
  %1251 = vmatpush1.msra.mxu0 0.0
  %1252 = vmatprep.subr.mxu0 0.0
  %1253 = vmatpush1.msra.mxu0 0.0
  %1254 = vmatprep.subr.mxu0 0.0
  %1255 = vmatpush1.msra.mxu0 0.0
  %1256 = vmatprep.subr.mxu0 0.0
  %1257 = vmatpush1.msra.mxu0 0.0
  %1258 = vmatprep.subr.mxu0 0.0
  %1259 = vmatpush1.msra.mxu0 0.0
  %1260 = vmatprep.subr.mxu0 0.0
  %1261 = vmatpush1.msra.mxu0 0.0
  %1262 = vmatprep.subr.mxu0 0.0
  %1263 = vmatpush1.msra.mxu0 0.0
  %1264 = vmatprep.mubr.f32.mxu0 0.0
  %1265 = vmatmul.mubr.f32.gmra.mrb[0].mxu0 %v1198
  %v1266 = vpop.f32.mrb[0].mxu0
  %v1267 = vadd.f32 %v76, %v1266
  %v1268 = vpop.f32.mrb[0].mxu0
  %1269 = vdwg.mxu0
  %v1270 = vxor.u32 %v1267, 2147483648
  %v1271 = vmul.f32 %v1270, 1.442695
  %v1272 = vpow.pop %v1271
  %v1273 = vadd.f32 %v1272, 1.0
  %v1274 = vrcp.pop %v1273
  %v1275 = vmul.f32 1.0, %v1274
  %v1276 = vtanh.pop %v1267
  %v1277 = vmul.f32 %v1275, %v1178
  %1279 = vrot.lane.b32.xlu0 %v1276, 64
  %v1280 = vpop.permute.xlu0 %1279
  %v1282 = vmul.f32 %v1275, %v1280
  %1284 = vrot.lane.b32.xlu0 %v1282, 32
  %v1285 = vpop.permute.xlu0 %1284
  %v1287 = vadd.f32 %v1277, %v1285
  %v1288 = vtanh.pop %v1287
  %1290 = vrot.lane.b32.xlu0 %v1288, 64
  %v1291 = vpop.permute.xlu0 %1290
  %v1293 = vmul.f32 %v1275, %v1291
  %vm1294 = vcmp.gt.f32.partialorder %v1182, 0.0
  %v1295 = vsel %vm1294, 1, 0
  %1296 = vset.pattern.permute.xlu0 0
  %1297 = vperm.xlu0 %1296, %v1295
  %v1298 = vpop.permute.xlu0 %1297
  %vm1299 = vcmp.eq.s32.totalorder %v1298, 1
  %v1300 = vsel %vm1299, %v1293, %v1177
  %v1301 = vsel %vm1299, %v1287, %v1178
  %s1302 = scalar_lea.vmem %s0, 80
  %v1303 = vld [vmem:[%s1302] sm:$0xff]
  %s1304 = scalar_lea.vmem %s1, 80
  %v1305 = vld [vmem:[%s1304] sm:$0xff]
  %s1306 = scalar_lea.vmem %s2, 80
  %v1307 = vld [vmem:[%s1306] sm:$0xff]
  %vm1308 = vcmp.gt.f32.partialorder %v1307, 0.0
  %v1309 = vsel %vm1308, 1, 0
  %1310 = vset.pattern.permute.xlu0 0
  %1311 = vperm.xlu0 %1310, %v1309
  %v1312 = vpop.permute.xlu0 %1311
  %vm1313 = vcmp.eq.s32.totalorder %v1312, 1
  %v1314 = vsel %vm1313, %v1300, %v1191
  %1316 = vrot.lane.b32.xlu0 %v1300, 48
  %v1317 = vpop.permute.xlu0 %1316
  %v1319 = vsel %vm70, %v1303, %v1317
  %v1321 = vsel %vm78, %v1319, 0
  %1323 = vmatprep.subr.mxu0 0.0
  %1324 = vmatpush1.msra.mxu0 %v46
  %1325 = vmatprep.subr.mxu0 0.0
  %1326 = vmatpush1.msra.mxu0 %v47
  %1327 = vmatprep.subr.mxu0 0.0
  %1328 = vmatpush1.msra.mxu0 %v48
  %1329 = vmatprep.subr.mxu0 0.0
  %1330 = vmatpush1.msra.mxu0 %v49
  %1331 = vmatprep.subr.mxu0 0.0
  %1332 = vmatpush1.msra.mxu0 %v50
  %1333 = vmatprep.subr.mxu0 0.0
  %1334 = vmatpush1.msra.mxu0 %v51
  %1335 = vmatprep.subr.mxu0 0.0
  %1336 = vmatpush1.msra.mxu0 0.0
  %1337 = vmatprep.subr.mxu0 0.0
  %1338 = vmatpush1.msra.mxu0 0.0
  %1339 = vmatprep.subr.mxu0 0.0
  %1340 = vmatpush1.msra.mxu0 0.0
  %1341 = vmatprep.subr.mxu0 0.0
  %1342 = vmatpush1.msra.mxu0 0.0
  %1343 = vmatprep.subr.mxu0 0.0
  %1344 = vmatpush1.msra.mxu0 0.0
  %1345 = vmatprep.subr.mxu0 0.0
  %1346 = vmatpush1.msra.mxu0 0.0
  %1347 = vmatprep.subr.mxu0 0.0
  %1348 = vmatpush1.msra.mxu0 0.0
  %1349 = vmatprep.subr.mxu0 0.0
  %1350 = vmatpush1.msra.mxu0 0.0
  %1351 = vmatprep.subr.mxu0 0.0
  %1352 = vmatpush1.msra.mxu0 0.0
  %1353 = vmatprep.subr.mxu0 0.0
  %1354 = vmatpush1.msra.mxu0 0.0
  %1355 = vmatprep.subr.mxu0 0.0
  %1356 = vmatpush1.msra.mxu0 0.0
  %1357 = vmatprep.subr.mxu0 0.0
  %1358 = vmatpush1.msra.mxu0 0.0
  %1359 = vmatprep.subr.mxu0 0.0
  %1360 = vmatpush1.msra.mxu0 0.0
  %1361 = vmatprep.subr.mxu0 0.0
  %1362 = vmatpush1.msra.mxu0 0.0
  %1363 = vmatprep.subr.mxu0 0.0
  %1364 = vmatpush1.msra.mxu0 0.0
  %1365 = vmatprep.subr.mxu0 0.0
  %1366 = vmatpush1.msra.mxu0 0.0
  %1367 = vmatprep.subr.mxu0 0.0
  %1368 = vmatpush1.msra.mxu0 0.0
  %1369 = vmatprep.subr.mxu0 0.0
  %1370 = vmatpush1.msra.mxu0 0.0
  %1371 = vmatprep.subr.mxu0 0.0
  %1372 = vmatpush1.msra.mxu0 0.0
  %1373 = vmatprep.subr.mxu0 0.0
  %1374 = vmatpush1.msra.mxu0 0.0
  %1375 = vmatprep.subr.mxu0 0.0
  %1376 = vmatpush1.msra.mxu0 0.0
  %1377 = vmatprep.subr.mxu0 0.0
  %1378 = vmatpush1.msra.mxu0 0.0
  %1379 = vmatprep.subr.mxu0 0.0
  %1380 = vmatpush1.msra.mxu0 0.0
  %1381 = vmatprep.subr.mxu0 0.0
  %1382 = vmatpush1.msra.mxu0 0.0
  %1383 = vmatprep.subr.mxu0 0.0
  %1384 = vmatpush1.msra.mxu0 0.0
  %1385 = vmatprep.subr.mxu0 0.0
  %1386 = vmatpush1.msra.mxu0 0.0
  %1387 = vmatprep.mubr.f32.mxu0 0.0
  %1388 = vmatmul.mubr.f32.gmra.mrb[0].mxu0 %v1321
  %v1389 = vpop.f32.mrb[0].mxu0
  %v1390 = vadd.f32 %v76, %v1389
  %v1391 = vpop.f32.mrb[0].mxu0
  %1392 = vdwg.mxu0
  %v1393 = vxor.u32 %v1390, 2147483648
  %v1394 = vmul.f32 %v1393, 1.442695
  %v1395 = vpow.pop %v1394
  %v1396 = vadd.f32 %v1395, 1.0
  %v1397 = vrcp.pop %v1396
  %v1398 = vmul.f32 1.0, %v1397
  %v1399 = vtanh.pop %v1390
  %v1400 = vmul.f32 %v1398, %v1301
  %1402 = vrot.lane.b32.xlu0 %v1399, 64
  %v1403 = vpop.permute.xlu0 %1402
  %v1405 = vmul.f32 %v1398, %v1403
  %1407 = vrot.lane.b32.xlu0 %v1405, 32
  %v1408 = vpop.permute.xlu0 %1407
  %v1410 = vadd.f32 %v1400, %v1408
  %v1411 = vtanh.pop %v1410
  %1413 = vrot.lane.b32.xlu0 %v1411, 64
  %v1414 = vpop.permute.xlu0 %1413
  %v1416 = vmul.f32 %v1398, %v1414
  %vm1417 = vcmp.gt.f32.partialorder %v1305, 0.0
  %v1418 = vsel %vm1417, 1, 0
  %1419 = vset.pattern.permute.xlu0 0
  %1420 = vperm.xlu0 %1419, %v1418
  %v1421 = vpop.permute.xlu0 %1420
  %vm1422 = vcmp.eq.s32.totalorder %v1421, 1
  %v1423 = vsel %vm1422, %v1416, %v1300
  %v1424 = vsel %vm1422, %v1410, %v1301
  %s1425 = scalar_lea.vmem %s0, 88
  %v1426 = vld [vmem:[%s1425] sm:$0xff]
  %s1427 = scalar_lea.vmem %s1, 88
  %v1428 = vld [vmem:[%s1427] sm:$0xff]
  %s1429 = scalar_lea.vmem %s2, 88
  %v1430 = vld [vmem:[%s1429] sm:$0xff]
  %vm1431 = vcmp.gt.f32.partialorder %v1430, 0.0
  %v1432 = vsel %vm1431, 1, 0
  %1433 = vset.pattern.permute.xlu0 0
  %1434 = vperm.xlu0 %1433, %v1432
  %v1435 = vpop.permute.xlu0 %1434
  %vm1436 = vcmp.eq.s32.totalorder %v1435, 1
  %v1437 = vsel %vm1436, %v1423, %v1314
  %1439 = vrot.lane.b32.xlu0 %v1423, 48
  %v1440 = vpop.permute.xlu0 %1439
  %v1442 = vsel %vm70, %v1426, %v1440
  %v1444 = vsel %vm78, %v1442, 0
  %1446 = vmatprep.subr.mxu0 0.0
  %1447 = vmatpush1.msra.mxu0 %v46
  %1448 = vmatprep.subr.mxu0 0.0
  %1449 = vmatpush1.msra.mxu0 %v47
  %1450 = vmatprep.subr.mxu0 0.0
  %1451 = vmatpush1.msra.mxu0 %v48
  %1452 = vmatprep.subr.mxu0 0.0
  %1453 = vmatpush1.msra.mxu0 %v49
  %1454 = vmatprep.subr.mxu0 0.0
  %1455 = vmatpush1.msra.mxu0 %v50
  %1456 = vmatprep.subr.mxu0 0.0
  %1457 = vmatpush1.msra.mxu0 %v51
  %1458 = vmatprep.subr.mxu0 0.0
  %1459 = vmatpush1.msra.mxu0 0.0
  %1460 = vmatprep.subr.mxu0 0.0
  %1461 = vmatpush1.msra.mxu0 0.0
  %1462 = vmatprep.subr.mxu0 0.0
  %1463 = vmatpush1.msra.mxu0 0.0
  %1464 = vmatprep.subr.mxu0 0.0
  %1465 = vmatpush1.msra.mxu0 0.0
  %1466 = vmatprep.subr.mxu0 0.0
  %1467 = vmatpush1.msra.mxu0 0.0
  %1468 = vmatprep.subr.mxu0 0.0
  %1469 = vmatpush1.msra.mxu0 0.0
  %1470 = vmatprep.subr.mxu0 0.0
  %1471 = vmatpush1.msra.mxu0 0.0
  %1472 = vmatprep.subr.mxu0 0.0
  %1473 = vmatpush1.msra.mxu0 0.0
  %1474 = vmatprep.subr.mxu0 0.0
  %1475 = vmatpush1.msra.mxu0 0.0
  %1476 = vmatprep.subr.mxu0 0.0
  %1477 = vmatpush1.msra.mxu0 0.0
  %1478 = vmatprep.subr.mxu0 0.0
  %1479 = vmatpush1.msra.mxu0 0.0
  %1480 = vmatprep.subr.mxu0 0.0
  %1481 = vmatpush1.msra.mxu0 0.0
  %1482 = vmatprep.subr.mxu0 0.0
  %1483 = vmatpush1.msra.mxu0 0.0
  %1484 = vmatprep.subr.mxu0 0.0
  %1485 = vmatpush1.msra.mxu0 0.0
  %1486 = vmatprep.subr.mxu0 0.0
  %1487 = vmatpush1.msra.mxu0 0.0
  %1488 = vmatprep.subr.mxu0 0.0
  %1489 = vmatpush1.msra.mxu0 0.0
  %1490 = vmatprep.subr.mxu0 0.0
  %1491 = vmatpush1.msra.mxu0 0.0
  %1492 = vmatprep.subr.mxu0 0.0
  %1493 = vmatpush1.msra.mxu0 0.0
  %1494 = vmatprep.subr.mxu0 0.0
  %1495 = vmatpush1.msra.mxu0 0.0
  %1496 = vmatprep.subr.mxu0 0.0
  %1497 = vmatpush1.msra.mxu0 0.0
  %1498 = vmatprep.subr.mxu0 0.0
  %1499 = vmatpush1.msra.mxu0 0.0
  %1500 = vmatprep.subr.mxu0 0.0
  %1501 = vmatpush1.msra.mxu0 0.0
  %1502 = vmatprep.subr.mxu0 0.0
  %1503 = vmatpush1.msra.mxu0 0.0
  %1504 = vmatprep.subr.mxu0 0.0
  %1505 = vmatpush1.msra.mxu0 0.0
  %1506 = vmatprep.subr.mxu0 0.0
  %1507 = vmatpush1.msra.mxu0 0.0
  %1508 = vmatprep.subr.mxu0 0.0
  %1509 = vmatpush1.msra.mxu0 0.0
  %1510 = vmatprep.mubr.f32.mxu0 0.0
  %1511 = vmatmul.mubr.f32.gmra.mrb[0].mxu0 %v1444
  %v1512 = vpop.f32.mrb[0].mxu0
  %v1513 = vadd.f32 %v76, %v1512
  %v1514 = vpop.f32.mrb[0].mxu0
  %1515 = vdwg.mxu0
  %v1516 = vxor.u32 %v1513, 2147483648
  %v1517 = vmul.f32 %v1516, 1.442695
  %v1518 = vpow.pop %v1517
  %v1519 = vadd.f32 %v1518, 1.0
  %v1520 = vrcp.pop %v1519
  %v1521 = vmul.f32 1.0, %v1520
  %v1522 = vtanh.pop %v1513
  %v1523 = vmul.f32 %v1521, %v1424
  %1525 = vrot.lane.b32.xlu0 %v1522, 64
  %v1526 = vpop.permute.xlu0 %1525
  %v1528 = vmul.f32 %v1521, %v1526
  %1530 = vrot.lane.b32.xlu0 %v1528, 32
  %v1531 = vpop.permute.xlu0 %1530
  %v1533 = vadd.f32 %v1523, %v1531
  %v1534 = vtanh.pop %v1533
  %1536 = vrot.lane.b32.xlu0 %v1534, 64
  %v1537 = vpop.permute.xlu0 %1536
  %v1539 = vmul.f32 %v1521, %v1537
  %vm1540 = vcmp.gt.f32.partialorder %v1428, 0.0
  %v1541 = vsel %vm1540, 1, 0
  %1542 = vset.pattern.permute.xlu0 0
  %1543 = vperm.xlu0 %1542, %v1541
  %v1544 = vpop.permute.xlu0 %1543
  %vm1545 = vcmp.eq.s32.totalorder %v1544, 1
  %v1546 = vsel %vm1545, %v1539, %v1423
  %v1547 = vsel %vm1545, %v1533, %v1424
  %s1548 = scalar_lea.vmem %s0, 96
  %v1549 = vld [vmem:[%s1548] sm:$0xff]
  %s1550 = scalar_lea.vmem %s1, 96
  %v1551 = vld [vmem:[%s1550] sm:$0xff]
  %s1552 = scalar_lea.vmem %s2, 96
  %v1553 = vld [vmem:[%s1552] sm:$0xff]
  %vm1554 = vcmp.gt.f32.partialorder %v1553, 0.0
  %v1555 = vsel %vm1554, 1, 0
  %1556 = vset.pattern.permute.xlu0 0
  %1557 = vperm.xlu0 %1556, %v1555
  %v1558 = vpop.permute.xlu0 %1557
  %vm1559 = vcmp.eq.s32.totalorder %v1558, 1
  %v1560 = vsel %vm1559, %v1546, %v1437
  %1562 = vrot.lane.b32.xlu0 %v1546, 48
  %v1563 = vpop.permute.xlu0 %1562
  %v1565 = vsel %vm70, %v1549, %v1563
  %v1567 = vsel %vm78, %v1565, 0
  %1569 = vmatprep.subr.mxu0 0.0
  %1570 = vmatpush1.msra.mxu0 %v46
  %1571 = vmatprep.subr.mxu0 0.0
  %1572 = vmatpush1.msra.mxu0 %v47
  %1573 = vmatprep.subr.mxu0 0.0
  %1574 = vmatpush1.msra.mxu0 %v48
  %1575 = vmatprep.subr.mxu0 0.0
  %1576 = vmatpush1.msra.mxu0 %v49
  %1577 = vmatprep.subr.mxu0 0.0
  %1578 = vmatpush1.msra.mxu0 %v50
  %1579 = vmatprep.subr.mxu0 0.0
  %1580 = vmatpush1.msra.mxu0 %v51
  %1581 = vmatprep.subr.mxu0 0.0
  %1582 = vmatpush1.msra.mxu0 0.0
  %1583 = vmatprep.subr.mxu0 0.0
  %1584 = vmatpush1.msra.mxu0 0.0
  %1585 = vmatprep.subr.mxu0 0.0
  %1586 = vmatpush1.msra.mxu0 0.0
  %1587 = vmatprep.subr.mxu0 0.0
  %1588 = vmatpush1.msra.mxu0 0.0
  %1589 = vmatprep.subr.mxu0 0.0
  %1590 = vmatpush1.msra.mxu0 0.0
  %1591 = vmatprep.subr.mxu0 0.0
  %1592 = vmatpush1.msra.mxu0 0.0
  %1593 = vmatprep.subr.mxu0 0.0
  %1594 = vmatpush1.msra.mxu0 0.0
  %1595 = vmatprep.subr.mxu0 0.0
  %1596 = vmatpush1.msra.mxu0 0.0
  %1597 = vmatprep.subr.mxu0 0.0
  %1598 = vmatpush1.msra.mxu0 0.0
  %1599 = vmatprep.subr.mxu0 0.0
  %1600 = vmatpush1.msra.mxu0 0.0
  %1601 = vmatprep.subr.mxu0 0.0
  %1602 = vmatpush1.msra.mxu0 0.0
  %1603 = vmatprep.subr.mxu0 0.0
  %1604 = vmatpush1.msra.mxu0 0.0
  %1605 = vmatprep.subr.mxu0 0.0
  %1606 = vmatpush1.msra.mxu0 0.0
  %1607 = vmatprep.subr.mxu0 0.0
  %1608 = vmatpush1.msra.mxu0 0.0
  %1609 = vmatprep.subr.mxu0 0.0
  %1610 = vmatpush1.msra.mxu0 0.0
  %1611 = vmatprep.subr.mxu0 0.0
  %1612 = vmatpush1.msra.mxu0 0.0
  %1613 = vmatprep.subr.mxu0 0.0
  %1614 = vmatpush1.msra.mxu0 0.0
  %1615 = vmatprep.subr.mxu0 0.0
  %1616 = vmatpush1.msra.mxu0 0.0
  %1617 = vmatprep.subr.mxu0 0.0
  %1618 = vmatpush1.msra.mxu0 0.0
  %1619 = vmatprep.subr.mxu0 0.0
  %1620 = vmatpush1.msra.mxu0 0.0
  %1621 = vmatprep.subr.mxu0 0.0
  %1622 = vmatpush1.msra.mxu0 0.0
  %1623 = vmatprep.subr.mxu0 0.0
  %1624 = vmatpush1.msra.mxu0 0.0
  %1625 = vmatprep.subr.mxu0 0.0
  %1626 = vmatpush1.msra.mxu0 0.0
  %1627 = vmatprep.subr.mxu0 0.0
  %1628 = vmatpush1.msra.mxu0 0.0
  %1629 = vmatprep.subr.mxu0 0.0
  %1630 = vmatpush1.msra.mxu0 0.0
  %1631 = vmatprep.subr.mxu0 0.0
  %1632 = vmatpush1.msra.mxu0 0.0
  %1633 = vmatprep.mubr.f32.mxu0 0.0
  %1634 = vmatmul.mubr.f32.gmra.mrb[0].mxu0 %v1567
  %v1635 = vpop.f32.mrb[0].mxu0
  %v1636 = vadd.f32 %v76, %v1635
  %v1637 = vpop.f32.mrb[0].mxu0
  %1638 = vdwg.mxu0
  %v1639 = vxor.u32 %v1636, 2147483648
  %v1640 = vmul.f32 %v1639, 1.442695
  %v1641 = vpow.pop %v1640
  %v1642 = vadd.f32 %v1641, 1.0
  %v1643 = vrcp.pop %v1642
  %v1644 = vmul.f32 1.0, %v1643
  %v1645 = vtanh.pop %v1636
  %v1646 = vmul.f32 %v1644, %v1547
  %1648 = vrot.lane.b32.xlu0 %v1645, 64
  %v1649 = vpop.permute.xlu0 %1648
  %v1651 = vmul.f32 %v1644, %v1649
  %1653 = vrot.lane.b32.xlu0 %v1651, 32
  %v1654 = vpop.permute.xlu0 %1653
  %v1656 = vadd.f32 %v1646, %v1654
  %v1657 = vtanh.pop %v1656
  %1659 = vrot.lane.b32.xlu0 %v1657, 64
  %v1660 = vpop.permute.xlu0 %1659
  %v1662 = vmul.f32 %v1644, %v1660
  %vm1663 = vcmp.gt.f32.partialorder %v1551, 0.0
  %v1664 = vsel %vm1663, 1, 0
  %1665 = vset.pattern.permute.xlu0 0
  %1666 = vperm.xlu0 %1665, %v1664
  %v1667 = vpop.permute.xlu0 %1666
  %vm1668 = vcmp.eq.s32.totalorder %v1667, 1
  %v1669 = vsel %vm1668, %v1662, %v1546
  %v1670 = vsel %vm1668, %v1656, %v1547
  %s1671 = scalar_lea.vmem %s0, 104
  %v1672 = vld [vmem:[%s1671] sm:$0xff]
  %s1673 = scalar_lea.vmem %s1, 104
  %v1674 = vld [vmem:[%s1673] sm:$0xff]
  %s1675 = scalar_lea.vmem %s2, 104
  %v1676 = vld [vmem:[%s1675] sm:$0xff]
  %vm1677 = vcmp.gt.f32.partialorder %v1676, 0.0
  %v1678 = vsel %vm1677, 1, 0
  %1679 = vset.pattern.permute.xlu0 0
  %1680 = vperm.xlu0 %1679, %v1678
  %v1681 = vpop.permute.xlu0 %1680
  %vm1682 = vcmp.eq.s32.totalorder %v1681, 1
  %v1683 = vsel %vm1682, %v1669, %v1560
  %1685 = vrot.lane.b32.xlu0 %v1669, 48
  %v1686 = vpop.permute.xlu0 %1685
  %v1688 = vsel %vm70, %v1672, %v1686
  %v1690 = vsel %vm78, %v1688, 0
  %1692 = vmatprep.subr.mxu0 0.0
  %1693 = vmatpush1.msra.mxu0 %v46
  %1694 = vmatprep.subr.mxu0 0.0
  %1695 = vmatpush1.msra.mxu0 %v47
  %1696 = vmatprep.subr.mxu0 0.0
  %1697 = vmatpush1.msra.mxu0 %v48
  %1698 = vmatprep.subr.mxu0 0.0
  %1699 = vmatpush1.msra.mxu0 %v49
  %1700 = vmatprep.subr.mxu0 0.0
  %1701 = vmatpush1.msra.mxu0 %v50
  %1702 = vmatprep.subr.mxu0 0.0
  %1703 = vmatpush1.msra.mxu0 %v51
  %1704 = vmatprep.subr.mxu0 0.0
  %1705 = vmatpush1.msra.mxu0 0.0
  %1706 = vmatprep.subr.mxu0 0.0
  %1707 = vmatpush1.msra.mxu0 0.0
  %1708 = vmatprep.subr.mxu0 0.0
  %1709 = vmatpush1.msra.mxu0 0.0
  %1710 = vmatprep.subr.mxu0 0.0
  %1711 = vmatpush1.msra.mxu0 0.0
  %1712 = vmatprep.subr.mxu0 0.0
  %1713 = vmatpush1.msra.mxu0 0.0
  %1714 = vmatprep.subr.mxu0 0.0
  %1715 = vmatpush1.msra.mxu0 0.0
  %1716 = vmatprep.subr.mxu0 0.0
  %1717 = vmatpush1.msra.mxu0 0.0
  %1718 = vmatprep.subr.mxu0 0.0
  %1719 = vmatpush1.msra.mxu0 0.0
  %1720 = vmatprep.subr.mxu0 0.0
  %1721 = vmatpush1.msra.mxu0 0.0
  %1722 = vmatprep.subr.mxu0 0.0
  %1723 = vmatpush1.msra.mxu0 0.0
  %1724 = vmatprep.subr.mxu0 0.0
  %1725 = vmatpush1.msra.mxu0 0.0
  %1726 = vmatprep.subr.mxu0 0.0
  %1727 = vmatpush1.msra.mxu0 0.0
  %1728 = vmatprep.subr.mxu0 0.0
  %1729 = vmatpush1.msra.mxu0 0.0
  %1730 = vmatprep.subr.mxu0 0.0
  %1731 = vmatpush1.msra.mxu0 0.0
  %1732 = vmatprep.subr.mxu0 0.0
  %1733 = vmatpush1.msra.mxu0 0.0
  %1734 = vmatprep.subr.mxu0 0.0
  %1735 = vmatpush1.msra.mxu0 0.0
  %1736 = vmatprep.subr.mxu0 0.0
  %1737 = vmatpush1.msra.mxu0 0.0
  %1738 = vmatprep.subr.mxu0 0.0
  %1739 = vmatpush1.msra.mxu0 0.0
  %1740 = vmatprep.subr.mxu0 0.0
  %1741 = vmatpush1.msra.mxu0 0.0
  %1742 = vmatprep.subr.mxu0 0.0
  %1743 = vmatpush1.msra.mxu0 0.0
  %1744 = vmatprep.subr.mxu0 0.0
  %1745 = vmatpush1.msra.mxu0 0.0
  %1746 = vmatprep.subr.mxu0 0.0
  %1747 = vmatpush1.msra.mxu0 0.0
  %1748 = vmatprep.subr.mxu0 0.0
  %1749 = vmatpush1.msra.mxu0 0.0
  %1750 = vmatprep.subr.mxu0 0.0
  %1751 = vmatpush1.msra.mxu0 0.0
  %1752 = vmatprep.subr.mxu0 0.0
  %1753 = vmatpush1.msra.mxu0 0.0
  %1754 = vmatprep.subr.mxu0 0.0
  %1755 = vmatpush1.msra.mxu0 0.0
  %1756 = vmatprep.mubr.f32.mxu0 0.0
  %1757 = vmatmul.mubr.f32.gmra.mrb[0].mxu0 %v1690
  %v1758 = vpop.f32.mrb[0].mxu0
  %v1759 = vadd.f32 %v76, %v1758
  %v1760 = vpop.f32.mrb[0].mxu0
  %1761 = vdwg.mxu0
  %v1762 = vxor.u32 %v1759, 2147483648
  %v1763 = vmul.f32 %v1762, 1.442695
  %v1764 = vpow.pop %v1763
  %v1765 = vadd.f32 %v1764, 1.0
  %v1766 = vrcp.pop %v1765
  %v1767 = vmul.f32 1.0, %v1766
  %v1768 = vtanh.pop %v1759
  %v1769 = vmul.f32 %v1767, %v1670
  %1771 = vrot.lane.b32.xlu0 %v1768, 64
  %v1772 = vpop.permute.xlu0 %1771
  %v1774 = vmul.f32 %v1767, %v1772
  %1776 = vrot.lane.b32.xlu0 %v1774, 32
  %v1777 = vpop.permute.xlu0 %1776
  %v1779 = vadd.f32 %v1769, %v1777
  %v1780 = vtanh.pop %v1779
  %1782 = vrot.lane.b32.xlu0 %v1780, 64
  %v1783 = vpop.permute.xlu0 %1782
  %v1785 = vmul.f32 %v1767, %v1783
  %vm1786 = vcmp.gt.f32.partialorder %v1674, 0.0
  %v1787 = vsel %vm1786, 1, 0
  %1788 = vset.pattern.permute.xlu0 0
  %1789 = vperm.xlu0 %1788, %v1787
  %v1790 = vpop.permute.xlu0 %1789
  %vm1791 = vcmp.eq.s32.totalorder %v1790, 1
  %v1792 = vsel %vm1791, %v1785, %v1669
  %v1793 = vsel %vm1791, %v1779, %v1670
  %s1794 = scalar_lea.vmem %s0, 112
  %v1795 = vld [vmem:[%s1794] sm:$0xff]
  %s1796 = scalar_lea.vmem %s1, 112
  %v1797 = vld [vmem:[%s1796] sm:$0xff]
  %s1798 = scalar_lea.vmem %s2, 112
  %v1799 = vld [vmem:[%s1798] sm:$0xff]
  %vm1800 = vcmp.gt.f32.partialorder %v1799, 0.0
  %v1801 = vsel %vm1800, 1, 0
  %1802 = vset.pattern.permute.xlu0 0
  %1803 = vperm.xlu0 %1802, %v1801
  %v1804 = vpop.permute.xlu0 %1803
  %vm1805 = vcmp.eq.s32.totalorder %v1804, 1
  %v1806 = vsel %vm1805, %v1792, %v1683
  %1808 = vrot.lane.b32.xlu0 %v1792, 48
  %v1809 = vpop.permute.xlu0 %1808
  %v1811 = vsel %vm70, %v1795, %v1809
  %v1813 = vsel %vm78, %v1811, 0
  %1815 = vmatprep.subr.mxu0 0.0
  %1816 = vmatpush1.msra.mxu0 %v46
  %1817 = vmatprep.subr.mxu0 0.0
  %1818 = vmatpush1.msra.mxu0 %v47
  %1819 = vmatprep.subr.mxu0 0.0
  %1820 = vmatpush1.msra.mxu0 %v48
  %1821 = vmatprep.subr.mxu0 0.0
  %1822 = vmatpush1.msra.mxu0 %v49
  %1823 = vmatprep.subr.mxu0 0.0
  %1824 = vmatpush1.msra.mxu0 %v50
  %1825 = vmatprep.subr.mxu0 0.0
  %1826 = vmatpush1.msra.mxu0 %v51
  %1827 = vmatprep.subr.mxu0 0.0
  %1828 = vmatpush1.msra.mxu0 0.0
  %1829 = vmatprep.subr.mxu0 0.0
  %1830 = vmatpush1.msra.mxu0 0.0
  %1831 = vmatprep.subr.mxu0 0.0
  %1832 = vmatpush1.msra.mxu0 0.0
  %1833 = vmatprep.subr.mxu0 0.0
  %1834 = vmatpush1.msra.mxu0 0.0
  %1835 = vmatprep.subr.mxu0 0.0
  %1836 = vmatpush1.msra.mxu0 0.0
  %1837 = vmatprep.subr.mxu0 0.0
  %1838 = vmatpush1.msra.mxu0 0.0
  %1839 = vmatprep.subr.mxu0 0.0
  %1840 = vmatpush1.msra.mxu0 0.0
  %1841 = vmatprep.subr.mxu0 0.0
  %1842 = vmatpush1.msra.mxu0 0.0
  %1843 = vmatprep.subr.mxu0 0.0
  %1844 = vmatpush1.msra.mxu0 0.0
  %1845 = vmatprep.subr.mxu0 0.0
  %1846 = vmatpush1.msra.mxu0 0.0
  %1847 = vmatprep.subr.mxu0 0.0
  %1848 = vmatpush1.msra.mxu0 0.0
  %1849 = vmatprep.subr.mxu0 0.0
  %1850 = vmatpush1.msra.mxu0 0.0
  %1851 = vmatprep.subr.mxu0 0.0
  %1852 = vmatpush1.msra.mxu0 0.0
  %1853 = vmatprep.subr.mxu0 0.0
  %1854 = vmatpush1.msra.mxu0 0.0
  %1855 = vmatprep.subr.mxu0 0.0
  %1856 = vmatpush1.msra.mxu0 0.0
  %1857 = vmatprep.subr.mxu0 0.0
  %1858 = vmatpush1.msra.mxu0 0.0
  %1859 = vmatprep.subr.mxu0 0.0
  %1860 = vmatpush1.msra.mxu0 0.0
  %1861 = vmatprep.subr.mxu0 0.0
  %1862 = vmatpush1.msra.mxu0 0.0
  %1863 = vmatprep.subr.mxu0 0.0
  %1864 = vmatpush1.msra.mxu0 0.0
  %1865 = vmatprep.subr.mxu0 0.0
  %1866 = vmatpush1.msra.mxu0 0.0
  %1867 = vmatprep.subr.mxu0 0.0
  %1868 = vmatpush1.msra.mxu0 0.0
  %1869 = vmatprep.subr.mxu0 0.0
  %1870 = vmatpush1.msra.mxu0 0.0
  %1871 = vmatprep.subr.mxu0 0.0
  %1872 = vmatpush1.msra.mxu0 0.0
  %1873 = vmatprep.subr.mxu0 0.0
  %1874 = vmatpush1.msra.mxu0 0.0
  %1875 = vmatprep.subr.mxu0 0.0
  %1876 = vmatpush1.msra.mxu0 0.0
  %1877 = vmatprep.subr.mxu0 0.0
  %1878 = vmatpush1.msra.mxu0 0.0
  %1879 = vmatprep.mubr.f32.mxu0 0.0
  %1880 = vmatmul.mubr.f32.gmra.mrb[0].mxu0 %v1813
  %v1881 = vpop.f32.mrb[0].mxu0
  %v1882 = vadd.f32 %v76, %v1881
  %v1883 = vpop.f32.mrb[0].mxu0
  %1884 = vdwg.mxu0
  %v1885 = vxor.u32 %v1882, 2147483648
  %v1886 = vmul.f32 %v1885, 1.442695
  %v1887 = vpow.pop %v1886
  %v1888 = vadd.f32 %v1887, 1.0
  %v1889 = vrcp.pop %v1888
  %v1890 = vmul.f32 1.0, %v1889
  %v1891 = vtanh.pop %v1882
  %v1892 = vmul.f32 %v1890, %v1793
  %1894 = vrot.lane.b32.xlu0 %v1891, 64
  %v1895 = vpop.permute.xlu0 %1894
  %v1897 = vmul.f32 %v1890, %v1895
  %1899 = vrot.lane.b32.xlu0 %v1897, 32
  %v1900 = vpop.permute.xlu0 %1899
  %v1902 = vadd.f32 %v1892, %v1900
  %v1903 = vtanh.pop %v1902
  %1905 = vrot.lane.b32.xlu0 %v1903, 64
  %v1906 = vpop.permute.xlu0 %1905
  %v1908 = vmul.f32 %v1890, %v1906
  %vm1909 = vcmp.gt.f32.partialorder %v1797, 0.0
  %v1910 = vsel %vm1909, 1, 0
  %1911 = vset.pattern.permute.xlu0 0
  %1912 = vperm.xlu0 %1911, %v1910
  %v1913 = vpop.permute.xlu0 %1912
  %vm1914 = vcmp.eq.s32.totalorder %v1913, 1
  %v1915 = vsel %vm1914, %v1908, %v1792
  %v1916 = vsel %vm1914, %v1902, %v1793
  %s1917 = scalar_lea.vmem %s0, 120
  %v1918 = vld [vmem:[%s1917] sm:$0xff]
  %s1919 = scalar_lea.vmem %s1, 120
  %v1920 = vld [vmem:[%s1919] sm:$0xff]
  %s1921 = scalar_lea.vmem %s2, 120
  %v1922 = vld [vmem:[%s1921] sm:$0xff]
  %vm1923 = vcmp.gt.f32.partialorder %v1922, 0.0
  %v1924 = vsel %vm1923, 1, 0
  %1925 = vset.pattern.permute.xlu0 0
  %1926 = vperm.xlu0 %1925, %v1924
  %v1927 = vpop.permute.xlu0 %1926
  %vm1928 = vcmp.eq.s32.totalorder %v1927, 1
  %v1929 = vsel %vm1928, %v1915, %v1806
  %1931 = vrot.lane.b32.xlu0 %v1915, 48
  %v1932 = vpop.permute.xlu0 %1931
  %v1934 = vsel %vm70, %v1918, %v1932
  %v1936 = vsel %vm78, %v1934, 0
  %1938 = vmatprep.subr.mxu0 0.0
  %1939 = vmatpush1.msra.mxu0 %v46
  %1940 = vmatprep.subr.mxu0 0.0
  %1941 = vmatpush1.msra.mxu0 %v47
  %1942 = vmatprep.subr.mxu0 0.0
  %1943 = vmatpush1.msra.mxu0 %v48
  %1944 = vmatprep.subr.mxu0 0.0
  %1945 = vmatpush1.msra.mxu0 %v49
  %1946 = vmatprep.subr.mxu0 0.0
  %1947 = vmatpush1.msra.mxu0 %v50
  %1948 = vmatprep.subr.mxu0 0.0
  %1949 = vmatpush1.msra.mxu0 %v51
  %1950 = vmatprep.subr.mxu0 0.0
  %1951 = vmatpush1.msra.mxu0 0.0
  %1952 = vmatprep.subr.mxu0 0.0
  %1953 = vmatpush1.msra.mxu0 0.0
  %1954 = vmatprep.subr.mxu0 0.0
  %1955 = vmatpush1.msra.mxu0 0.0
  %1956 = vmatprep.subr.mxu0 0.0
  %1957 = vmatpush1.msra.mxu0 0.0
  %1958 = vmatprep.subr.mxu0 0.0
  %1959 = vmatpush1.msra.mxu0 0.0
  %1960 = vmatprep.subr.mxu0 0.0
  %1961 = vmatpush1.msra.mxu0 0.0
  %1962 = vmatprep.subr.mxu0 0.0
  %1963 = vmatpush1.msra.mxu0 0.0
  %1964 = vmatprep.subr.mxu0 0.0
  %1965 = vmatpush1.msra.mxu0 0.0
  %1966 = vmatprep.subr.mxu0 0.0
  %1967 = vmatpush1.msra.mxu0 0.0
  %1968 = vmatprep.subr.mxu0 0.0
  %1969 = vmatpush1.msra.mxu0 0.0
  %1970 = vmatprep.subr.mxu0 0.0
  %1971 = vmatpush1.msra.mxu0 0.0
  %1972 = vmatprep.subr.mxu0 0.0
  %1973 = vmatpush1.msra.mxu0 0.0
  %1974 = vmatprep.subr.mxu0 0.0
  %1975 = vmatpush1.msra.mxu0 0.0
  %1976 = vmatprep.subr.mxu0 0.0
  %1977 = vmatpush1.msra.mxu0 0.0
  %1978 = vmatprep.subr.mxu0 0.0
  %1979 = vmatpush1.msra.mxu0 0.0
  %1980 = vmatprep.subr.mxu0 0.0
  %1981 = vmatpush1.msra.mxu0 0.0
  %1982 = vmatprep.subr.mxu0 0.0
  %1983 = vmatpush1.msra.mxu0 0.0
  %1984 = vmatprep.subr.mxu0 0.0
  %1985 = vmatpush1.msra.mxu0 0.0
  %1986 = vmatprep.subr.mxu0 0.0
  %1987 = vmatpush1.msra.mxu0 0.0
  %1988 = vmatprep.subr.mxu0 0.0
  %1989 = vmatpush1.msra.mxu0 0.0
  %1990 = vmatprep.subr.mxu0 0.0
  %1991 = vmatpush1.msra.mxu0 0.0
  %1992 = vmatprep.subr.mxu0 0.0
  %1993 = vmatpush1.msra.mxu0 0.0
  %1994 = vmatprep.subr.mxu0 0.0
  %1995 = vmatpush1.msra.mxu0 0.0
  %1996 = vmatprep.subr.mxu0 0.0
  %1997 = vmatpush1.msra.mxu0 0.0
  %1998 = vmatprep.subr.mxu0 0.0
  %1999 = vmatpush1.msra.mxu0 0.0
  %2000 = vmatprep.subr.mxu0 0.0
  %2001 = vmatpush1.msra.mxu0 0.0
  %2002 = vmatprep.mubr.f32.mxu0 0.0
  %2003 = vmatmul.mubr.f32.gmra.mrb[0].mxu0 %v1936
  %v2004 = vpop.f32.mrb[0].mxu0
  %v2005 = vadd.f32 %v76, %v2004
  %v2006 = vpop.f32.mrb[0].mxu0
  %2007 = vdwg.mxu0
  %v2008 = vxor.u32 %v2005, 2147483648
  %v2009 = vmul.f32 %v2008, 1.442695
  %v2010 = vpow.pop %v2009
  %v2011 = vadd.f32 %v2010, 1.0
  %v2012 = vrcp.pop %v2011
  %v2013 = vmul.f32 1.0, %v2012
  %v2014 = vtanh.pop %v2005
  %v2015 = vmul.f32 %v2013, %v1916
  %2017 = vrot.lane.b32.xlu0 %v2014, 64
  %v2018 = vpop.permute.xlu0 %2017
  %v2020 = vmul.f32 %v2013, %v2018
  %2022 = vrot.lane.b32.xlu0 %v2020, 32
  %v2023 = vpop.permute.xlu0 %2022
  %v2025 = vadd.f32 %v2015, %v2023
  %v2026 = vtanh.pop %v2025
  %2028 = vrot.lane.b32.xlu0 %v2026, 64
  %v2029 = vpop.permute.xlu0 %2028
  %v2031 = vmul.f32 %v2013, %v2029
  %vm2032 = vcmp.gt.f32.partialorder %v1920, 0.0
  %v2033 = vsel %vm2032, 1, 0
  %2034 = vset.pattern.permute.xlu0 0
  %2035 = vperm.xlu0 %2034, %v2033
  %v2036 = vpop.permute.xlu0 %2035
  %vm2037 = vcmp.eq.s32.totalorder %v2036, 1
  %v2038 = vsel %vm2037, %v2031, %v1915
  %v2039 = vsel %vm2037, %v2025, %v1916
  %s2040 = scalar_lea.vmem %s0, 128
  %v2041 = vld [vmem:[%s2040] sm:$0xff]
  %s2042 = scalar_lea.vmem %s1, 128
  %v2043 = vld [vmem:[%s2042] sm:$0xff]
  %s2044 = scalar_lea.vmem %s2, 128
  %v2045 = vld [vmem:[%s2044] sm:$0xff]
  %vm2046 = vcmp.gt.f32.partialorder %v2045, 0.0
  %v2047 = vsel %vm2046, 1, 0
  %2048 = vset.pattern.permute.xlu0 0
  %2049 = vperm.xlu0 %2048, %v2047
  %v2050 = vpop.permute.xlu0 %2049
  %vm2051 = vcmp.eq.s32.totalorder %v2050, 1
  %v2052 = vsel %vm2051, %v2038, %v1929
  %2054 = vrot.lane.b32.xlu0 %v2038, 48
  %v2055 = vpop.permute.xlu0 %2054
  %v2057 = vsel %vm70, %v2041, %v2055
  %v2059 = vsel %vm78, %v2057, 0
  %2061 = vmatprep.subr.mxu0 0.0
  %2062 = vmatpush1.msra.mxu0 %v46
  %2063 = vmatprep.subr.mxu0 0.0
  %2064 = vmatpush1.msra.mxu0 %v47
  %2065 = vmatprep.subr.mxu0 0.0
  %2066 = vmatpush1.msra.mxu0 %v48
  %2067 = vmatprep.subr.mxu0 0.0
  %2068 = vmatpush1.msra.mxu0 %v49
  %2069 = vmatprep.subr.mxu0 0.0
  %2070 = vmatpush1.msra.mxu0 %v50
  %2071 = vmatprep.subr.mxu0 0.0
  %2072 = vmatpush1.msra.mxu0 %v51
  %2073 = vmatprep.subr.mxu0 0.0
  %2074 = vmatpush1.msra.mxu0 0.0
  %2075 = vmatprep.subr.mxu0 0.0
  %2076 = vmatpush1.msra.mxu0 0.0
  %2077 = vmatprep.subr.mxu0 0.0
  %2078 = vmatpush1.msra.mxu0 0.0
  %2079 = vmatprep.subr.mxu0 0.0
  %2080 = vmatpush1.msra.mxu0 0.0
  %2081 = vmatprep.subr.mxu0 0.0
  %2082 = vmatpush1.msra.mxu0 0.0
  %2083 = vmatprep.subr.mxu0 0.0
  %2084 = vmatpush1.msra.mxu0 0.0
  %2085 = vmatprep.subr.mxu0 0.0
  %2086 = vmatpush1.msra.mxu0 0.0
  %2087 = vmatprep.subr.mxu0 0.0
  %2088 = vmatpush1.msra.mxu0 0.0
  %2089 = vmatprep.subr.mxu0 0.0
  %2090 = vmatpush1.msra.mxu0 0.0
  %2091 = vmatprep.subr.mxu0 0.0
  %2092 = vmatpush1.msra.mxu0 0.0
  %2093 = vmatprep.subr.mxu0 0.0
  %2094 = vmatpush1.msra.mxu0 0.0
  %2095 = vmatprep.subr.mxu0 0.0
  %2096 = vmatpush1.msra.mxu0 0.0
  %2097 = vmatprep.subr.mxu0 0.0
  %2098 = vmatpush1.msra.mxu0 0.0
  %2099 = vmatprep.subr.mxu0 0.0
  %2100 = vmatpush1.msra.mxu0 0.0
  %2101 = vmatprep.subr.mxu0 0.0
  %2102 = vmatpush1.msra.mxu0 0.0
  %2103 = vmatprep.subr.mxu0 0.0
  %2104 = vmatpush1.msra.mxu0 0.0
  %2105 = vmatprep.subr.mxu0 0.0
  %2106 = vmatpush1.msra.mxu0 0.0
  %2107 = vmatprep.subr.mxu0 0.0
  %2108 = vmatpush1.msra.mxu0 0.0
  %2109 = vmatprep.subr.mxu0 0.0
  %2110 = vmatpush1.msra.mxu0 0.0
  %2111 = vmatprep.subr.mxu0 0.0
  %2112 = vmatpush1.msra.mxu0 0.0
  %2113 = vmatprep.subr.mxu0 0.0
  %2114 = vmatpush1.msra.mxu0 0.0
  %2115 = vmatprep.subr.mxu0 0.0
  %2116 = vmatpush1.msra.mxu0 0.0
  %2117 = vmatprep.subr.mxu0 0.0
  %2118 = vmatpush1.msra.mxu0 0.0
  %2119 = vmatprep.subr.mxu0 0.0
  %2120 = vmatpush1.msra.mxu0 0.0
  %2121 = vmatprep.subr.mxu0 0.0
  %2122 = vmatpush1.msra.mxu0 0.0
  %2123 = vmatprep.subr.mxu0 0.0
  %2124 = vmatpush1.msra.mxu0 0.0
  %2125 = vmatprep.mubr.f32.mxu0 0.0
  %2126 = vmatmul.mubr.f32.gmra.mrb[0].mxu0 %v2059
  %v2127 = vpop.f32.mrb[0].mxu0
  %v2128 = vadd.f32 %v76, %v2127
  %v2129 = vpop.f32.mrb[0].mxu0
  %2130 = vdwg.mxu0
  %v2131 = vxor.u32 %v2128, 2147483648
  %v2132 = vmul.f32 %v2131, 1.442695
  %v2133 = vpow.pop %v2132
  %v2134 = vadd.f32 %v2133, 1.0
  %v2135 = vrcp.pop %v2134
  %v2136 = vmul.f32 1.0, %v2135
  %v2137 = vtanh.pop %v2128
  %v2138 = vmul.f32 %v2136, %v2039
  %2140 = vrot.lane.b32.xlu0 %v2137, 64
  %v2141 = vpop.permute.xlu0 %2140
  %v2143 = vmul.f32 %v2136, %v2141
  %2145 = vrot.lane.b32.xlu0 %v2143, 32
  %v2146 = vpop.permute.xlu0 %2145
  %v2148 = vadd.f32 %v2138, %v2146
  %v2149 = vtanh.pop %v2148
  %2151 = vrot.lane.b32.xlu0 %v2149, 64
  %v2152 = vpop.permute.xlu0 %2151
  %v2154 = vmul.f32 %v2136, %v2152
  %vm2155 = vcmp.gt.f32.partialorder %v2043, 0.0
  %v2156 = vsel %vm2155, 1, 0
  %2157 = vset.pattern.permute.xlu0 0
  %2158 = vperm.xlu0 %2157, %v2156
  %v2159 = vpop.permute.xlu0 %2158
  %vm2160 = vcmp.eq.s32.totalorder %v2159, 1
  %v2161 = vsel %vm2160, %v2154, %v2038
  %v2162 = vsel %vm2160, %v2148, %v2039
  %s2163 = scalar_lea.vmem %s0, 136
  %v2164 = vld [vmem:[%s2163] sm:$0xff]
  %s2165 = scalar_lea.vmem %s1, 136
  %v2166 = vld [vmem:[%s2165] sm:$0xff]
  %s2167 = scalar_lea.vmem %s2, 136
  %v2168 = vld [vmem:[%s2167] sm:$0xff]
  %vm2169 = vcmp.gt.f32.partialorder %v2168, 0.0
  %v2170 = vsel %vm2169, 1, 0
  %2171 = vset.pattern.permute.xlu0 0
  %2172 = vperm.xlu0 %2171, %v2170
  %v2173 = vpop.permute.xlu0 %2172
  %vm2174 = vcmp.eq.s32.totalorder %v2173, 1
  %v2175 = vsel %vm2174, %v2161, %v2052
  %2177 = vrot.lane.b32.xlu0 %v2161, 48
  %v2178 = vpop.permute.xlu0 %2177
  %v2180 = vsel %vm70, %v2164, %v2178
  %v2182 = vsel %vm78, %v2180, 0
  %2184 = vmatprep.subr.mxu0 0.0
  %2185 = vmatpush1.msra.mxu0 %v46
  %2186 = vmatprep.subr.mxu0 0.0
  %2187 = vmatpush1.msra.mxu0 %v47
  %2188 = vmatprep.subr.mxu0 0.0
  %2189 = vmatpush1.msra.mxu0 %v48
  %2190 = vmatprep.subr.mxu0 0.0
  %2191 = vmatpush1.msra.mxu0 %v49
  %2192 = vmatprep.subr.mxu0 0.0
  %2193 = vmatpush1.msra.mxu0 %v50
  %2194 = vmatprep.subr.mxu0 0.0
  %2195 = vmatpush1.msra.mxu0 %v51
  %2196 = vmatprep.subr.mxu0 0.0
  %2197 = vmatpush1.msra.mxu0 0.0
  %2198 = vmatprep.subr.mxu0 0.0
  %2199 = vmatpush1.msra.mxu0 0.0
  %2200 = vmatprep.subr.mxu0 0.0
  %2201 = vmatpush1.msra.mxu0 0.0
  %2202 = vmatprep.subr.mxu0 0.0
  %2203 = vmatpush1.msra.mxu0 0.0
  %2204 = vmatprep.subr.mxu0 0.0
  %2205 = vmatpush1.msra.mxu0 0.0
  %2206 = vmatprep.subr.mxu0 0.0
  %2207 = vmatpush1.msra.mxu0 0.0
  %2208 = vmatprep.subr.mxu0 0.0
  %2209 = vmatpush1.msra.mxu0 0.0
  %2210 = vmatprep.subr.mxu0 0.0
  %2211 = vmatpush1.msra.mxu0 0.0
  %2212 = vmatprep.subr.mxu0 0.0
  %2213 = vmatpush1.msra.mxu0 0.0
  %2214 = vmatprep.subr.mxu0 0.0
  %2215 = vmatpush1.msra.mxu0 0.0
  %2216 = vmatprep.subr.mxu0 0.0
  %2217 = vmatpush1.msra.mxu0 0.0
  %2218 = vmatprep.subr.mxu0 0.0
  %2219 = vmatpush1.msra.mxu0 0.0
  %2220 = vmatprep.subr.mxu0 0.0
  %2221 = vmatpush1.msra.mxu0 0.0
  %2222 = vmatprep.subr.mxu0 0.0
  %2223 = vmatpush1.msra.mxu0 0.0
  %2224 = vmatprep.subr.mxu0 0.0
  %2225 = vmatpush1.msra.mxu0 0.0
  %2226 = vmatprep.subr.mxu0 0.0
  %2227 = vmatpush1.msra.mxu0 0.0
  %2228 = vmatprep.subr.mxu0 0.0
  %2229 = vmatpush1.msra.mxu0 0.0
  %2230 = vmatprep.subr.mxu0 0.0
  %2231 = vmatpush1.msra.mxu0 0.0
  %2232 = vmatprep.subr.mxu0 0.0
  %2233 = vmatpush1.msra.mxu0 0.0
  %2234 = vmatprep.subr.mxu0 0.0
  %2235 = vmatpush1.msra.mxu0 0.0
  %2236 = vmatprep.subr.mxu0 0.0
  %2237 = vmatpush1.msra.mxu0 0.0
  %2238 = vmatprep.subr.mxu0 0.0
  %2239 = vmatpush1.msra.mxu0 0.0
  %2240 = vmatprep.subr.mxu0 0.0
  %2241 = vmatpush1.msra.mxu0 0.0
  %2242 = vmatprep.subr.mxu0 0.0
  %2243 = vmatpush1.msra.mxu0 0.0
  %2244 = vmatprep.subr.mxu0 0.0
  %2245 = vmatpush1.msra.mxu0 0.0
  %2246 = vmatprep.subr.mxu0 0.0
  %2247 = vmatpush1.msra.mxu0 0.0
  %2248 = vmatprep.mubr.f32.mxu0 0.0
  %2249 = vmatmul.mubr.f32.gmra.mrb[0].mxu0 %v2182
  %v2250 = vpop.f32.mrb[0].mxu0
  %v2251 = vadd.f32 %v76, %v2250
  %v2252 = vpop.f32.mrb[0].mxu0
  %2253 = vdwg.mxu0
  %v2254 = vxor.u32 %v2251, 2147483648
  %v2255 = vmul.f32 %v2254, 1.442695
  %v2256 = vpow.pop %v2255
  %v2257 = vadd.f32 %v2256, 1.0
  %v2258 = vrcp.pop %v2257
  %v2259 = vmul.f32 1.0, %v2258
  %v2260 = vtanh.pop %v2251
  %v2261 = vmul.f32 %v2259, %v2162
  %2263 = vrot.lane.b32.xlu0 %v2260, 64
  %v2264 = vpop.permute.xlu0 %2263
  %v2266 = vmul.f32 %v2259, %v2264
  %2268 = vrot.lane.b32.xlu0 %v2266, 32
  %v2269 = vpop.permute.xlu0 %2268
  %v2271 = vadd.f32 %v2261, %v2269
  %v2272 = vtanh.pop %v2271
  %2274 = vrot.lane.b32.xlu0 %v2272, 64
  %v2275 = vpop.permute.xlu0 %2274
  %v2277 = vmul.f32 %v2259, %v2275
  %vm2278 = vcmp.gt.f32.partialorder %v2166, 0.0
  %v2279 = vsel %vm2278, 1, 0
  %2280 = vset.pattern.permute.xlu0 0
  %2281 = vperm.xlu0 %2280, %v2279
  %v2282 = vpop.permute.xlu0 %2281
  %vm2283 = vcmp.eq.s32.totalorder %v2282, 1
  %v2284 = vsel %vm2283, %v2277, %v2161
  %v2285 = vsel %vm2283, %v2271, %v2162
  %s2286 = scalar_lea.vmem %s0, 144
  %v2287 = vld [vmem:[%s2286] sm:$0xff]
  %s2288 = scalar_lea.vmem %s1, 144
  %v2289 = vld [vmem:[%s2288] sm:$0xff]
  %s2290 = scalar_lea.vmem %s2, 144
  %v2291 = vld [vmem:[%s2290] sm:$0xff]
  %vm2292 = vcmp.gt.f32.partialorder %v2291, 0.0
  %v2293 = vsel %vm2292, 1, 0
  %2294 = vset.pattern.permute.xlu0 0
  %2295 = vperm.xlu0 %2294, %v2293
  %v2296 = vpop.permute.xlu0 %2295
  %vm2297 = vcmp.eq.s32.totalorder %v2296, 1
  %v2298 = vsel %vm2297, %v2284, %v2175
  %2300 = vrot.lane.b32.xlu0 %v2284, 48
  %v2301 = vpop.permute.xlu0 %2300
  %v2303 = vsel %vm70, %v2287, %v2301
  %v2305 = vsel %vm78, %v2303, 0
  %2307 = vmatprep.subr.mxu0 0.0
  %2308 = vmatpush1.msra.mxu0 %v46
  %2309 = vmatprep.subr.mxu0 0.0
  %2310 = vmatpush1.msra.mxu0 %v47
  %2311 = vmatprep.subr.mxu0 0.0
  %2312 = vmatpush1.msra.mxu0 %v48
  %2313 = vmatprep.subr.mxu0 0.0
  %2314 = vmatpush1.msra.mxu0 %v49
  %2315 = vmatprep.subr.mxu0 0.0
  %2316 = vmatpush1.msra.mxu0 %v50
  %2317 = vmatprep.subr.mxu0 0.0
  %2318 = vmatpush1.msra.mxu0 %v51
  %2319 = vmatprep.subr.mxu0 0.0
  %2320 = vmatpush1.msra.mxu0 0.0
  %2321 = vmatprep.subr.mxu0 0.0
  %2322 = vmatpush1.msra.mxu0 0.0
  %2323 = vmatprep.subr.mxu0 0.0
  %2324 = vmatpush1.msra.mxu0 0.0
  %2325 = vmatprep.subr.mxu0 0.0
  %2326 = vmatpush1.msra.mxu0 0.0
  %2327 = vmatprep.subr.mxu0 0.0
  %2328 = vmatpush1.msra.mxu0 0.0
  %2329 = vmatprep.subr.mxu0 0.0
  %2330 = vmatpush1.msra.mxu0 0.0
  %2331 = vmatprep.subr.mxu0 0.0
  %2332 = vmatpush1.msra.mxu0 0.0
  %2333 = vmatprep.subr.mxu0 0.0
  %2334 = vmatpush1.msra.mxu0 0.0
  %2335 = vmatprep.subr.mxu0 0.0
  %2336 = vmatpush1.msra.mxu0 0.0
  %2337 = vmatprep.subr.mxu0 0.0
  %2338 = vmatpush1.msra.mxu0 0.0
  %2339 = vmatprep.subr.mxu0 0.0
  %2340 = vmatpush1.msra.mxu0 0.0
  %2341 = vmatprep.subr.mxu0 0.0
  %2342 = vmatpush1.msra.mxu0 0.0
  %2343 = vmatprep.subr.mxu0 0.0
  %2344 = vmatpush1.msra.mxu0 0.0
  %2345 = vmatprep.subr.mxu0 0.0
  %2346 = vmatpush1.msra.mxu0 0.0
  %2347 = vmatprep.subr.mxu0 0.0
  %2348 = vmatpush1.msra.mxu0 0.0
  %2349 = vmatprep.subr.mxu0 0.0
  %2350 = vmatpush1.msra.mxu0 0.0
  %2351 = vmatprep.subr.mxu0 0.0
  %2352 = vmatpush1.msra.mxu0 0.0
  %2353 = vmatprep.subr.mxu0 0.0
  %2354 = vmatpush1.msra.mxu0 0.0
  %2355 = vmatprep.subr.mxu0 0.0
  %2356 = vmatpush1.msra.mxu0 0.0
  %2357 = vmatprep.subr.mxu0 0.0
  %2358 = vmatpush1.msra.mxu0 0.0
  %2359 = vmatprep.subr.mxu0 0.0
  %2360 = vmatpush1.msra.mxu0 0.0
  %2361 = vmatprep.subr.mxu0 0.0
  %2362 = vmatpush1.msra.mxu0 0.0
  %2363 = vmatprep.subr.mxu0 0.0
  %2364 = vmatpush1.msra.mxu0 0.0
  %2365 = vmatprep.subr.mxu0 0.0
  %2366 = vmatpush1.msra.mxu0 0.0
  %2367 = vmatprep.subr.mxu0 0.0
  %2368 = vmatpush1.msra.mxu0 0.0
  %2369 = vmatprep.subr.mxu0 0.0
  %2370 = vmatpush1.msra.mxu0 0.0
  %2371 = vmatprep.mubr.f32.mxu0 0.0
  %2372 = vmatmul.mubr.f32.gmra.mrb[0].mxu0 %v2305
  %v2373 = vpop.f32.mrb[0].mxu0
  %v2374 = vadd.f32 %v76, %v2373
  %v2375 = vpop.f32.mrb[0].mxu0
  %2376 = vdwg.mxu0
  %v2377 = vxor.u32 %v2374, 2147483648
  %v2378 = vmul.f32 %v2377, 1.442695
  %v2379 = vpow.pop %v2378
  %v2380 = vadd.f32 %v2379, 1.0
  %v2381 = vrcp.pop %v2380
  %v2382 = vmul.f32 1.0, %v2381
  %v2383 = vtanh.pop %v2374
  %v2384 = vmul.f32 %v2382, %v2285
  %2386 = vrot.lane.b32.xlu0 %v2383, 64
  %v2387 = vpop.permute.xlu0 %2386
  %v2389 = vmul.f32 %v2382, %v2387
  %2391 = vrot.lane.b32.xlu0 %v2389, 32
  %v2392 = vpop.permute.xlu0 %2391
  %v2394 = vadd.f32 %v2384, %v2392
  %v2395 = vtanh.pop %v2394
  %2397 = vrot.lane.b32.xlu0 %v2395, 64
  %v2398 = vpop.permute.xlu0 %2397
  %v2400 = vmul.f32 %v2382, %v2398
  %vm2401 = vcmp.gt.f32.partialorder %v2289, 0.0
  %v2402 = vsel %vm2401, 1, 0
  %2403 = vset.pattern.permute.xlu0 0
  %2404 = vperm.xlu0 %2403, %v2402
  %v2405 = vpop.permute.xlu0 %2404
  %vm2406 = vcmp.eq.s32.totalorder %v2405, 1
  %v2407 = vsel %vm2406, %v2400, %v2284
  %v2408 = vsel %vm2406, %v2394, %v2285
  %s2409 = scalar_lea.vmem %s0, 152
  %v2410 = vld [vmem:[%s2409] sm:$0xff]
  %s2411 = scalar_lea.vmem %s1, 152
  %v2412 = vld [vmem:[%s2411] sm:$0xff]
  %s2413 = scalar_lea.vmem %s2, 152
  %v2414 = vld [vmem:[%s2413] sm:$0xff]
  %vm2415 = vcmp.gt.f32.partialorder %v2414, 0.0
  %v2416 = vsel %vm2415, 1, 0
  %2417 = vset.pattern.permute.xlu0 0
  %2418 = vperm.xlu0 %2417, %v2416
  %v2419 = vpop.permute.xlu0 %2418
  %vm2420 = vcmp.eq.s32.totalorder %v2419, 1
  %v2421 = vsel %vm2420, %v2407, %v2298
  %2423 = vrot.lane.b32.xlu0 %v2407, 48
  %v2424 = vpop.permute.xlu0 %2423
  %v2426 = vsel %vm70, %v2410, %v2424
  %v2428 = vsel %vm78, %v2426, 0
  %2430 = vmatprep.subr.mxu0 0.0
  %2431 = vmatpush1.msra.mxu0 %v46
  %2432 = vmatprep.subr.mxu0 0.0
  %2433 = vmatpush1.msra.mxu0 %v47
  %2434 = vmatprep.subr.mxu0 0.0
  %2435 = vmatpush1.msra.mxu0 %v48
  %2436 = vmatprep.subr.mxu0 0.0
  %2437 = vmatpush1.msra.mxu0 %v49
  %2438 = vmatprep.subr.mxu0 0.0
  %2439 = vmatpush1.msra.mxu0 %v50
  %2440 = vmatprep.subr.mxu0 0.0
  %2441 = vmatpush1.msra.mxu0 %v51
  %2442 = vmatprep.subr.mxu0 0.0
  %2443 = vmatpush1.msra.mxu0 0.0
  %2444 = vmatprep.subr.mxu0 0.0
  %2445 = vmatpush1.msra.mxu0 0.0
  %2446 = vmatprep.subr.mxu0 0.0
  %2447 = vmatpush1.msra.mxu0 0.0
  %2448 = vmatprep.subr.mxu0 0.0
  %2449 = vmatpush1.msra.mxu0 0.0
  %2450 = vmatprep.subr.mxu0 0.0
  %2451 = vmatpush1.msra.mxu0 0.0
  %2452 = vmatprep.subr.mxu0 0.0
  %2453 = vmatpush1.msra.mxu0 0.0
  %2454 = vmatprep.subr.mxu0 0.0
  %2455 = vmatpush1.msra.mxu0 0.0
  %2456 = vmatprep.subr.mxu0 0.0
  %2457 = vmatpush1.msra.mxu0 0.0
  %2458 = vmatprep.subr.mxu0 0.0
  %2459 = vmatpush1.msra.mxu0 0.0
  %2460 = vmatprep.subr.mxu0 0.0
  %2461 = vmatpush1.msra.mxu0 0.0
  %2462 = vmatprep.subr.mxu0 0.0
  %2463 = vmatpush1.msra.mxu0 0.0
  %2464 = vmatprep.subr.mxu0 0.0
  %2465 = vmatpush1.msra.mxu0 0.0
  %2466 = vmatprep.subr.mxu0 0.0
  %2467 = vmatpush1.msra.mxu0 0.0
  %2468 = vmatprep.subr.mxu0 0.0
  %2469 = vmatpush1.msra.mxu0 0.0
  %2470 = vmatprep.subr.mxu0 0.0
  %2471 = vmatpush1.msra.mxu0 0.0
  %2472 = vmatprep.subr.mxu0 0.0
  %2473 = vmatpush1.msra.mxu0 0.0
  %2474 = vmatprep.subr.mxu0 0.0
  %2475 = vmatpush1.msra.mxu0 0.0
  %2476 = vmatprep.subr.mxu0 0.0
  %2477 = vmatpush1.msra.mxu0 0.0
  %2478 = vmatprep.subr.mxu0 0.0
  %2479 = vmatpush1.msra.mxu0 0.0
  %2480 = vmatprep.subr.mxu0 0.0
  %2481 = vmatpush1.msra.mxu0 0.0
  %2482 = vmatprep.subr.mxu0 0.0
  %2483 = vmatpush1.msra.mxu0 0.0
  %2484 = vmatprep.subr.mxu0 0.0
  %2485 = vmatpush1.msra.mxu0 0.0
  %2486 = vmatprep.subr.mxu0 0.0
  %2487 = vmatpush1.msra.mxu0 0.0
  %2488 = vmatprep.subr.mxu0 0.0
  %2489 = vmatpush1.msra.mxu0 0.0
  %2490 = vmatprep.subr.mxu0 0.0
  %2491 = vmatpush1.msra.mxu0 0.0
  %2492 = vmatprep.subr.mxu0 0.0
  %2493 = vmatpush1.msra.mxu0 0.0
  %2494 = vmatprep.mubr.f32.mxu0 0.0
  %2495 = vmatmul.mubr.f32.gmra.mrb[0].mxu0 %v2428
  %v2496 = vpop.f32.mrb[0].mxu0
  %v2497 = vadd.f32 %v76, %v2496
  %v2498 = vpop.f32.mrb[0].mxu0
  %2499 = vdwg.mxu0
  %v2500 = vxor.u32 %v2497, 2147483648
  %v2501 = vmul.f32 %v2500, 1.442695
  %v2502 = vpow.pop %v2501
  %v2503 = vadd.f32 %v2502, 1.0
  %v2504 = vrcp.pop %v2503
  %v2505 = vmul.f32 1.0, %v2504
  %v2506 = vtanh.pop %v2497
  %v2507 = vmul.f32 %v2505, %v2408
  %2509 = vrot.lane.b32.xlu0 %v2506, 64
  %v2510 = vpop.permute.xlu0 %2509
  %v2512 = vmul.f32 %v2505, %v2510
  %2514 = vrot.lane.b32.xlu0 %v2512, 32
  %v2515 = vpop.permute.xlu0 %2514
  %v2517 = vadd.f32 %v2507, %v2515
  %v2518 = vtanh.pop %v2517
  %2520 = vrot.lane.b32.xlu0 %v2518, 64
  %v2521 = vpop.permute.xlu0 %2520
  %v2523 = vmul.f32 %v2505, %v2521
  %vm2524 = vcmp.gt.f32.partialorder %v2412, 0.0
  %v2525 = vsel %vm2524, 1, 0
  %2526 = vset.pattern.permute.xlu0 0
  %2527 = vperm.xlu0 %2526, %v2525
  %v2528 = vpop.permute.xlu0 %2527
  %vm2529 = vcmp.eq.s32.totalorder %v2528, 1
  %v2530 = vsel %vm2529, %v2523, %v2407
  %v2531 = vsel %vm2529, %v2517, %v2408
  %s2532 = scalar_lea.vmem %s0, 160
  %v2533 = vld [vmem:[%s2532] sm:$0xff]
  %s2534 = scalar_lea.vmem %s1, 160
  %v2535 = vld [vmem:[%s2534] sm:$0xff]
  %s2536 = scalar_lea.vmem %s2, 160
  %v2537 = vld [vmem:[%s2536] sm:$0xff]
  %vm2538 = vcmp.gt.f32.partialorder %v2537, 0.0
  %v2539 = vsel %vm2538, 1, 0
  %2540 = vset.pattern.permute.xlu0 0
  %2541 = vperm.xlu0 %2540, %v2539
  %v2542 = vpop.permute.xlu0 %2541
  %vm2543 = vcmp.eq.s32.totalorder %v2542, 1
  %v2544 = vsel %vm2543, %v2530, %v2421
  %2546 = vrot.lane.b32.xlu0 %v2530, 48
  %v2547 = vpop.permute.xlu0 %2546
  %v2549 = vsel %vm70, %v2533, %v2547
  %v2551 = vsel %vm78, %v2549, 0
  %2553 = vmatprep.subr.mxu0 0.0
  %2554 = vmatpush1.msra.mxu0 %v46
  %2555 = vmatprep.subr.mxu0 0.0
  %2556 = vmatpush1.msra.mxu0 %v47
  %2557 = vmatprep.subr.mxu0 0.0
  %2558 = vmatpush1.msra.mxu0 %v48
  %2559 = vmatprep.subr.mxu0 0.0
  %2560 = vmatpush1.msra.mxu0 %v49
  %2561 = vmatprep.subr.mxu0 0.0
  %2562 = vmatpush1.msra.mxu0 %v50
  %2563 = vmatprep.subr.mxu0 0.0
  %2564 = vmatpush1.msra.mxu0 %v51
  %2565 = vmatprep.subr.mxu0 0.0
  %2566 = vmatpush1.msra.mxu0 0.0
  %2567 = vmatprep.subr.mxu0 0.0
  %2568 = vmatpush1.msra.mxu0 0.0
  %2569 = vmatprep.subr.mxu0 0.0
  %2570 = vmatpush1.msra.mxu0 0.0
  %2571 = vmatprep.subr.mxu0 0.0
  %2572 = vmatpush1.msra.mxu0 0.0
  %2573 = vmatprep.subr.mxu0 0.0
  %2574 = vmatpush1.msra.mxu0 0.0
  %2575 = vmatprep.subr.mxu0 0.0
  %2576 = vmatpush1.msra.mxu0 0.0
  %2577 = vmatprep.subr.mxu0 0.0
  %2578 = vmatpush1.msra.mxu0 0.0
  %2579 = vmatprep.subr.mxu0 0.0
  %2580 = vmatpush1.msra.mxu0 0.0
  %2581 = vmatprep.subr.mxu0 0.0
  %2582 = vmatpush1.msra.mxu0 0.0
  %2583 = vmatprep.subr.mxu0 0.0
  %2584 = vmatpush1.msra.mxu0 0.0
  %2585 = vmatprep.subr.mxu0 0.0
  %2586 = vmatpush1.msra.mxu0 0.0
  %2587 = vmatprep.subr.mxu0 0.0
  %2588 = vmatpush1.msra.mxu0 0.0
  %2589 = vmatprep.subr.mxu0 0.0
  %2590 = vmatpush1.msra.mxu0 0.0
  %2591 = vmatprep.subr.mxu0 0.0
  %2592 = vmatpush1.msra.mxu0 0.0
  %2593 = vmatprep.subr.mxu0 0.0
  %2594 = vmatpush1.msra.mxu0 0.0
  %2595 = vmatprep.subr.mxu0 0.0
  %2596 = vmatpush1.msra.mxu0 0.0
  %2597 = vmatprep.subr.mxu0 0.0
  %2598 = vmatpush1.msra.mxu0 0.0
  %2599 = vmatprep.subr.mxu0 0.0
  %2600 = vmatpush1.msra.mxu0 0.0
  %2601 = vmatprep.subr.mxu0 0.0
  %2602 = vmatpush1.msra.mxu0 0.0
  %2603 = vmatprep.subr.mxu0 0.0
  %2604 = vmatpush1.msra.mxu0 0.0
  %2605 = vmatprep.subr.mxu0 0.0
  %2606 = vmatpush1.msra.mxu0 0.0
  %2607 = vmatprep.subr.mxu0 0.0
  %2608 = vmatpush1.msra.mxu0 0.0
  %2609 = vmatprep.subr.mxu0 0.0
  %2610 = vmatpush1.msra.mxu0 0.0
  %2611 = vmatprep.subr.mxu0 0.0
  %2612 = vmatpush1.msra.mxu0 0.0
  %2613 = vmatprep.subr.mxu0 0.0
  %2614 = vmatpush1.msra.mxu0 0.0
  %2615 = vmatprep.subr.mxu0 0.0
  %2616 = vmatpush1.msra.mxu0 0.0
  %2617 = vmatprep.mubr.f32.mxu0 0.0
  %2618 = vmatmul.mubr.f32.gmra.mrb[0].mxu0 %v2551
  %v2619 = vpop.f32.mrb[0].mxu0
  %v2620 = vadd.f32 %v76, %v2619
  %v2621 = vpop.f32.mrb[0].mxu0
  %2622 = vdwg.mxu0
  %v2623 = vxor.u32 %v2620, 2147483648
  %v2624 = vmul.f32 %v2623, 1.442695
  %v2625 = vpow.pop %v2624
  %v2626 = vadd.f32 %v2625, 1.0
  %v2627 = vrcp.pop %v2626
  %v2628 = vmul.f32 1.0, %v2627
  %v2629 = vtanh.pop %v2620
  %v2630 = vmul.f32 %v2628, %v2531
  %2632 = vrot.lane.b32.xlu0 %v2629, 64
  %v2633 = vpop.permute.xlu0 %2632
  %v2635 = vmul.f32 %v2628, %v2633
  %2637 = vrot.lane.b32.xlu0 %v2635, 32
  %v2638 = vpop.permute.xlu0 %2637
  %v2640 = vadd.f32 %v2630, %v2638
  %v2641 = vtanh.pop %v2640
  %2643 = vrot.lane.b32.xlu0 %v2641, 64
  %v2644 = vpop.permute.xlu0 %2643
  %v2646 = vmul.f32 %v2628, %v2644
  %vm2647 = vcmp.gt.f32.partialorder %v2535, 0.0
  %v2648 = vsel %vm2647, 1, 0
  %2649 = vset.pattern.permute.xlu0 0
  %2650 = vperm.xlu0 %2649, %v2648
  %v2651 = vpop.permute.xlu0 %2650
  %vm2652 = vcmp.eq.s32.totalorder %v2651, 1
  %v2653 = vsel %vm2652, %v2646, %v2530
  %v2654 = vsel %vm2652, %v2640, %v2531
  %2656 = vrot.lane.b32.xlu0 %v2653, 32
  %v2657 = vpop.permute.xlu0 %2656
  %vm2659 = vcmask 261120
  %2660 = vst.msk [vmem:[%s12] sm:$0xff] %vm2659, %v2657
  %2662 = vrot.lane.b32.xlu0 %v2654, 96
  %v2663 = vpop.permute.xlu0 %2662
  %2665 = vst.msk [vmem:[%s13] sm:$0xff] %vm2659, %v2663
  %2667 = vrot.lane.b32.xlu0 %v2544, 32
  %v2668 = vpop.permute.xlu0 %2667
  %2670 = vst.msk [vmem:[%s14] sm:$0xff] %vm2659, %v2668
  %v2671 = vld [vmem:[%s8] sm:$0xff]
  %v2672 = vld [vmem:[%s8 + $0x8] sm:$0xff]
  %v2673 = vld [vmem:[%s8 + $0x10] sm:$0xff]
  %v2674 = vld [vmem:[%s8 + $0x18] sm:$0xff]
  %v2675 = vld [vmem:[%s9] sm:$0x1]
  %v2677 = vlaneseq
  %v2678 = vshrl.u32 %v2677, 7
  %v2679 = vsub.s32 0, %v2678
  %v2680 = vrot.slane %v2675, %v2679
  %v2682 = vsel %vm2659, %v2657, 0
  %2684 = vmatprep.subr.mxu0 0.0
  %2685 = vmatpush1.msra.mxu0 %v2671
  %2686 = vmatprep.subr.mxu0 0.0
  %2687 = vmatpush1.msra.mxu0 %v2672
  %2688 = vmatprep.subr.mxu0 0.0
  %2689 = vmatpush1.msra.mxu0 %v2673
  %2690 = vmatprep.subr.mxu0 0.0
  %2691 = vmatpush1.msra.mxu0 %v2674
  %2692 = vmatprep.subr.mxu0 0.0
  %2693 = vmatpush1.msra.mxu0 0.0
  %2694 = vmatprep.subr.mxu0 0.0
  %2695 = vmatpush1.msra.mxu0 0.0
  %2696 = vmatprep.subr.mxu0 0.0
  %2697 = vmatpush1.msra.mxu0 0.0
  %2698 = vmatprep.subr.mxu0 0.0
  %2699 = vmatpush1.msra.mxu0 0.0
  %2700 = vmatprep.subr.mxu0 0.0
  %2701 = vmatpush1.msra.mxu0 0.0
  %2702 = vmatprep.subr.mxu0 0.0
  %2703 = vmatpush1.msra.mxu0 0.0
  %2704 = vmatprep.subr.mxu0 0.0
  %2705 = vmatpush1.msra.mxu0 0.0
  %2706 = vmatprep.subr.mxu0 0.0
  %2707 = vmatpush1.msra.mxu0 0.0
  %2708 = vmatprep.subr.mxu0 0.0
  %2709 = vmatpush1.msra.mxu0 0.0
  %2710 = vmatprep.subr.mxu0 0.0
  %2711 = vmatpush1.msra.mxu0 0.0
  %2712 = vmatprep.subr.mxu0 0.0
  %2713 = vmatpush1.msra.mxu0 0.0
  %2714 = vmatprep.subr.mxu0 0.0
  %2715 = vmatpush1.msra.mxu0 0.0
  %2716 = vmatprep.subr.mxu0 0.0
  %2717 = vmatpush1.msra.mxu0 0.0
  %2718 = vmatprep.subr.mxu0 0.0
  %2719 = vmatpush1.msra.mxu0 0.0
  %2720 = vmatprep.subr.mxu0 0.0
  %2721 = vmatpush1.msra.mxu0 0.0
  %2722 = vmatprep.subr.mxu0 0.0
  %2723 = vmatpush1.msra.mxu0 0.0
  %2724 = vmatprep.subr.mxu0 0.0
  %2725 = vmatpush1.msra.mxu0 0.0
  %2726 = vmatprep.subr.mxu0 0.0
  %2727 = vmatpush1.msra.mxu0 0.0
  %2728 = vmatprep.subr.mxu0 0.0
  %2729 = vmatpush1.msra.mxu0 0.0
  %2730 = vmatprep.subr.mxu0 0.0
  %2731 = vmatpush1.msra.mxu0 0.0
  %2732 = vmatprep.subr.mxu0 0.0
  %2733 = vmatpush1.msra.mxu0 0.0
  %2734 = vmatprep.subr.mxu0 0.0
  %2735 = vmatpush1.msra.mxu0 0.0
  %2736 = vmatprep.subr.mxu0 0.0
  %2737 = vmatpush1.msra.mxu0 0.0
  %2738 = vmatprep.subr.mxu0 0.0
  %2739 = vmatpush1.msra.mxu0 0.0
  %2740 = vmatprep.subr.mxu0 0.0
  %2741 = vmatpush1.msra.mxu0 0.0
  %2742 = vmatprep.subr.mxu0 0.0
  %2743 = vmatpush1.msra.mxu0 0.0
  %2744 = vmatprep.subr.mxu0 0.0
  %2745 = vmatpush1.msra.mxu0 0.0
  %2746 = vmatprep.subr.mxu0 0.0
  %2747 = vmatpush1.msra.mxu0 0.0
  %2748 = vmatprep.mubr.f32.mxu0 0.0
  %2749 = vmatmul.mubr.f32.gmra.mrb[0].mxu0 %v2682
  %v2750 = vpop.f32.mrb[0].mxu0
  %v2751 = vadd.f32 %v2680, %v2750
  %v2752 = vpop.f32.mrb[0].mxu0
  %2753 = vdwg.mxu0
  %2754 = vmax.xlane.f32.xlu0 %v2751
  %v2755 = vpop.xlane.xlu0 %2754
  %v2756 = vsub.f32 %v2751, %v2755
  %v2757 = vmul.f32 %v2756, 1.442695
  %v2758 = vpow.pop %v2757
  %2759 = vadd.xlane.f32.xlu0 %v2758
  %v2760 = vpop.xlane.xlu0 %2759
  %v2761 = vlog2.pop %v2760
  %v2762 = vmul.f32 %v2761, 0.6931472
  %v2763 = vsub.f32 %v2756, %v2762
  %2764 = vst [vmem:[%s15] sm:$0xff] %v2763
  %v2765 = vld [vmem:[%s10] sm:$0xff]
  %v2766 = vld [vmem:[%s10 + $0x8] sm:$0xff]
  %v2767 = vld [vmem:[%s10 + $0x10] sm:$0xff]
  %v2768 = vld [vmem:[%s10 + $0x18] sm:$0xff]
  %v2769 = vld [vmem:[%s11] sm:$0x1]
  %v2771 = vlaneseq
  %v2772 = vshrl.u32 %v2771, 7
  %v2773 = vsub.s32 0, %v2772
  %v2774 = vrot.slane %v2769, %v2773
  %2776 = vmatprep.subr.mxu0 0.0
  %2777 = vmatpush1.msra.mxu0 %v2765
  %2778 = vmatprep.subr.mxu0 0.0
  %2779 = vmatpush1.msra.mxu0 %v2766
  %2780 = vmatprep.subr.mxu0 0.0
  %2781 = vmatpush1.msra.mxu0 %v2767
  %2782 = vmatprep.subr.mxu0 0.0
  %2783 = vmatpush1.msra.mxu0 %v2768
  %2784 = vmatprep.subr.mxu0 0.0
  %2785 = vmatpush1.msra.mxu0 0.0
  %2786 = vmatprep.subr.mxu0 0.0
  %2787 = vmatpush1.msra.mxu0 0.0
  %2788 = vmatprep.subr.mxu0 0.0
  %2789 = vmatpush1.msra.mxu0 0.0
  %2790 = vmatprep.subr.mxu0 0.0
  %2791 = vmatpush1.msra.mxu0 0.0
  %2792 = vmatprep.subr.mxu0 0.0
  %2793 = vmatpush1.msra.mxu0 0.0
  %2794 = vmatprep.subr.mxu0 0.0
  %2795 = vmatpush1.msra.mxu0 0.0
  %2796 = vmatprep.subr.mxu0 0.0
  %2797 = vmatpush1.msra.mxu0 0.0
  %2798 = vmatprep.subr.mxu0 0.0
  %2799 = vmatpush1.msra.mxu0 0.0
  %2800 = vmatprep.subr.mxu0 0.0
  %2801 = vmatpush1.msra.mxu0 0.0
  %2802 = vmatprep.subr.mxu0 0.0
  %2803 = vmatpush1.msra.mxu0 0.0
  %2804 = vmatprep.subr.mxu0 0.0
  %2805 = vmatpush1.msra.mxu0 0.0
  %2806 = vmatprep.subr.mxu0 0.0
  %2807 = vmatpush1.msra.mxu0 0.0
  %2808 = vmatprep.subr.mxu0 0.0
  %2809 = vmatpush1.msra.mxu0 0.0
  %2810 = vmatprep.subr.mxu0 0.0
  %2811 = vmatpush1.msra.mxu0 0.0
  %2812 = vmatprep.subr.mxu0 0.0
  %2813 = vmatpush1.msra.mxu0 0.0
  %2814 = vmatprep.subr.mxu0 0.0
  %2815 = vmatpush1.msra.mxu0 0.0
  %2816 = vmatprep.subr.mxu0 0.0
  %2817 = vmatpush1.msra.mxu0 0.0
  %2818 = vmatprep.subr.mxu0 0.0
  %2819 = vmatpush1.msra.mxu0 0.0
  %2820 = vmatprep.subr.mxu0 0.0
  %2821 = vmatpush1.msra.mxu0 0.0
  %2822 = vmatprep.subr.mxu0 0.0
  %2823 = vmatpush1.msra.mxu0 0.0
  %2824 = vmatprep.subr.mxu0 0.0
  %2825 = vmatpush1.msra.mxu0 0.0
  %2826 = vmatprep.subr.mxu0 0.0
  %2827 = vmatpush1.msra.mxu0 0.0
  %2828 = vmatprep.subr.mxu0 0.0
  %2829 = vmatpush1.msra.mxu0 0.0
  %2830 = vmatprep.subr.mxu0 0.0
  %2831 = vmatpush1.msra.mxu0 0.0
  %2832 = vmatprep.subr.mxu0 0.0
  %2833 = vmatpush1.msra.mxu0 0.0
  %2834 = vmatprep.subr.mxu0 0.0
  %2835 = vmatpush1.msra.mxu0 0.0
  %2836 = vmatprep.subr.mxu0 0.0
  %2837 = vmatpush1.msra.mxu0 0.0
  %2838 = vmatprep.subr.mxu0 0.0
  %2839 = vmatpush1.msra.mxu0 0.0
  %2840 = vmatprep.mubr.f32.mxu0 0.0
  %2841 = vmatmul.mubr.f32.gmra.mrb[0].mxu0 %v2682
  %v2842 = vpop.f32.mrb[0].mxu0
  %v2843 = vadd.f32 %v2774, %v2842
  %v2844 = vpop.f32.mrb[0].mxu0
  %2845 = vdwg.mxu0
  %2846 = vst [vmem:[%s16] sm:$0xff] %v2843
  // Predicated region
  $region50: #{_lstm_jump_forward_impl.6} parent=0 // pred_check
    _
  $region51: #{_lstm_jump_forward_impl.6} parent=0 // pred_check_branch
    %2848 = sbr.rel (0) target = $region53
  $region52: #{_lstm_jump_forward_impl.6} parent=0 // pred_region
    _
  $region53: #{_lstm_jump_forward_impl.6} parent=0 // pred_fallthru
    _
  // Predicated region
  $region54: #{_lstm_jump_forward_impl.6} parent=0 // pred_check
    _
  $region55: #{_lstm_jump_forward_impl.6} parent=0 // pred_check_branch
    %2850 = sbr.rel (0) target = $region57
  $region56: #{_lstm_jump_forward_impl.6} parent=0 // pred_region
    _
  $region57: #{_lstm_jump_forward_impl.6} parent=0 // pred_fallthru
    _
  // Predicated region
  $region58: #{_lstm_jump_forward_impl.6} parent=0 // pred_check
    _
  $region59: #{_lstm_jump_forward_impl.6} parent=0 // pred_check_branch
    %2852 = sbr.rel (0) target = $region61
  $region60: #{_lstm_jump_forward_impl.6} parent=0 // pred_region
    _
  $region61: #{_lstm_jump_forward_impl.6} parent=0 // pred_fallthru
    _
  // Predicated region
  $region62: #{_lstm_jump_forward_impl.6} parent=0 // pred_check
    _
  $region63: #{_lstm_jump_forward_impl.6} parent=0 // pred_check_branch
    %2854 = sbr.rel (0) target = $region65
  $region64: #{_lstm_jump_forward_impl.6} parent=0 // pred_region
    _
  $region65: #{_lstm_jump_forward_impl.6} parent=0 // pred_fallthru
    _
  // Predicated region
  $region66: #{_lstm_jump_forward_impl.6} parent=0 // pred_check
    _
  $region67: #{_lstm_jump_forward_impl.6} parent=0 // pred_check_branch
    %2856 = sbr.rel (0) target = $region69
  $region68: #{_lstm_jump_forward_impl.6} parent=0 // pred_region
    _
  $region69: #{_lstm_jump_forward_impl.6} parent=0 // pred_fallthru
    _
  // Predicated region
  $region70: #{_lstm_jump_forward_impl.6} parent=0 // pred_check
    _
  $region71: #{_lstm_jump_forward_impl.6} parent=0 // pred_check_branch
    %2858 = sbr.rel (0) target = $region73
  $region72: #{_lstm_jump_forward_impl.6} parent=0 // pred_region
    _
  $region73: #{_lstm_jump_forward_impl.6} parent=0 // pred_fallthru
    _
  // Predicated region
  $region74: #{_lstm_jump_forward_impl.6} parent=0 // pred_check
    _
  $region75: #{_lstm_jump_forward_impl.6} parent=0 // pred_check_branch
    %2860 = sbr.rel (0) target = $region77
  $region76: #{_lstm_jump_forward_impl.6} parent=0 // pred_region
    _
  $region77: #{_lstm_jump_forward_impl.6} parent=0 // pred_fallthru
    _
  // Predicated region
  $region78: #{_lstm_jump_forward_impl.6} parent=0 // pred_check
    _
  $region79: #{_lstm_jump_forward_impl.6} parent=0 // pred_check_branch
    %2862 = sbr.rel (0) target = $region81
  $region80: #{_lstm_jump_forward_impl.6} parent=0 // pred_region
    _
  $region81: #{_lstm_jump_forward_impl.6} parent=0 // pred_fallthru
    _
  // Predicated region
  $region82: #{_lstm_jump_forward_impl.6} parent=0 // pred_check
    _
  $region83: #{_lstm_jump_forward_impl.6} parent=0 // pred_check_branch
    %2864 = sbr.rel (0) target = $region85
  $region84: #{_lstm_jump_forward_impl.6} parent=0 // pred_region
    _
  $region85: #{_lstm_jump_forward_impl.6} parent=0 // pred_fallthru
    _
  // Predicated region
  $region86: #{_lstm_jump_forward_impl.6} parent=0 // pred_check
    _
  $region87: #{_lstm_jump_forward_impl.6} parent=0 // pred_check_branch
    %2866 = sbr.rel (0) target = $region89
  $region88: #{_lstm_jump_forward_impl.6} parent=0 // pred_region
    _
  $region89: #{_lstm_jump_forward_impl.6} parent=0 // pred_fallthru
    _

// kernel: _lstm_jump_forward_impl.10
$region0: #{_lstm_jump_forward_impl.10}
  #allocation0 [shape = 'u32[]', space=smem, size = 0x4, offset = 0x4, fixed_abs, tag = 'smem constant byte address 0x4 - core index']
  #allocation1 [shape = 'u32[144,128]{1,0:T(1,128)}', space=vmem, size = 0x12000, scoped, tag = 'internal scratch']
  %s0 = inlined_call_operand.vmem [shape: f32[21,8,16], index: 0, kind: input, shape index: {}]
  %s1 = inlined_call_operand.vmem [shape: f32[21,8,1], index: 1, kind: input, shape index: {}]
  %s2 = inlined_call_operand.vmem [shape: f32[21,8,1], index: 2, kind: input, shape index: {}]
  %s3 = inlined_call_operand.vmem [shape: f32[8,32], index: 3, kind: input, shape index: {}]
  %s4 = inlined_call_operand.vmem [shape: f32[8,32], index: 4, kind: input, shape index: {}]
  %s5 = inlined_call_operand.vmem [shape: f32[8,32], index: 5, kind: input, shape index: {}]
  %s6 = inlined_call_operand.vmem [shape: f32[48,128], index: 6, kind: input, shape index: {}]
  %s7 = inlined_call_operand.vmem [shape: f32[1,128], index: 7, kind: input, shape index: {}]
  %s8 = inlined_call_operand.vmem [shape: f32[32,128], index: 8, kind: input, shape index: {}]
  %s9 = inlined_call_operand.vmem [shape: f32[1,128], index: 9, kind: input, shape index: {}]
  %s10 = inlined_call_operand.vmem [shape: f32[32,128], index: 10, kind: input, shape index: {}]
  %s11 = inlined_call_operand.vmem [shape: f32[1,128], index: 11, kind: input, shape index: {}]
  %s12 = inlined_call_operand.vmem [shape: f32[8,32], index: 12, kind: output, shape index: {0}]
  %s13 = inlined_call_operand.hbm [shape: f32[8,32], index: 13, kind: output, shape index: {1}]
  %s14 = inlined_call_operand.vmem [shape: f32[8,32], index: 14, kind: output, shape index: {2}]
  %s15 = inlined_call_operand.vmem [shape: f32[8,128], index: 15, kind: output, shape index: {3}]
  %s16 = inlined_call_operand.vmem [shape: f32[8,128], index: 16, kind: output, shape index: {4}]
  %17 = xla_tuple %s12, %s13, %s14, %s15, %s16
  %s18 = sld [smem:[#allocation0]]
  $region90: #{_lstm_jump_forward_impl.10} parent=0
    _
  %s20 = ssub.s32 1, %s18
  %s21 = scalar_select 0, %s20, %s18
  $region1: #{_lstm_jump_forward_impl.10} parent=0
    #allocation2 [shape = 'u8[4096]{0}', space=vmem, size = 0x1000, scoped, tag = 'output window, operand 1, single buffered']
    #allocation3 [shape = 's32[1]{0}', space=sflag, size = 0x4, scoped, tag = 'scoped memory for _lstm_jump_forward_impl.10']
    %22 = vsyncpa [#allocation3], 0
    // Predicated region
    $region2: #{_lstm_jump_forward_impl.10} parent=1 // pred_check
      _
    $region3: #{_lstm_jump_forward_impl.10} parent=1 // pred_check_branch
      %24 = sbr.rel (0) target = $region5
    $region4: #{_lstm_jump_forward_impl.10} parent=1 // pred_region
      _
    $region5: #{_lstm_jump_forward_impl.10} parent=1 // pred_fallthru
      _
    // Predicated region
    $region6: #{_lstm_jump_forward_impl.10} parent=1 // pred_check
      _
    $region7: #{_lstm_jump_forward_impl.10} parent=1 // pred_check_branch
      %26 = sbr.rel (0) target = $region9
    $region8: #{_lstm_jump_forward_impl.10} parent=1 // pred_region
      _
    $region9: #{_lstm_jump_forward_impl.10} parent=1 // pred_fallthru
      _
    // Predicated region
    $region10: #{_lstm_jump_forward_impl.10} parent=1 // pred_check
      _
    $region11: #{_lstm_jump_forward_impl.10} parent=1 // pred_check_branch
      %28 = sbr.rel (0) target = $region13
    $region12: #{_lstm_jump_forward_impl.10} parent=1 // pred_region
      _
    $region13: #{_lstm_jump_forward_impl.10} parent=1 // pred_fallthru
      _
    // Predicated region
    $region14: #{_lstm_jump_forward_impl.10} parent=1 // pred_check
      _
    $region15: #{_lstm_jump_forward_impl.10} parent=1 // pred_check_branch
      %30 = sbr.rel (0) target = $region17
    $region16: #{_lstm_jump_forward_impl.10} parent=1 // pred_region
      _
    $region17: #{_lstm_jump_forward_impl.10} parent=1 // pred_fallthru
      _
    // Predicated region
    $region18: #{_lstm_jump_forward_impl.10} parent=1 // pred_check
      _
    $region19: #{_lstm_jump_forward_impl.10} parent=1 // pred_check_branch
      %32 = sbr.rel (0) target = $region21
    $region20: #{_lstm_jump_forward_impl.10} parent=1 // pred_region
      _
    $region21: #{_lstm_jump_forward_impl.10} parent=1 // pred_fallthru
      _
    // Predicated region
    $region22: #{_lstm_jump_forward_impl.10} parent=1 // pred_check
      _
    $region23: #{_lstm_jump_forward_impl.10} parent=1 // pred_check_branch
      %34 = sbr.rel (0) target = $region25
    $region24: #{_lstm_jump_forward_impl.10} parent=1 // pred_region
      _
    $region25: #{_lstm_jump_forward_impl.10} parent=1 // pred_fallthru
      _
    // Predicated region
    $region26: #{_lstm_jump_forward_impl.10} parent=1 // pred_check
      _
    $region27: #{_lstm_jump_forward_impl.10} parent=1 // pred_check_branch
      %36 = sbr.rel (0) target = $region29
    $region28: #{_lstm_jump_forward_impl.10} parent=1 // pred_region
      _
    $region29: #{_lstm_jump_forward_impl.10} parent=1 // pred_fallthru
      _
    // Predicated region
    $region30: #{_lstm_jump_forward_impl.10} parent=1 // pred_check
      _
    $region31: #{_lstm_jump_forward_impl.10} parent=1 // pred_check_branch
      %38 = sbr.rel (0) target = $region33
    $region32: #{_lstm_jump_forward_impl.10} parent=1 // pred_region
      _
    $region33: #{_lstm_jump_forward_impl.10} parent=1 // pred_fallthru
      _
    // Predicated region
    $region34: #{_lstm_jump_forward_impl.10} parent=1 // pred_check
      _
    $region35: #{_lstm_jump_forward_impl.10} parent=1 // pred_check_branch
      %40 = sbr.rel (0) target = $region37
    $region36: #{_lstm_jump_forward_impl.10} parent=1 // pred_region
      _
    $region37: #{_lstm_jump_forward_impl.10} parent=1 // pred_fallthru
      _
    // Predicated region
    $region38: #{_lstm_jump_forward_impl.10} parent=1 // pred_check
      _
    $region39: #{_lstm_jump_forward_impl.10} parent=1 // pred_check_branch
      %42 = sbr.rel (0) target = $region41
    $region40: #{_lstm_jump_forward_impl.10} parent=1 // pred_region
      _
    $region41: #{_lstm_jump_forward_impl.10} parent=1 // pred_fallthru
      _
    // Predicated region
    $region42: #{_lstm_jump_forward_impl.10} parent=1 // pred_check
      _
    $region43: #{_lstm_jump_forward_impl.10} parent=1 // pred_check_branch
      %44 = sbr.rel (0) target = $region45
    $region44: #{_lstm_jump_forward_impl.10} parent=1 // pred_region
      _
    $region45: #{_lstm_jump_forward_impl.10} parent=1 // pred_fallthru
      _
    // Predicated region
    $region46: #{_lstm_jump_forward_impl.10} parent=1 // pred_check
      _
    $region47: #{_lstm_jump_forward_impl.10} parent=1 // pred_check_branch
      %46 = sbr.rel (0) target = $region49
    $region48: #{_lstm_jump_forward_impl.10} parent=1 // pred_region
      _
    $region49: #{_lstm_jump_forward_impl.10} parent=1 // pred_fallthru
      _
    %v47 = vld [vmem:[%s6] sm:$0xff]
    %v48 = vld [vmem:[%s6 + $0x8] sm:$0xff]
    %v49 = vld [vmem:[%s6 + $0x10] sm:$0xff]
    %v50 = vld [vmem:[%s6 + $0x18] sm:$0xff]
    %v51 = vld [vmem:[%s6 + $0x20] sm:$0xff]
    %v52 = vld [vmem:[%s6 + $0x28] sm:$0xff]
    %v53 = vld [vmem:[%s7] sm:$0x1]
    %v54 = vld [vmem:[%s3] sm:$0xff]
    %v55 = vld [vmem:[%s4] sm:$0xff]
    %v56 = vld [vmem:[%s5] sm:$0xff]
    %v57 = vld [vmem:[%s0] sm:$0xff]
    %v58 = vld [vmem:[%s1] sm:$0xff]
    %v59 = vld [vmem:[%s2] sm:$0xff]
    %vm60 = vcmp.gt.f32.partialorder %v59, 0.0
    %v61 = vsel %vm60, 1, 0
    %62 = vset.pattern.permute.xlu0 0
    %63 = vperm.xlu0 %62, %v61
    %v64 = vpop.permute.xlu0 %63
    %vm65 = vcmp.eq.s32.totalorder %v64, 1
    %v66 = vsel %vm65, %v54, %v56
    %68 = vrot.lane.b32.xlu0 %v54, 16
    %v69 = vpop.permute.xlu0 %68
    %vm71 = vcmask 130048
    %v72 = vsel %vm71, %v57, %v69
    %v74 = vlaneseq
    %v75 = vshrl.u32 %v74, 7
    %v76 = vsub.s32 0, %v75
    %v77 = vrot.slane %v53, %v76
    %vm79 = vcmask 392192
    %v81 = vsel %vm79, %v72, 0
    %83 = vmatprep.subr.mxu0 0.0
    %84 = vmatpush1.msra.mxu0 %v47
    %85 = vmatprep.subr.mxu0 0.0
    %86 = vmatpush1.msra.mxu0 %v48
    %87 = vmatprep.subr.mxu0 0.0
    %88 = vmatpush1.msra.mxu0 %v49
    %89 = vmatprep.subr.mxu0 0.0
    %90 = vmatpush1.msra.mxu0 %v50
    %91 = vmatprep.subr.mxu0 0.0
    %92 = vmatpush1.msra.mxu0 %v51
    %93 = vmatprep.subr.mxu0 0.0
    %94 = vmatpush1.msra.mxu0 %v52
    %95 = vmatprep.subr.mxu0 0.0
    %96 = vmatpush1.msra.mxu0 0.0
    %97 = vmatprep.subr.mxu0 0.0
    %98 = vmatpush1.msra.mxu0 0.0
    %99 = vmatprep.subr.mxu0 0.0
    %100 = vmatpush1.msra.mxu0 0.0
    %101 = vmatprep.subr.mxu0 0.0
    %102 = vmatpush1.msra.mxu0 0.0
    %103 = vmatprep.subr.mxu0 0.0
    %104 = vmatpush1.msra.mxu0 0.0
    %105 = vmatprep.subr.mxu0 0.0
    %106 = vmatpush1.msra.mxu0 0.0
    %107 = vmatprep.subr.mxu0 0.0
    %108 = vmatpush1.msra.mxu0 0.0
    %109 = vmatprep.subr.mxu0 0.0
    %110 = vmatpush1.msra.mxu0 0.0
    %111 = vmatprep.subr.mxu0 0.0
    %112 = vmatpush1.msra.mxu0 0.0
    %113 = vmatprep.subr.mxu0 0.0
    %114 = vmatpush1.msra.mxu0 0.0
    %115 = vmatprep.subr.mxu0 0.0
    %116 = vmatpush1.msra.mxu0 0.0
    %117 = vmatprep.subr.mxu0 0.0
    %118 = vmatpush1.msra.mxu0 0.0
    %119 = vmatprep.subr.mxu0 0.0
    %120 = vmatpush1.msra.mxu0 0.0
    %121 = vmatprep.subr.mxu0 0.0
    %122 = vmatpush1.msra.mxu0 0.0
    %123 = vmatprep.subr.mxu0 0.0
    %124 = vmatpush1.msra.mxu0 0.0
    %125 = vmatprep.subr.mxu0 0.0
    %126 = vmatpush1.msra.mxu0 0.0
    %127 = vmatprep.subr.mxu0 0.0
    %128 = vmatpush1.msra.mxu0 0.0
    %129 = vmatprep.subr.mxu0 0.0
    %130 = vmatpush1.msra.mxu0 0.0
    %131 = vmatprep.subr.mxu0 0.0
    %132 = vmatpush1.msra.mxu0 0.0
    %133 = vmatprep.subr.mxu0 0.0
    %134 = vmatpush1.msra.mxu0 0.0
    %135 = vmatprep.subr.mxu0 0.0
    %136 = vmatpush1.msra.mxu0 0.0
    %137 = vmatprep.subr.mxu0 0.0
    %138 = vmatpush1.msra.mxu0 0.0
    %139 = vmatprep.subr.mxu0 0.0
    %140 = vmatpush1.msra.mxu0 0.0
    %141 = vmatprep.subr.mxu0 0.0
    %142 = vmatpush1.msra.mxu0 0.0
    %143 = vmatprep.subr.mxu0 0.0
    %144 = vmatpush1.msra.mxu0 0.0
    %145 = vmatprep.subr.mxu0 0.0
    %146 = vmatpush1.msra.mxu0 0.0
    %147 = vmatprep.mubr.f32.mxu0 0.0
    %148 = vmatmul.mubr.f32.gmra.mrb[0].mxu0 %v81
    %v149 = vpop.f32.mrb[0].mxu0
    %v150 = vadd.f32 %v77, %v149
    %v151 = vpop.f32.mrb[0].mxu0
    %152 = vdwg.mxu0
    %v153 = vxor.u32 %v150, 2147483648
    %v154 = vmul.f32 %v153, 1.442695
    %v155 = vpow.pop %v154
    %v156 = vadd.f32 %v155, 1.0
    %v157 = vrcp.pop %v156
    %v158 = vmul.f32 1.0, %v157
    %v159 = vtanh.pop %v150
    %161 = vrot.lane.b32.xlu0 %v55, 32
    %v162 = vpop.permute.xlu0 %161
    %v164 = vmul.f32 %v158, %v162
    %166 = vrot.lane.b32.xlu0 %v159, 64
    %v167 = vpop.permute.xlu0 %166
    %v169 = vmul.f32 %v158, %v167
    %171 = vrot.lane.b32.xlu0 %v169, 32
    %v172 = vpop.permute.xlu0 %171
    %v174 = vadd.f32 %v164, %v172
    %v175 = vtanh.pop %v174
    %177 = vrot.lane.b32.xlu0 %v175, 64
    %v178 = vpop.permute.xlu0 %177
    %v180 = vmul.f32 %v158, %v178
    %vm181 = vcmp.gt.f32.partialorder %v58, 0.0
    %v182 = vsel %vm181, 1, 0
    %183 = vset.pattern.permute.xlu0 0
    %184 = vperm.xlu0 %183, %v182
    %v185 = vpop.permute.xlu0 %184
    %vm186 = vcmp.eq.s32.totalorder %v185, 1
    %187 = vrot.lane.b32.xlu0 %v54, 96
    %v188 = vpop.permute.xlu0 %187
    %v190 = vsel %vm186, %v180, %v188
    %v191 = vsel %vm186, %v174, %v162
    %s192 = scalar_lea.vmem %s0, 8
    %v193 = vld [vmem:[%s192] sm:$0xff]
    %s194 = scalar_lea.vmem %s1, 8
    %v195 = vld [vmem:[%s194] sm:$0xff]
    %s196 = scalar_lea.vmem %s2, 8
    %v197 = vld [vmem:[%s196] sm:$0xff]
    %vm198 = vcmp.gt.f32.partialorder %v197, 0.0
    %v199 = vsel %vm198, 1, 0
    %200 = vset.pattern.permute.xlu0 0
    %201 = vperm.xlu0 %200, %v199
    %v202 = vpop.permute.xlu0 %201
    %vm203 = vcmp.eq.s32.totalorder %v202, 1
    %205 = vrot.lane.b32.xlu0 %v66, 96
    %v206 = vpop.permute.xlu0 %205
    %v208 = vsel %vm203, %v190, %v206
    %210 = vrot.lane.b32.xlu0 %v190, 48
    %v211 = vpop.permute.xlu0 %210
    %v213 = vsel %vm71, %v193, %v211
    %v215 = vsel %vm79, %v213, 0
    %217 = vmatprep.subr.mxu0 0.0
    %218 = vmatpush1.msra.mxu0 %v47
    %219 = vmatprep.subr.mxu0 0.0
    %220 = vmatpush1.msra.mxu0 %v48
    %221 = vmatprep.subr.mxu0 0.0
    %222 = vmatpush1.msra.mxu0 %v49
    %223 = vmatprep.subr.mxu0 0.0
    %224 = vmatpush1.msra.mxu0 %v50
    %225 = vmatprep.subr.mxu0 0.0
    %226 = vmatpush1.msra.mxu0 %v51
    %227 = vmatprep.subr.mxu0 0.0
    %228 = vmatpush1.msra.mxu0 %v52
    %229 = vmatprep.subr.mxu0 0.0
    %230 = vmatpush1.msra.mxu0 0.0
    %231 = vmatprep.subr.mxu0 0.0
    %232 = vmatpush1.msra.mxu0 0.0
    %233 = vmatprep.subr.mxu0 0.0
    %234 = vmatpush1.msra.mxu0 0.0
    %235 = vmatprep.subr.mxu0 0.0
    %236 = vmatpush1.msra.mxu0 0.0
    %237 = vmatprep.subr.mxu0 0.0
    %238 = vmatpush1.msra.mxu0 0.0
    %239 = vmatprep.subr.mxu0 0.0
    %240 = vmatpush1.msra.mxu0 0.0
    %241 = vmatprep.subr.mxu0 0.0
    %242 = vmatpush1.msra.mxu0 0.0
    %243 = vmatprep.subr.mxu0 0.0
    %244 = vmatpush1.msra.mxu0 0.0
    %245 = vmatprep.subr.mxu0 0.0
    %246 = vmatpush1.msra.mxu0 0.0
    %247 = vmatprep.subr.mxu0 0.0
    %248 = vmatpush1.msra.mxu0 0.0
    %249 = vmatprep.subr.mxu0 0.0
    %250 = vmatpush1.msra.mxu0 0.0
    %251 = vmatprep.subr.mxu0 0.0
    %252 = vmatpush1.msra.mxu0 0.0
    %253 = vmatprep.subr.mxu0 0.0
    %254 = vmatpush1.msra.mxu0 0.0
    %255 = vmatprep.subr.mxu0 0.0
    %256 = vmatpush1.msra.mxu0 0.0
    %257 = vmatprep.subr.mxu0 0.0
    %258 = vmatpush1.msra.mxu0 0.0
    %259 = vmatprep.subr.mxu0 0.0
    %260 = vmatpush1.msra.mxu0 0.0
    %261 = vmatprep.subr.mxu0 0.0
    %262 = vmatpush1.msra.mxu0 0.0
    %263 = vmatprep.subr.mxu0 0.0
    %264 = vmatpush1.msra.mxu0 0.0
    %265 = vmatprep.subr.mxu0 0.0
    %266 = vmatpush1.msra.mxu0 0.0
    %267 = vmatprep.subr.mxu0 0.0
    %268 = vmatpush1.msra.mxu0 0.0
    %269 = vmatprep.subr.mxu0 0.0
    %270 = vmatpush1.msra.mxu0 0.0
    %271 = vmatprep.subr.mxu0 0.0
    %272 = vmatpush1.msra.mxu0 0.0
    %273 = vmatprep.subr.mxu0 0.0
    %274 = vmatpush1.msra.mxu0 0.0
    %275 = vmatprep.subr.mxu0 0.0
    %276 = vmatpush1.msra.mxu0 0.0
    %277 = vmatprep.subr.mxu0 0.0
    %278 = vmatpush1.msra.mxu0 0.0
    %279 = vmatprep.subr.mxu0 0.0
    %280 = vmatpush1.msra.mxu0 0.0
    %281 = vmatprep.mubr.f32.mxu0 0.0
    %282 = vmatmul.mubr.f32.gmra.mrb[0].mxu0 %v215
    %v283 = vpop.f32.mrb[0].mxu0
    %v284 = vadd.f32 %v77, %v283
    %v285 = vpop.f32.mrb[0].mxu0
    %286 = vdwg.mxu0
    %v287 = vxor.u32 %v284, 2147483648
    %v288 = vmul.f32 %v287, 1.442695
    %v289 = vpow.pop %v288
    %v290 = vadd.f32 %v289, 1.0
    %v291 = vrcp.pop %v290
    %v292 = vmul.f32 1.0, %v291
    %v293 = vtanh.pop %v284
    %v294 = vmul.f32 %v292, %v191
    %296 = vrot.lane.b32.xlu0 %v293, 64
    %v297 = vpop.permute.xlu0 %296
    %v299 = vmul.f32 %v292, %v297
    %301 = vrot.lane.b32.xlu0 %v299, 32
    %v302 = vpop.permute.xlu0 %301
    %v304 = vadd.f32 %v294, %v302
    %v305 = vtanh.pop %v304
    %307 = vrot.lane.b32.xlu0 %v305, 64
    %v308 = vpop.permute.xlu0 %307
    %v310 = vmul.f32 %v292, %v308
    %vm311 = vcmp.gt.f32.partialorder %v195, 0.0
    %v312 = vsel %vm311, 1, 0
    %313 = vset.pattern.permute.xlu0 0
    %314 = vperm.xlu0 %313, %v312
    %v315 = vpop.permute.xlu0 %314
    %vm316 = vcmp.eq.s32.totalorder %v315, 1
    %v317 = vsel %vm316, %v310, %v190
    %v318 = vsel %vm316, %v304, %v191
    %s319 = scalar_lea.vmem %s0, 16
    %v320 = vld [vmem:[%s319] sm:$0xff]
    %s321 = scalar_lea.vmem %s1, 16
    %v322 = vld [vmem:[%s321] sm:$0xff]
    %s323 = scalar_lea.vmem %s2, 16
    %v324 = vld [vmem:[%s323] sm:$0xff]
    %vm325 = vcmp.gt.f32.partialorder %v324, 0.0
    %v326 = vsel %vm325, 1, 0
    %327 = vset.pattern.permute.xlu0 0
    %328 = vperm.xlu0 %327, %v326
    %v329 = vpop.permute.xlu0 %328
    %vm330 = vcmp.eq.s32.totalorder %v329, 1
    %v331 = vsel %vm330, %v317, %v208
    %333 = vrot.lane.b32.xlu0 %v317, 48
    %v334 = vpop.permute.xlu0 %333
    %v336 = vsel %vm71, %v320, %v334
    %v338 = vsel %vm79, %v336, 0
    %340 = vmatprep.subr.mxu0 0.0
    %341 = vmatpush1.msra.mxu0 %v47
    %342 = vmatprep.subr.mxu0 0.0
    %343 = vmatpush1.msra.mxu0 %v48
    %344 = vmatprep.subr.mxu0 0.0
    %345 = vmatpush1.msra.mxu0 %v49
    %346 = vmatprep.subr.mxu0 0.0
    %347 = vmatpush1.msra.mxu0 %v50
    %348 = vmatprep.subr.mxu0 0.0
    %349 = vmatpush1.msra.mxu0 %v51
    %350 = vmatprep.subr.mxu0 0.0
    %351 = vmatpush1.msra.mxu0 %v52
    %352 = vmatprep.subr.mxu0 0.0
    %353 = vmatpush1.msra.mxu0 0.0
    %354 = vmatprep.subr.mxu0 0.0
    %355 = vmatpush1.msra.mxu0 0.0
    %356 = vmatprep.subr.mxu0 0.0
    %357 = vmatpush1.msra.mxu0 0.0
    %358 = vmatprep.subr.mxu0 0.0
    %359 = vmatpush1.msra.mxu0 0.0
    %360 = vmatprep.subr.mxu0 0.0
    %361 = vmatpush1.msra.mxu0 0.0
    %362 = vmatprep.subr.mxu0 0.0
    %363 = vmatpush1.msra.mxu0 0.0
    %364 = vmatprep.subr.mxu0 0.0
    %365 = vmatpush1.msra.mxu0 0.0
    %366 = vmatprep.subr.mxu0 0.0
    %367 = vmatpush1.msra.mxu0 0.0
    %368 = vmatprep.subr.mxu0 0.0
    %369 = vmatpush1.msra.mxu0 0.0
    %370 = vmatprep.subr.mxu0 0.0
    %371 = vmatpush1.msra.mxu0 0.0
    %372 = vmatprep.subr.mxu0 0.0
    %373 = vmatpush1.msra.mxu0 0.0
    %374 = vmatprep.subr.mxu0 0.0
    %375 = vmatpush1.msra.mxu0 0.0
    %376 = vmatprep.subr.mxu0 0.0
    %377 = vmatpush1.msra.mxu0 0.0
    %378 = vmatprep.subr.mxu0 0.0
    %379 = vmatpush1.msra.mxu0 0.0
    %380 = vmatprep.subr.mxu0 0.0
    %381 = vmatpush1.msra.mxu0 0.0
    %382 = vmatprep.subr.mxu0 0.0
    %383 = vmatpush1.msra.mxu0 0.0
    %384 = vmatprep.subr.mxu0 0.0
    %385 = vmatpush1.msra.mxu0 0.0
    %386 = vmatprep.subr.mxu0 0.0
    %387 = vmatpush1.msra.mxu0 0.0
    %388 = vmatprep.subr.mxu0 0.0
    %389 = vmatpush1.msra.mxu0 0.0
    %390 = vmatprep.subr.mxu0 0.0
    %391 = vmatpush1.msra.mxu0 0.0
    %392 = vmatprep.subr.mxu0 0.0
    %393 = vmatpush1.msra.mxu0 0.0
    %394 = vmatprep.subr.mxu0 0.0
    %395 = vmatpush1.msra.mxu0 0.0
    %396 = vmatprep.subr.mxu0 0.0
    %397 = vmatpush1.msra.mxu0 0.0
    %398 = vmatprep.subr.mxu0 0.0
    %399 = vmatpush1.msra.mxu0 0.0
    %400 = vmatprep.subr.mxu0 0.0
    %401 = vmatpush1.msra.mxu0 0.0
    %402 = vmatprep.subr.mxu0 0.0
    %403 = vmatpush1.msra.mxu0 0.0
    %404 = vmatprep.mubr.f32.mxu0 0.0
    %405 = vmatmul.mubr.f32.gmra.mrb[0].mxu0 %v338
    %v406 = vpop.f32.mrb[0].mxu0
    %v407 = vadd.f32 %v77, %v406
    %v408 = vpop.f32.mrb[0].mxu0
    %409 = vdwg.mxu0
    %v410 = vxor.u32 %v407, 2147483648
    %v411 = vmul.f32 %v410, 1.442695
    %v412 = vpow.pop %v411
    %v413 = vadd.f32 %v412, 1.0
    %v414 = vrcp.pop %v413
    %v415 = vmul.f32 1.0, %v414
    %v416 = vtanh.pop %v407
    %v417 = vmul.f32 %v415, %v318
    %419 = vrot.lane.b32.xlu0 %v416, 64
    %v420 = vpop.permute.xlu0 %419
    %v422 = vmul.f32 %v415, %v420
    %424 = vrot.lane.b32.xlu0 %v422, 32
    %v425 = vpop.permute.xlu0 %424
    %v427 = vadd.f32 %v417, %v425
    %v428 = vtanh.pop %v427
    %430 = vrot.lane.b32.xlu0 %v428, 64
    %v431 = vpop.permute.xlu0 %430
    %v433 = vmul.f32 %v415, %v431
    %vm434 = vcmp.gt.f32.partialorder %v322, 0.0
    %v435 = vsel %vm434, 1, 0
    %436 = vset.pattern.permute.xlu0 0
    %437 = vperm.xlu0 %436, %v435
    %v438 = vpop.permute.xlu0 %437
    %vm439 = vcmp.eq.s32.totalorder %v438, 1
    %v440 = vsel %vm439, %v433, %v317
    %v441 = vsel %vm439, %v427, %v318
    %s442 = scalar_lea.vmem %s0, 24
    %v443 = vld [vmem:[%s442] sm:$0xff]
    %s444 = scalar_lea.vmem %s1, 24
    %v445 = vld [vmem:[%s444] sm:$0xff]
    %s446 = scalar_lea.vmem %s2, 24
    %v447 = vld [vmem:[%s446] sm:$0xff]
    %vm448 = vcmp.gt.f32.partialorder %v447, 0.0
    %v449 = vsel %vm448, 1, 0
    %450 = vset.pattern.permute.xlu0 0
    %451 = vperm.xlu0 %450, %v449
    %v452 = vpop.permute.xlu0 %451
    %vm453 = vcmp.eq.s32.totalorder %v452, 1
    %v454 = vsel %vm453, %v440, %v331
    %456 = vrot.lane.b32.xlu0 %v440, 48
    %v457 = vpop.permute.xlu0 %456
    %v459 = vsel %vm71, %v443, %v457
    %v461 = vsel %vm79, %v459, 0
    %463 = vmatprep.subr.mxu0 0.0
    %464 = vmatpush1.msra.mxu0 %v47
    %465 = vmatprep.subr.mxu0 0.0
    %466 = vmatpush1.msra.mxu0 %v48
    %467 = vmatprep.subr.mxu0 0.0
    %468 = vmatpush1.msra.mxu0 %v49
    %469 = vmatprep.subr.mxu0 0.0
    %470 = vmatpush1.msra.mxu0 %v50
    %471 = vmatprep.subr.mxu0 0.0
    %472 = vmatpush1.msra.mxu0 %v51
    %473 = vmatprep.subr.mxu0 0.0
    %474 = vmatpush1.msra.mxu0 %v52
    %475 = vmatprep.subr.mxu0 0.0
    %476 = vmatpush1.msra.mxu0 0.0
    %477 = vmatprep.subr.mxu0 0.0
    %478 = vmatpush1.msra.mxu0 0.0
    %479 = vmatprep.subr.mxu0 0.0
    %480 = vmatpush1.msra.mxu0 0.0
    %481 = vmatprep.subr.mxu0 0.0
    %482 = vmatpush1.msra.mxu0 0.0
    %483 = vmatprep.subr.mxu0 0.0
    %484 = vmatpush1.msra.mxu0 0.0
    %485 = vmatprep.subr.mxu0 0.0
    %486 = vmatpush1.msra.mxu0 0.0
    %487 = vmatprep.subr.mxu0 0.0
    %488 = vmatpush1.msra.mxu0 0.0
    %489 = vmatprep.subr.mxu0 0.0
    %490 = vmatpush1.msra.mxu0 0.0
    %491 = vmatprep.subr.mxu0 0.0
    %492 = vmatpush1.msra.mxu0 0.0
    %493 = vmatprep.subr.mxu0 0.0
    %494 = vmatpush1.msra.mxu0 0.0
    %495 = vmatprep.subr.mxu0 0.0
    %496 = vmatpush1.msra.mxu0 0.0
    %497 = vmatprep.subr.mxu0 0.0
    %498 = vmatpush1.msra.mxu0 0.0
    %499 = vmatprep.subr.mxu0 0.0
    %500 = vmatpush1.msra.mxu0 0.0
    %501 = vmatprep.subr.mxu0 0.0
    %502 = vmatpush1.msra.mxu0 0.0
    %503 = vmatprep.subr.mxu0 0.0
    %504 = vmatpush1.msra.mxu0 0.0
    %505 = vmatprep.subr.mxu0 0.0
    %506 = vmatpush1.msra.mxu0 0.0
    %507 = vmatprep.subr.mxu0 0.0
    %508 = vmatpush1.msra.mxu0 0.0
    %509 = vmatprep.subr.mxu0 0.0
    %510 = vmatpush1.msra.mxu0 0.0
    %511 = vmatprep.subr.mxu0 0.0
    %512 = vmatpush1.msra.mxu0 0.0
    %513 = vmatprep.subr.mxu0 0.0
    %514 = vmatpush1.msra.mxu0 0.0
    %515 = vmatprep.subr.mxu0 0.0
    %516 = vmatpush1.msra.mxu0 0.0
    %517 = vmatprep.subr.mxu0 0.0
    %518 = vmatpush1.msra.mxu0 0.0
    %519 = vmatprep.subr.mxu0 0.0
    %520 = vmatpush1.msra.mxu0 0.0
    %521 = vmatprep.subr.mxu0 0.0
    %522 = vmatpush1.msra.mxu0 0.0
    %523 = vmatprep.subr.mxu0 0.0
    %524 = vmatpush1.msra.mxu0 0.0
    %525 = vmatprep.subr.mxu0 0.0
    %526 = vmatpush1.msra.mxu0 0.0
    %527 = vmatprep.mubr.f32.mxu0 0.0
    %528 = vmatmul.mubr.f32.gmra.mrb[0].mxu0 %v461
    %v529 = vpop.f32.mrb[0].mxu0
    %v530 = vadd.f32 %v77, %v529
    %v531 = vpop.f32.mrb[0].mxu0
    %532 = vdwg.mxu0
    %v533 = vxor.u32 %v530, 2147483648
    %v534 = vmul.f32 %v533, 1.442695
    %v535 = vpow.pop %v534
    %v536 = vadd.f32 %v535, 1.0
    %v537 = vrcp.pop %v536
    %v538 = vmul.f32 1.0, %v537
    %v539 = vtanh.pop %v530
    %v540 = vmul.f32 %v538, %v441
    %542 = vrot.lane.b32.xlu0 %v539, 64
    %v543 = vpop.permute.xlu0 %542
    %v545 = vmul.f32 %v538, %v543
    %547 = vrot.lane.b32.xlu0 %v545, 32
    %v548 = vpop.permute.xlu0 %547
    %v550 = vadd.f32 %v540, %v548
    %v551 = vtanh.pop %v550
    %553 = vrot.lane.b32.xlu0 %v551, 64
    %v554 = vpop.permute.xlu0 %553
    %v556 = vmul.f32 %v538, %v554
    %vm557 = vcmp.gt.f32.partialorder %v445, 0.0
    %v558 = vsel %vm557, 1, 0
    %559 = vset.pattern.permute.xlu0 0
    %560 = vperm.xlu0 %559, %v558
    %v561 = vpop.permute.xlu0 %560
    %vm562 = vcmp.eq.s32.totalorder %v561, 1
    %v563 = vsel %vm562, %v556, %v440
    %v564 = vsel %vm562, %v550, %v441
    %s565 = scalar_lea.vmem %s0, 32
    %v566 = vld [vmem:[%s565] sm:$0xff]
    %s567 = scalar_lea.vmem %s1, 32
    %v568 = vld [vmem:[%s567] sm:$0xff]
    %s569 = scalar_lea.vmem %s2, 32
    %v570 = vld [vmem:[%s569] sm:$0xff]
    %vm571 = vcmp.gt.f32.partialorder %v570, 0.0
    %v572 = vsel %vm571, 1, 0
    %573 = vset.pattern.permute.xlu0 0
    %574 = vperm.xlu0 %573, %v572
    %v575 = vpop.permute.xlu0 %574
    %vm576 = vcmp.eq.s32.totalorder %v575, 1
    %v577 = vsel %vm576, %v563, %v454
    %579 = vrot.lane.b32.xlu0 %v563, 48
    %v580 = vpop.permute.xlu0 %579
    %v582 = vsel %vm71, %v566, %v580
    %v584 = vsel %vm79, %v582, 0
    %586 = vmatprep.subr.mxu0 0.0
    %587 = vmatpush1.msra.mxu0 %v47
    %588 = vmatprep.subr.mxu0 0.0
    %589 = vmatpush1.msra.mxu0 %v48
    %590 = vmatprep.subr.mxu0 0.0
    %591 = vmatpush1.msra.mxu0 %v49
    %592 = vmatprep.subr.mxu0 0.0
    %593 = vmatpush1.msra.mxu0 %v50
    %594 = vmatprep.subr.mxu0 0.0
    %595 = vmatpush1.msra.mxu0 %v51
    %596 = vmatprep.subr.mxu0 0.0
    %597 = vmatpush1.msra.mxu0 %v52
    %598 = vmatprep.subr.mxu0 0.0
    %599 = vmatpush1.msra.mxu0 0.0
    %600 = vmatprep.subr.mxu0 0.0
    %601 = vmatpush1.msra.mxu0 0.0
    %602 = vmatprep.subr.mxu0 0.0
    %603 = vmatpush1.msra.mxu0 0.0
    %604 = vmatprep.subr.mxu0 0.0
    %605 = vmatpush1.msra.mxu0 0.0
    %606 = vmatprep.subr.mxu0 0.0
    %607 = vmatpush1.msra.mxu0 0.0
    %608 = vmatprep.subr.mxu0 0.0
    %609 = vmatpush1.msra.mxu0 0.0
    %610 = vmatprep.subr.mxu0 0.0
    %611 = vmatpush1.msra.mxu0 0.0
    %612 = vmatprep.subr.mxu0 0.0
    %613 = vmatpush1.msra.mxu0 0.0
    %614 = vmatprep.subr.mxu0 0.0
    %615 = vmatpush1.msra.mxu0 0.0
    %616 = vmatprep.subr.mxu0 0.0
    %617 = vmatpush1.msra.mxu0 0.0
    %618 = vmatprep.subr.mxu0 0.0
    %619 = vmatpush1.msra.mxu0 0.0
    %620 = vmatprep.subr.mxu0 0.0
    %621 = vmatpush1.msra.mxu0 0.0
    %622 = vmatprep.subr.mxu0 0.0
    %623 = vmatpush1.msra.mxu0 0.0
    %624 = vmatprep.subr.mxu0 0.0
    %625 = vmatpush1.msra.mxu0 0.0
    %626 = vmatprep.subr.mxu0 0.0
    %627 = vmatpush1.msra.mxu0 0.0
    %628 = vmatprep.subr.mxu0 0.0
    %629 = vmatpush1.msra.mxu0 0.0
    %630 = vmatprep.subr.mxu0 0.0
    %631 = vmatpush1.msra.mxu0 0.0
    %632 = vmatprep.subr.mxu0 0.0
    %633 = vmatpush1.msra.mxu0 0.0
    %634 = vmatprep.subr.mxu0 0.0
    %635 = vmatpush1.msra.mxu0 0.0
    %636 = vmatprep.subr.mxu0 0.0
    %637 = vmatpush1.msra.mxu0 0.0
    %638 = vmatprep.subr.mxu0 0.0
    %639 = vmatpush1.msra.mxu0 0.0
    %640 = vmatprep.subr.mxu0 0.0
    %641 = vmatpush1.msra.mxu0 0.0
    %642 = vmatprep.subr.mxu0 0.0
    %643 = vmatpush1.msra.mxu0 0.0
    %644 = vmatprep.subr.mxu0 0.0
    %645 = vmatpush1.msra.mxu0 0.0
    %646 = vmatprep.subr.mxu0 0.0
    %647 = vmatpush1.msra.mxu0 0.0
    %648 = vmatprep.subr.mxu0 0.0
    %649 = vmatpush1.msra.mxu0 0.0
    %650 = vmatprep.mubr.f32.mxu0 0.0
    %651 = vmatmul.mubr.f32.gmra.mrb[0].mxu0 %v584
    %v652 = vpop.f32.mrb[0].mxu0
    %v653 = vadd.f32 %v77, %v652
    %v654 = vpop.f32.mrb[0].mxu0
    %655 = vdwg.mxu0
    %v656 = vxor.u32 %v653, 2147483648
    %v657 = vmul.f32 %v656, 1.442695
    %v658 = vpow.pop %v657
    %v659 = vadd.f32 %v658, 1.0
    %v660 = vrcp.pop %v659
    %v661 = vmul.f32 1.0, %v660
    %v662 = vtanh.pop %v653
    %v663 = vmul.f32 %v661, %v564
    %665 = vrot.lane.b32.xlu0 %v662, 64
    %v666 = vpop.permute.xlu0 %665
    %v668 = vmul.f32 %v661, %v666
    %670 = vrot.lane.b32.xlu0 %v668, 32
    %v671 = vpop.permute.xlu0 %670
    %v673 = vadd.f32 %v663, %v671
    %v674 = vtanh.pop %v673
    %676 = vrot.lane.b32.xlu0 %v674, 64
    %v677 = vpop.permute.xlu0 %676
    %v679 = vmul.f32 %v661, %v677
    %vm680 = vcmp.gt.f32.partialorder %v568, 0.0
    %v681 = vsel %vm680, 1, 0
    %682 = vset.pattern.permute.xlu0 0
    %683 = vperm.xlu0 %682, %v681
    %v684 = vpop.permute.xlu0 %683
    %vm685 = vcmp.eq.s32.totalorder %v684, 1
    %v686 = vsel %vm685, %v679, %v563
    %v687 = vsel %vm685, %v673, %v564
    %s688 = scalar_lea.vmem %s0, 40
    %v689 = vld [vmem:[%s688] sm:$0xff]
    %s690 = scalar_lea.vmem %s1, 40
    %v691 = vld [vmem:[%s690] sm:$0xff]
    %s692 = scalar_lea.vmem %s2, 40
    %v693 = vld [vmem:[%s692] sm:$0xff]
    %vm694 = vcmp.gt.f32.partialorder %v693, 0.0
    %v695 = vsel %vm694, 1, 0
    %696 = vset.pattern.permute.xlu0 0
    %697 = vperm.xlu0 %696, %v695
    %v698 = vpop.permute.xlu0 %697
    %vm699 = vcmp.eq.s32.totalorder %v698, 1
    %v700 = vsel %vm699, %v686, %v577
    %702 = vrot.lane.b32.xlu0 %v686, 48
    %v703 = vpop.permute.xlu0 %702
    %v705 = vsel %vm71, %v689, %v703
    %v707 = vsel %vm79, %v705, 0
    %709 = vmatprep.subr.mxu0 0.0
    %710 = vmatpush1.msra.mxu0 %v47
    %711 = vmatprep.subr.mxu0 0.0
    %712 = vmatpush1.msra.mxu0 %v48
    %713 = vmatprep.subr.mxu0 0.0
    %714 = vmatpush1.msra.mxu0 %v49
    %715 = vmatprep.subr.mxu0 0.0
    %716 = vmatpush1.msra.mxu0 %v50
    %717 = vmatprep.subr.mxu0 0.0
    %718 = vmatpush1.msra.mxu0 %v51
    %719 = vmatprep.subr.mxu0 0.0
    %720 = vmatpush1.msra.mxu0 %v52
    %721 = vmatprep.subr.mxu0 0.0
    %722 = vmatpush1.msra.mxu0 0.0
    %723 = vmatprep.subr.mxu0 0.0
    %724 = vmatpush1.msra.mxu0 0.0
    %725 = vmatprep.subr.mxu0 0.0
    %726 = vmatpush1.msra.mxu0 0.0
    %727 = vmatprep.subr.mxu0 0.0
    %728 = vmatpush1.msra.mxu0 0.0
    %729 = vmatprep.subr.mxu0 0.0
    %730 = vmatpush1.msra.mxu0 0.0
    %731 = vmatprep.subr.mxu0 0.0
    %732 = vmatpush1.msra.mxu0 0.0
    %733 = vmatprep.subr.mxu0 0.0
    %734 = vmatpush1.msra.mxu0 0.0
    %735 = vmatprep.subr.mxu0 0.0
    %736 = vmatpush1.msra.mxu0 0.0
    %737 = vmatprep.subr.mxu0 0.0
    %738 = vmatpush1.msra.mxu0 0.0
    %739 = vmatprep.subr.mxu0 0.0
    %740 = vmatpush1.msra.mxu0 0.0
    %741 = vmatprep.subr.mxu0 0.0
    %742 = vmatpush1.msra.mxu0 0.0
    %743 = vmatprep.subr.mxu0 0.0
    %744 = vmatpush1.msra.mxu0 0.0
    %745 = vmatprep.subr.mxu0 0.0
    %746 = vmatpush1.msra.mxu0 0.0
    %747 = vmatprep.subr.mxu0 0.0
    %748 = vmatpush1.msra.mxu0 0.0
    %749 = vmatprep.subr.mxu0 0.0
    %750 = vmatpush1.msra.mxu0 0.0
    %751 = vmatprep.subr.mxu0 0.0
    %752 = vmatpush1.msra.mxu0 0.0
    %753 = vmatprep.subr.mxu0 0.0
    %754 = vmatpush1.msra.mxu0 0.0
    %755 = vmatprep.subr.mxu0 0.0
    %756 = vmatpush1.msra.mxu0 0.0
    %757 = vmatprep.subr.mxu0 0.0
    %758 = vmatpush1.msra.mxu0 0.0
    %759 = vmatprep.subr.mxu0 0.0
    %760 = vmatpush1.msra.mxu0 0.0
    %761 = vmatprep.subr.mxu0 0.0
    %762 = vmatpush1.msra.mxu0 0.0
    %763 = vmatprep.subr.mxu0 0.0
    %764 = vmatpush1.msra.mxu0 0.0
    %765 = vmatprep.subr.mxu0 0.0
    %766 = vmatpush1.msra.mxu0 0.0
    %767 = vmatprep.subr.mxu0 0.0
    %768 = vmatpush1.msra.mxu0 0.0
    %769 = vmatprep.subr.mxu0 0.0
    %770 = vmatpush1.msra.mxu0 0.0
    %771 = vmatprep.subr.mxu0 0.0
    %772 = vmatpush1.msra.mxu0 0.0
    %773 = vmatprep.mubr.f32.mxu0 0.0
    %774 = vmatmul.mubr.f32.gmra.mrb[0].mxu0 %v707
    %v775 = vpop.f32.mrb[0].mxu0
    %v776 = vadd.f32 %v77, %v775
    %v777 = vpop.f32.mrb[0].mxu0
    %778 = vdwg.mxu0
    %v779 = vxor.u32 %v776, 2147483648
    %v780 = vmul.f32 %v779, 1.442695
    %v781 = vpow.pop %v780
    %v782 = vadd.f32 %v781, 1.0
    %v783 = vrcp.pop %v782
    %v784 = vmul.f32 1.0, %v783
    %v785 = vtanh.pop %v776
    %v786 = vmul.f32 %v784, %v687
    %788 = vrot.lane.b32.xlu0 %v785, 64
    %v789 = vpop.permute.xlu0 %788
    %v791 = vmul.f32 %v784, %v789
    %793 = vrot.lane.b32.xlu0 %v791, 32
    %v794 = vpop.permute.xlu0 %793
    %v796 = vadd.f32 %v786, %v794
    %v797 = vtanh.pop %v796
    %799 = vrot.lane.b32.xlu0 %v797, 64
    %v800 = vpop.permute.xlu0 %799
    %v802 = vmul.f32 %v784, %v800
    %vm803 = vcmp.gt.f32.partialorder %v691, 0.0
    %v804 = vsel %vm803, 1, 0
    %805 = vset.pattern.permute.xlu0 0
    %806 = vperm.xlu0 %805, %v804
    %v807 = vpop.permute.xlu0 %806
    %vm808 = vcmp.eq.s32.totalorder %v807, 1
    %v809 = vsel %vm808, %v802, %v686
    %v810 = vsel %vm808, %v796, %v687
    %s811 = scalar_lea.vmem %s0, 48
    %v812 = vld [vmem:[%s811] sm:$0xff]
    %s813 = scalar_lea.vmem %s1, 48
    %v814 = vld [vmem:[%s813] sm:$0xff]
    %s815 = scalar_lea.vmem %s2, 48
    %v816 = vld [vmem:[%s815] sm:$0xff]
    %vm817 = vcmp.gt.f32.partialorder %v816, 0.0
    %v818 = vsel %vm817, 1, 0
    %819 = vset.pattern.permute.xlu0 0
    %820 = vperm.xlu0 %819, %v818
    %v821 = vpop.permute.xlu0 %820
    %vm822 = vcmp.eq.s32.totalorder %v821, 1
    %v823 = vsel %vm822, %v809, %v700
    %825 = vrot.lane.b32.xlu0 %v809, 48
    %v826 = vpop.permute.xlu0 %825
    %v828 = vsel %vm71, %v812, %v826
    %v830 = vsel %vm79, %v828, 0
    %832 = vmatprep.subr.mxu0 0.0
    %833 = vmatpush1.msra.mxu0 %v47
    %834 = vmatprep.subr.mxu0 0.0
    %835 = vmatpush1.msra.mxu0 %v48
    %836 = vmatprep.subr.mxu0 0.0
    %837 = vmatpush1.msra.mxu0 %v49
    %838 = vmatprep.subr.mxu0 0.0
    %839 = vmatpush1.msra.mxu0 %v50
    %840 = vmatprep.subr.mxu0 0.0
    %841 = vmatpush1.msra.mxu0 %v51
    %842 = vmatprep.subr.mxu0 0.0
    %843 = vmatpush1.msra.mxu0 %v52
    %844 = vmatprep.subr.mxu0 0.0
    %845 = vmatpush1.msra.mxu0 0.0
    %846 = vmatprep.subr.mxu0 0.0
    %847 = vmatpush1.msra.mxu0 0.0
    %848 = vmatprep.subr.mxu0 0.0
    %849 = vmatpush1.msra.mxu0 0.0
    %850 = vmatprep.subr.mxu0 0.0
    %851 = vmatpush1.msra.mxu0 0.0
    %852 = vmatprep.subr.mxu0 0.0
    %853 = vmatpush1.msra.mxu0 0.0
    %854 = vmatprep.subr.mxu0 0.0
    %855 = vmatpush1.msra.mxu0 0.0
    %856 = vmatprep.subr.mxu0 0.0
    %857 = vmatpush1.msra.mxu0 0.0
    %858 = vmatprep.subr.mxu0 0.0
    %859 = vmatpush1.msra.mxu0 0.0
    %860 = vmatprep.subr.mxu0 0.0
    %861 = vmatpush1.msra.mxu0 0.0
    %862 = vmatprep.subr.mxu0 0.0
    %863 = vmatpush1.msra.mxu0 0.0
    %864 = vmatprep.subr.mxu0 0.0
    %865 = vmatpush1.msra.mxu0 0.0
    %866 = vmatprep.subr.mxu0 0.0
    %867 = vmatpush1.msra.mxu0 0.0
    %868 = vmatprep.subr.mxu0 0.0
    %869 = vmatpush1.msra.mxu0 0.0
    %870 = vmatprep.subr.mxu0 0.0
    %871 = vmatpush1.msra.mxu0 0.0
    %872 = vmatprep.subr.mxu0 0.0
    %873 = vmatpush1.msra.mxu0 0.0
    %874 = vmatprep.subr.mxu0 0.0
    %875 = vmatpush1.msra.mxu0 0.0
    %876 = vmatprep.subr.mxu0 0.0
    %877 = vmatpush1.msra.mxu0 0.0
    %878 = vmatprep.subr.mxu0 0.0
    %879 = vmatpush1.msra.mxu0 0.0
    %880 = vmatprep.subr.mxu0 0.0
    %881 = vmatpush1.msra.mxu0 0.0
    %882 = vmatprep.subr.mxu0 0.0
    %883 = vmatpush1.msra.mxu0 0.0
    %884 = vmatprep.subr.mxu0 0.0
    %885 = vmatpush1.msra.mxu0 0.0
    %886 = vmatprep.subr.mxu0 0.0
    %887 = vmatpush1.msra.mxu0 0.0
    %888 = vmatprep.subr.mxu0 0.0
    %889 = vmatpush1.msra.mxu0 0.0
    %890 = vmatprep.subr.mxu0 0.0
    %891 = vmatpush1.msra.mxu0 0.0
    %892 = vmatprep.subr.mxu0 0.0
    %893 = vmatpush1.msra.mxu0 0.0
    %894 = vmatprep.subr.mxu0 0.0
    %895 = vmatpush1.msra.mxu0 0.0
    %896 = vmatprep.mubr.f32.mxu0 0.0
    %897 = vmatmul.mubr.f32.gmra.mrb[0].mxu0 %v830
    %v898 = vpop.f32.mrb[0].mxu0
    %v899 = vadd.f32 %v77, %v898
    %v900 = vpop.f32.mrb[0].mxu0
    %901 = vdwg.mxu0
    %v902 = vxor.u32 %v899, 2147483648
    %v903 = vmul.f32 %v902, 1.442695
    %v904 = vpow.pop %v903
    %v905 = vadd.f32 %v904, 1.0
    %v906 = vrcp.pop %v905
    %v907 = vmul.f32 1.0, %v906
    %v908 = vtanh.pop %v899
    %v909 = vmul.f32 %v907, %v810
    %911 = vrot.lane.b32.xlu0 %v908, 64
    %v912 = vpop.permute.xlu0 %911
    %v914 = vmul.f32 %v907, %v912
    %916 = vrot.lane.b32.xlu0 %v914, 32
    %v917 = vpop.permute.xlu0 %916
    %v919 = vadd.f32 %v909, %v917
    %v920 = vtanh.pop %v919
    %922 = vrot.lane.b32.xlu0 %v920, 64
    %v923 = vpop.permute.xlu0 %922
    %v925 = vmul.f32 %v907, %v923
    %vm926 = vcmp.gt.f32.partialorder %v814, 0.0
    %v927 = vsel %vm926, 1, 0
    %928 = vset.pattern.permute.xlu0 0
    %929 = vperm.xlu0 %928, %v927
    %v930 = vpop.permute.xlu0 %929
    %vm931 = vcmp.eq.s32.totalorder %v930, 1
    %v932 = vsel %vm931, %v925, %v809
    %v933 = vsel %vm931, %v919, %v810
    %s934 = scalar_lea.vmem %s0, 56
    %v935 = vld [vmem:[%s934] sm:$0xff]
    %s936 = scalar_lea.vmem %s1, 56
    %v937 = vld [vmem:[%s936] sm:$0xff]
    %s938 = scalar_lea.vmem %s2, 56
    %v939 = vld [vmem:[%s938] sm:$0xff]
    %vm940 = vcmp.gt.f32.partialorder %v939, 0.0
    %v941 = vsel %vm940, 1, 0
    %942 = vset.pattern.permute.xlu0 0
    %943 = vperm.xlu0 %942, %v941
    %v944 = vpop.permute.xlu0 %943
    %vm945 = vcmp.eq.s32.totalorder %v944, 1
    %v946 = vsel %vm945, %v932, %v823
    %948 = vrot.lane.b32.xlu0 %v932, 48
    %v949 = vpop.permute.xlu0 %948
    %v951 = vsel %vm71, %v935, %v949
    %v953 = vsel %vm79, %v951, 0
    %955 = vmatprep.subr.mxu0 0.0
    %956 = vmatpush1.msra.mxu0 %v47
    %957 = vmatprep.subr.mxu0 0.0
    %958 = vmatpush1.msra.mxu0 %v48
    %959 = vmatprep.subr.mxu0 0.0
    %960 = vmatpush1.msra.mxu0 %v49
    %961 = vmatprep.subr.mxu0 0.0
    %962 = vmatpush1.msra.mxu0 %v50
    %963 = vmatprep.subr.mxu0 0.0
    %964 = vmatpush1.msra.mxu0 %v51
    %965 = vmatprep.subr.mxu0 0.0
    %966 = vmatpush1.msra.mxu0 %v52
    %967 = vmatprep.subr.mxu0 0.0
    %968 = vmatpush1.msra.mxu0 0.0
    %969 = vmatprep.subr.mxu0 0.0
    %970 = vmatpush1.msra.mxu0 0.0
    %971 = vmatprep.subr.mxu0 0.0
    %972 = vmatpush1.msra.mxu0 0.0
    %973 = vmatprep.subr.mxu0 0.0
    %974 = vmatpush1.msra.mxu0 0.0
    %975 = vmatprep.subr.mxu0 0.0
    %976 = vmatpush1.msra.mxu0 0.0
    %977 = vmatprep.subr.mxu0 0.0
    %978 = vmatpush1.msra.mxu0 0.0
    %979 = vmatprep.subr.mxu0 0.0
    %980 = vmatpush1.msra.mxu0 0.0
    %981 = vmatprep.subr.mxu0 0.0
    %982 = vmatpush1.msra.mxu0 0.0
    %983 = vmatprep.subr.mxu0 0.0
    %984 = vmatpush1.msra.mxu0 0.0
    %985 = vmatprep.subr.mxu0 0.0
    %986 = vmatpush1.msra.mxu0 0.0
    %987 = vmatprep.subr.mxu0 0.0
    %988 = vmatpush1.msra.mxu0 0.0
    %989 = vmatprep.subr.mxu0 0.0
    %990 = vmatpush1.msra.mxu0 0.0
    %991 = vmatprep.subr.mxu0 0.0
    %992 = vmatpush1.msra.mxu0 0.0
    %993 = vmatprep.subr.mxu0 0.0
    %994 = vmatpush1.msra.mxu0 0.0
    %995 = vmatprep.subr.mxu0 0.0
    %996 = vmatpush1.msra.mxu0 0.0
    %997 = vmatprep.subr.mxu0 0.0
    %998 = vmatpush1.msra.mxu0 0.0
    %999 = vmatprep.subr.mxu0 0.0
    %1000 = vmatpush1.msra.mxu0 0.0
    %1001 = vmatprep.subr.mxu0 0.0
    %1002 = vmatpush1.msra.mxu0 0.0
    %1003 = vmatprep.subr.mxu0 0.0
    %1004 = vmatpush1.msra.mxu0 0.0
    %1005 = vmatprep.subr.mxu0 0.0
    %1006 = vmatpush1.msra.mxu0 0.0
    %1007 = vmatprep.subr.mxu0 0.0
    %1008 = vmatpush1.msra.mxu0 0.0
    %1009 = vmatprep.subr.mxu0 0.0
    %1010 = vmatpush1.msra.mxu0 0.0
    %1011 = vmatprep.subr.mxu0 0.0
    %1012 = vmatpush1.msra.mxu0 0.0
    %1013 = vmatprep.subr.mxu0 0.0
    %1014 = vmatpush1.msra.mxu0 0.0
    %1015 = vmatprep.subr.mxu0 0.0
    %1016 = vmatpush1.msra.mxu0 0.0
    %1017 = vmatprep.subr.mxu0 0.0
    %1018 = vmatpush1.msra.mxu0 0.0
    %1019 = vmatprep.mubr.f32.mxu0 0.0
    %1020 = vmatmul.mubr.f32.gmra.mrb[0].mxu0 %v953
    %v1021 = vpop.f32.mrb[0].mxu0
    %v1022 = vadd.f32 %v77, %v1021
    %v1023 = vpop.f32.mrb[0].mxu0
    %1024 = vdwg.mxu0
    %v1025 = vxor.u32 %v1022, 2147483648
    %v1026 = vmul.f32 %v1025, 1.442695
    %v1027 = vpow.pop %v1026
    %v1028 = vadd.f32 %v1027, 1.0
    %v1029 = vrcp.pop %v1028
    %v1030 = vmul.f32 1.0, %v1029
    %v1031 = vtanh.pop %v1022
    %v1032 = vmul.f32 %v1030, %v933
    %1034 = vrot.lane.b32.xlu0 %v1031, 64
    %v1035 = vpop.permute.xlu0 %1034
    %v1037 = vmul.f32 %v1030, %v1035
    %1039 = vrot.lane.b32.xlu0 %v1037, 32
    %v1040 = vpop.permute.xlu0 %1039
    %v1042 = vadd.f32 %v1032, %v1040
    %v1043 = vtanh.pop %v1042
    %1045 = vrot.lane.b32.xlu0 %v1043, 64
    %v1046 = vpop.permute.xlu0 %1045
    %v1048 = vmul.f32 %v1030, %v1046
    %vm1049 = vcmp.gt.f32.partialorder %v937, 0.0
    %v1050 = vsel %vm1049, 1, 0
    %1051 = vset.pattern.permute.xlu0 0
    %1052 = vperm.xlu0 %1051, %v1050
    %v1053 = vpop.permute.xlu0 %1052
    %vm1054 = vcmp.eq.s32.totalorder %v1053, 1
    %v1055 = vsel %vm1054, %v1048, %v932
    %v1056 = vsel %vm1054, %v1042, %v933
    %s1057 = scalar_lea.vmem %s0, 64
    %v1058 = vld [vmem:[%s1057] sm:$0xff]
    %s1059 = scalar_lea.vmem %s1, 64
    %v1060 = vld [vmem:[%s1059] sm:$0xff]
    %s1061 = scalar_lea.vmem %s2, 64
    %v1062 = vld [vmem:[%s1061] sm:$0xff]
    %vm1063 = vcmp.gt.f32.partialorder %v1062, 0.0
    %v1064 = vsel %vm1063, 1, 0
    %1065 = vset.pattern.permute.xlu0 0
    %1066 = vperm.xlu0 %1065, %v1064
    %v1067 = vpop.permute.xlu0 %1066
    %vm1068 = vcmp.eq.s32.totalorder %v1067, 1
    %v1069 = vsel %vm1068, %v1055, %v946
    %1071 = vrot.lane.b32.xlu0 %v1055, 48
    %v1072 = vpop.permute.xlu0 %1071
    %v1074 = vsel %vm71, %v1058, %v1072
    %v1076 = vsel %vm79, %v1074, 0
    %1078 = vmatprep.subr.mxu0 0.0
    %1079 = vmatpush1.msra.mxu0 %v47
    %1080 = vmatprep.subr.mxu0 0.0
    %1081 = vmatpush1.msra.mxu0 %v48
    %1082 = vmatprep.subr.mxu0 0.0
    %1083 = vmatpush1.msra.mxu0 %v49
    %1084 = vmatprep.subr.mxu0 0.0
    %1085 = vmatpush1.msra.mxu0 %v50
    %1086 = vmatprep.subr.mxu0 0.0
    %1087 = vmatpush1.msra.mxu0 %v51
    %1088 = vmatprep.subr.mxu0 0.0
    %1089 = vmatpush1.msra.mxu0 %v52
    %1090 = vmatprep.subr.mxu0 0.0
    %1091 = vmatpush1.msra.mxu0 0.0
    %1092 = vmatprep.subr.mxu0 0.0
    %1093 = vmatpush1.msra.mxu0 0.0
    %1094 = vmatprep.subr.mxu0 0.0
    %1095 = vmatpush1.msra.mxu0 0.0
    %1096 = vmatprep.subr.mxu0 0.0
    %1097 = vmatpush1.msra.mxu0 0.0
    %1098 = vmatprep.subr.mxu0 0.0
    %1099 = vmatpush1.msra.mxu0 0.0
    %1100 = vmatprep.subr.mxu0 0.0
    %1101 = vmatpush1.msra.mxu0 0.0
    %1102 = vmatprep.subr.mxu0 0.0
    %1103 = vmatpush1.msra.mxu0 0.0
    %1104 = vmatprep.subr.mxu0 0.0
    %1105 = vmatpush1.msra.mxu0 0.0
    %1106 = vmatprep.subr.mxu0 0.0
    %1107 = vmatpush1.msra.mxu0 0.0
    %1108 = vmatprep.subr.mxu0 0.0
    %1109 = vmatpush1.msra.mxu0 0.0
    %1110 = vmatprep.subr.mxu0 0.0
    %1111 = vmatpush1.msra.mxu0 0.0
    %1112 = vmatprep.subr.mxu0 0.0
    %1113 = vmatpush1.msra.mxu0 0.0
    %1114 = vmatprep.subr.mxu0 0.0
    %1115 = vmatpush1.msra.mxu0 0.0
    %1116 = vmatprep.subr.mxu0 0.0
    %1117 = vmatpush1.msra.mxu0 0.0
    %1118 = vmatprep.subr.mxu0 0.0
    %1119 = vmatpush1.msra.mxu0 0.0
    %1120 = vmatprep.subr.mxu0 0.0
    %1121 = vmatpush1.msra.mxu0 0.0
    %1122 = vmatprep.subr.mxu0 0.0
    %1123 = vmatpush1.msra.mxu0 0.0
    %1124 = vmatprep.subr.mxu0 0.0
    %1125 = vmatpush1.msra.mxu0 0.0
    %1126 = vmatprep.subr.mxu0 0.0
    %1127 = vmatpush1.msra.mxu0 0.0
    %1128 = vmatprep.subr.mxu0 0.0
    %1129 = vmatpush1.msra.mxu0 0.0
    %1130 = vmatprep.subr.mxu0 0.0
    %1131 = vmatpush1.msra.mxu0 0.0
    %1132 = vmatprep.subr.mxu0 0.0
    %1133 = vmatpush1.msra.mxu0 0.0
    %1134 = vmatprep.subr.mxu0 0.0
    %1135 = vmatpush1.msra.mxu0 0.0
    %1136 = vmatprep.subr.mxu0 0.0
    %1137 = vmatpush1.msra.mxu0 0.0
    %1138 = vmatprep.subr.mxu0 0.0
    %1139 = vmatpush1.msra.mxu0 0.0
    %1140 = vmatprep.subr.mxu0 0.0
    %1141 = vmatpush1.msra.mxu0 0.0
    %1142 = vmatprep.mubr.f32.mxu0 0.0
    %1143 = vmatmul.mubr.f32.gmra.mrb[0].mxu0 %v1076
    %v1144 = vpop.f32.mrb[0].mxu0
    %v1145 = vadd.f32 %v77, %v1144
    %v1146 = vpop.f32.mrb[0].mxu0
    %1147 = vdwg.mxu0
    %v1148 = vxor.u32 %v1145, 2147483648
    %v1149 = vmul.f32 %v1148, 1.442695
    %v1150 = vpow.pop %v1149
    %v1151 = vadd.f32 %v1150, 1.0
    %v1152 = vrcp.pop %v1151
    %v1153 = vmul.f32 1.0, %v1152
    %v1154 = vtanh.pop %v1145
    %v1155 = vmul.f32 %v1153, %v1056
    %1157 = vrot.lane.b32.xlu0 %v1154, 64
    %v1158 = vpop.permute.xlu0 %1157
    %v1160 = vmul.f32 %v1153, %v1158
    %1162 = vrot.lane.b32.xlu0 %v1160, 32
    %v1163 = vpop.permute.xlu0 %1162
    %v1165 = vadd.f32 %v1155, %v1163
    %v1166 = vtanh.pop %v1165
    %1168 = vrot.lane.b32.xlu0 %v1166, 64
    %v1169 = vpop.permute.xlu0 %1168
    %v1171 = vmul.f32 %v1153, %v1169
    %vm1172 = vcmp.gt.f32.partialorder %v1060, 0.0
    %v1173 = vsel %vm1172, 1, 0
    %1174 = vset.pattern.permute.xlu0 0
    %1175 = vperm.xlu0 %1174, %v1173
    %v1176 = vpop.permute.xlu0 %1175
    %vm1177 = vcmp.eq.s32.totalorder %v1176, 1
    %v1178 = vsel %vm1177, %v1171, %v1055
    %v1179 = vsel %vm1177, %v1165, %v1056
    %s1180 = scalar_lea.vmem %s0, 72
    %v1181 = vld [vmem:[%s1180] sm:$0xff]
    %s1182 = scalar_lea.vmem %s1, 72
    %v1183 = vld [vmem:[%s1182] sm:$0xff]
    %s1184 = scalar_lea.vmem %s2, 72
    %v1185 = vld [vmem:[%s1184] sm:$0xff]
    %vm1186 = vcmp.gt.f32.partialorder %v1185, 0.0
    %v1187 = vsel %vm1186, 1, 0
    %1188 = vset.pattern.permute.xlu0 0
    %1189 = vperm.xlu0 %1188, %v1187
    %v1190 = vpop.permute.xlu0 %1189
    %vm1191 = vcmp.eq.s32.totalorder %v1190, 1
    %v1192 = vsel %vm1191, %v1178, %v1069
    %1194 = vrot.lane.b32.xlu0 %v1178, 48
    %v1195 = vpop.permute.xlu0 %1194
    %v1197 = vsel %vm71, %v1181, %v1195
    %v1199 = vsel %vm79, %v1197, 0
    %1201 = vmatprep.subr.mxu0 0.0
    %1202 = vmatpush1.msra.mxu0 %v47
    %1203 = vmatprep.subr.mxu0 0.0
    %1204 = vmatpush1.msra.mxu0 %v48
    %1205 = vmatprep.subr.mxu0 0.0
    %1206 = vmatpush1.msra.mxu0 %v49
    %1207 = vmatprep.subr.mxu0 0.0
    %1208 = vmatpush1.msra.mxu0 %v50
    %1209 = vmatprep.subr.mxu0 0.0
    %1210 = vmatpush1.msra.mxu0 %v51
    %1211 = vmatprep.subr.mxu0 0.0
    %1212 = vmatpush1.msra.mxu0 %v52
    %1213 = vmatprep.subr.mxu0 0.0
    %1214 = vmatpush1.msra.mxu0 0.0
    %1215 = vmatprep.subr.mxu0 0.0
    %1216 = vmatpush1.msra.mxu0 0.0
    %1217 = vmatprep.subr.mxu0 0.0
    %1218 = vmatpush1.msra.mxu0 0.0
    %1219 = vmatprep.subr.mxu0 0.0
    %1220 = vmatpush1.msra.mxu0 0.0
    %1221 = vmatprep.subr.mxu0 0.0
    %1222 = vmatpush1.msra.mxu0 0.0
    %1223 = vmatprep.subr.mxu0 0.0
    %1224 = vmatpush1.msra.mxu0 0.0
    %1225 = vmatprep.subr.mxu0 0.0
    %1226 = vmatpush1.msra.mxu0 0.0
    %1227 = vmatprep.subr.mxu0 0.0
    %1228 = vmatpush1.msra.mxu0 0.0
    %1229 = vmatprep.subr.mxu0 0.0
    %1230 = vmatpush1.msra.mxu0 0.0
    %1231 = vmatprep.subr.mxu0 0.0
    %1232 = vmatpush1.msra.mxu0 0.0
    %1233 = vmatprep.subr.mxu0 0.0
    %1234 = vmatpush1.msra.mxu0 0.0
    %1235 = vmatprep.subr.mxu0 0.0
    %1236 = vmatpush1.msra.mxu0 0.0
    %1237 = vmatprep.subr.mxu0 0.0
    %1238 = vmatpush1.msra.mxu0 0.0
    %1239 = vmatprep.subr.mxu0 0.0
    %1240 = vmatpush1.msra.mxu0 0.0
    %1241 = vmatprep.subr.mxu0 0.0
    %1242 = vmatpush1.msra.mxu0 0.0
    %1243 = vmatprep.subr.mxu0 0.0
    %1244 = vmatpush1.msra.mxu0 0.0
    %1245 = vmatprep.subr.mxu0 0.0
    %1246 = vmatpush1.msra.mxu0 0.0
    %1247 = vmatprep.subr.mxu0 0.0
    %1248 = vmatpush1.msra.mxu0 0.0
    %1249 = vmatprep.subr.mxu0 0.0
    %1250 = vmatpush1.msra.mxu0 0.0
    %1251 = vmatprep.subr.mxu0 0.0
    %1252 = vmatpush1.msra.mxu0 0.0
    %1253 = vmatprep.subr.mxu0 0.0
    %1254 = vmatpush1.msra.mxu0 0.0
    %1255 = vmatprep.subr.mxu0 0.0
    %1256 = vmatpush1.msra.mxu0 0.0
    %1257 = vmatprep.subr.mxu0 0.0
    %1258 = vmatpush1.msra.mxu0 0.0
    %1259 = vmatprep.subr.mxu0 0.0
    %1260 = vmatpush1.msra.mxu0 0.0
    %1261 = vmatprep.subr.mxu0 0.0
    %1262 = vmatpush1.msra.mxu0 0.0
    %1263 = vmatprep.subr.mxu0 0.0
    %1264 = vmatpush1.msra.mxu0 0.0
    %1265 = vmatprep.mubr.f32.mxu0 0.0
    %1266 = vmatmul.mubr.f32.gmra.mrb[0].mxu0 %v1199
    %v1267 = vpop.f32.mrb[0].mxu0
    %v1268 = vadd.f32 %v77, %v1267
    %v1269 = vpop.f32.mrb[0].mxu0
    %1270 = vdwg.mxu0
    %v1271 = vxor.u32 %v1268, 2147483648
    %v1272 = vmul.f32 %v1271, 1.442695
    %v1273 = vpow.pop %v1272
    %v1274 = vadd.f32 %v1273, 1.0
    %v1275 = vrcp.pop %v1274
    %v1276 = vmul.f32 1.0, %v1275
    %v1277 = vtanh.pop %v1268
    %v1278 = vmul.f32 %v1276, %v1179
    %1280 = vrot.lane.b32.xlu0 %v1277, 64
    %v1281 = vpop.permute.xlu0 %1280
    %v1283 = vmul.f32 %v1276, %v1281
    %1285 = vrot.lane.b32.xlu0 %v1283, 32
    %v1286 = vpop.permute.xlu0 %1285
    %v1288 = vadd.f32 %v1278, %v1286
    %v1289 = vtanh.pop %v1288
    %1291 = vrot.lane.b32.xlu0 %v1289, 64
    %v1292 = vpop.permute.xlu0 %1291
    %v1294 = vmul.f32 %v1276, %v1292
    %vm1295 = vcmp.gt.f32.partialorder %v1183, 0.0
    %v1296 = vsel %vm1295, 1, 0
    %1297 = vset.pattern.permute.xlu0 0
    %1298 = vperm.xlu0 %1297, %v1296
    %v1299 = vpop.permute.xlu0 %1298
    %vm1300 = vcmp.eq.s32.totalorder %v1299, 1
    %v1301 = vsel %vm1300, %v1294, %v1178
    %v1302 = vsel %vm1300, %v1288, %v1179
    %s1303 = scalar_lea.vmem %s0, 80
    %v1304 = vld [vmem:[%s1303] sm:$0xff]
    %s1305 = scalar_lea.vmem %s1, 80
    %v1306 = vld [vmem:[%s1305] sm:$0xff]
    %s1307 = scalar_lea.vmem %s2, 80
    %v1308 = vld [vmem:[%s1307] sm:$0xff]
    %vm1309 = vcmp.gt.f32.partialorder %v1308, 0.0
    %v1310 = vsel %vm1309, 1, 0
    %1311 = vset.pattern.permute.xlu0 0
    %1312 = vperm.xlu0 %1311, %v1310
    %v1313 = vpop.permute.xlu0 %1312
    %vm1314 = vcmp.eq.s32.totalorder %v1313, 1
    %v1315 = vsel %vm1314, %v1301, %v1192
    %1317 = vrot.lane.b32.xlu0 %v1301, 48
    %v1318 = vpop.permute.xlu0 %1317
    %v1320 = vsel %vm71, %v1304, %v1318
    %v1322 = vsel %vm79, %v1320, 0
    %1324 = vmatprep.subr.mxu0 0.0
    %1325 = vmatpush1.msra.mxu0 %v47
    %1326 = vmatprep.subr.mxu0 0.0
    %1327 = vmatpush1.msra.mxu0 %v48
    %1328 = vmatprep.subr.mxu0 0.0
    %1329 = vmatpush1.msra.mxu0 %v49
    %1330 = vmatprep.subr.mxu0 0.0
    %1331 = vmatpush1.msra.mxu0 %v50
    %1332 = vmatprep.subr.mxu0 0.0
    %1333 = vmatpush1.msra.mxu0 %v51
    %1334 = vmatprep.subr.mxu0 0.0
    %1335 = vmatpush1.msra.mxu0 %v52
    %1336 = vmatprep.subr.mxu0 0.0
    %1337 = vmatpush1.msra.mxu0 0.0
    %1338 = vmatprep.subr.mxu0 0.0
    %1339 = vmatpush1.msra.mxu0 0.0
    %1340 = vmatprep.subr.mxu0 0.0
    %1341 = vmatpush1.msra.mxu0 0.0
    %1342 = vmatprep.subr.mxu0 0.0
    %1343 = vmatpush1.msra.mxu0 0.0
    %1344 = vmatprep.subr.mxu0 0.0
    %1345 = vmatpush1.msra.mxu0 0.0
    %1346 = vmatprep.subr.mxu0 0.0
    %1347 = vmatpush1.msra.mxu0 0.0
    %1348 = vmatprep.subr.mxu0 0.0
    %1349 = vmatpush1.msra.mxu0 0.0
    %1350 = vmatprep.subr.mxu0 0.0
    %1351 = vmatpush1.msra.mxu0 0.0
    %1352 = vmatprep.subr.mxu0 0.0
    %1353 = vmatpush1.msra.mxu0 0.0
    %1354 = vmatprep.subr.mxu0 0.0
    %1355 = vmatpush1.msra.mxu0 0.0
    %1356 = vmatprep.subr.mxu0 0.0
    %1357 = vmatpush1.msra.mxu0 0.0
    %1358 = vmatprep.subr.mxu0 0.0
    %1359 = vmatpush1.msra.mxu0 0.0
    %1360 = vmatprep.subr.mxu0 0.0
    %1361 = vmatpush1.msra.mxu0 0.0
    %1362 = vmatprep.subr.mxu0 0.0
    %1363 = vmatpush1.msra.mxu0 0.0
    %1364 = vmatprep.subr.mxu0 0.0
    %1365 = vmatpush1.msra.mxu0 0.0
    %1366 = vmatprep.subr.mxu0 0.0
    %1367 = vmatpush1.msra.mxu0 0.0
    %1368 = vmatprep.subr.mxu0 0.0
    %1369 = vmatpush1.msra.mxu0 0.0
    %1370 = vmatprep.subr.mxu0 0.0
    %1371 = vmatpush1.msra.mxu0 0.0
    %1372 = vmatprep.subr.mxu0 0.0
    %1373 = vmatpush1.msra.mxu0 0.0
    %1374 = vmatprep.subr.mxu0 0.0
    %1375 = vmatpush1.msra.mxu0 0.0
    %1376 = vmatprep.subr.mxu0 0.0
    %1377 = vmatpush1.msra.mxu0 0.0
    %1378 = vmatprep.subr.mxu0 0.0
    %1379 = vmatpush1.msra.mxu0 0.0
    %1380 = vmatprep.subr.mxu0 0.0
    %1381 = vmatpush1.msra.mxu0 0.0
    %1382 = vmatprep.subr.mxu0 0.0
    %1383 = vmatpush1.msra.mxu0 0.0
    %1384 = vmatprep.subr.mxu0 0.0
    %1385 = vmatpush1.msra.mxu0 0.0
    %1386 = vmatprep.subr.mxu0 0.0
    %1387 = vmatpush1.msra.mxu0 0.0
    %1388 = vmatprep.mubr.f32.mxu0 0.0
    %1389 = vmatmul.mubr.f32.gmra.mrb[0].mxu0 %v1322
    %v1390 = vpop.f32.mrb[0].mxu0
    %v1391 = vadd.f32 %v77, %v1390
    %v1392 = vpop.f32.mrb[0].mxu0
    %1393 = vdwg.mxu0
    %v1394 = vxor.u32 %v1391, 2147483648
    %v1395 = vmul.f32 %v1394, 1.442695
    %v1396 = vpow.pop %v1395
    %v1397 = vadd.f32 %v1396, 1.0
    %v1398 = vrcp.pop %v1397
    %v1399 = vmul.f32 1.0, %v1398
    %v1400 = vtanh.pop %v1391
    %v1401 = vmul.f32 %v1399, %v1302
    %1403 = vrot.lane.b32.xlu0 %v1400, 64
    %v1404 = vpop.permute.xlu0 %1403
    %v1406 = vmul.f32 %v1399, %v1404
    %1408 = vrot.lane.b32.xlu0 %v1406, 32
    %v1409 = vpop.permute.xlu0 %1408
    %v1411 = vadd.f32 %v1401, %v1409
    %v1412 = vtanh.pop %v1411
    %1414 = vrot.lane.b32.xlu0 %v1412, 64
    %v1415 = vpop.permute.xlu0 %1414
    %v1417 = vmul.f32 %v1399, %v1415
    %vm1418 = vcmp.gt.f32.partialorder %v1306, 0.0
    %v1419 = vsel %vm1418, 1, 0
    %1420 = vset.pattern.permute.xlu0 0
    %1421 = vperm.xlu0 %1420, %v1419
    %v1422 = vpop.permute.xlu0 %1421
    %vm1423 = vcmp.eq.s32.totalorder %v1422, 1
    %v1424 = vsel %vm1423, %v1417, %v1301
    %v1425 = vsel %vm1423, %v1411, %v1302
    %s1426 = scalar_lea.vmem %s0, 88
    %v1427 = vld [vmem:[%s1426] sm:$0xff]
    %s1428 = scalar_lea.vmem %s1, 88
    %v1429 = vld [vmem:[%s1428] sm:$0xff]
    %s1430 = scalar_lea.vmem %s2, 88
    %v1431 = vld [vmem:[%s1430] sm:$0xff]
    %vm1432 = vcmp.gt.f32.partialorder %v1431, 0.0
    %v1433 = vsel %vm1432, 1, 0
    %1434 = vset.pattern.permute.xlu0 0
    %1435 = vperm.xlu0 %1434, %v1433
    %v1436 = vpop.permute.xlu0 %1435
    %vm1437 = vcmp.eq.s32.totalorder %v1436, 1
    %v1438 = vsel %vm1437, %v1424, %v1315
    %1440 = vrot.lane.b32.xlu0 %v1424, 48
    %v1441 = vpop.permute.xlu0 %1440
    %v1443 = vsel %vm71, %v1427, %v1441
    %v1445 = vsel %vm79, %v1443, 0
    %1447 = vmatprep.subr.mxu0 0.0
    %1448 = vmatpush1.msra.mxu0 %v47
    %1449 = vmatprep.subr.mxu0 0.0
    %1450 = vmatpush1.msra.mxu0 %v48
    %1451 = vmatprep.subr.mxu0 0.0
    %1452 = vmatpush1.msra.mxu0 %v49
    %1453 = vmatprep.subr.mxu0 0.0
    %1454 = vmatpush1.msra.mxu0 %v50
    %1455 = vmatprep.subr.mxu0 0.0
    %1456 = vmatpush1.msra.mxu0 %v51
    %1457 = vmatprep.subr.mxu0 0.0
    %1458 = vmatpush1.msra.mxu0 %v52
    %1459 = vmatprep.subr.mxu0 0.0
    %1460 = vmatpush1.msra.mxu0 0.0
    %1461 = vmatprep.subr.mxu0 0.0
    %1462 = vmatpush1.msra.mxu0 0.0
    %1463 = vmatprep.subr.mxu0 0.0
    %1464 = vmatpush1.msra.mxu0 0.0
    %1465 = vmatprep.subr.mxu0 0.0
    %1466 = vmatpush1.msra.mxu0 0.0
    %1467 = vmatprep.subr.mxu0 0.0
    %1468 = vmatpush1.msra.mxu0 0.0
    %1469 = vmatprep.subr.mxu0 0.0
    %1470 = vmatpush1.msra.mxu0 0.0
    %1471 = vmatprep.subr.mxu0 0.0
    %1472 = vmatpush1.msra.mxu0 0.0
    %1473 = vmatprep.subr.mxu0 0.0
    %1474 = vmatpush1.msra.mxu0 0.0
    %1475 = vmatprep.subr.mxu0 0.0
    %1476 = vmatpush1.msra.mxu0 0.0
    %1477 = vmatprep.subr.mxu0 0.0
    %1478 = vmatpush1.msra.mxu0 0.0
    %1479 = vmatprep.subr.mxu0 0.0
    %1480 = vmatpush1.msra.mxu0 0.0
    %1481 = vmatprep.subr.mxu0 0.0
    %1482 = vmatpush1.msra.mxu0 0.0
    %1483 = vmatprep.subr.mxu0 0.0
    %1484 = vmatpush1.msra.mxu0 0.0
    %1485 = vmatprep.subr.mxu0 0.0
    %1486 = vmatpush1.msra.mxu0 0.0
    %1487 = vmatprep.subr.mxu0 0.0
    %1488 = vmatpush1.msra.mxu0 0.0
    %1489 = vmatprep.subr.mxu0 0.0
    %1490 = vmatpush1.msra.mxu0 0.0
    %1491 = vmatprep.subr.mxu0 0.0
    %1492 = vmatpush1.msra.mxu0 0.0
    %1493 = vmatprep.subr.mxu0 0.0
    %1494 = vmatpush1.msra.mxu0 0.0
    %1495 = vmatprep.subr.mxu0 0.0
    %1496 = vmatpush1.msra.mxu0 0.0
    %1497 = vmatprep.subr.mxu0 0.0
    %1498 = vmatpush1.msra.mxu0 0.0
    %1499 = vmatprep.subr.mxu0 0.0
    %1500 = vmatpush1.msra.mxu0 0.0
    %1501 = vmatprep.subr.mxu0 0.0
    %1502 = vmatpush1.msra.mxu0 0.0
    %1503 = vmatprep.subr.mxu0 0.0
    %1504 = vmatpush1.msra.mxu0 0.0
    %1505 = vmatprep.subr.mxu0 0.0
    %1506 = vmatpush1.msra.mxu0 0.0
    %1507 = vmatprep.subr.mxu0 0.0
    %1508 = vmatpush1.msra.mxu0 0.0
    %1509 = vmatprep.subr.mxu0 0.0
    %1510 = vmatpush1.msra.mxu0 0.0
    %1511 = vmatprep.mubr.f32.mxu0 0.0
    %1512 = vmatmul.mubr.f32.gmra.mrb[0].mxu0 %v1445
    %v1513 = vpop.f32.mrb[0].mxu0
    %v1514 = vadd.f32 %v77, %v1513
    %v1515 = vpop.f32.mrb[0].mxu0
    %1516 = vdwg.mxu0
    %v1517 = vxor.u32 %v1514, 2147483648
    %v1518 = vmul.f32 %v1517, 1.442695
    %v1519 = vpow.pop %v1518
    %v1520 = vadd.f32 %v1519, 1.0
    %v1521 = vrcp.pop %v1520
    %v1522 = vmul.f32 1.0, %v1521
    %v1523 = vtanh.pop %v1514
    %v1524 = vmul.f32 %v1522, %v1425
    %1526 = vrot.lane.b32.xlu0 %v1523, 64
    %v1527 = vpop.permute.xlu0 %1526
    %v1529 = vmul.f32 %v1522, %v1527
    %1531 = vrot.lane.b32.xlu0 %v1529, 32
    %v1532 = vpop.permute.xlu0 %1531
    %v1534 = vadd.f32 %v1524, %v1532
    %v1535 = vtanh.pop %v1534
    %1537 = vrot.lane.b32.xlu0 %v1535, 64
    %v1538 = vpop.permute.xlu0 %1537
    %v1540 = vmul.f32 %v1522, %v1538
    %vm1541 = vcmp.gt.f32.partialorder %v1429, 0.0
    %v1542 = vsel %vm1541, 1, 0
    %1543 = vset.pattern.permute.xlu0 0
    %1544 = vperm.xlu0 %1543, %v1542
    %v1545 = vpop.permute.xlu0 %1544
    %vm1546 = vcmp.eq.s32.totalorder %v1545, 1
    %v1547 = vsel %vm1546, %v1540, %v1424
    %v1548 = vsel %vm1546, %v1534, %v1425
    %s1549 = scalar_lea.vmem %s0, 96
    %v1550 = vld [vmem:[%s1549] sm:$0xff]
    %s1551 = scalar_lea.vmem %s1, 96
    %v1552 = vld [vmem:[%s1551] sm:$0xff]
    %s1553 = scalar_lea.vmem %s2, 96
    %v1554 = vld [vmem:[%s1553] sm:$0xff]
    %vm1555 = vcmp.gt.f32.partialorder %v1554, 0.0
    %v1556 = vsel %vm1555, 1, 0
    %1557 = vset.pattern.permute.xlu0 0
    %1558 = vperm.xlu0 %1557, %v1556
    %v1559 = vpop.permute.xlu0 %1558
    %vm1560 = vcmp.eq.s32.totalorder %v1559, 1
    %v1561 = vsel %vm1560, %v1547, %v1438
    %1563 = vrot.lane.b32.xlu0 %v1547, 48
    %v1564 = vpop.permute.xlu0 %1563
    %v1566 = vsel %vm71, %v1550, %v1564
    %v1568 = vsel %vm79, %v1566, 0
    %1570 = vmatprep.subr.mxu0 0.0
    %1571 = vmatpush1.msra.mxu0 %v47
    %1572 = vmatprep.subr.mxu0 0.0
    %1573 = vmatpush1.msra.mxu0 %v48
    %1574 = vmatprep.subr.mxu0 0.0
    %1575 = vmatpush1.msra.mxu0 %v49
    %1576 = vmatprep.subr.mxu0 0.0
    %1577 = vmatpush1.msra.mxu0 %v50
    %1578 = vmatprep.subr.mxu0 0.0
    %1579 = vmatpush1.msra.mxu0 %v51
    %1580 = vmatprep.subr.mxu0 0.0
    %1581 = vmatpush1.msra.mxu0 %v52
    %1582 = vmatprep.subr.mxu0 0.0
    %1583 = vmatpush1.msra.mxu0 0.0
    %1584 = vmatprep.subr.mxu0 0.0
    %1585 = vmatpush1.msra.mxu0 0.0
    %1586 = vmatprep.subr.mxu0 0.0
    %1587 = vmatpush1.msra.mxu0 0.0
    %1588 = vmatprep.subr.mxu0 0.0
    %1589 = vmatpush1.msra.mxu0 0.0
    %1590 = vmatprep.subr.mxu0 0.0
    %1591 = vmatpush1.msra.mxu0 0.0
    %1592 = vmatprep.subr.mxu0 0.0
    %1593 = vmatpush1.msra.mxu0 0.0
    %1594 = vmatprep.subr.mxu0 0.0
    %1595 = vmatpush1.msra.mxu0 0.0
    %1596 = vmatprep.subr.mxu0 0.0
    %1597 = vmatpush1.msra.mxu0 0.0
    %1598 = vmatprep.subr.mxu0 0.0
    %1599 = vmatpush1.msra.mxu0 0.0
    %1600 = vmatprep.subr.mxu0 0.0
    %1601 = vmatpush1.msra.mxu0 0.0
    %1602 = vmatprep.subr.mxu0 0.0
    %1603 = vmatpush1.msra.mxu0 0.0
    %1604 = vmatprep.subr.mxu0 0.0
    %1605 = vmatpush1.msra.mxu0 0.0
    %1606 = vmatprep.subr.mxu0 0.0
    %1607 = vmatpush1.msra.mxu0 0.0
    %1608 = vmatprep.subr.mxu0 0.0
    %1609 = vmatpush1.msra.mxu0 0.0
    %1610 = vmatprep.subr.mxu0 0.0
    %1611 = vmatpush1.msra.mxu0 0.0
    %1612 = vmatprep.subr.mxu0 0.0
    %1613 = vmatpush1.msra.mxu0 0.0
    %1614 = vmatprep.subr.mxu0 0.0
    %1615 = vmatpush1.msra.mxu0 0.0
    %1616 = vmatprep.subr.mxu0 0.0
    %1617 = vmatpush1.msra.mxu0 0.0
    %1618 = vmatprep.subr.mxu0 0.0
    %1619 = vmatpush1.msra.mxu0 0.0
    %1620 = vmatprep.subr.mxu0 0.0
    %1621 = vmatpush1.msra.mxu0 0.0
    %1622 = vmatprep.subr.mxu0 0.0
    %1623 = vmatpush1.msra.mxu0 0.0
    %1624 = vmatprep.subr.mxu0 0.0
    %1625 = vmatpush1.msra.mxu0 0.0
    %1626 = vmatprep.subr.mxu0 0.0
    %1627 = vmatpush1.msra.mxu0 0.0
    %1628 = vmatprep.subr.mxu0 0.0
    %1629 = vmatpush1.msra.mxu0 0.0
    %1630 = vmatprep.subr.mxu0 0.0
    %1631 = vmatpush1.msra.mxu0 0.0
    %1632 = vmatprep.subr.mxu0 0.0
    %1633 = vmatpush1.msra.mxu0 0.0
    %1634 = vmatprep.mubr.f32.mxu0 0.0
    %1635 = vmatmul.mubr.f32.gmra.mrb[0].mxu0 %v1568
    %v1636 = vpop.f32.mrb[0].mxu0
    %v1637 = vadd.f32 %v77, %v1636
    %v1638 = vpop.f32.mrb[0].mxu0
    %1639 = vdwg.mxu0
    %v1640 = vxor.u32 %v1637, 2147483648
    %v1641 = vmul.f32 %v1640, 1.442695
    %v1642 = vpow.pop %v1641
    %v1643 = vadd.f32 %v1642, 1.0
    %v1644 = vrcp.pop %v1643
    %v1645 = vmul.f32 1.0, %v1644
    %v1646 = vtanh.pop %v1637
    %v1647 = vmul.f32 %v1645, %v1548
    %1649 = vrot.lane.b32.xlu0 %v1646, 64
    %v1650 = vpop.permute.xlu0 %1649
    %v1652 = vmul.f32 %v1645, %v1650
    %1654 = vrot.lane.b32.xlu0 %v1652, 32
    %v1655 = vpop.permute.xlu0 %1654
    %v1657 = vadd.f32 %v1647, %v1655
    %v1658 = vtanh.pop %v1657
    %1660 = vrot.lane.b32.xlu0 %v1658, 64
    %v1661 = vpop.permute.xlu0 %1660
    %v1663 = vmul.f32 %v1645, %v1661
    %vm1664 = vcmp.gt.f32.partialorder %v1552, 0.0
    %v1665 = vsel %vm1664, 1, 0
    %1666 = vset.pattern.permute.xlu0 0
    %1667 = vperm.xlu0 %1666, %v1665
    %v1668 = vpop.permute.xlu0 %1667
    %vm1669 = vcmp.eq.s32.totalorder %v1668, 1
    %v1670 = vsel %vm1669, %v1663, %v1547
    %v1671 = vsel %vm1669, %v1657, %v1548
    %s1672 = scalar_lea.vmem %s0, 104
    %v1673 = vld [vmem:[%s1672] sm:$0xff]
    %s1674 = scalar_lea.vmem %s1, 104
    %v1675 = vld [vmem:[%s1674] sm:$0xff]
    %s1676 = scalar_lea.vmem %s2, 104
    %v1677 = vld [vmem:[%s1676] sm:$0xff]
    %vm1678 = vcmp.gt.f32.partialorder %v1677, 0.0
    %v1679 = vsel %vm1678, 1, 0
    %1680 = vset.pattern.permute.xlu0 0
    %1681 = vperm.xlu0 %1680, %v1679
    %v1682 = vpop.permute.xlu0 %1681
    %vm1683 = vcmp.eq.s32.totalorder %v1682, 1
    %v1684 = vsel %vm1683, %v1670, %v1561
    %1686 = vrot.lane.b32.xlu0 %v1670, 48
    %v1687 = vpop.permute.xlu0 %1686
    %v1689 = vsel %vm71, %v1673, %v1687
    %v1691 = vsel %vm79, %v1689, 0
    %1693 = vmatprep.subr.mxu0 0.0
    %1694 = vmatpush1.msra.mxu0 %v47
    %1695 = vmatprep.subr.mxu0 0.0
    %1696 = vmatpush1.msra.mxu0 %v48
    %1697 = vmatprep.subr.mxu0 0.0
    %1698 = vmatpush1.msra.mxu0 %v49
    %1699 = vmatprep.subr.mxu0 0.0
    %1700 = vmatpush1.msra.mxu0 %v50
    %1701 = vmatprep.subr.mxu0 0.0
    %1702 = vmatpush1.msra.mxu0 %v51
    %1703 = vmatprep.subr.mxu0 0.0
    %1704 = vmatpush1.msra.mxu0 %v52
    %1705 = vmatprep.subr.mxu0 0.0
    %1706 = vmatpush1.msra.mxu0 0.0
    %1707 = vmatprep.subr.mxu0 0.0
    %1708 = vmatpush1.msra.mxu0 0.0
    %1709 = vmatprep.subr.mxu0 0.0
    %1710 = vmatpush1.msra.mxu0 0.0
    %1711 = vmatprep.subr.mxu0 0.0
    %1712 = vmatpush1.msra.mxu0 0.0
    %1713 = vmatprep.subr.mxu0 0.0
    %1714 = vmatpush1.msra.mxu0 0.0
    %1715 = vmatprep.subr.mxu0 0.0
    %1716 = vmatpush1.msra.mxu0 0.0
    %1717 = vmatprep.subr.mxu0 0.0
    %1718 = vmatpush1.msra.mxu0 0.0
    %1719 = vmatprep.subr.mxu0 0.0
    %1720 = vmatpush1.msra.mxu0 0.0
    %1721 = vmatprep.subr.mxu0 0.0
    %1722 = vmatpush1.msra.mxu0 0.0
    %1723 = vmatprep.subr.mxu0 0.0
    %1724 = vmatpush1.msra.mxu0 0.0
    %1725 = vmatprep.subr.mxu0 0.0
    %1726 = vmatpush1.msra.mxu0 0.0
    %1727 = vmatprep.subr.mxu0 0.0
    %1728 = vmatpush1.msra.mxu0 0.0
    %1729 = vmatprep.subr.mxu0 0.0
    %1730 = vmatpush1.msra.mxu0 0.0
    %1731 = vmatprep.subr.mxu0 0.0
    %1732 = vmatpush1.msra.mxu0 0.0
    %1733 = vmatprep.subr.mxu0 0.0
    %1734 = vmatpush1.msra.mxu0 0.0
    %1735 = vmatprep.subr.mxu0 0.0
    %1736 = vmatpush1.msra.mxu0 0.0
    %1737 = vmatprep.subr.mxu0 0.0
    %1738 = vmatpush1.msra.mxu0 0.0
    %1739 = vmatprep.subr.mxu0 0.0
    %1740 = vmatpush1.msra.mxu0 0.0
    %1741 = vmatprep.subr.mxu0 0.0
    %1742 = vmatpush1.msra.mxu0 0.0
    %1743 = vmatprep.subr.mxu0 0.0
    %1744 = vmatpush1.msra.mxu0 0.0
    %1745 = vmatprep.subr.mxu0 0.0
    %1746 = vmatpush1.msra.mxu0 0.0
    %1747 = vmatprep.subr.mxu0 0.0
    %1748 = vmatpush1.msra.mxu0 0.0
    %1749 = vmatprep.subr.mxu0 0.0
    %1750 = vmatpush1.msra.mxu0 0.0
    %1751 = vmatprep.subr.mxu0 0.0
    %1752 = vmatpush1.msra.mxu0 0.0
    %1753 = vmatprep.subr.mxu0 0.0
    %1754 = vmatpush1.msra.mxu0 0.0
    %1755 = vmatprep.subr.mxu0 0.0
    %1756 = vmatpush1.msra.mxu0 0.0
    %1757 = vmatprep.mubr.f32.mxu0 0.0
    %1758 = vmatmul.mubr.f32.gmra.mrb[0].mxu0 %v1691
    %v1759 = vpop.f32.mrb[0].mxu0
    %v1760 = vadd.f32 %v77, %v1759
    %v1761 = vpop.f32.mrb[0].mxu0
    %1762 = vdwg.mxu0
    %v1763 = vxor.u32 %v1760, 2147483648
    %v1764 = vmul.f32 %v1763, 1.442695
    %v1765 = vpow.pop %v1764
    %v1766 = vadd.f32 %v1765, 1.0
    %v1767 = vrcp.pop %v1766
    %v1768 = vmul.f32 1.0, %v1767
    %v1769 = vtanh.pop %v1760
    %v1770 = vmul.f32 %v1768, %v1671
    %1772 = vrot.lane.b32.xlu0 %v1769, 64
    %v1773 = vpop.permute.xlu0 %1772
    %v1775 = vmul.f32 %v1768, %v1773
    %1777 = vrot.lane.b32.xlu0 %v1775, 32
    %v1778 = vpop.permute.xlu0 %1777
    %v1780 = vadd.f32 %v1770, %v1778
    %v1781 = vtanh.pop %v1780
    %1783 = vrot.lane.b32.xlu0 %v1781, 64
    %v1784 = vpop.permute.xlu0 %1783
    %v1786 = vmul.f32 %v1768, %v1784
    %vm1787 = vcmp.gt.f32.partialorder %v1675, 0.0
    %v1788 = vsel %vm1787, 1, 0
    %1789 = vset.pattern.permute.xlu0 0
    %1790 = vperm.xlu0 %1789, %v1788
    %v1791 = vpop.permute.xlu0 %1790
    %vm1792 = vcmp.eq.s32.totalorder %v1791, 1
    %v1793 = vsel %vm1792, %v1786, %v1670
    %v1794 = vsel %vm1792, %v1780, %v1671
    %s1795 = scalar_lea.vmem %s0, 112
    %v1796 = vld [vmem:[%s1795] sm:$0xff]
    %s1797 = scalar_lea.vmem %s1, 112
    %v1798 = vld [vmem:[%s1797] sm:$0xff]
    %s1799 = scalar_lea.vmem %s2, 112
    %v1800 = vld [vmem:[%s1799] sm:$0xff]
    %vm1801 = vcmp.gt.f32.partialorder %v1800, 0.0
    %v1802 = vsel %vm1801, 1, 0
    %1803 = vset.pattern.permute.xlu0 0
    %1804 = vperm.xlu0 %1803, %v1802
    %v1805 = vpop.permute.xlu0 %1804
    %vm1806 = vcmp.eq.s32.totalorder %v1805, 1
    %v1807 = vsel %vm1806, %v1793, %v1684
    %1809 = vrot.lane.b32.xlu0 %v1793, 48
    %v1810 = vpop.permute.xlu0 %1809
    %v1812 = vsel %vm71, %v1796, %v1810
    %v1814 = vsel %vm79, %v1812, 0
    %1816 = vmatprep.subr.mxu0 0.0
    %1817 = vmatpush1.msra.mxu0 %v47
    %1818 = vmatprep.subr.mxu0 0.0
    %1819 = vmatpush1.msra.mxu0 %v48
    %1820 = vmatprep.subr.mxu0 0.0
    %1821 = vmatpush1.msra.mxu0 %v49
    %1822 = vmatprep.subr.mxu0 0.0
    %1823 = vmatpush1.msra.mxu0 %v50
    %1824 = vmatprep.subr.mxu0 0.0
    %1825 = vmatpush1.msra.mxu0 %v51
    %1826 = vmatprep.subr.mxu0 0.0
    %1827 = vmatpush1.msra.mxu0 %v52
    %1828 = vmatprep.subr.mxu0 0.0
    %1829 = vmatpush1.msra.mxu0 0.0
    %1830 = vmatprep.subr.mxu0 0.0
    %1831 = vmatpush1.msra.mxu0 0.0
    %1832 = vmatprep.subr.mxu0 0.0
    %1833 = vmatpush1.msra.mxu0 0.0
    %1834 = vmatprep.subr.mxu0 0.0
    %1835 = vmatpush1.msra.mxu0 0.0
    %1836 = vmatprep.subr.mxu0 0.0
    %1837 = vmatpush1.msra.mxu0 0.0
    %1838 = vmatprep.subr.mxu0 0.0
    %1839 = vmatpush1.msra.mxu0 0.0
    %1840 = vmatprep.subr.mxu0 0.0
    %1841 = vmatpush1.msra.mxu0 0.0
    %1842 = vmatprep.subr.mxu0 0.0
    %1843 = vmatpush1.msra.mxu0 0.0
    %1844 = vmatprep.subr.mxu0 0.0
    %1845 = vmatpush1.msra.mxu0 0.0
    %1846 = vmatprep.subr.mxu0 0.0
    %1847 = vmatpush1.msra.mxu0 0.0
    %1848 = vmatprep.subr.mxu0 0.0
    %1849 = vmatpush1.msra.mxu0 0.0
    %1850 = vmatprep.subr.mxu0 0.0
    %1851 = vmatpush1.msra.mxu0 0.0
    %1852 = vmatprep.subr.mxu0 0.0
    %1853 = vmatpush1.msra.mxu0 0.0
    %1854 = vmatprep.subr.mxu0 0.0
    %1855 = vmatpush1.msra.mxu0 0.0
    %1856 = vmatprep.subr.mxu0 0.0
    %1857 = vmatpush1.msra.mxu0 0.0
    %1858 = vmatprep.subr.mxu0 0.0
    %1859 = vmatpush1.msra.mxu0 0.0
    %1860 = vmatprep.subr.mxu0 0.0
    %1861 = vmatpush1.msra.mxu0 0.0
    %1862 = vmatprep.subr.mxu0 0.0
    %1863 = vmatpush1.msra.mxu0 0.0
    %1864 = vmatprep.subr.mxu0 0.0
    %1865 = vmatpush1.msra.mxu0 0.0
    %1866 = vmatprep.subr.mxu0 0.0
    %1867 = vmatpush1.msra.mxu0 0.0
    %1868 = vmatprep.subr.mxu0 0.0
    %1869 = vmatpush1.msra.mxu0 0.0
    %1870 = vmatprep.subr.mxu0 0.0
    %1871 = vmatpush1.msra.mxu0 0.0
    %1872 = vmatprep.subr.mxu0 0.0
    %1873 = vmatpush1.msra.mxu0 0.0
    %1874 = vmatprep.subr.mxu0 0.0
    %1875 = vmatpush1.msra.mxu0 0.0
    %1876 = vmatprep.subr.mxu0 0.0
    %1877 = vmatpush1.msra.mxu0 0.0
    %1878 = vmatprep.subr.mxu0 0.0
    %1879 = vmatpush1.msra.mxu0 0.0
    %1880 = vmatprep.mubr.f32.mxu0 0.0
    %1881 = vmatmul.mubr.f32.gmra.mrb[0].mxu0 %v1814
    %v1882 = vpop.f32.mrb[0].mxu0
    %v1883 = vadd.f32 %v77, %v1882
    %v1884 = vpop.f32.mrb[0].mxu0
    %1885 = vdwg.mxu0
    %v1886 = vxor.u32 %v1883, 2147483648
    %v1887 = vmul.f32 %v1886, 1.442695
    %v1888 = vpow.pop %v1887
    %v1889 = vadd.f32 %v1888, 1.0
    %v1890 = vrcp.pop %v1889
    %v1891 = vmul.f32 1.0, %v1890
    %v1892 = vtanh.pop %v1883
    %v1893 = vmul.f32 %v1891, %v1794
    %1895 = vrot.lane.b32.xlu0 %v1892, 64
    %v1896 = vpop.permute.xlu0 %1895
    %v1898 = vmul.f32 %v1891, %v1896
    %1900 = vrot.lane.b32.xlu0 %v1898, 32
    %v1901 = vpop.permute.xlu0 %1900
    %v1903 = vadd.f32 %v1893, %v1901
    %v1904 = vtanh.pop %v1903
    %1906 = vrot.lane.b32.xlu0 %v1904, 64
    %v1907 = vpop.permute.xlu0 %1906
    %v1909 = vmul.f32 %v1891, %v1907
    %vm1910 = vcmp.gt.f32.partialorder %v1798, 0.0
    %v1911 = vsel %vm1910, 1, 0
    %1912 = vset.pattern.permute.xlu0 0
    %1913 = vperm.xlu0 %1912, %v1911
    %v1914 = vpop.permute.xlu0 %1913
    %vm1915 = vcmp.eq.s32.totalorder %v1914, 1
    %v1916 = vsel %vm1915, %v1909, %v1793
    %v1917 = vsel %vm1915, %v1903, %v1794
    %s1918 = scalar_lea.vmem %s0, 120
    %v1919 = vld [vmem:[%s1918] sm:$0xff]
    %s1920 = scalar_lea.vmem %s1, 120
    %v1921 = vld [vmem:[%s1920] sm:$0xff]
    %s1922 = scalar_lea.vmem %s2, 120
    %v1923 = vld [vmem:[%s1922] sm:$0xff]
    %vm1924 = vcmp.gt.f32.partialorder %v1923, 0.0
    %v1925 = vsel %vm1924, 1, 0
    %1926 = vset.pattern.permute.xlu0 0
    %1927 = vperm.xlu0 %1926, %v1925
    %v1928 = vpop.permute.xlu0 %1927
    %vm1929 = vcmp.eq.s32.totalorder %v1928, 1
    %v1930 = vsel %vm1929, %v1916, %v1807
    %1932 = vrot.lane.b32.xlu0 %v1916, 48
    %v1933 = vpop.permute.xlu0 %1932
    %v1935 = vsel %vm71, %v1919, %v1933
    %v1937 = vsel %vm79, %v1935, 0
    %1939 = vmatprep.subr.mxu0 0.0
    %1940 = vmatpush1.msra.mxu0 %v47
    %1941 = vmatprep.subr.mxu0 0.0
    %1942 = vmatpush1.msra.mxu0 %v48
    %1943 = vmatprep.subr.mxu0 0.0
    %1944 = vmatpush1.msra.mxu0 %v49
    %1945 = vmatprep.subr.mxu0 0.0
    %1946 = vmatpush1.msra.mxu0 %v50
    %1947 = vmatprep.subr.mxu0 0.0
    %1948 = vmatpush1.msra.mxu0 %v51
    %1949 = vmatprep.subr.mxu0 0.0
    %1950 = vmatpush1.msra.mxu0 %v52
    %1951 = vmatprep.subr.mxu0 0.0
    %1952 = vmatpush1.msra.mxu0 0.0
    %1953 = vmatprep.subr.mxu0 0.0
    %1954 = vmatpush1.msra.mxu0 0.0
    %1955 = vmatprep.subr.mxu0 0.0
    %1956 = vmatpush1.msra.mxu0 0.0
    %1957 = vmatprep.subr.mxu0 0.0
    %1958 = vmatpush1.msra.mxu0 0.0
    %1959 = vmatprep.subr.mxu0 0.0
    %1960 = vmatpush1.msra.mxu0 0.0
    %1961 = vmatprep.subr.mxu0 0.0
    %1962 = vmatpush1.msra.mxu0 0.0
    %1963 = vmatprep.subr.mxu0 0.0
    %1964 = vmatpush1.msra.mxu0 0.0
    %1965 = vmatprep.subr.mxu0 0.0
    %1966 = vmatpush1.msra.mxu0 0.0
    %1967 = vmatprep.subr.mxu0 0.0
    %1968 = vmatpush1.msra.mxu0 0.0
    %1969 = vmatprep.subr.mxu0 0.0
    %1970 = vmatpush1.msra.mxu0 0.0
    %1971 = vmatprep.subr.mxu0 0.0
    %1972 = vmatpush1.msra.mxu0 0.0
    %1973 = vmatprep.subr.mxu0 0.0
    %1974 = vmatpush1.msra.mxu0 0.0
    %1975 = vmatprep.subr.mxu0 0.0
    %1976 = vmatpush1.msra.mxu0 0.0
    %1977 = vmatprep.subr.mxu0 0.0
    %1978 = vmatpush1.msra.mxu0 0.0
    %1979 = vmatprep.subr.mxu0 0.0
    %1980 = vmatpush1.msra.mxu0 0.0
    %1981 = vmatprep.subr.mxu0 0.0
    %1982 = vmatpush1.msra.mxu0 0.0
    %1983 = vmatprep.subr.mxu0 0.0
    %1984 = vmatpush1.msra.mxu0 0.0
    %1985 = vmatprep.subr.mxu0 0.0
    %1986 = vmatpush1.msra.mxu0 0.0
    %1987 = vmatprep.subr.mxu0 0.0
    %1988 = vmatpush1.msra.mxu0 0.0
    %1989 = vmatprep.subr.mxu0 0.0
    %1990 = vmatpush1.msra.mxu0 0.0
    %1991 = vmatprep.subr.mxu0 0.0
    %1992 = vmatpush1.msra.mxu0 0.0
    %1993 = vmatprep.subr.mxu0 0.0
    %1994 = vmatpush1.msra.mxu0 0.0
    %1995 = vmatprep.subr.mxu0 0.0
    %1996 = vmatpush1.msra.mxu0 0.0
    %1997 = vmatprep.subr.mxu0 0.0
    %1998 = vmatpush1.msra.mxu0 0.0
    %1999 = vmatprep.subr.mxu0 0.0
    %2000 = vmatpush1.msra.mxu0 0.0
    %2001 = vmatprep.subr.mxu0 0.0
    %2002 = vmatpush1.msra.mxu0 0.0
    %2003 = vmatprep.mubr.f32.mxu0 0.0
    %2004 = vmatmul.mubr.f32.gmra.mrb[0].mxu0 %v1937
    %v2005 = vpop.f32.mrb[0].mxu0
    %v2006 = vadd.f32 %v77, %v2005
    %v2007 = vpop.f32.mrb[0].mxu0
    %2008 = vdwg.mxu0
    %v2009 = vxor.u32 %v2006, 2147483648
    %v2010 = vmul.f32 %v2009, 1.442695
    %v2011 = vpow.pop %v2010
    %v2012 = vadd.f32 %v2011, 1.0
    %v2013 = vrcp.pop %v2012
    %v2014 = vmul.f32 1.0, %v2013
    %v2015 = vtanh.pop %v2006
    %v2016 = vmul.f32 %v2014, %v1917
    %2018 = vrot.lane.b32.xlu0 %v2015, 64
    %v2019 = vpop.permute.xlu0 %2018
    %v2021 = vmul.f32 %v2014, %v2019
    %2023 = vrot.lane.b32.xlu0 %v2021, 32
    %v2024 = vpop.permute.xlu0 %2023
    %v2026 = vadd.f32 %v2016, %v2024
    %v2027 = vtanh.pop %v2026
    %2029 = vrot.lane.b32.xlu0 %v2027, 64
    %v2030 = vpop.permute.xlu0 %2029
    %v2032 = vmul.f32 %v2014, %v2030
    %vm2033 = vcmp.gt.f32.partialorder %v1921, 0.0
    %v2034 = vsel %vm2033, 1, 0
    %2035 = vset.pattern.permute.xlu0 0
    %2036 = vperm.xlu0 %2035, %v2034
    %v2037 = vpop.permute.xlu0 %2036
    %vm2038 = vcmp.eq.s32.totalorder %v2037, 1
    %v2039 = vsel %vm2038, %v2032, %v1916
    %v2040 = vsel %vm2038, %v2026, %v1917
    %s2041 = scalar_lea.vmem %s0, 128
    %v2042 = vld [vmem:[%s2041] sm:$0xff]
    %s2043 = scalar_lea.vmem %s1, 128
    %v2044 = vld [vmem:[%s2043] sm:$0xff]
    %s2045 = scalar_lea.vmem %s2, 128
    %v2046 = vld [vmem:[%s2045] sm:$0xff]
    %vm2047 = vcmp.gt.f32.partialorder %v2046, 0.0
    %v2048 = vsel %vm2047, 1, 0
    %2049 = vset.pattern.permute.xlu0 0
    %2050 = vperm.xlu0 %2049, %v2048
    %v2051 = vpop.permute.xlu0 %2050
    %vm2052 = vcmp.eq.s32.totalorder %v2051, 1
    %v2053 = vsel %vm2052, %v2039, %v1930
    %2055 = vrot.lane.b32.xlu0 %v2039, 48
    %v2056 = vpop.permute.xlu0 %2055
    %v2058 = vsel %vm71, %v2042, %v2056
    %v2060 = vsel %vm79, %v2058, 0
    %2062 = vmatprep.subr.mxu0 0.0
    %2063 = vmatpush1.msra.mxu0 %v47
    %2064 = vmatprep.subr.mxu0 0.0
    %2065 = vmatpush1.msra.mxu0 %v48
    %2066 = vmatprep.subr.mxu0 0.0
    %2067 = vmatpush1.msra.mxu0 %v49
    %2068 = vmatprep.subr.mxu0 0.0
    %2069 = vmatpush1.msra.mxu0 %v50
    %2070 = vmatprep.subr.mxu0 0.0
    %2071 = vmatpush1.msra.mxu0 %v51
    %2072 = vmatprep.subr.mxu0 0.0
    %2073 = vmatpush1.msra.mxu0 %v52
    %2074 = vmatprep.subr.mxu0 0.0
    %2075 = vmatpush1.msra.mxu0 0.0
    %2076 = vmatprep.subr.mxu0 0.0
    %2077 = vmatpush1.msra.mxu0 0.0
    %2078 = vmatprep.subr.mxu0 0.0
    %2079 = vmatpush1.msra.mxu0 0.0
    %2080 = vmatprep.subr.mxu0 0.0
    %2081 = vmatpush1.msra.mxu0 0.0
    %2082 = vmatprep.subr.mxu0 0.0
    %2083 = vmatpush1.msra.mxu0 0.0
    %2084 = vmatprep.subr.mxu0 0.0
    %2085 = vmatpush1.msra.mxu0 0.0
    %2086 = vmatprep.subr.mxu0 0.0
    %2087 = vmatpush1.msra.mxu0 0.0
    %2088 = vmatprep.subr.mxu0 0.0
    %2089 = vmatpush1.msra.mxu0 0.0
    %2090 = vmatprep.subr.mxu0 0.0
    %2091 = vmatpush1.msra.mxu0 0.0
    %2092 = vmatprep.subr.mxu0 0.0
    %2093 = vmatpush1.msra.mxu0 0.0
    %2094 = vmatprep.subr.mxu0 0.0
    %2095 = vmatpush1.msra.mxu0 0.0
    %2096 = vmatprep.subr.mxu0 0.0
    %2097 = vmatpush1.msra.mxu0 0.0
    %2098 = vmatprep.subr.mxu0 0.0
    %2099 = vmatpush1.msra.mxu0 0.0
    %2100 = vmatprep.subr.mxu0 0.0
    %2101 = vmatpush1.msra.mxu0 0.0
    %2102 = vmatprep.subr.mxu0 0.0
    %2103 = vmatpush1.msra.mxu0 0.0
    %2104 = vmatprep.subr.mxu0 0.0
    %2105 = vmatpush1.msra.mxu0 0.0
    %2106 = vmatprep.subr.mxu0 0.0
    %2107 = vmatpush1.msra.mxu0 0.0
    %2108 = vmatprep.subr.mxu0 0.0
    %2109 = vmatpush1.msra.mxu0 0.0
    %2110 = vmatprep.subr.mxu0 0.0
    %2111 = vmatpush1.msra.mxu0 0.0
    %2112 = vmatprep.subr.mxu0 0.0
    %2113 = vmatpush1.msra.mxu0 0.0
    %2114 = vmatprep.subr.mxu0 0.0
    %2115 = vmatpush1.msra.mxu0 0.0
    %2116 = vmatprep.subr.mxu0 0.0
    %2117 = vmatpush1.msra.mxu0 0.0
    %2118 = vmatprep.subr.mxu0 0.0
    %2119 = vmatpush1.msra.mxu0 0.0
    %2120 = vmatprep.subr.mxu0 0.0
    %2121 = vmatpush1.msra.mxu0 0.0
    %2122 = vmatprep.subr.mxu0 0.0
    %2123 = vmatpush1.msra.mxu0 0.0
    %2124 = vmatprep.subr.mxu0 0.0
    %2125 = vmatpush1.msra.mxu0 0.0
    %2126 = vmatprep.mubr.f32.mxu0 0.0
    %2127 = vmatmul.mubr.f32.gmra.mrb[0].mxu0 %v2060
    %v2128 = vpop.f32.mrb[0].mxu0
    %v2129 = vadd.f32 %v77, %v2128
    %v2130 = vpop.f32.mrb[0].mxu0
    %2131 = vdwg.mxu0
    %v2132 = vxor.u32 %v2129, 2147483648
    %v2133 = vmul.f32 %v2132, 1.442695
    %v2134 = vpow.pop %v2133
    %v2135 = vadd.f32 %v2134, 1.0
    %v2136 = vrcp.pop %v2135
    %v2137 = vmul.f32 1.0, %v2136
    %v2138 = vtanh.pop %v2129
    %v2139 = vmul.f32 %v2137, %v2040
    %2141 = vrot.lane.b32.xlu0 %v2138, 64
    %v2142 = vpop.permute.xlu0 %2141
    %v2144 = vmul.f32 %v2137, %v2142
    %2146 = vrot.lane.b32.xlu0 %v2144, 32
    %v2147 = vpop.permute.xlu0 %2146
    %v2149 = vadd.f32 %v2139, %v2147
    %v2150 = vtanh.pop %v2149
    %2152 = vrot.lane.b32.xlu0 %v2150, 64
    %v2153 = vpop.permute.xlu0 %2152
    %v2155 = vmul.f32 %v2137, %v2153
    %vm2156 = vcmp.gt.f32.partialorder %v2044, 0.0
    %v2157 = vsel %vm2156, 1, 0
    %2158 = vset.pattern.permute.xlu0 0
    %2159 = vperm.xlu0 %2158, %v2157
    %v2160 = vpop.permute.xlu0 %2159
    %vm2161 = vcmp.eq.s32.totalorder %v2160, 1
    %v2162 = vsel %vm2161, %v2155, %v2039
    %v2163 = vsel %vm2161, %v2149, %v2040
    %s2164 = scalar_lea.vmem %s0, 136
    %v2165 = vld [vmem:[%s2164] sm:$0xff]
    %s2166 = scalar_lea.vmem %s1, 136
    %v2167 = vld [vmem:[%s2166] sm:$0xff]
    %s2168 = scalar_lea.vmem %s2, 136
    %v2169 = vld [vmem:[%s2168] sm:$0xff]
    %vm2170 = vcmp.gt.f32.partialorder %v2169, 0.0
    %v2171 = vsel %vm2170, 1, 0
    %2172 = vset.pattern.permute.xlu0 0
    %2173 = vperm.xlu0 %2172, %v2171
    %v2174 = vpop.permute.xlu0 %2173
    %vm2175 = vcmp.eq.s32.totalorder %v2174, 1
    %v2176 = vsel %vm2175, %v2162, %v2053
    %2178 = vrot.lane.b32.xlu0 %v2162, 48
    %v2179 = vpop.permute.xlu0 %2178
    %v2181 = vsel %vm71, %v2165, %v2179
    %v2183 = vsel %vm79, %v2181, 0
    %2185 = vmatprep.subr.mxu0 0.0
    %2186 = vmatpush1.msra.mxu0 %v47
    %2187 = vmatprep.subr.mxu0 0.0
    %2188 = vmatpush1.msra.mxu0 %v48
    %2189 = vmatprep.subr.mxu0 0.0
    %2190 = vmatpush1.msra.mxu0 %v49
    %2191 = vmatprep.subr.mxu0 0.0
    %2192 = vmatpush1.msra.mxu0 %v50
    %2193 = vmatprep.subr.mxu0 0.0
    %2194 = vmatpush1.msra.mxu0 %v51
    %2195 = vmatprep.subr.mxu0 0.0
    %2196 = vmatpush1.msra.mxu0 %v52
    %2197 = vmatprep.subr.mxu0 0.0
    %2198 = vmatpush1.msra.mxu0 0.0
    %2199 = vmatprep.subr.mxu0 0.0
    %2200 = vmatpush1.msra.mxu0 0.0
    %2201 = vmatprep.subr.mxu0 0.0
    %2202 = vmatpush1.msra.mxu0 0.0
    %2203 = vmatprep.subr.mxu0 0.0
    %2204 = vmatpush1.msra.mxu0 0.0
    %2205 = vmatprep.subr.mxu0 0.0
    %2206 = vmatpush1.msra.mxu0 0.0
    %2207 = vmatprep.subr.mxu0 0.0
    %2208 = vmatpush1.msra.mxu0 0.0
    %2209 = vmatprep.subr.mxu0 0.0
    %2210 = vmatpush1.msra.mxu0 0.0
    %2211 = vmatprep.subr.mxu0 0.0
    %2212 = vmatpush1.msra.mxu0 0.0
    %2213 = vmatprep.subr.mxu0 0.0
    %2214 = vmatpush1.msra.mxu0 0.0
    %2215 = vmatprep.subr.mxu0 0.0
    %2216 = vmatpush1.msra.mxu0 0.0
    %2217 = vmatprep.subr.mxu0 0.0
    %2218 = vmatpush1.msra.mxu0 0.0
    %2219 = vmatprep.subr.mxu0 0.0
    %2220 = vmatpush1.msra.mxu0 0.0
    %2221 = vmatprep.subr.mxu0 0.0
    %2222 = vmatpush1.msra.mxu0 0.0
    %2223 = vmatprep.subr.mxu0 0.0
    %2224 = vmatpush1.msra.mxu0 0.0
    %2225 = vmatprep.subr.mxu0 0.0
    %2226 = vmatpush1.msra.mxu0 0.0
    %2227 = vmatprep.subr.mxu0 0.0
    %2228 = vmatpush1.msra.mxu0 0.0
    %2229 = vmatprep.subr.mxu0 0.0
    %2230 = vmatpush1.msra.mxu0 0.0
    %2231 = vmatprep.subr.mxu0 0.0
    %2232 = vmatpush1.msra.mxu0 0.0
    %2233 = vmatprep.subr.mxu0 0.0
    %2234 = vmatpush1.msra.mxu0 0.0
    %2235 = vmatprep.subr.mxu0 0.0
    %2236 = vmatpush1.msra.mxu0 0.0
    %2237 = vmatprep.subr.mxu0 0.0
    %2238 = vmatpush1.msra.mxu0 0.0
    %2239 = vmatprep.subr.mxu0 0.0
    %2240 = vmatpush1.msra.mxu0 0.0
    %2241 = vmatprep.subr.mxu0 0.0
    %2242 = vmatpush1.msra.mxu0 0.0
    %2243 = vmatprep.subr.mxu0 0.0
    %2244 = vmatpush1.msra.mxu0 0.0
    %2245 = vmatprep.subr.mxu0 0.0
    %2246 = vmatpush1.msra.mxu0 0.0
    %2247 = vmatprep.subr.mxu0 0.0
    %2248 = vmatpush1.msra.mxu0 0.0
    %2249 = vmatprep.mubr.f32.mxu0 0.0
    %2250 = vmatmul.mubr.f32.gmra.mrb[0].mxu0 %v2183
    %v2251 = vpop.f32.mrb[0].mxu0
    %v2252 = vadd.f32 %v77, %v2251
    %v2253 = vpop.f32.mrb[0].mxu0
    %2254 = vdwg.mxu0
    %v2255 = vxor.u32 %v2252, 2147483648
    %v2256 = vmul.f32 %v2255, 1.442695
    %v2257 = vpow.pop %v2256
    %v2258 = vadd.f32 %v2257, 1.0
    %v2259 = vrcp.pop %v2258
    %v2260 = vmul.f32 1.0, %v2259
    %v2261 = vtanh.pop %v2252
    %v2262 = vmul.f32 %v2260, %v2163
    %2264 = vrot.lane.b32.xlu0 %v2261, 64
    %v2265 = vpop.permute.xlu0 %2264
    %v2267 = vmul.f32 %v2260, %v2265
    %2269 = vrot.lane.b32.xlu0 %v2267, 32
    %v2270 = vpop.permute.xlu0 %2269
    %v2272 = vadd.f32 %v2262, %v2270
    %v2273 = vtanh.pop %v2272
    %2275 = vrot.lane.b32.xlu0 %v2273, 64
    %v2276 = vpop.permute.xlu0 %2275
    %v2278 = vmul.f32 %v2260, %v2276
    %vm2279 = vcmp.gt.f32.partialorder %v2167, 0.0
    %v2280 = vsel %vm2279, 1, 0
    %2281 = vset.pattern.permute.xlu0 0
    %2282 = vperm.xlu0 %2281, %v2280
    %v2283 = vpop.permute.xlu0 %2282
    %vm2284 = vcmp.eq.s32.totalorder %v2283, 1
    %v2285 = vsel %vm2284, %v2278, %v2162
    %v2286 = vsel %vm2284, %v2272, %v2163
    %s2287 = scalar_lea.vmem %s0, 144
    %v2288 = vld [vmem:[%s2287] sm:$0xff]
    %s2289 = scalar_lea.vmem %s1, 144
    %v2290 = vld [vmem:[%s2289] sm:$0xff]
    %s2291 = scalar_lea.vmem %s2, 144
    %v2292 = vld [vmem:[%s2291] sm:$0xff]
    %vm2293 = vcmp.gt.f32.partialorder %v2292, 0.0
    %v2294 = vsel %vm2293, 1, 0
    %2295 = vset.pattern.permute.xlu0 0
    %2296 = vperm.xlu0 %2295, %v2294
    %v2297 = vpop.permute.xlu0 %2296
    %vm2298 = vcmp.eq.s32.totalorder %v2297, 1
    %v2299 = vsel %vm2298, %v2285, %v2176
    %2301 = vrot.lane.b32.xlu0 %v2285, 48
    %v2302 = vpop.permute.xlu0 %2301
    %v2304 = vsel %vm71, %v2288, %v2302
    %v2306 = vsel %vm79, %v2304, 0
    %2308 = vmatprep.subr.mxu0 0.0
    %2309 = vmatpush1.msra.mxu0 %v47
    %2310 = vmatprep.subr.mxu0 0.0
    %2311 = vmatpush1.msra.mxu0 %v48
    %2312 = vmatprep.subr.mxu0 0.0
    %2313 = vmatpush1.msra.mxu0 %v49
    %2314 = vmatprep.subr.mxu0 0.0
    %2315 = vmatpush1.msra.mxu0 %v50
    %2316 = vmatprep.subr.mxu0 0.0
    %2317 = vmatpush1.msra.mxu0 %v51
    %2318 = vmatprep.subr.mxu0 0.0
    %2319 = vmatpush1.msra.mxu0 %v52
    %2320 = vmatprep.subr.mxu0 0.0
    %2321 = vmatpush1.msra.mxu0 0.0
    %2322 = vmatprep.subr.mxu0 0.0
    %2323 = vmatpush1.msra.mxu0 0.0
    %2324 = vmatprep.subr.mxu0 0.0
    %2325 = vmatpush1.msra.mxu0 0.0
    %2326 = vmatprep.subr.mxu0 0.0
    %2327 = vmatpush1.msra.mxu0 0.0
    %2328 = vmatprep.subr.mxu0 0.0
    %2329 = vmatpush1.msra.mxu0 0.0
    %2330 = vmatprep.subr.mxu0 0.0
    %2331 = vmatpush1.msra.mxu0 0.0
    %2332 = vmatprep.subr.mxu0 0.0
    %2333 = vmatpush1.msra.mxu0 0.0
    %2334 = vmatprep.subr.mxu0 0.0
    %2335 = vmatpush1.msra.mxu0 0.0
    %2336 = vmatprep.subr.mxu0 0.0
    %2337 = vmatpush1.msra.mxu0 0.0
    %2338 = vmatprep.subr.mxu0 0.0
    %2339 = vmatpush1.msra.mxu0 0.0
    %2340 = vmatprep.subr.mxu0 0.0
    %2341 = vmatpush1.msra.mxu0 0.0
    %2342 = vmatprep.subr.mxu0 0.0
    %2343 = vmatpush1.msra.mxu0 0.0
    %2344 = vmatprep.subr.mxu0 0.0
    %2345 = vmatpush1.msra.mxu0 0.0
    %2346 = vmatprep.subr.mxu0 0.0
    %2347 = vmatpush1.msra.mxu0 0.0
    %2348 = vmatprep.subr.mxu0 0.0
    %2349 = vmatpush1.msra.mxu0 0.0
    %2350 = vmatprep.subr.mxu0 0.0
    %2351 = vmatpush1.msra.mxu0 0.0
    %2352 = vmatprep.subr.mxu0 0.0
    %2353 = vmatpush1.msra.mxu0 0.0
    %2354 = vmatprep.subr.mxu0 0.0
    %2355 = vmatpush1.msra.mxu0 0.0
    %2356 = vmatprep.subr.mxu0 0.0
    %2357 = vmatpush1.msra.mxu0 0.0
    %2358 = vmatprep.subr.mxu0 0.0
    %2359 = vmatpush1.msra.mxu0 0.0
    %2360 = vmatprep.subr.mxu0 0.0
    %2361 = vmatpush1.msra.mxu0 0.0
    %2362 = vmatprep.subr.mxu0 0.0
    %2363 = vmatpush1.msra.mxu0 0.0
    %2364 = vmatprep.subr.mxu0 0.0
    %2365 = vmatpush1.msra.mxu0 0.0
    %2366 = vmatprep.subr.mxu0 0.0
    %2367 = vmatpush1.msra.mxu0 0.0
    %2368 = vmatprep.subr.mxu0 0.0
    %2369 = vmatpush1.msra.mxu0 0.0
    %2370 = vmatprep.subr.mxu0 0.0
    %2371 = vmatpush1.msra.mxu0 0.0
    %2372 = vmatprep.mubr.f32.mxu0 0.0
    %2373 = vmatmul.mubr.f32.gmra.mrb[0].mxu0 %v2306
    %v2374 = vpop.f32.mrb[0].mxu0
    %v2375 = vadd.f32 %v77, %v2374
    %v2376 = vpop.f32.mrb[0].mxu0
    %2377 = vdwg.mxu0
    %v2378 = vxor.u32 %v2375, 2147483648
    %v2379 = vmul.f32 %v2378, 1.442695
    %v2380 = vpow.pop %v2379
    %v2381 = vadd.f32 %v2380, 1.0
    %v2382 = vrcp.pop %v2381
    %v2383 = vmul.f32 1.0, %v2382
    %v2384 = vtanh.pop %v2375
    %v2385 = vmul.f32 %v2383, %v2286
    %2387 = vrot.lane.b32.xlu0 %v2384, 64
    %v2388 = vpop.permute.xlu0 %2387
    %v2390 = vmul.f32 %v2383, %v2388
    %2392 = vrot.lane.b32.xlu0 %v2390, 32
    %v2393 = vpop.permute.xlu0 %2392
    %v2395 = vadd.f32 %v2385, %v2393
    %v2396 = vtanh.pop %v2395
    %2398 = vrot.lane.b32.xlu0 %v2396, 64
    %v2399 = vpop.permute.xlu0 %2398
    %v2401 = vmul.f32 %v2383, %v2399
    %vm2402 = vcmp.gt.f32.partialorder %v2290, 0.0
    %v2403 = vsel %vm2402, 1, 0
    %2404 = vset.pattern.permute.xlu0 0
    %2405 = vperm.xlu0 %2404, %v2403
    %v2406 = vpop.permute.xlu0 %2405
    %vm2407 = vcmp.eq.s32.totalorder %v2406, 1
    %v2408 = vsel %vm2407, %v2401, %v2285
    %v2409 = vsel %vm2407, %v2395, %v2286
    %s2410 = scalar_lea.vmem %s0, 152
    %v2411 = vld [vmem:[%s2410] sm:$0xff]
    %s2412 = scalar_lea.vmem %s1, 152
    %v2413 = vld [vmem:[%s2412] sm:$0xff]
    %s2414 = scalar_lea.vmem %s2, 152
    %v2415 = vld [vmem:[%s2414] sm:$0xff]
    %vm2416 = vcmp.gt.f32.partialorder %v2415, 0.0
    %v2417 = vsel %vm2416, 1, 0
    %2418 = vset.pattern.permute.xlu0 0
    %2419 = vperm.xlu0 %2418, %v2417
    %v2420 = vpop.permute.xlu0 %2419
    %vm2421 = vcmp.eq.s32.totalorder %v2420, 1
    %v2422 = vsel %vm2421, %v2408, %v2299
    %2424 = vrot.lane.b32.xlu0 %v2408, 48
    %v2425 = vpop.permute.xlu0 %2424
    %v2427 = vsel %vm71, %v2411, %v2425
    %v2429 = vsel %vm79, %v2427, 0
    %2431 = vmatprep.subr.mxu0 0.0
    %2432 = vmatpush1.msra.mxu0 %v47
    %2433 = vmatprep.subr.mxu0 0.0
    %2434 = vmatpush1.msra.mxu0 %v48
    %2435 = vmatprep.subr.mxu0 0.0
    %2436 = vmatpush1.msra.mxu0 %v49
    %2437 = vmatprep.subr.mxu0 0.0
    %2438 = vmatpush1.msra.mxu0 %v50
    %2439 = vmatprep.subr.mxu0 0.0
    %2440 = vmatpush1.msra.mxu0 %v51
    %2441 = vmatprep.subr.mxu0 0.0
    %2442 = vmatpush1.msra.mxu0 %v52
    %2443 = vmatprep.subr.mxu0 0.0
    %2444 = vmatpush1.msra.mxu0 0.0
    %2445 = vmatprep.subr.mxu0 0.0
    %2446 = vmatpush1.msra.mxu0 0.0
    %2447 = vmatprep.subr.mxu0 0.0
    %2448 = vmatpush1.msra.mxu0 0.0
    %2449 = vmatprep.subr.mxu0 0.0
    %2450 = vmatpush1.msra.mxu0 0.0
    %2451 = vmatprep.subr.mxu0 0.0
    %2452 = vmatpush1.msra.mxu0 0.0
    %2453 = vmatprep.subr.mxu0 0.0
    %2454 = vmatpush1.msra.mxu0 0.0
    %2455 = vmatprep.subr.mxu0 0.0
    %2456 = vmatpush1.msra.mxu0 0.0
    %2457 = vmatprep.subr.mxu0 0.0
    %2458 = vmatpush1.msra.mxu0 0.0
    %2459 = vmatprep.subr.mxu0 0.0
    %2460 = vmatpush1.msra.mxu0 0.0
    %2461 = vmatprep.subr.mxu0 0.0
    %2462 = vmatpush1.msra.mxu0 0.0
    %2463 = vmatprep.subr.mxu0 0.0
    %2464 = vmatpush1.msra.mxu0 0.0
    %2465 = vmatprep.subr.mxu0 0.0
    %2466 = vmatpush1.msra.mxu0 0.0
    %2467 = vmatprep.subr.mxu0 0.0
    %2468 = vmatpush1.msra.mxu0 0.0
    %2469 = vmatprep.subr.mxu0 0.0
    %2470 = vmatpush1.msra.mxu0 0.0
    %2471 = vmatprep.subr.mxu0 0.0
    %2472 = vmatpush1.msra.mxu0 0.0
    %2473 = vmatprep.subr.mxu0 0.0
    %2474 = vmatpush1.msra.mxu0 0.0
    %2475 = vmatprep.subr.mxu0 0.0
    %2476 = vmatpush1.msra.mxu0 0.0
    %2477 = vmatprep.subr.mxu0 0.0
    %2478 = vmatpush1.msra.mxu0 0.0
    %2479 = vmatprep.subr.mxu0 0.0
    %2480 = vmatpush1.msra.mxu0 0.0
    %2481 = vmatprep.subr.mxu0 0.0
    %2482 = vmatpush1.msra.mxu0 0.0
    %2483 = vmatprep.subr.mxu0 0.0
    %2484 = vmatpush1.msra.mxu0 0.0
    %2485 = vmatprep.subr.mxu0 0.0
    %2486 = vmatpush1.msra.mxu0 0.0
    %2487 = vmatprep.subr.mxu0 0.0
    %2488 = vmatpush1.msra.mxu0 0.0
    %2489 = vmatprep.subr.mxu0 0.0
    %2490 = vmatpush1.msra.mxu0 0.0
    %2491 = vmatprep.subr.mxu0 0.0
    %2492 = vmatpush1.msra.mxu0 0.0
    %2493 = vmatprep.subr.mxu0 0.0
    %2494 = vmatpush1.msra.mxu0 0.0
    %2495 = vmatprep.mubr.f32.mxu0 0.0
    %2496 = vmatmul.mubr.f32.gmra.mrb[0].mxu0 %v2429
    %v2497 = vpop.f32.mrb[0].mxu0
    %v2498 = vadd.f32 %v77, %v2497
    %v2499 = vpop.f32.mrb[0].mxu0
    %2500 = vdwg.mxu0
    %v2501 = vxor.u32 %v2498, 2147483648
    %v2502 = vmul.f32 %v2501, 1.442695
    %v2503 = vpow.pop %v2502
    %v2504 = vadd.f32 %v2503, 1.0
    %v2505 = vrcp.pop %v2504
    %v2506 = vmul.f32 1.0, %v2505
    %v2507 = vtanh.pop %v2498
    %v2508 = vmul.f32 %v2506, %v2409
    %2510 = vrot.lane.b32.xlu0 %v2507, 64
    %v2511 = vpop.permute.xlu0 %2510
    %v2513 = vmul.f32 %v2506, %v2511
    %2515 = vrot.lane.b32.xlu0 %v2513, 32
    %v2516 = vpop.permute.xlu0 %2515
    %v2518 = vadd.f32 %v2508, %v2516
    %v2519 = vtanh.pop %v2518
    %2521 = vrot.lane.b32.xlu0 %v2519, 64
    %v2522 = vpop.permute.xlu0 %2521
    %v2524 = vmul.f32 %v2506, %v2522
    %vm2525 = vcmp.gt.f32.partialorder %v2413, 0.0
    %v2526 = vsel %vm2525, 1, 0
    %2527 = vset.pattern.permute.xlu0 0
    %2528 = vperm.xlu0 %2527, %v2526
    %v2529 = vpop.permute.xlu0 %2528
    %vm2530 = vcmp.eq.s32.totalorder %v2529, 1
    %v2531 = vsel %vm2530, %v2524, %v2408
    %v2532 = vsel %vm2530, %v2518, %v2409
    %s2533 = scalar_lea.vmem %s0, 160
    %v2534 = vld [vmem:[%s2533] sm:$0xff]
    %s2535 = scalar_lea.vmem %s1, 160
    %v2536 = vld [vmem:[%s2535] sm:$0xff]
    %s2537 = scalar_lea.vmem %s2, 160
    %v2538 = vld [vmem:[%s2537] sm:$0xff]
    %vm2539 = vcmp.gt.f32.partialorder %v2538, 0.0
    %v2540 = vsel %vm2539, 1, 0
    %2541 = vset.pattern.permute.xlu0 0
    %2542 = vperm.xlu0 %2541, %v2540
    %v2543 = vpop.permute.xlu0 %2542
    %vm2544 = vcmp.eq.s32.totalorder %v2543, 1
    %v2545 = vsel %vm2544, %v2531, %v2422
    %2547 = vrot.lane.b32.xlu0 %v2531, 48
    %v2548 = vpop.permute.xlu0 %2547
    %v2550 = vsel %vm71, %v2534, %v2548
    %v2552 = vsel %vm79, %v2550, 0
    %2554 = vmatprep.subr.mxu0 0.0
    %2555 = vmatpush1.msra.mxu0 %v47
    %2556 = vmatprep.subr.mxu0 0.0
    %2557 = vmatpush1.msra.mxu0 %v48
    %2558 = vmatprep.subr.mxu0 0.0
    %2559 = vmatpush1.msra.mxu0 %v49
    %2560 = vmatprep.subr.mxu0 0.0
    %2561 = vmatpush1.msra.mxu0 %v50
    %2562 = vmatprep.subr.mxu0 0.0
    %2563 = vmatpush1.msra.mxu0 %v51
    %2564 = vmatprep.subr.mxu0 0.0
    %2565 = vmatpush1.msra.mxu0 %v52
    %2566 = vmatprep.subr.mxu0 0.0
    %2567 = vmatpush1.msra.mxu0 0.0
    %2568 = vmatprep.subr.mxu0 0.0
    %2569 = vmatpush1.msra.mxu0 0.0
    %2570 = vmatprep.subr.mxu0 0.0
    %2571 = vmatpush1.msra.mxu0 0.0
    %2572 = vmatprep.subr.mxu0 0.0
    %2573 = vmatpush1.msra.mxu0 0.0
    %2574 = vmatprep.subr.mxu0 0.0
    %2575 = vmatpush1.msra.mxu0 0.0
    %2576 = vmatprep.subr.mxu0 0.0
    %2577 = vmatpush1.msra.mxu0 0.0
    %2578 = vmatprep.subr.mxu0 0.0
    %2579 = vmatpush1.msra.mxu0 0.0
    %2580 = vmatprep.subr.mxu0 0.0
    %2581 = vmatpush1.msra.mxu0 0.0
    %2582 = vmatprep.subr.mxu0 0.0
    %2583 = vmatpush1.msra.mxu0 0.0
    %2584 = vmatprep.subr.mxu0 0.0
    %2585 = vmatpush1.msra.mxu0 0.0
    %2586 = vmatprep.subr.mxu0 0.0
    %2587 = vmatpush1.msra.mxu0 0.0
    %2588 = vmatprep.subr.mxu0 0.0
    %2589 = vmatpush1.msra.mxu0 0.0
    %2590 = vmatprep.subr.mxu0 0.0
    %2591 = vmatpush1.msra.mxu0 0.0
    %2592 = vmatprep.subr.mxu0 0.0
    %2593 = vmatpush1.msra.mxu0 0.0
    %2594 = vmatprep.subr.mxu0 0.0
    %2595 = vmatpush1.msra.mxu0 0.0
    %2596 = vmatprep.subr.mxu0 0.0
    %2597 = vmatpush1.msra.mxu0 0.0
    %2598 = vmatprep.subr.mxu0 0.0
    %2599 = vmatpush1.msra.mxu0 0.0
    %2600 = vmatprep.subr.mxu0 0.0
    %2601 = vmatpush1.msra.mxu0 0.0
    %2602 = vmatprep.subr.mxu0 0.0
    %2603 = vmatpush1.msra.mxu0 0.0
    %2604 = vmatprep.subr.mxu0 0.0
    %2605 = vmatpush1.msra.mxu0 0.0
    %2606 = vmatprep.subr.mxu0 0.0
    %2607 = vmatpush1.msra.mxu0 0.0
    %2608 = vmatprep.subr.mxu0 0.0
    %2609 = vmatpush1.msra.mxu0 0.0
    %2610 = vmatprep.subr.mxu0 0.0
    %2611 = vmatpush1.msra.mxu0 0.0
    %2612 = vmatprep.subr.mxu0 0.0
    %2613 = vmatpush1.msra.mxu0 0.0
    %2614 = vmatprep.subr.mxu0 0.0
    %2615 = vmatpush1.msra.mxu0 0.0
    %2616 = vmatprep.subr.mxu0 0.0
    %2617 = vmatpush1.msra.mxu0 0.0
    %2618 = vmatprep.mubr.f32.mxu0 0.0
    %2619 = vmatmul.mubr.f32.gmra.mrb[0].mxu0 %v2552
    %v2620 = vpop.f32.mrb[0].mxu0
    %v2621 = vadd.f32 %v77, %v2620
    %v2622 = vpop.f32.mrb[0].mxu0
    %2623 = vdwg.mxu0
    %v2624 = vxor.u32 %v2621, 2147483648
    %v2625 = vmul.f32 %v2624, 1.442695
    %v2626 = vpow.pop %v2625
    %v2627 = vadd.f32 %v2626, 1.0
    %v2628 = vrcp.pop %v2627
    %v2629 = vmul.f32 1.0, %v2628
    %v2630 = vtanh.pop %v2621
    %v2631 = vmul.f32 %v2629, %v2532
    %2633 = vrot.lane.b32.xlu0 %v2630, 64
    %v2634 = vpop.permute.xlu0 %2633
    %v2636 = vmul.f32 %v2629, %v2634
    %2638 = vrot.lane.b32.xlu0 %v2636, 32
    %v2639 = vpop.permute.xlu0 %2638
    %v2641 = vadd.f32 %v2631, %v2639
    %v2642 = vtanh.pop %v2641
    %2644 = vrot.lane.b32.xlu0 %v2642, 64
    %v2645 = vpop.permute.xlu0 %2644
    %v2647 = vmul.f32 %v2629, %v2645
    %vm2648 = vcmp.gt.f32.partialorder %v2536, 0.0
    %v2649 = vsel %vm2648, 1, 0
    %2650 = vset.pattern.permute.xlu0 0
    %2651 = vperm.xlu0 %2650, %v2649
    %v2652 = vpop.permute.xlu0 %2651
    %vm2653 = vcmp.eq.s32.totalorder %v2652, 1
    %v2654 = vsel %vm2653, %v2647, %v2531
    %v2655 = vsel %vm2653, %v2641, %v2532
    %2657 = vrot.lane.b32.xlu0 %v2654, 32
    %v2658 = vpop.permute.xlu0 %2657
    %vm2660 = vcmask 261120
    %2661 = vst.msk [vmem:[%s12] sm:$0xff] %vm2660, %v2658
    %2663 = vrot.lane.b32.xlu0 %v2655, 96
    %v2664 = vpop.permute.xlu0 %2663
    %2666 = vst.msk [vmem:[#allocation2] sm:$0xff] %vm2660, %v2664
    %2668 = vrot.lane.b32.xlu0 %v2545, 32
    %v2669 = vpop.permute.xlu0 %2668
    %2671 = vst.msk [vmem:[%s14] sm:$0xff] %vm2660, %v2669
    %v2672 = vld [vmem:[%s8] sm:$0xff]
    %v2673 = vld [vmem:[%s8 + $0x8] sm:$0xff]
    %v2674 = vld [vmem:[%s8 + $0x10] sm:$0xff]
    %v2675 = vld [vmem:[%s8 + $0x18] sm:$0xff]
    %v2676 = vld [vmem:[%s9] sm:$0x1]
    %v2678 = vlaneseq
    %v2679 = vshrl.u32 %v2678, 7
    %v2680 = vsub.s32 0, %v2679
    %v2681 = vrot.slane %v2676, %v2680
    %v2683 = vsel %vm2660, %v2658, 0
    %2685 = vmatprep.subr.mxu0 0.0
    %2686 = vmatpush1.msra.mxu0 %v2672
    %2687 = vmatprep.subr.mxu0 0.0
    %2688 = vmatpush1.msra.mxu0 %v2673
    %2689 = vmatprep.subr.mxu0 0.0
    %2690 = vmatpush1.msra.mxu0 %v2674
    %2691 = vmatprep.subr.mxu0 0.0
    %2692 = vmatpush1.msra.mxu0 %v2675
    %2693 = vmatprep.subr.mxu0 0.0
    %2694 = vmatpush1.msra.mxu0 0.0
    %2695 = vmatprep.subr.mxu0 0.0
    %2696 = vmatpush1.msra.mxu0 0.0
    %2697 = vmatprep.subr.mxu0 0.0
    %2698 = vmatpush1.msra.mxu0 0.0
    %2699 = vmatprep.subr.mxu0 0.0
    %2700 = vmatpush1.msra.mxu0 0.0
    %2701 = vmatprep.subr.mxu0 0.0
    %2702 = vmatpush1.msra.mxu0 0.0
    %2703 = vmatprep.subr.mxu0 0.0
    %2704 = vmatpush1.msra.mxu0 0.0
    %2705 = vmatprep.subr.mxu0 0.0
    %2706 = vmatpush1.msra.mxu0 0.0
    %2707 = vmatprep.subr.mxu0 0.0
    %2708 = vmatpush1.msra.mxu0 0.0
    %2709 = vmatprep.subr.mxu0 0.0
    %2710 = vmatpush1.msra.mxu0 0.0
    %2711 = vmatprep.subr.mxu0 0.0
    %2712 = vmatpush1.msra.mxu0 0.0
    %2713 = vmatprep.subr.mxu0 0.0
    %2714 = vmatpush1.msra.mxu0 0.0
    %2715 = vmatprep.subr.mxu0 0.0
    %2716 = vmatpush1.msra.mxu0 0.0
    %2717 = vmatprep.subr.mxu0 0.0
    %2718 = vmatpush1.msra.mxu0 0.0
    %2719 = vmatprep.subr.mxu0 0.0
    %2720 = vmatpush1.msra.mxu0 0.0
    %2721 = vmatprep.subr.mxu0 0.0
    %2722 = vmatpush1.msra.mxu0 0.0
    %2723 = vmatprep.subr.mxu0 0.0
    %2724 = vmatpush1.msra.mxu0 0.0
    %2725 = vmatprep.subr.mxu0 0.0
    %2726 = vmatpush1.msra.mxu0 0.0
    %2727 = vmatprep.subr.mxu0 0.0
    %2728 = vmatpush1.msra.mxu0 0.0
    %2729 = vmatprep.subr.mxu0 0.0
    %2730 = vmatpush1.msra.mxu0 0.0
    %2731 = vmatprep.subr.mxu0 0.0
    %2732 = vmatpush1.msra.mxu0 0.0
    %2733 = vmatprep.subr.mxu0 0.0
    %2734 = vmatpush1.msra.mxu0 0.0
    %2735 = vmatprep.subr.mxu0 0.0
    %2736 = vmatpush1.msra.mxu0 0.0
    %2737 = vmatprep.subr.mxu0 0.0
    %2738 = vmatpush1.msra.mxu0 0.0
    %2739 = vmatprep.subr.mxu0 0.0
    %2740 = vmatpush1.msra.mxu0 0.0
    %2741 = vmatprep.subr.mxu0 0.0
    %2742 = vmatpush1.msra.mxu0 0.0
    %2743 = vmatprep.subr.mxu0 0.0
    %2744 = vmatpush1.msra.mxu0 0.0
    %2745 = vmatprep.subr.mxu0 0.0
    %2746 = vmatpush1.msra.mxu0 0.0
    %2747 = vmatprep.subr.mxu0 0.0
    %2748 = vmatpush1.msra.mxu0 0.0
    %2749 = vmatprep.mubr.f32.mxu0 0.0
    %2750 = vmatmul.mubr.f32.gmra.mrb[0].mxu0 %v2683
    %v2751 = vpop.f32.mrb[0].mxu0
    %v2752 = vadd.f32 %v2681, %v2751
    %v2753 = vpop.f32.mrb[0].mxu0
    %2754 = vdwg.mxu0
    %2755 = vmax.xlane.f32.xlu0 %v2752
    %v2756 = vpop.xlane.xlu0 %2755
    %v2757 = vsub.f32 %v2752, %v2756
    %v2758 = vmul.f32 %v2757, 1.442695
    %v2759 = vpow.pop %v2758
    %2760 = vadd.xlane.f32.xlu0 %v2759
    %v2761 = vpop.xlane.xlu0 %2760
    %v2762 = vlog2.pop %v2761
    %v2763 = vmul.f32 %v2762, 0.6931472
    %v2764 = vsub.f32 %v2757, %v2763
    %2765 = vst [vmem:[%s15] sm:$0xff] %v2764
    %v2766 = vld [vmem:[%s10] sm:$0xff]
    %v2767 = vld [vmem:[%s10 + $0x8] sm:$0xff]
    %v2768 = vld [vmem:[%s10 + $0x10] sm:$0xff]
    %v2769 = vld [vmem:[%s10 + $0x18] sm:$0xff]
    %v2770 = vld [vmem:[%s11] sm:$0x1]
    %v2772 = vlaneseq
    %v2773 = vshrl.u32 %v2772, 7
    %v2774 = vsub.s32 0, %v2773
    %v2775 = vrot.slane %v2770, %v2774
    %2777 = vmatprep.subr.mxu0 0.0
    %2778 = vmatpush1.msra.mxu0 %v2766
    %2779 = vmatprep.subr.mxu0 0.0
    %2780 = vmatpush1.msra.mxu0 %v2767
    %2781 = vmatprep.subr.mxu0 0.0
    %2782 = vmatpush1.msra.mxu0 %v2768
    %2783 = vmatprep.subr.mxu0 0.0
    %2784 = vmatpush1.msra.mxu0 %v2769
    %2785 = vmatprep.subr.mxu0 0.0
    %2786 = vmatpush1.msra.mxu0 0.0
    %2787 = vmatprep.subr.mxu0 0.0
    %2788 = vmatpush1.msra.mxu0 0.0
    %2789 = vmatprep.subr.mxu0 0.0
    %2790 = vmatpush1.msra.mxu0 0.0
    %2791 = vmatprep.subr.mxu0 0.0
    %2792 = vmatpush1.msra.mxu0 0.0
    %2793 = vmatprep.subr.mxu0 0.0
    %2794 = vmatpush1.msra.mxu0 0.0
    %2795 = vmatprep.subr.mxu0 0.0
    %2796 = vmatpush1.msra.mxu0 0.0
    %2797 = vmatprep.subr.mxu0 0.0
    %2798 = vmatpush1.msra.mxu0 0.0
    %2799 = vmatprep.subr.mxu0 0.0
    %2800 = vmatpush1.msra.mxu0 0.0
    %2801 = vmatprep.subr.mxu0 0.0
    %2802 = vmatpush1.msra.mxu0 0.0
    %2803 = vmatprep.subr.mxu0 0.0
    %2804 = vmatpush1.msra.mxu0 0.0
    %2805 = vmatprep.subr.mxu0 0.0
    %2806 = vmatpush1.msra.mxu0 0.0
    %2807 = vmatprep.subr.mxu0 0.0
    %2808 = vmatpush1.msra.mxu0 0.0
    %2809 = vmatprep.subr.mxu0 0.0
    %2810 = vmatpush1.msra.mxu0 0.0
    %2811 = vmatprep.subr.mxu0 0.0
    %2812 = vmatpush1.msra.mxu0 0.0
    %2813 = vmatprep.subr.mxu0 0.0
    %2814 = vmatpush1.msra.mxu0 0.0
    %2815 = vmatprep.subr.mxu0 0.0
    %2816 = vmatpush1.msra.mxu0 0.0
    %2817 = vmatprep.subr.mxu0 0.0
    %2818 = vmatpush1.msra.mxu0 0.0
    %2819 = vmatprep.subr.mxu0 0.0
    %2820 = vmatpush1.msra.mxu0 0.0
    %2821 = vmatprep.subr.mxu0 0.0
    %2822 = vmatpush1.msra.mxu0 0.0
    %2823 = vmatprep.subr.mxu0 0.0
    %2824 = vmatpush1.msra.mxu0 0.0
    %2825 = vmatprep.subr.mxu0 0.0
    %2826 = vmatpush1.msra.mxu0 0.0
    %2827 = vmatprep.subr.mxu0 0.0
    %2828 = vmatpush1.msra.mxu0 0.0
    %2829 = vmatprep.subr.mxu0 0.0
    %2830 = vmatpush1.msra.mxu0 0.0
    %2831 = vmatprep.subr.mxu0 0.0
    %2832 = vmatpush1.msra.mxu0 0.0
    %2833 = vmatprep.subr.mxu0 0.0
    %2834 = vmatpush1.msra.mxu0 0.0
    %2835 = vmatprep.subr.mxu0 0.0
    %2836 = vmatpush1.msra.mxu0 0.0
    %2837 = vmatprep.subr.mxu0 0.0
    %2838 = vmatpush1.msra.mxu0 0.0
    %2839 = vmatprep.subr.mxu0 0.0
    %2840 = vmatpush1.msra.mxu0 0.0
    %2841 = vmatprep.mubr.f32.mxu0 0.0
    %2842 = vmatmul.mubr.f32.gmra.mrb[0].mxu0 %v2683
    %v2843 = vpop.f32.mrb[0].mxu0
    %v2844 = vadd.f32 %v2775, %v2843
    %v2845 = vpop.f32.mrb[0].mxu0
    %2846 = vdwg.mxu0
    %2847 = vst [vmem:[%s16] sm:$0xff] %v2844
    // Predicated region
    $region50: #{_lstm_jump_forward_impl.10} parent=1 // pred_check
      _
    $region51: #{_lstm_jump_forward_impl.10} parent=1 // pred_check_branch
      %2849 = sbr.rel (0) target = $region53
    $region52: #{_lstm_jump_forward_impl.10} parent=1 // pred_region
      _
    $region53: #{_lstm_jump_forward_impl.10} parent=1 // pred_fallthru
      _
    // Predicated region
    $region54: #{_lstm_jump_forward_impl.10} parent=1 // pred_check
      _
    $region55: #{_lstm_jump_forward_impl.10} parent=1 // pred_check_branch
      %2851 = sbr.rel (0) target = $region57
    $region56: #{_lstm_jump_forward_impl.10} parent=1 // pred_region
      %s2853 = ssub.s32 128, 128
      %2854 = vsyncadd [#allocation3], %s2853
      %s2856 = sshll.u32 [#allocation2], 4
      %s2857 = int_to_ptr.vmem [resolvable:$true] %s2856
      %2859 = dma.vmem_to_hbm [thread:$0]  %s2857, 128, %s13, [#allocation3]
    $region57: #{_lstm_jump_forward_impl.10} parent=1 // pred_fallthru
      _
    // Predicated region
    $region58: #{_lstm_jump_forward_impl.10} parent=1 // pred_check
      _
    $region59: #{_lstm_jump_forward_impl.10} parent=1 // pred_check_branch
      %2861 = sbr.rel (0) target = $region61
    $region60: #{_lstm_jump_forward_impl.10} parent=1 // pred_region
      _
    $region61: #{_lstm_jump_forward_impl.10} parent=1 // pred_fallthru
      _
    // Predicated region
    $region62: #{_lstm_jump_forward_impl.10} parent=1 // pred_check
      _
    $region63: #{_lstm_jump_forward_impl.10} parent=1 // pred_check_branch
      %2863 = sbr.rel (0) target = $region65
    $region64: #{_lstm_jump_forward_impl.10} parent=1 // pred_region
      _
    $region65: #{_lstm_jump_forward_impl.10} parent=1 // pred_fallthru
      _
    // Predicated region
    $region66: #{_lstm_jump_forward_impl.10} parent=1 // pred_check
      _
    $region67: #{_lstm_jump_forward_impl.10} parent=1 // pred_check_branch
      %2865 = sbr.rel (0) target = $region69
    $region68: #{_lstm_jump_forward_impl.10} parent=1 // pred_region
      _
    $region69: #{_lstm_jump_forward_impl.10} parent=1 // pred_fallthru
      _
    // Predicated region
    $region70: #{_lstm_jump_forward_impl.10} parent=1 // pred_check
      _
    $region71: #{_lstm_jump_forward_impl.10} parent=1 // pred_check_branch
      %2867 = sbr.rel (0) target = $region73
    $region72: #{_lstm_jump_forward_impl.10} parent=1 // pred_region
      _
    $region73: #{_lstm_jump_forward_impl.10} parent=1 // pred_fallthru
      _
    // Predicated region
    $region74: #{_lstm_jump_forward_impl.10} parent=1 // pred_check
      _
    $region75: #{_lstm_jump_forward_impl.10} parent=1 // pred_check_branch
      %2869 = sbr.rel (0) target = $region77
    $region76: #{_lstm_jump_forward_impl.10} parent=1 // pred_region
      %2870 = dma.done [#allocation3], 128
    $region77: #{_lstm_jump_forward_impl.10} parent=1 // pred_fallthru
      _
    // Predicated region
    $region78: #{_lstm_jump_forward_impl.10} parent=1 // pred_check
      _
    $region79: #{_lstm_jump_forward_impl.10} parent=1 // pred_check_branch
      %2872 = sbr.rel (0) target = $region81
    $region80: #{_lstm_jump_forward_impl.10} parent=1 // pred_region
      _
    $region81: #{_lstm_jump_forward_impl.10} parent=1 // pred_fallthru
      _
    // Predicated region
    $region82: #{_lstm_jump_forward_impl.10} parent=1 // pred_check
      _
    $region83: #{_lstm_jump_forward_impl.10} parent=1 // pred_check_branch
      %2874 = sbr.rel (0) target = $region85
    $region84: #{_lstm_jump_forward_impl.10} parent=1 // pred_region
      _
    $region85: #{_lstm_jump_forward_impl.10} parent=1 // pred_fallthru
      _
    // Predicated region
    $region86: #{_lstm_jump_forward_impl.10} parent=1 // pred_check
      _
    $region87: #{_lstm_jump_forward_impl.10} parent=1 // pred_check_branch
      %2876 = sbr.rel (0) target = $region89
    $region88: #{_lstm_jump_forward_impl.10} parent=1 // pred_region
      _
    $region89: #{_lstm_jump_forward_impl.10} parent=1 // pred_fallthru
      _
    %2877 = vsyncpa [#allocation3], 1

</llo_original>
